<compile_context>
chip_gen: v6e
topology: v6e:2x2x1
jax: 0.10.0
libtpu: 0.0.40
codegen_flags: <defaults>
</compile_context>

<pallas_src>
import math
import functools

import jax
import jax.numpy as jnp
from jax import lax
from jax.experimental import pallas as pl
from jax.experimental.pallas import tpu as pltpu


# ---------------------------------------------------------------------------
# Fused kernel: full-attention branch, Be events per grid step.
# ---------------------------------------------------------------------------
def swa_kernel(n_heads, x_ref, wqkv_ref, bqkv_ref, wo_ref, bo_ref, out_ref,
               qkv_ref, o_ref):
    """
    x_ref    : [Be, N, D]  bf16   per-step event block
    wqkv_ref : [D, 3D]     bf16   Q columns pre-scaled by 1/sqrt(head_dim)
    bqkv_ref : [1, 3D]     f32
    wo_ref   : [D, D]      bf16
    bo_ref   : [1, D]      f32
    out_ref  : [Be, N, D]  f32
    qkv_ref  : [Be*N, 3D]  bf16   VMEM scratch (projected Q|K|V)
    o_ref    : [Be*N, D]   bf16   VMEM scratch (per-head attention outputs)
    """
    Be, N, D = x_ref.shape
    hd = D // n_heads
    wdt = wqkv_ref.dtype                                   # bf16

    # ---- fused Q|K|V projection over all Be*N rows: one [Be*N,D]x[D,3D] ----
    x2 = x_ref[...].reshape(Be * N, D)                     # leading-dim merge (no relayout)
    qkv = jnp.dot(x2, wqkv_ref[...], preferred_element_type=jnp.float32)
    qkv_ref[...] = (qkv + bqkv_ref[...]).astype(wdt)       # single VMEM copy, bf16

    # ---- per-event, per-head attention (static, fully unrolled loops) ------
    for e in range(Be):
        r0 = e * N
        for h in range(n_heads):
            q = qkv_ref[r0:r0 + N, h * hd:(h + 1) * hd]                    # [N, hd]
            k = qkv_ref[r0:r0 + N, D + h * hd:D + (h + 1) * hd]            # [N, hd]
            v = qkv_ref[r0:r0 + N, 2 * D + h * hd:2 * D + (h + 1) * hd]    # [N, hd]

            # scores (scale already folded into Q weights); f32 accumulation.
            s = lax.dot_general(q, k, (((1,), (1,)), ((), ())),
                                preferred_element_type=jnp.float32)        # [N, N]
            # numerically-stable f32 softmax (matches F.softmax); EUP recip.
            s = s - jnp.max(s, axis=-1, keepdims=True)
            ex = jnp.exp(s)
            p = ex * pl.reciprocal(jnp.sum(ex, axis=-1, keepdims=True), approx=True)

            o_h = jnp.dot(p.astype(wdt), v, preferred_element_type=jnp.float32)
            # store at lane offset h*hd -> no lane-concat, enables one K=D
            # output projection after the head loop.
            o_ref[r0:r0 + N, h * hd:(h + 1) * hd] = o_h.astype(wdt)

    # ---- one K=D output projection over all Be*N rows -----------------------
    out = jnp.dot(o_ref[...], wo_ref[...], preferred_element_type=jnp.float32)
    out_ref[...] = (out + bo_ref[...]).reshape(Be, N, D)


# ---------------------------------------------------------------------------
# Wrappers
# ---------------------------------------------------------------------------
def sliding_window_attention_batched(params, x, phi_indices, *, n_heads,
                                     window_size=1024, events_per_block=4):
    """x: [B, N, d_model] (B independent events) -> [B, N, d_model] (f32)."""
    del phi_indices  # unused on the N <= window_size (full attention) branch
    B, N, D = x.shape
    if N > window_size:
        # TODO(synk): N > window_size phi-ordered sliding-window branch not implemented.
        raise NotImplementedError(
            "only the full-attention (N <= window_size) branch is implemented")

    Be = max(1, min(events_per_block, B)) if B < events_per_block else events_per_block
    # pad B up to a multiple of Be (padded events are computed and discarded).
    Bp = ((B + Be - 1) // Be) * Be
    x_b = x.astype(jnp.bfloat16)                     # bf16 input DMA (half traffic)
    if Bp != B:
        x_b = jnp.concatenate(
            [x_b, jnp.zeros((Bp - B, N, D), jnp.bfloat16)], axis=0)

    kernel = functools.partial(swa_kernel, n_heads)

    def rep(arr):
        # Whole weight/bias resident in VMEM; same block every grid step
        # -> DMA'd once, no re-fetch across event blocks.
        nd = arr.ndim
        return pl.BlockSpec(arr.shape, lambda b, _nd=nd: (0,) * _nd)

    out = pl.pallas_call(
        kernel,
        out_shape=jax.ShapeDtypeStruct((Bp, N, D), jnp.float32),
        grid=(Bp // Be,),
        in_specs=[
            pl.BlockSpec((Be, N, D), lambda b: (b, 0, 0)),   # x (Be events / step)
            rep(params["wqkv"]),
            rep(params["bqkv"]),
            rep(params["wo"]),
            rep(params["bo"]),
        ],
        out_specs=pl.BlockSpec((Be, N, D), lambda b: (b, 0, 0)),
        scratch_shapes=[
            pltpu.VMEM((Be * N, 3 * D), jnp.bfloat16),       # projected Q|K|V
            pltpu.VMEM((Be * N, D), jnp.bfloat16),           # per-head outputs
        ],
        compiler_params=pltpu.CompilerParams(
            dimension_semantics=("parallel",),               # events across cores
            vmem_limit_bytes=32 * 1024 * 1024),              # explicit (v7x-safe) budget
    )(x_b, params["wqkv"], params["bqkv"], params["wo"], params["bo"])

    return out[:B]


def sliding_window_attention(params, x, phi_indices, *, n_heads, window_size=1024):
    """Single event, matching the PyTorch module signature: x [N, d_model]."""
    out = sliding_window_attention_batched(params, x[None], phi_indices[None],
                                           n_heads=n_heads,
                                           window_size=window_size)
    return out[0]


# ---------------------------------------------------------------------------
# Parameters (PyTorch-style f32 master params + packed bf16 kernel params)
# ---------------------------------------------------------------------------
def init_params_f32(key, d_model):
    keys = jax.random.split(key, 8)

    def lin(kw, kb, in_d, out_d):
        w = jax.random.normal(kw, (in_d, out_d), jnp.float32) / math.sqrt(in_d)
        b = jax.random.normal(kb, (1, out_d), jnp.float32) * 0.01
        return w, b

    p = {}
    p["wq"], p["bq"] = lin(keys[0], keys[1], d_model, d_model)
    p["wk"], p["bk"] = lin(keys[2], keys[3], d_model, d_model)
    p["wv"], p["bv"] = lin(keys[4], keys[5], d_model, d_model)
    p["wo"], p["bo"] = lin(keys[6], keys[7], d_model, d_model)
    return p


def pack_params(p, n_heads, weight_dtype=jnp.bfloat16):
    """Pre-concatenate Q|K|V weights (bf16) and fold 1/sqrt(hd) into the Q columns."""
    d_model = p["wq"].shape[0]
    scale = 1.0 / math.sqrt(d_model // n_heads)
    wqkv = jnp.concatenate([p["wq"] * scale, p["wk"], p["wv"]], axis=1)
    bqkv = jnp.concatenate([p["bq"] * scale, p["bk"], p["bv"]], axis=1)
    return {
        "wqkv": wqkv.astype(weight_dtype),
        "bqkv": bqkv,                                 # f32 biases
        "wo": p["wo"].astype(weight_dtype),
        "bo": p["bo"],
    }


# ---------------------------------------------------------------------------
# Pure-JAX f32 reference (PyTorch semantics) for correctness checking
# ---------------------------------------------------------------------------
def reference_forward(p, x, n_heads):
    N, D = x.shape
    hd = D // n_heads
    q = (x @ p["wq"] + p["bq"]).reshape(N, n_heads, hd)
    k = (x @ p["wk"] + p["bk"]).reshape(N, n_heads, hd)
    v = (x @ p["wv"] + p["bv"]).reshape(N, n_heads, hd)
    s = jnp.einsum("nhd,mhd->nhm", q, k) / math.sqrt(hd)
    w = jax.nn.softmax(s, axis=-1)
    o = jnp.einsum("nhm,mhd->nhd", w, v).reshape(N, D)
    return o @ p["wo"] + p["bo"]


if __name__ == "__main__":
    # Small shapes consistent with the module (full-attention branch).
    N, d_model, n_heads, window_size = 64, 128, 4, 1024
    B = 8           # independent events; Be=4 events per grid step -> grid=(2,)

    key = jax.random.PRNGKey(0)
    kx, kphi, kp = jax.random.split(key, 3)

    p_f32 = init_params_f32(kp, d_model)
    params = pack_params(p_f32, n_heads)

    x = jax.random.normal(kx, (B, N, d_model), jnp.float32)
    phi = jax.random.uniform(kphi, (B, N), jnp.float32, -math.pi, math.pi)
    phi_indices = jnp.argsort(phi, axis=-1)   # unused on this branch (as in PyTorch)

    # Batched call (exercises the multi-event grid blocks + parallel axis).
    out = sliding_window_attention_batched(params, x, phi_indices,
                                           n_heads=n_heads,
                                           window_size=window_size,
                                           events_per_block=4)
    out = jax.block_until_ready(out)
    assert out.shape == (B, N, d_model)

    # bf16 activations/weights with f32 accumulation (+ approx reciprocal in
    # the softmax denominator) -> compare vs f32 reference at bf16 tolerance.
    for b in range(B):
        ref = reference_forward(p_f32, x[b], n_heads)
        diff = float(jnp.max(jnp.abs(out[b] - ref)))
        assert jnp.allclose(out[b], ref, rtol=2e-2, atol=2e-2), (
            f"event {b}: max abs diff {diff}")

    # Single-event API (matches the PyTorch module signature); exercises the
    # batch-padding path (B=1 padded up to one Be=4 block, padding discarded).
    out1 = sliding_window_attention(params, x[0], phi_indices[0],
                                    n_heads=n_heads, window_size=window_size)
    out1 = jax.block_until_ready(out1)
    assert out1.shape == (N, d_model)
    assert jnp.allclose(out1, out[0], rtol=1e-5, atol=1e-5)

    print("KERNEL_OK")
</pallas_src>

<mosaic_0001>
module attributes {stable_mosaic.version = 11 : i64} {
  func.func @swa_kernel(%arg0: i32, %arg1: memref<4x64x128xbf16, #tpu.memory_space<vmem>>, %arg2: memref<128x384xbf16, #tpu.memory_space<vmem>>, %arg3: memref<1x384xf32, #tpu.memory_space<vmem>>, %arg4: memref<128x128xbf16, #tpu.memory_space<vmem>>, %arg5: memref<1x128xf32, #tpu.memory_space<vmem>>, %arg6: memref<4x64x128xf32, #tpu.memory_space<vmem>>, %arg7: memref<256x384xbf16, #tpu.memory_space<vmem>>, %arg8: memref<256x128xbf16, #tpu.memory_space<vmem>>) attributes {dimension_semantics = [#tpu.dimension_semantics<parallel>], iteration_bounds = array<i64: 2>, scalar_prefetch = 0 : i64, scratch_operands = 2 : i64, tpu.core_type = #tpu.core_type<tc>, window_params = [{transform_indices = @transform_0, window_bounds = array<i64: 4, 64, 128>}, {pipeline_mode = #tpu.pipeline_mode<synchronous>, transform_indices = @transform_1, window_bounds = array<i64: 128, 384>}, {pipeline_mode = #tpu.pipeline_mode<synchronous>, transform_indices = @transform_2, window_bounds = array<i64: 1, 384>}, {pipeline_mode = #tpu.pipeline_mode<synchronous>, transform_indices = @transform_3, window_bounds = array<i64: 128, 128>}, {pipeline_mode = #tpu.pipeline_mode<synchronous>, transform_indices = @transform_4, window_bounds = array<i64: 1, 128>}, {transform_indices = @transform_5, window_bounds = array<i64: 4, 64, 128>}]} {
    %c0 = arith.constant 0 : index
    %c0_0 = arith.constant 0 : index
    %c0_1 = arith.constant 0 : index
    %0 = vector.load %arg1[%c0, %c0_0, %c0_1] : memref<4x64x128xbf16, #tpu.memory_space<vmem>>, vector<4x64x128xbf16>
    %1 = vector.shape_cast %0 : vector<4x64x128xbf16> to vector<256x128xbf16>
    %c0_2 = arith.constant 0 : index
    %c0_3 = arith.constant 0 : index
    %2 = vector.load %arg2[%c0_2, %c0_3] : memref<128x384xbf16, #tpu.memory_space<vmem>>, vector<128x384xbf16>
    %cst = arith.constant dense<0.000000e+00> : vector<256x384xf32>
    %3 = tpu.matmul %1, %2, %cst {dimension_numbers = #tpu.dot_dimension_numbers<[1], [0], [0], [1], [0, 0, 1, 1], [], []>} : vector<256x128xbf16>, vector<128x384xbf16>, vector<256x384xf32> -> vector<256x384xf32>
    %c0_4 = arith.constant 0 : index
    %c0_5 = arith.constant 0 : index
    %4 = vector.load %arg3[%c0_4, %c0_5] : memref<1x384xf32, #tpu.memory_space<vmem>>, vector<1x384xf32>
    %5 = vector.broadcast %4 : vector<1x384xf32> to vector<256x384xf32>
    %6 = arith.addf %3, %5 : vector<256x384xf32>
    %7 = arith.truncf %6 : vector<256x384xf32> to vector<256x384xbf16>
    %c0_6 = arith.constant 0 : index
    %c0_7 = arith.constant 0 : index
    %8 = vector.load %arg7[%c0_6, %c0_7] : memref<256x384xbf16, #tpu.memory_space<vmem>>, vector<256x384xbf16>
    tpu.vector_store %arg7[%c0_6, %c0_7], %7 {strides = array<i32>} : memref<256x384xbf16, #tpu.memory_space<vmem>>, vector<256x384xbf16>,
    %c0_8 = arith.constant 0 : index
    %c0_9 = arith.constant 0 : index
    %9 = vector.load %arg7[%c0_8, %c0_9] : memref<256x384xbf16, #tpu.memory_space<vmem>>, vector<64x32xbf16>
    %c0_10 = arith.constant 0 : index
    %c128 = arith.constant 128 : index
    %10 = vector.load %arg7[%c0_10, %c128] : memref<256x384xbf16, #tpu.memory_space<vmem>>, vector<64x32xbf16>
    %c0_11 = arith.constant 0 : index
    %c256 = arith.constant 256 : index
    %11 = vector.load %arg7[%c0_11, %c256] : memref<256x384xbf16, #tpu.memory_space<vmem>>, vector<64x32xbf16>
    %cst_12 = arith.constant dense<0.000000e+00> : vector<64x64xf32>
    %12 = tpu.matmul %9, %10, %cst_12 {dimension_numbers = #tpu.dot_dimension_numbers<[1], [1], [0], [0], [0, 0, 1, 0], [], []>} : vector<64x32xbf16>, vector<64x32xbf16>, vector<64x64xf32> -> vector<64x64xf32>
    %cst_13 = arith.constant dense<0xFF800000> : vector<64xf32>
    %13 = vector.multi_reduction <maximumf>, %12, %cst_13 [1] : vector<64x64xf32> to vector<64xf32>
    %14 = vector.shape_cast %13 : vector<64xf32> to vector<64x1xf32>
    %15 = vector.broadcast %14 : vector<64x1xf32> to vector<64x64xf32>
    %16 = arith.subf %12, %15 : vector<64x64xf32>
    %17 = math.exp %16 : vector<64x64xf32>
    %cst_14 = arith.constant dense<0.000000e+00> : vector<64xf32>
    %18 = vector.multi_reduction <add>, %17, %cst_14 [1] : vector<64x64xf32> to vector<64xf32>
    %19 = vector.shape_cast %18 : vector<64xf32> to vector<64x1xf32>
    %20 = tpu.reciprocal %19 {approx = true} : vector<64x1xf32> -> vector<64x1xf32>
    %21 = vector.broadcast %20 : vector<64x1xf32> to vector<64x64xf32>
    %22 = arith.mulf %17, %21 : vector<64x64xf32>
    %23 = arith.truncf %22 : vector<64x64xf32> to vector<64x64xbf16>
    %cst_15 = arith.constant dense<0.000000e+00> : vector<64x32xf32>
    %24 = tpu.matmul %23, %11, %cst_15 {dimension_numbers = #tpu.dot_dimension_numbers<[1], [0], [0], [1], [0, 0, 1, 1], [], []>} : vector<64x64xbf16>, vector<64x32xbf16>, vector<64x32xf32> -> vector<64x32xf32>
    %25 = arith.truncf %24 : vector<64x32xf32> to vector<64x32xbf16>
    %c0_16 = arith.constant 0 : index
    %c0_17 = arith.constant 0 : index
    %26 = vector.load %arg8[%c0_16, %c0_17] : memref<256x128xbf16, #tpu.memory_space<vmem>>, vector<64x32xbf16>
    tpu.vector_store %arg8[%c0_16, %c0_17], %25 {strides = array<i32>} : memref<256x128xbf16, #tpu.memory_space<vmem>>, vector<64x32xbf16>,
    %c0_18 = arith.constant 0 : index
    %c32 = arith.constant 32 : index
    %27 = vector.load %arg7[%c0_18, %c32] : memref<256x384xbf16, #tpu.memory_space<vmem>>, vector<64x32xbf16>
    %c0_19 = arith.constant 0 : index
    %c160 = arith.constant 160 : index
    %28 = vector.load %arg7[%c0_19, %c160] : memref<256x384xbf16, #tpu.memory_space<vmem>>, vector<64x32xbf16>
    %c0_20 = arith.constant 0 : index
    %c288 = arith.constant 288 : index
    %29 = vector.load %arg7[%c0_20, %c288] : memref<256x384xbf16, #tpu.memory_space<vmem>>, vector<64x32xbf16>
    %cst_21 = arith.constant dense<0.000000e+00> : vector<64x64xf32>
    %30 = tpu.matmul %27, %28, %cst_21 {dimension_numbers = #tpu.dot_dimension_numbers<[1], [1], [0], [0], [0, 0, 1, 0], [], []>} : vector<64x32xbf16>, vector<64x32xbf16>, vector<64x64xf32> -> vector<64x64xf32>
    %cst_22 = arith.constant dense<0xFF800000> : vector<64xf32>
    %31 = vector.multi_reduction <maximumf>, %30, %cst_22 [1] : vector<64x64xf32> to vector<64xf32>
    %32 = vector.shape_cast %31 : vector<64xf32> to vector<64x1xf32>
    %33 = vector.broadcast %32 : vector<64x1xf32> to vector<64x64xf32>
    %34 = arith.subf %30, %33 : vector<64x64xf32>
    %35 = math.exp %34 : vector<64x64xf32>
    %cst_23 = arith.constant dense<0.000000e+00> : vector<64xf32>
    %36 = vector.multi_reduction <add>, %35, %cst_23 [1] : vector<64x64xf32> to vector<64xf32>
    %37 = vector.shape_cast %36 : vector<64xf32> to vector<64x1xf32>
    %38 = tpu.reciprocal %37 {approx = true} : vector<64x1xf32> -> vector<64x1xf32>
    %39 = vector.broadcast %38 : vector<64x1xf32> to vector<64x64xf32>
    %40 = arith.mulf %35, %39 : vector<64x64xf32>
    %41 = arith.truncf %40 : vector<64x64xf32> to vector<64x64xbf16>
    %cst_24 = arith.constant dense<0.000000e+00> : vector<64x32xf32>
    %42 = tpu.matmul %41, %29, %cst_24 {dimension_numbers = #tpu.dot_dimension_numbers<[1], [0], [0], [1], [0, 0, 1, 1], [], []>} : vector<64x64xbf16>, vector<64x32xbf16>, vector<64x32xf32> -> vector<64x32xf32>
    %43 = arith.truncf %42 : vector<64x32xf32> to vector<64x32xbf16>
    %c0_25 = arith.constant 0 : index
    %c32_26 = arith.constant 32 : index
    %44 = vector.load %arg8[%c0_25, %c32_26] : memref<256x128xbf16, #tpu.memory_space<vmem>>, vector<64x32xbf16>
    tpu.vector_store %arg8[%c0_25, %c32_26], %43 {strides = array<i32>} : memref<256x128xbf16, #tpu.memory_space<vmem>>, vector<64x32xbf16>,
    %c0_27 = arith.constant 0 : index
    %c64 = arith.constant 64 : index
    %45 = vector.load %arg7[%c0_27, %c64] : memref<256x384xbf16, #tpu.memory_space<vmem>>, vector<64x32xbf16>
    %c0_28 = arith.constant 0 : index
    %c192 = arith.constant 192 : index
    %46 = vector.load %arg7[%c0_28, %c192] : memref<256x384xbf16, #tpu.memory_space<vmem>>, vector<64x32xbf16>
    %c0_29 = arith.constant 0 : index
    %c320 = arith.constant 320 : index
    %47 = vector.load %arg7[%c0_29, %c320] : memref<256x384xbf16, #tpu.memory_space<vmem>>, vector<64x32xbf16>
    %cst_30 = arith.constant dense<0.000000e+00> : vector<64x64xf32>
    %48 = tpu.matmul %45, %46, %cst_30 {dimension_numbers = #tpu.dot_dimension_numbers<[1], [1], [0], [0], [0, 0, 1, 0], [], []>} : vector<64x32xbf16>, vector<64x32xbf16>, vector<64x64xf32> -> vector<64x64xf32>
    %cst_31 = arith.constant dense<0xFF800000> : vector<64xf32>
    %49 = vector.multi_reduction <maximumf>, %48, %cst_31 [1] : vector<64x64xf32> to vector<64xf32>
    %50 = vector.shape_cast %49 : vector<64xf32> to vector<64x1xf32>
    %51 = vector.broadcast %50 : vector<64x1xf32> to vector<64x64xf32>
    %52 = arith.subf %48, %51 : vector<64x64xf32>
    %53 = math.exp %52 : vector<64x64xf32>
    %cst_32 = arith.constant dense<0.000000e+00> : vector<64xf32>
    %54 = vector.multi_reduction <add>, %53, %cst_32 [1] : vector<64x64xf32> to vector<64xf32>
    %55 = vector.shape_cast %54 : vector<64xf32> to vector<64x1xf32>
    %56 = tpu.reciprocal %55 {approx = true} : vector<64x1xf32> -> vector<64x1xf32>
    %57 = vector.broadcast %56 : vector<64x1xf32> to vector<64x64xf32>
    %58 = arith.mulf %53, %57 : vector<64x64xf32>
    %59 = arith.truncf %58 : vector<64x64xf32> to vector<64x64xbf16>
    %cst_33 = arith.constant dense<0.000000e+00> : vector<64x32xf32>
    %60 = tpu.matmul %59, %47, %cst_33 {dimension_numbers = #tpu.dot_dimension_numbers<[1], [0], [0], [1], [0, 0, 1, 1], [], []>} : vector<64x64xbf16>, vector<64x32xbf16>, vector<64x32xf32> -> vector<64x32xf32>
    %61 = arith.truncf %60 : vector<64x32xf32> to vector<64x32xbf16>
    %c0_34 = arith.constant 0 : index
    %c64_35 = arith.constant 64 : index
    %62 = vector.load %arg8[%c0_34, %c64_35] : memref<256x128xbf16, #tpu.memory_space<vmem>>, vector<64x32xbf16>
    tpu.vector_store %arg8[%c0_34, %c64_35], %61 {strides = array<i32>} : memref<256x128xbf16, #tpu.memory_space<vmem>>, vector<64x32xbf16>,
    %c0_36 = arith.constant 0 : index
    %c96 = arith.constant 96 : index
    %63 = vector.load %arg7[%c0_36, %c96] : memref<256x384xbf16, #tpu.memory_space<vmem>>, vector<64x32xbf16>
    %c0_37 = arith.constant 0 : index
    %c224 = arith.constant 224 : index
    %64 = vector.load %arg7[%c0_37, %c224] : memref<256x384xbf16, #tpu.memory_space<vmem>>, vector<64x32xbf16>
    %c0_38 = arith.constant 0 : index
    %c352 = arith.constant 352 : index
    %65 = vector.load %arg7[%c0_38, %c352] : memref<256x384xbf16, #tpu.memory_space<vmem>>, vector<64x32xbf16>
    %cst_39 = arith.constant dense<0.000000e+00> : vector<64x64xf32>
    %66 = tpu.matmul %63, %64, %cst_39 {dimension_numbers = #tpu.dot_dimension_numbers<[1], [1], [0], [0], [0, 0, 1, 0], [], []>} : vector<64x32xbf16>, vector<64x32xbf16>, vector<64x64xf32> -> vector<64x64xf32>
    %cst_40 = arith.constant dense<0xFF800000> : vector<64xf32>
    %67 = vector.multi_reduction <maximumf>, %66, %cst_40 [1] : vector<64x64xf32> to vector<64xf32>
    %68 = vector.shape_cast %67 : vector<64xf32> to vector<64x1xf32>
    %69 = vector.broadcast %68 : vector<64x1xf32> to vector<64x64xf32>
    %70 = arith.subf %66, %69 : vector<64x64xf32>
    %71 = math.exp %70 : vector<64x64xf32>
    %cst_41 = arith.constant dense<0.000000e+00> : vector<64xf32>
    %72 = vector.multi_reduction <add>, %71, %cst_41 [1] : vector<64x64xf32> to vector<64xf32>
    %73 = vector.shape_cast %72 : vector<64xf32> to vector<64x1xf32>
    %74 = tpu.reciprocal %73 {approx = true} : vector<64x1xf32> -> vector<64x1xf32>
    %75 = vector.broadcast %74 : vector<64x1xf32> to vector<64x64xf32>
    %76 = arith.mulf %71, %75 : vector<64x64xf32>
    %77 = arith.truncf %76 : vector<64x64xf32> to vector<64x64xbf16>
    %cst_42 = arith.constant dense<0.000000e+00> : vector<64x32xf32>
    %78 = tpu.matmul %77, %65, %cst_42 {dimension_numbers = #tpu.dot_dimension_numbers<[1], [0], [0], [1], [0, 0, 1, 1], [], []>} : vector<64x64xbf16>, vector<64x32xbf16>, vector<64x32xf32> -> vector<64x32xf32>
    %79 = arith.truncf %78 : vector<64x32xf32> to vector<64x32xbf16>
    %c0_43 = arith.constant 0 : index
    %c96_44 = arith.constant 96 : index
    %80 = vector.load %arg8[%c0_43, %c96_44] : memref<256x128xbf16, #tpu.memory_space<vmem>>, vector<64x32xbf16>
    tpu.vector_store %arg8[%c0_43, %c96_44], %79 {strides = array<i32>} : memref<256x128xbf16, #tpu.memory_space<vmem>>, vector<64x32xbf16>,
    %c64_45 = arith.constant 64 : index
    %c0_46 = arith.constant 0 : index
    %81 = vector.load %arg7[%c64_45, %c0_46] : memref<256x384xbf16, #tpu.memory_space<vmem>>, vector<64x32xbf16>
    %c64_47 = arith.constant 64 : index
    %c128_48 = arith.constant 128 : index
    %82 = vector.load %arg7[%c64_47, %c128_48] : memref<256x384xbf16, #tpu.memory_space<vmem>>, vector<64x32xbf16>
    %c64_49 = arith.constant 64 : index
    %c256_50 = arith.constant 256 : index
    %83 = vector.load %arg7[%c64_49, %c256_50] : memref<256x384xbf16, #tpu.memory_space<vmem>>, vector<64x32xbf16>
    %cst_51 = arith.constant dense<0.000000e+00> : vector<64x64xf32>
    %84 = tpu.matmul %81, %82, %cst_51 {dimension_numbers = #tpu.dot_dimension_numbers<[1], [1], [0], [0], [0, 0, 1, 0], [], []>} : vector<64x32xbf16>, vector<64x32xbf16>, vector<64x64xf32> -> vector<64x64xf32>
    %cst_52 = arith.constant dense<0xFF800000> : vector<64xf32>
    %85 = vector.multi_reduction <maximumf>, %84, %cst_52 [1] : vector<64x64xf32> to vector<64xf32>
    %86 = vector.shape_cast %85 : vector<64xf32> to vector<64x1xf32>
    %87 = vector.broadcast %86 : vector<64x1xf32> to vector<64x64xf32>
    %88 = arith.subf %84, %87 : vector<64x64xf32>
    %89 = math.exp %88 : vector<64x64xf32>
    %cst_53 = arith.constant dense<0.000000e+00> : vector<64xf32>
    %90 = vector.multi_reduction <add>, %89, %cst_53 [1] : vector<64x64xf32> to vector<64xf32>
    %91 = vector.shape_cast %90 : vector<64xf32> to vector<64x1xf32>
    %92 = tpu.reciprocal %91 {approx = true} : vector<64x1xf32> -> vector<64x1xf32>
    %93 = vector.broadcast %92 : vector<64x1xf32> to vector<64x64xf32>
    %94 = arith.mulf %89, %93 : vector<64x64xf32>
    %95 = arith.truncf %94 : vector<64x64xf32> to vector<64x64xbf16>
    %cst_54 = arith.constant dense<0.000000e+00> : vector<64x32xf32>
    %96 = tpu.matmul %95, %83, %cst_54 {dimension_numbers = #tpu.dot_dimension_numbers<[1], [0], [0], [1], [0, 0, 1, 1], [], []>} : vector<64x64xbf16>, vector<64x32xbf16>, vector<64x32xf32> -> vector<64x32xf32>
    %97 = arith.truncf %96 : vector<64x32xf32> to vector<64x32xbf16>
    %c64_55 = arith.constant 64 : index
    %c0_56 = arith.constant 0 : index
    %98 = vector.load %arg8[%c64_55, %c0_56] : memref<256x128xbf16, #tpu.memory_space<vmem>>, vector<64x32xbf16>
    tpu.vector_store %arg8[%c64_55, %c0_56], %97 {strides = array<i32>} : memref<256x128xbf16, #tpu.memory_space<vmem>>, vector<64x32xbf16>,
    %c64_57 = arith.constant 64 : index
    %c32_58 = arith.constant 32 : index
    %99 = vector.load %arg7[%c64_57, %c32_58] : memref<256x384xbf16, #tpu.memory_space<vmem>>, vector<64x32xbf16>
    %c64_59 = arith.constant 64 : index
    %c160_60 = arith.constant 160 : index
    %100 = vector.load %arg7[%c64_59, %c160_60] : memref<256x384xbf16, #tpu.memory_space<vmem>>, vector<64x32xbf16>
    %c64_61 = arith.constant 64 : index
    %c288_62 = arith.constant 288 : index
    %101 = vector.load %arg7[%c64_61, %c288_62] : memref<256x384xbf16, #tpu.memory_space<vmem>>, vector<64x32xbf16>
    %cst_63 = arith.constant dense<0.000000e+00> : vector<64x64xf32>
    %102 = tpu.matmul %99, %100, %cst_63 {dimension_numbers = #tpu.dot_dimension_numbers<[1], [1], [0], [0], [0, 0, 1, 0], [], []>} : vector<64x32xbf16>, vector<64x32xbf16>, vector<64x64xf32> -> vector<64x64xf32>
    %cst_64 = arith.constant dense<0xFF800000> : vector<64xf32>
    %103 = vector.multi_reduction <maximumf>, %102, %cst_64 [1] : vector<64x64xf32> to vector<64xf32>
    %104 = vector.shape_cast %103 : vector<64xf32> to vector<64x1xf32>
    %105 = vector.broadcast %104 : vector<64x1xf32> to vector<64x64xf32>
    %106 = arith.subf %102, %105 : vector<64x64xf32>
    %107 = math.exp %106 : vector<64x64xf32>
    %cst_65 = arith.constant dense<0.000000e+00> : vector<64xf32>
    %108 = vector.multi_reduction <add>, %107, %cst_65 [1] : vector<64x64xf32> to vector<64xf32>
    %109 = vector.shape_cast %108 : vector<64xf32> to vector<64x1xf32>
    %110 = tpu.reciprocal %109 {approx = true} : vector<64x1xf32> -> vector<64x1xf32>
    %111 = vector.broadcast %110 : vector<64x1xf32> to vector<64x64xf32>
    %112 = arith.mulf %107, %111 : vector<64x64xf32>
    %113 = arith.truncf %112 : vector<64x64xf32> to vector<64x64xbf16>
    %cst_66 = arith.constant dense<0.000000e+00> : vector<64x32xf32>
    %114 = tpu.matmul %113, %101, %cst_66 {dimension_numbers = #tpu.dot_dimension_numbers<[1], [0], [0], [1], [0, 0, 1, 1], [], []>} : vector<64x64xbf16>, vector<64x32xbf16>, vector<64x32xf32> -> vector<64x32xf32>
    %115 = arith.truncf %114 : vector<64x32xf32> to vector<64x32xbf16>
    %c64_67 = arith.constant 64 : index
    %c32_68 = arith.constant 32 : index
    %116 = vector.load %arg8[%c64_67, %c32_68] : memref<256x128xbf16, #tpu.memory_space<vmem>>, vector<64x32xbf16>
    tpu.vector_store %arg8[%c64_67, %c32_68], %115 {strides = array<i32>} : memref<256x128xbf16, #tpu.memory_space<vmem>>, vector<64x32xbf16>,
    %c64_69 = arith.constant 64 : index
    %c64_70 = arith.constant 64 : index
    %117 = vector.load %arg7[%c64_69, %c64_70] : memref<256x384xbf16, #tpu.memory_space<vmem>>, vector<64x32xbf16>
    %c64_71 = arith.constant 64 : index
    %c192_72 = arith.constant 192 : index
    %118 = vector.load %arg7[%c64_71, %c192_72] : memref<256x384xbf16, #tpu.memory_space<vmem>>, vector<64x32xbf16>
    %c64_73 = arith.constant 64 : index
    %c320_74 = arith.constant 320 : index
    %119 = vector.load %arg7[%c64_73, %c320_74] : memref<256x384xbf16, #tpu.memory_space<vmem>>, vector<64x32xbf16>
    %cst_75 = arith.constant dense<0.000000e+00> : vector<64x64xf32>
    %120 = tpu.matmul %117, %118, %cst_75 {dimension_numbers = #tpu.dot_dimension_numbers<[1], [1], [0], [0], [0, 0, 1, 0], [], []>} : vector<64x32xbf16>, vector<64x32xbf16>, vector<64x64xf32> -> vector<64x64xf32>
    %cst_76 = arith.constant dense<0xFF800000> : vector<64xf32>
    %121 = vector.multi_reduction <maximumf>, %120, %cst_76 [1] : vector<64x64xf32> to vector<64xf32>
    %122 = vector.shape_cast %121 : vector<64xf32> to vector<64x1xf32>
    %123 = vector.broadcast %122 : vector<64x1xf32> to vector<64x64xf32>
    %124 = arith.subf %120, %123 : vector<64x64xf32>
    %125 = math.exp %124 : vector<64x64xf32>
    %cst_77 = arith.constant dense<0.000000e+00> : vector<64xf32>
    %126 = vector.multi_reduction <add>, %125, %cst_77 [1] : vector<64x64xf32> to vector<64xf32>
    %127 = vector.shape_cast %126 : vector<64xf32> to vector<64x1xf32>
    %128 = tpu.reciprocal %127 {approx = true} : vector<64x1xf32> -> vector<64x1xf32>
    %129 = vector.broadcast %128 : vector<64x1xf32> to vector<64x64xf32>
    %130 = arith.mulf %125, %129 : vector<64x64xf32>
    %131 = arith.truncf %130 : vector<64x64xf32> to vector<64x64xbf16>
    %cst_78 = arith.constant dense<0.000000e+00> : vector<64x32xf32>
    %132 = tpu.matmul %131, %119, %cst_78 {dimension_numbers = #tpu.dot_dimension_numbers<[1], [0], [0], [1], [0, 0, 1, 1], [], []>} : vector<64x64xbf16>, vector<64x32xbf16>, vector<64x32xf32> -> vector<64x32xf32>
    %133 = arith.truncf %132 : vector<64x32xf32> to vector<64x32xbf16>
    %c64_79 = arith.constant 64 : index
    %c64_80 = arith.constant 64 : index
    %134 = vector.load %arg8[%c64_79, %c64_80] : memref<256x128xbf16, #tpu.memory_space<vmem>>, vector<64x32xbf16>
    tpu.vector_store %arg8[%c64_79, %c64_80], %133 {strides = array<i32>} : memref<256x128xbf16, #tpu.memory_space<vmem>>, vector<64x32xbf16>,
    %c64_81 = arith.constant 64 : index
    %c96_82 = arith.constant 96 : index
    %135 = vector.load %arg7[%c64_81, %c96_82] : memref<256x384xbf16, #tpu.memory_space<vmem>>, vector<64x32xbf16>
    %c64_83 = arith.constant 64 : index
    %c224_84 = arith.constant 224 : index
    %136 = vector.load %arg7[%c64_83, %c224_84] : memref<256x384xbf16, #tpu.memory_space<vmem>>, vector<64x32xbf16>
    %c64_85 = arith.constant 64 : index
    %c352_86 = arith.constant 352 : index
    %137 = vector.load %arg7[%c64_85, %c352_86] : memref<256x384xbf16, #tpu.memory_space<vmem>>, vector<64x32xbf16>
    %cst_87 = arith.constant dense<0.000000e+00> : vector<64x64xf32>
    %138 = tpu.matmul %135, %136, %cst_87 {dimension_numbers = #tpu.dot_dimension_numbers<[1], [1], [0], [0], [0, 0, 1, 0], [], []>} : vector<64x32xbf16>, vector<64x32xbf16>, vector<64x64xf32> -> vector<64x64xf32>
    %cst_88 = arith.constant dense<0xFF800000> : vector<64xf32>
    %139 = vector.multi_reduction <maximumf>, %138, %cst_88 [1] : vector<64x64xf32> to vector<64xf32>
    %140 = vector.shape_cast %139 : vector<64xf32> to vector<64x1xf32>
    %141 = vector.broadcast %140 : vector<64x1xf32> to vector<64x64xf32>
    %142 = arith.subf %138, %141 : vector<64x64xf32>
    %143 = math.exp %142 : vector<64x64xf32>
    %cst_89 = arith.constant dense<0.000000e+00> : vector<64xf32>
    %144 = vector.multi_reduction <add>, %143, %cst_89 [1] : vector<64x64xf32> to vector<64xf32>
    %145 = vector.shape_cast %144 : vector<64xf32> to vector<64x1xf32>
    %146 = tpu.reciprocal %145 {approx = true} : vector<64x1xf32> -> vector<64x1xf32>
    %147 = vector.broadcast %146 : vector<64x1xf32> to vector<64x64xf32>
    %148 = arith.mulf %143, %147 : vector<64x64xf32>
    %149 = arith.truncf %148 : vector<64x64xf32> to vector<64x64xbf16>
    %cst_90 = arith.constant dense<0.000000e+00> : vector<64x32xf32>
    %150 = tpu.matmul %149, %137, %cst_90 {dimension_numbers = #tpu.dot_dimension_numbers<[1], [0], [0], [1], [0, 0, 1, 1], [], []>} : vector<64x64xbf16>, vector<64x32xbf16>, vector<64x32xf32> -> vector<64x32xf32>
    %151 = arith.truncf %150 : vector<64x32xf32> to vector<64x32xbf16>
    %c64_91 = arith.constant 64 : index
    %c96_92 = arith.constant 96 : index
    %152 = vector.load %arg8[%c64_91, %c96_92] : memref<256x128xbf16, #tpu.memory_space<vmem>>, vector<64x32xbf16>
    tpu.vector_store %arg8[%c64_91, %c96_92], %151 {strides = array<i32>} : memref<256x128xbf16, #tpu.memory_space<vmem>>, vector<64x32xbf16>,
    %c128_93 = arith.constant 128 : index
    %c0_94 = arith.constant 0 : index
    %153 = vector.load %arg7[%c128_93, %c0_94] : memref<256x384xbf16, #tpu.memory_space<vmem>>, vector<64x32xbf16>
    %c128_95 = arith.constant 128 : index
    %c128_96 = arith.constant 128 : index
    %154 = vector.load %arg7[%c128_95, %c128_96] : memref<256x384xbf16, #tpu.memory_space<vmem>>, vector<64x32xbf16>
    %c128_97 = arith.constant 128 : index
    %c256_98 = arith.constant 256 : index
    %155 = vector.load %arg7[%c128_97, %c256_98] : memref<256x384xbf16, #tpu.memory_space<vmem>>, vector<64x32xbf16>
    %cst_99 = arith.constant dense<0.000000e+00> : vector<64x64xf32>
    %156 = tpu.matmul %153, %154, %cst_99 {dimension_numbers = #tpu.dot_dimension_numbers<[1], [1], [0], [0], [0, 0, 1, 0], [], []>} : vector<64x32xbf16>, vector<64x32xbf16>, vector<64x64xf32> -> vector<64x64xf32>
    %cst_100 = arith.constant dense<0xFF800000> : vector<64xf32>
    %157 = vector.multi_reduction <maximumf>, %156, %cst_100 [1] : vector<64x64xf32> to vector<64xf32>
    %158 = vector.shape_cast %157 : vector<64xf32> to vector<64x1xf32>
    %159 = vector.broadcast %158 : vector<64x1xf32> to vector<64x64xf32>
    %160 = arith.subf %156, %159 : vector<64x64xf32>
    %161 = math.exp %160 : vector<64x64xf32>
    %cst_101 = arith.constant dense<0.000000e+00> : vector<64xf32>
    %162 = vector.multi_reduction <add>, %161, %cst_101 [1] : vector<64x64xf32> to vector<64xf32>
    %163 = vector.shape_cast %162 : vector<64xf32> to vector<64x1xf32>
    %164 = tpu.reciprocal %163 {approx = true} : vector<64x1xf32> -> vector<64x1xf32>
    %165 = vector.broadcast %164 : vector<64x1xf32> to vector<64x64xf32>
    %166 = arith.mulf %161, %165 : vector<64x64xf32>
    %167 = arith.truncf %166 : vector<64x64xf32> to vector<64x64xbf16>
    %cst_102 = arith.constant dense<0.000000e+00> : vector<64x32xf32>
    %168 = tpu.matmul %167, %155, %cst_102 {dimension_numbers = #tpu.dot_dimension_numbers<[1], [0], [0], [1], [0, 0, 1, 1], [], []>} : vector<64x64xbf16>, vector<64x32xbf16>, vector<64x32xf32> -> vector<64x32xf32>
    %169 = arith.truncf %168 : vector<64x32xf32> to vector<64x32xbf16>
    %c128_103 = arith.constant 128 : index
    %c0_104 = arith.constant 0 : index
    %170 = vector.load %arg8[%c128_103, %c0_104] : memref<256x128xbf16, #tpu.memory_space<vmem>>, vector<64x32xbf16>
    tpu.vector_store %arg8[%c128_103, %c0_104], %169 {strides = array<i32>} : memref<256x128xbf16, #tpu.memory_space<vmem>>, vector<64x32xbf16>,
    %c128_105 = arith.constant 128 : index
    %c32_106 = arith.constant 32 : index
    %171 = vector.load %arg7[%c128_105, %c32_106] : memref<256x384xbf16, #tpu.memory_space<vmem>>, vector<64x32xbf16>
    %c128_107 = arith.constant 128 : index
    %c160_108 = arith.constant 160 : index
    %172 = vector.load %arg7[%c128_107, %c160_108] : memref<256x384xbf16, #tpu.memory_space<vmem>>, vector<64x32xbf16>
    %c128_109 = arith.constant 128 : index
    %c288_110 = arith.constant 288 : index
    %173 = vector.load %arg7[%c128_109, %c288_110] : memref<256x384xbf16, #tpu.memory_space<vmem>>, vector<64x32xbf16>
    %cst_111 = arith.constant dense<0.000000e+00> : vector<64x64xf32>
    %174 = tpu.matmul %171, %172, %cst_111 {dimension_numbers = #tpu.dot_dimension_numbers<[1], [1], [0], [0], [0, 0, 1, 0], [], []>} : vector<64x32xbf16>, vector<64x32xbf16>, vector<64x64xf32> -> vector<64x64xf32>
    %cst_112 = arith.constant dense<0xFF800000> : vector<64xf32>
    %175 = vector.multi_reduction <maximumf>, %174, %cst_112 [1] : vector<64x64xf32> to vector<64xf32>
    %176 = vector.shape_cast %175 : vector<64xf32> to vector<64x1xf32>
    %177 = vector.broadcast %176 : vector<64x1xf32> to vector<64x64xf32>
    %178 = arith.subf %174, %177 : vector<64x64xf32>
    %179 = math.exp %178 : vector<64x64xf32>
    %cst_113 = arith.constant dense<0.000000e+00> : vector<64xf32>
    %180 = vector.multi_reduction <add>, %179, %cst_113 [1] : vector<64x64xf32> to vector<64xf32>
    %181 = vector.shape_cast %180 : vector<64xf32> to vector<64x1xf32>
    %182 = tpu.reciprocal %181 {approx = true} : vector<64x1xf32> -> vector<64x1xf32>
    %183 = vector.broadcast %182 : vector<64x1xf32> to vector<64x64xf32>
    %184 = arith.mulf %179, %183 : vector<64x64xf32>
    %185 = arith.truncf %184 : vector<64x64xf32> to vector<64x64xbf16>
    %cst_114 = arith.constant dense<0.000000e+00> : vector<64x32xf32>
    %186 = tpu.matmul %185, %173, %cst_114 {dimension_numbers = #tpu.dot_dimension_numbers<[1], [0], [0], [1], [0, 0, 1, 1], [], []>} : vector<64x64xbf16>, vector<64x32xbf16>, vector<64x32xf32> -> vector<64x32xf32>
    %187 = arith.truncf %186 : vector<64x32xf32> to vector<64x32xbf16>
    %c128_115 = arith.constant 128 : index
    %c32_116 = arith.constant 32 : index
    %188 = vector.load %arg8[%c128_115, %c32_116] : memref<256x128xbf16, #tpu.memory_space<vmem>>, vector<64x32xbf16>
    tpu.vector_store %arg8[%c128_115, %c32_116], %187 {strides = array<i32>} : memref<256x128xbf16, #tpu.memory_space<vmem>>, vector<64x32xbf16>,
    %c128_117 = arith.constant 128 : index
    %c64_118 = arith.constant 64 : index
    %189 = vector.load %arg7[%c128_117, %c64_118] : memref<256x384xbf16, #tpu.memory_space<vmem>>, vector<64x32xbf16>
    %c128_119 = arith.constant 128 : index
    %c192_120 = arith.constant 192 : index
    %190 = vector.load %arg7[%c128_119, %c192_120] : memref<256x384xbf16, #tpu.memory_space<vmem>>, vector<64x32xbf16>
    %c128_121 = arith.constant 128 : index
    %c320_122 = arith.constant 320 : index
    %191 = vector.load %arg7[%c128_121, %c320_122] : memref<256x384xbf16, #tpu.memory_space<vmem>>, vector<64x32xbf16>
    %cst_123 = arith.constant dense<0.000000e+00> : vector<64x64xf32>
    %192 = tpu.matmul %189, %190, %cst_123 {dimension_numbers = #tpu.dot_dimension_numbers<[1], [1], [0], [0], [0, 0, 1, 0], [], []>} : vector<64x32xbf16>, vector<64x32xbf16>, vector<64x64xf32> -> vector<64x64xf32>
    %cst_124 = arith.constant dense<0xFF800000> : vector<64xf32>
    %193 = vector.multi_reduction <maximumf>, %192, %cst_124 [1] : vector<64x64xf32> to vector<64xf32>
    %194 = vector.shape_cast %193 : vector<64xf32> to vector<64x1xf32>
    %195 = vector.broadcast %194 : vector<64x1xf32> to vector<64x64xf32>
    %196 = arith.subf %192, %195 : vector<64x64xf32>
    %197 = math.exp %196 : vector<64x64xf32>
    %cst_125 = arith.constant dense<0.000000e+00> : vector<64xf32>
    %198 = vector.multi_reduction <add>, %197, %cst_125 [1] : vector<64x64xf32> to vector<64xf32>
    %199 = vector.shape_cast %198 : vector<64xf32> to vector<64x1xf32>
    %200 = tpu.reciprocal %199 {approx = true} : vector<64x1xf32> -> vector<64x1xf32>
    %201 = vector.broadcast %200 : vector<64x1xf32> to vector<64x64xf32>
    %202 = arith.mulf %197, %201 : vector<64x64xf32>
    %203 = arith.truncf %202 : vector<64x64xf32> to vector<64x64xbf16>
    %cst_126 = arith.constant dense<0.000000e+00> : vector<64x32xf32>
    %204 = tpu.matmul %203, %191, %cst_126 {dimension_numbers = #tpu.dot_dimension_numbers<[1], [0], [0], [1], [0, 0, 1, 1], [], []>} : vector<64x64xbf16>, vector<64x32xbf16>, vector<64x32xf32> -> vector<64x32xf32>
    %205 = arith.truncf %204 : vector<64x32xf32> to vector<64x32xbf16>
    %c128_127 = arith.constant 128 : index
    %c64_128 = arith.constant 64 : index
    %206 = vector.load %arg8[%c128_127, %c64_128] : memref<256x128xbf16, #tpu.memory_space<vmem>>, vector<64x32xbf16>
    tpu.vector_store %arg8[%c128_127, %c64_128], %205 {strides = array<i32>} : memref<256x128xbf16, #tpu.memory_space<vmem>>, vector<64x32xbf16>,
    %c128_129 = arith.constant 128 : index
    %c96_130 = arith.constant 96 : index
    %207 = vector.load %arg7[%c128_129, %c96_130] : memref<256x384xbf16, #tpu.memory_space<vmem>>, vector<64x32xbf16>
    %c128_131 = arith.constant 128 : index
    %c224_132 = arith.constant 224 : index
    %208 = vector.load %arg7[%c128_131, %c224_132] : memref<256x384xbf16, #tpu.memory_space<vmem>>, vector<64x32xbf16>
    %c128_133 = arith.constant 128 : index
    %c352_134 = arith.constant 352 : index
    %209 = vector.load %arg7[%c128_133, %c352_134] : memref<256x384xbf16, #tpu.memory_space<vmem>>, vector<64x32xbf16>
    %cst_135 = arith.constant dense<0.000000e+00> : vector<64x64xf32>
    %210 = tpu.matmul %207, %208, %cst_135 {dimension_numbers = #tpu.dot_dimension_numbers<[1], [1], [0], [0], [0, 0, 1, 0], [], []>} : vector<64x32xbf16>, vector<64x32xbf16>, vector<64x64xf32> -> vector<64x64xf32>
    %cst_136 = arith.constant dense<0xFF800000> : vector<64xf32>
    %211 = vector.multi_reduction <maximumf>, %210, %cst_136 [1] : vector<64x64xf32> to vector<64xf32>
    %212 = vector.shape_cast %211 : vector<64xf32> to vector<64x1xf32>
    %213 = vector.broadcast %212 : vector<64x1xf32> to vector<64x64xf32>
    %214 = arith.subf %210, %213 : vector<64x64xf32>
    %215 = math.exp %214 : vector<64x64xf32>
    %cst_137 = arith.constant dense<0.000000e+00> : vector<64xf32>
    %216 = vector.multi_reduction <add>, %215, %cst_137 [1] : vector<64x64xf32> to vector<64xf32>
    %217 = vector.shape_cast %216 : vector<64xf32> to vector<64x1xf32>
    %218 = tpu.reciprocal %217 {approx = true} : vector<64x1xf32> -> vector<64x1xf32>
    %219 = vector.broadcast %218 : vector<64x1xf32> to vector<64x64xf32>
    %220 = arith.mulf %215, %219 : vector<64x64xf32>
    %221 = arith.truncf %220 : vector<64x64xf32> to vector<64x64xbf16>
    %cst_138 = arith.constant dense<0.000000e+00> : vector<64x32xf32>
    %222 = tpu.matmul %221, %209, %cst_138 {dimension_numbers = #tpu.dot_dimension_numbers<[1], [0], [0], [1], [0, 0, 1, 1], [], []>} : vector<64x64xbf16>, vector<64x32xbf16>, vector<64x32xf32> -> vector<64x32xf32>
    %223 = arith.truncf %222 : vector<64x32xf32> to vector<64x32xbf16>
    %c128_139 = arith.constant 128 : index
    %c96_140 = arith.constant 96 : index
    %224 = vector.load %arg8[%c128_139, %c96_140] : memref<256x128xbf16, #tpu.memory_space<vmem>>, vector<64x32xbf16>
    tpu.vector_store %arg8[%c128_139, %c96_140], %223 {strides = array<i32>} : memref<256x128xbf16, #tpu.memory_space<vmem>>, vector<64x32xbf16>,
    %c192_141 = arith.constant 192 : index
    %c0_142 = arith.constant 0 : index
    %225 = vector.load %arg7[%c192_141, %c0_142] : memref<256x384xbf16, #tpu.memory_space<vmem>>, vector<64x32xbf16>
    %c192_143 = arith.constant 192 : index
    %c128_144 = arith.constant 128 : index
    %226 = vector.load %arg7[%c192_143, %c128_144] : memref<256x384xbf16, #tpu.memory_space<vmem>>, vector<64x32xbf16>
    %c192_145 = arith.constant 192 : index
    %c256_146 = arith.constant 256 : index
    %227 = vector.load %arg7[%c192_145, %c256_146] : memref<256x384xbf16, #tpu.memory_space<vmem>>, vector<64x32xbf16>
    %cst_147 = arith.constant dense<0.000000e+00> : vector<64x64xf32>
    %228 = tpu.matmul %225, %226, %cst_147 {dimension_numbers = #tpu.dot_dimension_numbers<[1], [1], [0], [0], [0, 0, 1, 0], [], []>} : vector<64x32xbf16>, vector<64x32xbf16>, vector<64x64xf32> -> vector<64x64xf32>
    %cst_148 = arith.constant dense<0xFF800000> : vector<64xf32>
    %229 = vector.multi_reduction <maximumf>, %228, %cst_148 [1] : vector<64x64xf32> to vector<64xf32>
    %230 = vector.shape_cast %229 : vector<64xf32> to vector<64x1xf32>
    %231 = vector.broadcast %230 : vector<64x1xf32> to vector<64x64xf32>
    %232 = arith.subf %228, %231 : vector<64x64xf32>
    %233 = math.exp %232 : vector<64x64xf32>
    %cst_149 = arith.constant dense<0.000000e+00> : vector<64xf32>
    %234 = vector.multi_reduction <add>, %233, %cst_149 [1] : vector<64x64xf32> to vector<64xf32>
    %235 = vector.shape_cast %234 : vector<64xf32> to vector<64x1xf32>
    %236 = tpu.reciprocal %235 {approx = true} : vector<64x1xf32> -> vector<64x1xf32>
    %237 = vector.broadcast %236 : vector<64x1xf32> to vector<64x64xf32>
    %238 = arith.mulf %233, %237 : vector<64x64xf32>
    %239 = arith.truncf %238 : vector<64x64xf32> to vector<64x64xbf16>
    %cst_150 = arith.constant dense<0.000000e+00> : vector<64x32xf32>
    %240 = tpu.matmul %239, %227, %cst_150 {dimension_numbers = #tpu.dot_dimension_numbers<[1], [0], [0], [1], [0, 0, 1, 1], [], []>} : vector<64x64xbf16>, vector<64x32xbf16>, vector<64x32xf32> -> vector<64x32xf32>
    %241 = arith.truncf %240 : vector<64x32xf32> to vector<64x32xbf16>
    %c192_151 = arith.constant 192 : index
    %c0_152 = arith.constant 0 : index
    %242 = vector.load %arg8[%c192_151, %c0_152] : memref<256x128xbf16, #tpu.memory_space<vmem>>, vector<64x32xbf16>
    tpu.vector_store %arg8[%c192_151, %c0_152], %241 {strides = array<i32>} : memref<256x128xbf16, #tpu.memory_space<vmem>>, vector<64x32xbf16>,
    %c192_153 = arith.constant 192 : index
    %c32_154 = arith.constant 32 : index
    %243 = vector.load %arg7[%c192_153, %c32_154] : memref<256x384xbf16, #tpu.memory_space<vmem>>, vector<64x32xbf16>
    %c192_155 = arith.constant 192 : index
    %c160_156 = arith.constant 160 : index
    %244 = vector.load %arg7[%c192_155, %c160_156] : memref<256x384xbf16, #tpu.memory_space<vmem>>, vector<64x32xbf16>
    %c192_157 = arith.constant 192 : index
    %c288_158 = arith.constant 288 : index
    %245 = vector.load %arg7[%c192_157, %c288_158] : memref<256x384xbf16, #tpu.memory_space<vmem>>, vector<64x32xbf16>
    %cst_159 = arith.constant dense<0.000000e+00> : vector<64x64xf32>
    %246 = tpu.matmul %243, %244, %cst_159 {dimension_numbers = #tpu.dot_dimension_numbers<[1], [1], [0], [0], [0, 0, 1, 0], [], []>} : vector<64x32xbf16>, vector<64x32xbf16>, vector<64x64xf32> -> vector<64x64xf32>
    %cst_160 = arith.constant dense<0xFF800000> : vector<64xf32>
    %247 = vector.multi_reduction <maximumf>, %246, %cst_160 [1] : vector<64x64xf32> to vector<64xf32>
    %248 = vector.shape_cast %247 : vector<64xf32> to vector<64x1xf32>
    %249 = vector.broadcast %248 : vector<64x1xf32> to vector<64x64xf32>
    %250 = arith.subf %246, %249 : vector<64x64xf32>
    %251 = math.exp %250 : vector<64x64xf32>
    %cst_161 = arith.constant dense<0.000000e+00> : vector<64xf32>
    %252 = vector.multi_reduction <add>, %251, %cst_161 [1] : vector<64x64xf32> to vector<64xf32>
    %253 = vector.shape_cast %252 : vector<64xf32> to vector<64x1xf32>
    %254 = tpu.reciprocal %253 {approx = true} : vector<64x1xf32> -> vector<64x1xf32>
    %255 = vector.broadcast %254 : vector<64x1xf32> to vector<64x64xf32>
    %256 = arith.mulf %251, %255 : vector<64x64xf32>
    %257 = arith.truncf %256 : vector<64x64xf32> to vector<64x64xbf16>
    %cst_162 = arith.constant dense<0.000000e+00> : vector<64x32xf32>
    %258 = tpu.matmul %257, %245, %cst_162 {dimension_numbers = #tpu.dot_dimension_numbers<[1], [0], [0], [1], [0, 0, 1, 1], [], []>} : vector<64x64xbf16>, vector<64x32xbf16>, vector<64x32xf32> -> vector<64x32xf32>
    %259 = arith.truncf %258 : vector<64x32xf32> to vector<64x32xbf16>
    %c192_163 = arith.constant 192 : index
    %c32_164 = arith.constant 32 : index
    %260 = vector.load %arg8[%c192_163, %c32_164] : memref<256x128xbf16, #tpu.memory_space<vmem>>, vector<64x32xbf16>
    tpu.vector_store %arg8[%c192_163, %c32_164], %259 {strides = array<i32>} : memref<256x128xbf16, #tpu.memory_space<vmem>>, vector<64x32xbf16>,
    %c192_165 = arith.constant 192 : index
    %c64_166 = arith.constant 64 : index
    %261 = vector.load %arg7[%c192_165, %c64_166] : memref<256x384xbf16, #tpu.memory_space<vmem>>, vector<64x32xbf16>
    %c192_167 = arith.constant 192 : index
    %c192_168 = arith.constant 192 : index
    %262 = vector.load %arg7[%c192_167, %c192_168] : memref<256x384xbf16, #tpu.memory_space<vmem>>, vector<64x32xbf16>
    %c192_169 = arith.constant 192 : index
    %c320_170 = arith.constant 320 : index
    %263 = vector.load %arg7[%c192_169, %c320_170] : memref<256x384xbf16, #tpu.memory_space<vmem>>, vector<64x32xbf16>
    %cst_171 = arith.constant dense<0.000000e+00> : vector<64x64xf32>
    %264 = tpu.matmul %261, %262, %cst_171 {dimension_numbers = #tpu.dot_dimension_numbers<[1], [1], [0], [0], [0, 0, 1, 0], [], []>} : vector<64x32xbf16>, vector<64x32xbf16>, vector<64x64xf32> -> vector<64x64xf32>
    %cst_172 = arith.constant dense<0xFF800000> : vector<64xf32>
    %265 = vector.multi_reduction <maximumf>, %264, %cst_172 [1] : vector<64x64xf32> to vector<64xf32>
    %266 = vector.shape_cast %265 : vector<64xf32> to vector<64x1xf32>
    %267 = vector.broadcast %266 : vector<64x1xf32> to vector<64x64xf32>
    %268 = arith.subf %264, %267 : vector<64x64xf32>
    %269 = math.exp %268 : vector<64x64xf32>
    %cst_173 = arith.constant dense<0.000000e+00> : vector<64xf32>
    %270 = vector.multi_reduction <add>, %269, %cst_173 [1] : vector<64x64xf32> to vector<64xf32>
    %271 = vector.shape_cast %270 : vector<64xf32> to vector<64x1xf32>
    %272 = tpu.reciprocal %271 {approx = true} : vector<64x1xf32> -> vector<64x1xf32>
    %273 = vector.broadcast %272 : vector<64x1xf32> to vector<64x64xf32>
    %274 = arith.mulf %269, %273 : vector<64x64xf32>
    %275 = arith.truncf %274 : vector<64x64xf32> to vector<64x64xbf16>
    %cst_174 = arith.constant dense<0.000000e+00> : vector<64x32xf32>
    %276 = tpu.matmul %275, %263, %cst_174 {dimension_numbers = #tpu.dot_dimension_numbers<[1], [0], [0], [1], [0, 0, 1, 1], [], []>} : vector<64x64xbf16>, vector<64x32xbf16>, vector<64x32xf32> -> vector<64x32xf32>
    %277 = arith.truncf %276 : vector<64x32xf32> to vector<64x32xbf16>
    %c192_175 = arith.constant 192 : index
    %c64_176 = arith.constant 64 : index
    %278 = vector.load %arg8[%c192_175, %c64_176] : memref<256x128xbf16, #tpu.memory_space<vmem>>, vector<64x32xbf16>
    tpu.vector_store %arg8[%c192_175, %c64_176], %277 {strides = array<i32>} : memref<256x128xbf16, #tpu.memory_space<vmem>>, vector<64x32xbf16>,
    %c192_177 = arith.constant 192 : index
    %c96_178 = arith.constant 96 : index
    %279 = vector.load %arg7[%c192_177, %c96_178] : memref<256x384xbf16, #tpu.memory_space<vmem>>, vector<64x32xbf16>
    %c192_179 = arith.constant 192 : index
    %c224_180 = arith.constant 224 : index
    %280 = vector.load %arg7[%c192_179, %c224_180] : memref<256x384xbf16, #tpu.memory_space<vmem>>, vector<64x32xbf16>
    %c192_181 = arith.constant 192 : index
    %c352_182 = arith.constant 352 : index
    %281 = vector.load %arg7[%c192_181, %c352_182] : memref<256x384xbf16, #tpu.memory_space<vmem>>, vector<64x32xbf16>
    %cst_183 = arith.constant dense<0.000000e+00> : vector<64x64xf32>
    %282 = tpu.matmul %279, %280, %cst_183 {dimension_numbers = #tpu.dot_dimension_numbers<[1], [1], [0], [0], [0, 0, 1, 0], [], []>} : vector<64x32xbf16>, vector<64x32xbf16>, vector<64x64xf32> -> vector<64x64xf32>
    %cst_184 = arith.constant dense<0xFF800000> : vector<64xf32>
    %283 = vector.multi_reduction <maximumf>, %282, %cst_184 [1] : vector<64x64xf32> to vector<64xf32>
    %284 = vector.shape_cast %283 : vector<64xf32> to vector<64x1xf32>
    %285 = vector.broadcast %284 : vector<64x1xf32> to vector<64x64xf32>
    %286 = arith.subf %282, %285 : vector<64x64xf32>
    %287 = math.exp %286 : vector<64x64xf32>
    %cst_185 = arith.constant dense<0.000000e+00> : vector<64xf32>
    %288 = vector.multi_reduction <add>, %287, %cst_185 [1] : vector<64x64xf32> to vector<64xf32>
    %289 = vector.shape_cast %288 : vector<64xf32> to vector<64x1xf32>
    %290 = tpu.reciprocal %289 {approx = true} : vector<64x1xf32> -> vector<64x1xf32>
    %291 = vector.broadcast %290 : vector<64x1xf32> to vector<64x64xf32>
    %292 = arith.mulf %287, %291 : vector<64x64xf32>
    %293 = arith.truncf %292 : vector<64x64xf32> to vector<64x64xbf16>
    %cst_186 = arith.constant dense<0.000000e+00> : vector<64x32xf32>
    %294 = tpu.matmul %293, %281, %cst_186 {dimension_numbers = #tpu.dot_dimension_numbers<[1], [0], [0], [1], [0, 0, 1, 1], [], []>} : vector<64x64xbf16>, vector<64x32xbf16>, vector<64x32xf32> -> vector<64x32xf32>
    %295 = arith.truncf %294 : vector<64x32xf32> to vector<64x32xbf16>
    %c192_187 = arith.constant 192 : index
    %c96_188 = arith.constant 96 : index
    %296 = vector.load %arg8[%c192_187, %c96_188] : memref<256x128xbf16, #tpu.memory_space<vmem>>, vector<64x32xbf16>
    tpu.vector_store %arg8[%c192_187, %c96_188], %295 {strides = array<i32>} : memref<256x128xbf16, #tpu.memory_space<vmem>>, vector<64x32xbf16>,
    %c0_189 = arith.constant 0 : index
    %c0_190 = arith.constant 0 : index
    %297 = vector.load %arg8[%c0_189, %c0_190] : memref<256x128xbf16, #tpu.memory_space<vmem>>, vector<256x128xbf16>
    %c0_191 = arith.constant 0 : index
    %c0_192 = arith.constant 0 : index
    %298 = vector.load %arg4[%c0_191, %c0_192] : memref<128x128xbf16, #tpu.memory_space<vmem>>, vector<128x128xbf16>
    %cst_193 = arith.constant dense<0.000000e+00> : vector<256x128xf32>
    %299 = tpu.matmul %297, %298, %cst_193 {dimension_numbers = #tpu.dot_dimension_numbers<[1], [0], [0], [1], [0, 0, 1, 1], [], []>} : vector<256x128xbf16>, vector<128x128xbf16>, vector<256x128xf32> -> vector<256x128xf32>
    %c0_194 = arith.constant 0 : index
    %c0_195 = arith.constant 0 : index
    %300 = vector.load %arg5[%c0_194, %c0_195] : memref<1x128xf32, #tpu.memory_space<vmem>>, vector<1x128xf32>
    %301 = vector.broadcast %300 : vector<1x128xf32> to vector<256x128xf32>
    %302 = arith.addf %299, %301 : vector<256x128xf32>
    %303 = vector.shape_cast %302 : vector<256x128xf32> to vector<4x64x128xf32>
    %c0_196 = arith.constant 0 : index
    %c0_197 = arith.constant 0 : index
    %c0_198 = arith.constant 0 : index
    %304 = vector.load %arg6[%c0_196, %c0_197, %c0_198] : memref<4x64x128xf32, #tpu.memory_space<vmem>>, vector<4x64x128xf32>
    tpu.vector_store %arg6[%c0_196, %c0_197, %c0_198], %303 {strides = array<i32>} : memref<4x64x128xf32, #tpu.memory_space<vmem>>, vector<4x64x128xf32>,
    return
  }
  func.func @transform_0(%arg0: i32) -> (i32, i32, i32) {
    %c0_i32 = arith.constant 0 : i32
    %c0_i32_0 = arith.constant 0 : i32
    %c0_i32_1 = arith.constant 0 : i32
    return %arg0, %c0_i32, %c0_i32_0 : i32, i32, i32
  }
  func.func @transform_1(%arg0: i32) -> (i32, i32) {
    %c0_i32 = arith.constant 0 : i32
    %c0_i32_0 = arith.constant 0 : i32
    %c0_i32_1 = arith.constant 0 : i32
    return %c0_i32, %c0_i32_0 : i32, i32
  }
  func.func @transform_2(%arg0: i32) -> (i32, i32) {
    %c0_i32 = arith.constant 0 : i32
    %c0_i32_0 = arith.constant 0 : i32
    %c0_i32_1 = arith.constant 0 : i32
    return %c0_i32, %c0_i32_0 : i32, i32
  }
  func.func @transform_3(%arg0: i32) -> (i32, i32) {
    %c0_i32 = arith.constant 0 : i32
    %c0_i32_0 = arith.constant 0 : i32
    %c0_i32_1 = arith.constant 0 : i32
    return %c0_i32, %c0_i32_0 : i32, i32
  }
  func.func @transform_4(%arg0: i32) -> (i32, i32) {
    %c0_i32 = arith.constant 0 : i32
    %c0_i32_0 = arith.constant 0 : i32
    %c0_i32_1 = arith.constant 0 : i32
    return %c0_i32, %c0_i32_0 : i32, i32
  }
  func.func @transform_5(%arg0: i32) -> (i32, i32, i32) {
    %c0_i32 = arith.constant 0 : i32
    %c0_i32_0 = arith.constant 0 : i32
    %c0_i32_1 = arith.constant 0 : i32
    return %arg0, %c0_i32, %c0_i32_0 : i32, i32, i32
  }
}

</mosaic_0001>

<llo_original>
// kernel: tpu_custom_call.1
$region0: #{tpu_custom_call.1}
  #allocation0 [shape = 'u32[]', space=smem, size = 0x4, offset = 0x4, fixed_abs, tag = 'smem constant byte address 0x4 - core index']
  #allocation1 [shape = 'u32[144,128]{1,0:T(1,128)}', space=vmem, size = 0x12000, scoped, tag = 'internal scratch']
  #allocation2 [shape = 'bf16[256,384]{1,0:T(8,128)(2,1)}', space=vmem, size = 0x30000, scoped, tag = 'scratch operand']
  #allocation3 [shape = 'bf16[256,128]{1,0:T(8,128)(2,1)}', space=vmem, size = 0x10000, scoped, tag = 'scratch operand']
  %s0 = inlined_call_operand.hbm [shape: bf16[8,64,128], index: 0, kind: input, shape index: {}]
  %s1 = inlined_call_operand.hbm [shape: bf16[128,384], index: 1, kind: input, shape index: {}]
  %s2 = inlined_call_operand.vmem [shape: f32[1,384], index: 2, kind: input, shape index: {}]
  %s3 = inlined_call_operand.hbm [shape: bf16[128,128], index: 3, kind: input, shape index: {}]
  %s4 = inlined_call_operand.vmem [shape: f32[1,128], index: 4, kind: input, shape index: {}]
  %s5 = inlined_call_operand.hbm [shape: f32[8,64,128], index: 5, kind: output, shape index: {}]
  %s6 = sld [smem:[#allocation0]]
  $region65: #{tpu_custom_call.1} parent=0
    _
  %s8 = ssub.s32 1, %s6
  %s9 = scalar_select 0, %s8, %s6
  $region1: #{tpu_custom_call.1} parent=0
    #allocation4 [shape = 'u8[131072]{0}', space=vmem, size = 0x20000, scoped, tag = 'input window, operand 0']
    #allocation5 [shape = 's32[2]{0}', space=sflag, size = 0x8, scoped, tag = 'scoped memory for tpu_custom_call.1']
    #allocation6 [shape = 's32[2]{0}', space=sflag, size = 0x8, scoped, tag = 'scoped memory for tpu_custom_call.1']
    #allocation7 [shape = 'u8[98304]{0}', space=vmem, size = 0x18000, scoped, tag = 'input window, operand 1, single buffered']
    #allocation8 [shape = 's32[1]{0}', space=sflag, size = 0x4, scoped, tag = 'scoped memory for tpu_custom_call.1']
    #allocation9 [shape = 'u8[32768]{0}', space=vmem, size = 0x8000, scoped, tag = 'input window, operand 3, single buffered']
    #allocation10 [shape = 'u8[262144]{0}', space=vmem, size = 0x40000, scoped, tag = 'output window, operand 0']
    %10 = vsyncpa [#allocation5], 0
    %s11 = scalar_lea.sflag [#allocation5], 1
    %12 = vsyncpa %s11, 0
    %13 = vsyncpa [#allocation8], 0
    %14 = vsyncpa [#allocation6], 0
    %s15 = scalar_lea.sflag [#allocation6], 1
    %16 = vsyncpa %s15, 0
    loop: start=0, step=1, limit=4
    $region2: #{tpu_custom_call.1} parent=1 // loop_pre_header
      _
    $region3: #{tpu_custom_call.1} parent=1 // loop_header
      %s18 = sphi 0, %s22
      %p19 = scmp.ge.s32.totalorder %s18, 4
      %s28 = sphi 0, %s30
      %s31 = sphi 0, %s28
      %s32 = sphi 0, %s31
      %s48 = sphi 0, %s32
      %s52 = sphi 0, %s52
      %s54 = sphi 0, %s52
      %s55 = sphi 0, %s54
      %s69 = sphi 0, %s55
      %s73 = sphi 0, %s73
      %s75 = sphi 0, %s73
      %s76 = sphi 0, %s75
      %s90 = sphi 0, %s76
      %s94 = sphi 0, %s94
      %s96 = sphi 0, %s94
      %s97 = sphi 0, %s96
      %s111 = sphi 0, %s97
      %s115 = sphi 0, %s115
      %s117 = sphi 0, %s115
      %s118 = sphi 0, %s117
      %s132 = sphi 0, %s118
      %s138 = sphi 0, %s140
      %s141 = sphi 0, %s138
      %s142 = sphi 0, %s141
      %s158 = sphi 0, %s142
    $region4: #{tpu_custom_call.1} parent=1 // loop_header_branch
      %21 = sbr.rel (%p19) target = $region8
    $region5: #{tpu_custom_call.1} parent=1 // loop_body
      %s23 = ssub.s32 %s18, 1
      %s24 = ssub.s32 %s18, 2
      %s25 = sadd.s32 %s18, 1
      %s26 = ssub.s32 %s18, %s25
      %p27 = scmp.eq.s32.totalorder %s26, 0
      %s29 = sadd.s32 %s28, 1
      %s30 = scalar_select %p27, %s28, %s29
      %p33 = pneg %p27
      %p34 = scmp.eq.s32.totalorder %s18, 1
      %p35 = por %p33, %p34
      %p36 = scmp.ne.s32.totalorder %s28, %s31
      %p37 = scmp.eq.s32.totalorder %s18, 0
      %p38 = por %p36, %p37
      %p39 = scmp.ne.s32.totalorder %s28, %s31
      %p40 = scmp.eq.s32.totalorder %s23, 1
      %p41 = por %p39, %p40
      %p42 = scmp.ne.s32.totalorder %s31, %s32
      %p43 = scmp.eq.s32.totalorder %s23, 0
      %p44 = por %p42, %p43
      %p45 = scmp.ne.s32.totalorder %s31, %s32
      %p46 = scmp.eq.s32.totalorder %s24, 1
      %p47 = por %p45, %p46
      %p49 = scmp.ne.s32.totalorder %s32, %s48
      %p50 = scmp.eq.s32.totalorder %s24, 0
      %p51 = por %p49, %p50
      %s53 = sadd.s32 %s52, 1
      %p56 = scmp.eq.s32.totalorder %s18, 1
      %p57 = scmp.ne.s32.totalorder %s52, %s54
      %p58 = scmp.eq.s32.totalorder %s18, 0
      %p59 = por %p57, %p58
      %p60 = scmp.ne.s32.totalorder %s52, %s54
      %p61 = scmp.eq.s32.totalorder %s23, 1
      %p62 = por %p60, %p61
      %p63 = scmp.ne.s32.totalorder %s54, %s55
      %p64 = scmp.eq.s32.totalorder %s23, 0
      %p65 = por %p63, %p64
      %p66 = scmp.ne.s32.totalorder %s54, %s55
      %p67 = scmp.eq.s32.totalorder %s24, 1
      %p68 = por %p66, %p67
      %p70 = scmp.ne.s32.totalorder %s55, %s69
      %p71 = scmp.eq.s32.totalorder %s24, 0
      %p72 = por %p70, %p71
      %s74 = sadd.s32 %s73, 1
      %p77 = scmp.eq.s32.totalorder %s18, 1
      %p78 = scmp.ne.s32.totalorder %s73, %s75
      %p79 = scmp.eq.s32.totalorder %s18, 0
      %p80 = por %p78, %p79
      %p81 = scmp.ne.s32.totalorder %s73, %s75
      %p82 = scmp.eq.s32.totalorder %s23, 1
      %p83 = por %p81, %p82
      %p84 = scmp.ne.s32.totalorder %s75, %s76
      %p85 = scmp.eq.s32.totalorder %s23, 0
      %p86 = por %p84, %p85
      %p87 = scmp.ne.s32.totalorder %s75, %s76
      %p88 = scmp.eq.s32.totalorder %s24, 1
      %p89 = por %p87, %p88
      %p91 = scmp.ne.s32.totalorder %s76, %s90
      %p92 = scmp.eq.s32.totalorder %s24, 0
      %p93 = por %p91, %p92
      %s95 = sadd.s32 %s94, 1
      %p98 = scmp.eq.s32.totalorder %s18, 1
      %p99 = scmp.ne.s32.totalorder %s94, %s96
      %p100 = scmp.eq.s32.totalorder %s18, 0
      %p101 = por %p99, %p100
      %p102 = scmp.ne.s32.totalorder %s94, %s96
      %p103 = scmp.eq.s32.totalorder %s23, 1
      %p104 = por %p102, %p103
      %p105 = scmp.ne.s32.totalorder %s96, %s97
      %p106 = scmp.eq.s32.totalorder %s23, 0
      %p107 = por %p105, %p106
      %p108 = scmp.ne.s32.totalorder %s96, %s97
      %p109 = scmp.eq.s32.totalorder %s24, 1
      %p110 = por %p108, %p109
      %p112 = scmp.ne.s32.totalorder %s97, %s111
      %p113 = scmp.eq.s32.totalorder %s24, 0
      %p114 = por %p112, %p113
      %s116 = sadd.s32 %s115, 1
      %p119 = scmp.eq.s32.totalorder %s18, 1
      %p120 = scmp.ne.s32.totalorder %s115, %s117
      %p121 = scmp.eq.s32.totalorder %s18, 0
      %p122 = por %p120, %p121
      %p123 = scmp.ne.s32.totalorder %s115, %s117
      %p124 = scmp.eq.s32.totalorder %s23, 1
      %p125 = por %p123, %p124
      %p126 = scmp.ne.s32.totalorder %s117, %s118
      %p127 = scmp.eq.s32.totalorder %s23, 0
      %p128 = por %p126, %p127
      %p129 = scmp.ne.s32.totalorder %s117, %s118
      %p130 = scmp.eq.s32.totalorder %s24, 1
      %p131 = por %p129, %p130
      %p133 = scmp.ne.s32.totalorder %s118, %s132
      %p134 = scmp.eq.s32.totalorder %s24, 0
      %p135 = por %p133, %p134
      %s136 = ssub.s32 %s18, %s25
      %p137 = scmp.eq.s32.totalorder %s136, 0
      %s139 = sadd.s32 %s138, 1
      %s140 = scalar_select %p137, %s138, %s139
      %p143 = pneg %p137
      %p144 = scmp.eq.s32.totalorder %s18, 1
      %p145 = por %p143, %p144
      %p146 = scmp.ne.s32.totalorder %s138, %s141
      %p147 = scmp.eq.s32.totalorder %s18, 0
      %p148 = por %p146, %p147
      %p149 = scmp.ne.s32.totalorder %s138, %s141
      %p150 = scmp.eq.s32.totalorder %s23, 1
      %p151 = por %p149, %p150
      %p152 = scmp.ne.s32.totalorder %s141, %s142
      %p153 = scmp.eq.s32.totalorder %s23, 0
      %p154 = por %p152, %p153
      %p155 = scmp.ne.s32.totalorder %s141, %s142
      %p156 = scmp.eq.s32.totalorder %s24, 1
      %p157 = por %p155, %p156
      %p159 = scmp.ne.s32.totalorder %s142, %s158
      %p160 = scmp.eq.s32.totalorder %s24, 0
      %p161 = por %p159, %p160
      %p162 = scmp.le.s32.totalorder 1, %s18
      %p163 = scmp.lt.s32.totalorder %s18, 3
      %p164 = pnand %p162, %p163
      %p165 = pneg %p164
      // Predicated region
      $region9: #{tpu_custom_call.1} parent=5 // pred_check
        _
      $region10: #{tpu_custom_call.1} parent=5 // pred_check_branch
        %167 = sbr.rel (%p164) target = $region12
      $region11: #{tpu_custom_call.1} parent=5 // pred_region
        %s168 = ssub.s32 %s18, 1
        // Predicated region
        $region13: #{tpu_custom_call.1} parent=11 // pred_check
          %p169 = pneg %p65
        $region14: #{tpu_custom_call.1} parent=11 // pred_check_branch
          %171 = sbr.rel (%p169) target = $region16
        $region15: #{tpu_custom_call.1} parent=11 // pred_region
          %s173 = ssub.s32 3072, 3072
          %174 = vsyncadd [#allocation8], %s173
          %s175 = sshll.u32 [#allocation7], 4
          %s176 = int_to_ptr.vmem [resolvable:$true] %s175
          %181 = dma.hbm_to_vmem [thread:$0]  %s1, 3072, %s176, [#allocation8], 192, 192, 12
        $region16: #{tpu_custom_call.1} parent=11 // pred_fallthru
          _
        // Predicated region
        $region17: #{tpu_custom_call.1} parent=11 // pred_check
          %p182 = pneg %p86
        $region18: #{tpu_custom_call.1} parent=11 // pred_check_branch
          %184 = sbr.rel (%p182) target = $region20
        $region19: #{tpu_custom_call.1} parent=11 // pred_region
          _
        $region20: #{tpu_custom_call.1} parent=11 // pred_fallthru
          _
        // Predicated region
        $region21: #{tpu_custom_call.1} parent=11 // pred_check
          %p185 = pneg %p107
        $region22: #{tpu_custom_call.1} parent=11 // pred_check_branch
          %187 = sbr.rel (%p185) target = $region24
        $region23: #{tpu_custom_call.1} parent=11 // pred_region
          %s189 = ssub.s32 1024, 1024
          %190 = vsyncadd [#allocation8], %s189
          %s191 = sshll.u32 [#allocation9], 4
          %s192 = int_to_ptr.vmem [resolvable:$true] %s191
          %197 = dma.hbm_to_vmem [thread:$0]  %s3, 1024, %s192, [#allocation8], 64, 64, 4
        $region24: #{tpu_custom_call.1} parent=11 // pred_fallthru
          _
        // Predicated region
        $region25: #{tpu_custom_call.1} parent=11 // pred_check
          %p198 = pneg %p128
        $region26: #{tpu_custom_call.1} parent=11 // pred_check_branch
          %200 = sbr.rel (%p198) target = $region28
        $region27: #{tpu_custom_call.1} parent=11 // pred_region
          _
        $region28: #{tpu_custom_call.1} parent=11 // pred_fallthru
          _
      $region12: #{tpu_custom_call.1} parent=5 // pred_fallthru
        _
      %p201 = scmp.lt.s32.totalorder %s18, 2
      // Predicated region
      $region29: #{tpu_custom_call.1} parent=5 // pred_check
        %p202 = pneg %p201
      $region30: #{tpu_custom_call.1} parent=5 // pred_check_branch
        %204 = sbr.rel (%p202) target = $region32
      $region31: #{tpu_custom_call.1} parent=5 // pred_region
        // Predicated region
        $region33: #{tpu_custom_call.1} parent=31 // pred_check
          %p205 = pneg %p38
        $region34: #{tpu_custom_call.1} parent=31 // pred_check_branch
          %207 = sbr.rel (%p205) target = $region36
        $region35: #{tpu_custom_call.1} parent=31 // pred_region
          %s208 = sand.u32 %s28, 1
          %s209 = scalar_lea.sflag [#allocation5], %s208
          %s210 = sand.u32 %s28, 1
          %s211 = smul.addr %s210, 128
          %s212 = scalar_lea.vmem [#allocation4], %s211
          %s213 = smul.u32 4, %s18
          %s215 = ssub.s32 2048, 2048
          %216 = vsyncadd %s209, %s215
          %s217 = smul.addr %s213, 8
          %s218 = smul.addr %s217, 64
          %s219 = scalar_lea.hbm %s0, %s218
          %s220 = sshll.u32 %s212, 4
          %s221 = int_to_ptr.vmem [resolvable:$true] %s220
          %226 = dma.hbm_to_vmem [thread:$0]  %s219, 2048, %s221, %s209, 64, 64, 4
        $region36: #{tpu_custom_call.1} parent=31 // pred_fallthru
          _
      $region32: #{tpu_custom_call.1} parent=5 // pred_fallthru
        _
      %p227 = scmp.le.s32.totalorder 1, %s18
      %p228 = scmp.lt.s32.totalorder %s18, 3
      %p229 = pnand %p227, %p228
      %p230 = pneg %p229
      // Predicated region
      $region37: #{tpu_custom_call.1} parent=5 // pred_check
        _
      $region38: #{tpu_custom_call.1} parent=5 // pred_check_branch
        %232 = sbr.rel (%p229) target = $region40
      $region39: #{tpu_custom_call.1} parent=5 // pred_region
        %s233 = ssub.s32 %s18, 1
        %s234 = sand.u32 %s31, 1
        %s235 = scalar_lea.sflag [#allocation5], %s234
        %s236 = sand.u32 %s31, 1
        %s237 = smul.addr %s236, 128
        %s238 = scalar_lea.vmem [#allocation4], %s237
        // Predicated region
        $region41: #{tpu_custom_call.1} parent=39 // pred_check
          %p239 = pneg %p44
        $region42: #{tpu_custom_call.1} parent=39 // pred_check_branch
          %241 = sbr.rel (%p239) target = $region44
        $region43: #{tpu_custom_call.1} parent=39 // pred_region
          %242 = dma.done %s235, 2048
        $region44: #{tpu_custom_call.1} parent=39 // pred_fallthru
          _
        // Predicated region
        $region45: #{tpu_custom_call.1} parent=39 // pred_check
          %p243 = pneg %p65
        $region46: #{tpu_custom_call.1} parent=39 // pred_check_branch
          %245 = sbr.rel (%p243) target = $region48
        $region47: #{tpu_custom_call.1} parent=39 // pred_region
          %246 = dma.done [#allocation8], 3072
        $region48: #{tpu_custom_call.1} parent=39 // pred_fallthru
          _
        // Predicated region
        $region49: #{tpu_custom_call.1} parent=39 // pred_check
          %p247 = pneg %p107
        $region50: #{tpu_custom_call.1} parent=39 // pred_check_branch
          %249 = sbr.rel (%p247) target = $region52
        $region51: #{tpu_custom_call.1} parent=39 // pred_region
          %250 = dma.done [#allocation8], 1024
        $region52: #{tpu_custom_call.1} parent=39 // pred_fallthru
          _
        %s251 = sand.u32 %s31, 1
        %s252 = scalar_lea.sflag [#allocation5], %s251
        %s253 = sand.u32 %s31, 1
        %s254 = smul.addr %s253, 128
        %s255 = scalar_lea.vmem [#allocation4], %s254
        %p256 = pneg %p44
        %p257 = pneg %p41
        %p258 = pneg %p65
        %p259 = pneg %p62
        %p260 = pneg %p86
        %p261 = pneg %p83
        %p262 = pneg %p107
        %p263 = pneg %p104
        %p264 = pneg %p128
        %p265 = pneg %p125
        %p266 = pneg %p154
        %p267 = pneg %p151
        %s268 = sand.u32 %s141, 1
        %s269 = scalar_lea.sflag [#allocation6], %s268
        %s270 = sand.u32 %s141, 1
        %s271 = smul.addr %s270, 256
        %s272 = scalar_lea.vmem [#allocation10], %s271
        %s273 = smul.u32 4, %s23
        %s274 = smul.u32 4, %s23
        %v276 = vld [vmem:[%s238] sm:$0xf]
        %v277 = vld [vmem:[%s238 + $0x4] sm:$0xf]
        %v278 = vld [vmem:[%s238 + $0x8] sm:$0xf]
        %v279 = vld [vmem:[%s238 + $0xc] sm:$0xf]
        %v280 = vld [vmem:[%s238 + $0x10] sm:$0xf]
        %v281 = vld [vmem:[%s238 + $0x14] sm:$0xf]
        %v282 = vld [vmem:[%s238 + $0x18] sm:$0xf]
        %v283 = vld [vmem:[%s238 + $0x1c] sm:$0xf]
        %v284 = vld [vmem:[%s238 + $0x20] sm:$0xf]
        %v285 = vld [vmem:[%s238 + $0x24] sm:$0xf]
        %v286 = vld [vmem:[%s238 + $0x28] sm:$0xf]
        %v287 = vld [vmem:[%s238 + $0x2c] sm:$0xf]
        %v288 = vld [vmem:[%s238 + $0x30] sm:$0xf]
        %v289 = vld [vmem:[%s238 + $0x34] sm:$0xf]
        %v290 = vld [vmem:[%s238 + $0x38] sm:$0xf]
        %v291 = vld [vmem:[%s238 + $0x3c] sm:$0xf]
        %v292 = vld [vmem:[%s238 + $0x40] sm:$0xf]
        %v293 = vld [vmem:[%s238 + $0x44] sm:$0xf]
        %v294 = vld [vmem:[%s238 + $0x48] sm:$0xf]
        %v295 = vld [vmem:[%s238 + $0x4c] sm:$0xf]
        %v296 = vld [vmem:[%s238 + $0x50] sm:$0xf]
        %v297 = vld [vmem:[%s238 + $0x54] sm:$0xf]
        %v298 = vld [vmem:[%s238 + $0x58] sm:$0xf]
        %v299 = vld [vmem:[%s238 + $0x5c] sm:$0xf]
        %v300 = vld [vmem:[%s238 + $0x60] sm:$0xf]
        %v301 = vld [vmem:[%s238 + $0x64] sm:$0xf]
        %v302 = vld [vmem:[%s238 + $0x68] sm:$0xf]
        %v303 = vld [vmem:[%s238 + $0x6c] sm:$0xf]
        %v304 = vld [vmem:[%s238 + $0x70] sm:$0xf]
        %v305 = vld [vmem:[%s238 + $0x74] sm:$0xf]
        %v306 = vld [vmem:[%s238 + $0x78] sm:$0xf]
        %v307 = vld [vmem:[%s238 + $0x7c] sm:$0xf]
        %v308 = vld [vmem:[#allocation7] sm:$0xff]
        %v309 = vld [vmem:[#allocation7 + $0x8] sm:$0xf]
        %v310 = vld [vmem:[#allocation7 + $0xc] sm:$0xff]
        %v311 = vld [vmem:[#allocation7 + $0x14] sm:$0xf]
        %v312 = vld [vmem:[#allocation7 + $0x18] sm:$0xff]
        %v313 = vld [vmem:[#allocation7 + $0x20] sm:$0xf]
        %v314 = vld [vmem:[#allocation7 + $0x24] sm:$0xff]
        %v315 = vld [vmem:[#allocation7 + $0x2c] sm:$0xf]
        %v316 = vld [vmem:[#allocation7 + $0x30] sm:$0xff]
        %v317 = vld [vmem:[#allocation7 + $0x38] sm:$0xf]
        %v318 = vld [vmem:[#allocation7 + $0x3c] sm:$0xff]
        %v319 = vld [vmem:[#allocation7 + $0x44] sm:$0xf]
        %v320 = vld [vmem:[#allocation7 + $0x48] sm:$0xff]
        %v321 = vld [vmem:[#allocation7 + $0x50] sm:$0xf]
        %v322 = vld [vmem:[#allocation7 + $0x54] sm:$0xff]
        %v323 = vld [vmem:[#allocation7 + $0x5c] sm:$0xf]
        %v324 = vld [vmem:[#allocation7 + $0x60] sm:$0xff]
        %v325 = vld [vmem:[#allocation7 + $0x68] sm:$0xf]
        %v326 = vld [vmem:[#allocation7 + $0x6c] sm:$0xff]
        %v327 = vld [vmem:[#allocation7 + $0x74] sm:$0xf]
        %v328 = vld [vmem:[#allocation7 + $0x78] sm:$0xff]
        %v329 = vld [vmem:[#allocation7 + $0x80] sm:$0xf]
        %v330 = vld [vmem:[#allocation7 + $0x84] sm:$0xff]
        %v331 = vld [vmem:[#allocation7 + $0x8c] sm:$0xf]
        %v332 = vld [vmem:[#allocation7 + $0x90] sm:$0xff]
        %v333 = vld [vmem:[#allocation7 + $0x98] sm:$0xf]
        %v334 = vld [vmem:[#allocation7 + $0x9c] sm:$0xff]
        %v335 = vld [vmem:[#allocation7 + $0xa4] sm:$0xf]
        %v336 = vld [vmem:[#allocation7 + $0xa8] sm:$0xff]
        %v337 = vld [vmem:[#allocation7 + $0xb0] sm:$0xf]
        %v338 = vld [vmem:[#allocation7 + $0xb4] sm:$0xff]
        %v339 = vld [vmem:[#allocation7 + $0xbc] sm:$0xf]
        %v340 = vld [vmem:[%s2] sm:$0x7]
        %v342 = vlaneseq
        %v343 = vshrl.u32 %v342, 7
        %v344 = vsub.s32 0, %v343
        %v345 = vrot.slane %v340, %v344
        %v346 = vlaneseq
        %v347 = vshrl.u32 %v346, 7
        %v348 = vsub.s32 1, %v347
        %v349 = vrot.slane %v340, %v348
        %v350 = vlaneseq
        %v351 = vshrl.u32 %v350, 7
        %v352 = vsub.s32 2, %v351
        %v353 = vrot.slane %v340, %v352
        %v389 = vunpack.c.l.b16 %v276
        %v390 = vunpack.c.l.b16 %v277
        %v391 = vunpack.c.l.b16 %v278
        %v392 = vunpack.c.l.b16 %v279
        %v393 = vunpack.c.l.b16 %v280
        %v394 = vunpack.c.l.b16 %v281
        %v395 = vunpack.c.l.b16 %v282
        %v396 = vunpack.c.l.b16 %v283
        %v397 = vunpack.c.l.b16 %v284
        %v398 = vunpack.c.l.b16 %v285
        %v399 = vunpack.c.l.b16 %v286
        %v400 = vunpack.c.l.b16 %v287
        %v401 = vunpack.c.l.b16 %v288
        %v402 = vunpack.c.l.b16 %v289
        %v403 = vunpack.c.l.b16 %v290
        %v404 = vunpack.c.l.b16 %v291
        %v405 = vunpack.c.l.b16 %v292
        %v406 = vunpack.c.l.b16 %v293
        %v407 = vunpack.c.l.b16 %v294
        %v408 = vunpack.c.l.b16 %v295
        %v409 = vunpack.c.l.b16 %v296
        %v410 = vunpack.c.l.b16 %v297
        %v411 = vunpack.c.l.b16 %v298
        %v412 = vunpack.c.l.b16 %v299
        %v413 = vunpack.c.l.b16 %v300
        %v414 = vunpack.c.l.b16 %v301
        %v415 = vunpack.c.l.b16 %v302
        %v416 = vunpack.c.l.b16 %v303
        %v417 = vunpack.c.l.b16 %v304
        %v418 = vunpack.c.l.b16 %v305
        %v419 = vunpack.c.l.b16 %v306
        %v420 = vunpack.c.l.b16 %v307
        %v421 = vpack.c.b16 %v390, %v389
        %v422 = vpack.c.b16 %v392, %v391
        %v423 = vpack.c.b16 %v394, %v393
        %v424 = vpack.c.b16 %v396, %v395
        %v425 = vpack.c.b16 %v398, %v397
        %v426 = vpack.c.b16 %v400, %v399
        %v427 = vpack.c.b16 %v402, %v401
        %v428 = vpack.c.b16 %v404, %v403
        %v429 = vpack.c.b16 %v406, %v405
        %v430 = vpack.c.b16 %v408, %v407
        %v431 = vpack.c.b16 %v410, %v409
        %v432 = vpack.c.b16 %v412, %v411
        %v433 = vpack.c.b16 %v414, %v413
        %v434 = vpack.c.b16 %v416, %v415
        %v435 = vpack.c.b16 %v418, %v417
        %v436 = vpack.c.b16 %v420, %v419
        %v485 = vunpack.c.l.b16 %v308
        %v486 = vunpack.c.h.b16 %v308
        %v487 = vunpack.c.l.b16 %v309
        %v488 = vunpack.c.l.b16 %v310
        %v489 = vunpack.c.h.b16 %v310
        %v490 = vunpack.c.l.b16 %v311
        %v491 = vunpack.c.l.b16 %v312
        %v492 = vunpack.c.h.b16 %v312
        %v493 = vunpack.c.l.b16 %v313
        %v494 = vunpack.c.l.b16 %v314
        %v495 = vunpack.c.h.b16 %v314
        %v496 = vunpack.c.l.b16 %v315
        %v497 = vunpack.c.l.b16 %v316
        %v498 = vunpack.c.h.b16 %v316
        %v499 = vunpack.c.l.b16 %v317
        %v500 = vunpack.c.l.b16 %v318
        %v501 = vunpack.c.h.b16 %v318
        %v502 = vunpack.c.l.b16 %v319
        %v503 = vunpack.c.l.b16 %v320
        %v504 = vunpack.c.h.b16 %v320
        %v505 = vunpack.c.l.b16 %v321
        %v506 = vunpack.c.l.b16 %v322
        %v507 = vunpack.c.h.b16 %v322
        %v508 = vunpack.c.l.b16 %v323
        %v509 = vunpack.c.l.b16 %v324
        %v510 = vunpack.c.h.b16 %v324
        %v511 = vunpack.c.l.b16 %v325
        %v512 = vunpack.c.l.b16 %v326
        %v513 = vunpack.c.h.b16 %v326
        %v514 = vunpack.c.l.b16 %v327
        %v515 = vunpack.c.l.b16 %v328
        %v516 = vunpack.c.h.b16 %v328
        %v517 = vunpack.c.l.b16 %v329
        %v518 = vunpack.c.l.b16 %v330
        %v519 = vunpack.c.h.b16 %v330
        %v520 = vunpack.c.l.b16 %v331
        %v521 = vunpack.c.l.b16 %v332
        %v522 = vunpack.c.h.b16 %v332
        %v523 = vunpack.c.l.b16 %v333
        %v524 = vunpack.c.l.b16 %v334
        %v525 = vunpack.c.h.b16 %v334
        %v526 = vunpack.c.l.b16 %v335
        %v527 = vunpack.c.l.b16 %v336
        %v528 = vunpack.c.h.b16 %v336
        %v529 = vunpack.c.l.b16 %v337
        %v530 = vunpack.c.l.b16 %v338
        %v531 = vunpack.c.h.b16 %v338
        %v532 = vunpack.c.l.b16 %v339
        %v533 = vpack.c.b16 %v488, %v485
        %v534 = vpack.c.b16 %v489, %v486
        %v535 = vpack.c.b16 %v490, %v487
        %v536 = vpack.c.b16 %v494, %v491
        %v537 = vpack.c.b16 %v495, %v492
        %v538 = vpack.c.b16 %v496, %v493
        %v539 = vpack.c.b16 %v500, %v497
        %v540 = vpack.c.b16 %v501, %v498
        %v541 = vpack.c.b16 %v502, %v499
        %v542 = vpack.c.b16 %v506, %v503
        %v543 = vpack.c.b16 %v507, %v504
        %v544 = vpack.c.b16 %v508, %v505
        %v545 = vpack.c.b16 %v512, %v509
        %v546 = vpack.c.b16 %v513, %v510
        %v547 = vpack.c.b16 %v514, %v511
        %v548 = vpack.c.b16 %v518, %v515
        %v549 = vpack.c.b16 %v519, %v516
        %v550 = vpack.c.b16 %v520, %v517
        %v551 = vpack.c.b16 %v524, %v521
        %v552 = vpack.c.b16 %v525, %v522
        %v553 = vpack.c.b16 %v526, %v523
        %v554 = vpack.c.b16 %v530, %v527
        %v555 = vpack.c.b16 %v531, %v528
        %v556 = vpack.c.b16 %v532, %v529
        %581 = vmatprep.subr.bf16.mxu0 %v555
        %582 = vmatpush1.bf16.msra.mxu0 %v554
        %583 = vmatprep.subr.bf16.mxu0 %v552
        %584 = vmatpush1.bf16.msra.mxu0 %v551
        %585 = vmatprep.subr.bf16.mxu0 %v549
        %586 = vmatpush1.bf16.msra.mxu0 %v548
        %587 = vmatprep.subr.bf16.mxu0 %v546
        %588 = vmatpush1.bf16.msra.mxu0 %v545
        %589 = vmatprep.subr.bf16.mxu0 %v543
        %590 = vmatpush1.bf16.msra.mxu0 %v542
        %591 = vmatprep.subr.bf16.mxu0 %v540
        %592 = vmatpush1.bf16.msra.mxu0 %v539
        %593 = vmatprep.subr.bf16.mxu0 %v537
        %594 = vmatpush1.bf16.msra.mxu0 %v536
        %595 = vmatprep.subr.bf16.mxu0 %v534
        %596 = vmatpush1.bf16.msra.mxu0 %v533
        %597 = vmatprep.subr.bf16.mxu0 0
        %598 = vmatpush2.bf16.msra.mxu0 0
        %599 = vmatprep.subr.bf16.mxu0 0
        %600 = vmatpush2.bf16.msra.mxu0 0
        %601 = vmatprep.subr.bf16.mxu0 0
        %602 = vmatpush2.bf16.msra.mxu0 0
        %603 = vmatprep.subr.bf16.mxu0 0
        %604 = vmatpush2.bf16.msra.mxu0 0
        %605 = vmatprep.subr.bf16.mxu0 0
        %606 = vmatpush2.bf16.msra.mxu0 0
        %607 = vmatprep.subr.bf16.mxu0 0
        %608 = vmatpush2.bf16.msra.mxu0 0
        %609 = vmatprep.subr.bf16.mxu0 0
        %610 = vmatpush2.bf16.msra.mxu0 0
        %611 = vmatprep.subr.bf16.mxu0 0
        %612 = vmatpush2.bf16.msra.mxu0 0
        %613 = vmatprep.mubr.bf16.mxu0 0
        %614 = vmatmul.mubr.bf16.gmra.mxu0 %v421
        %v615 = vpop.f32.mrf.mxu0
        %v616 = vadd.f32 %v345, %v615
        %v617 = vpop.f32.mrf.mxu0
        %v618 = vadd.f32 %v349, %v617
        %v619 = vpop.f32.mrf.mxu0
        %v620 = vadd.f32 %v345, %v619
        %v621 = vpop.f32.mrf.mxu0
        %v622 = vadd.f32 %v349, %v621
        %623 = vmatprep.mubr.bf16.mxu0 0
        %624 = vmatmul.mubr.bf16.gmra.mxu0 %v422
        %v625 = vpop.f32.mrf.mxu0
        %v626 = vadd.f32 %v345, %v625
        %v627 = vpop.f32.mrf.mxu0
        %v628 = vadd.f32 %v349, %v627
        %v629 = vpop.f32.mrf.mxu0
        %v630 = vadd.f32 %v345, %v629
        %v631 = vpop.f32.mrf.mxu0
        %v632 = vadd.f32 %v349, %v631
        %633 = vmatprep.mubr.bf16.mxu0 0
        %634 = vmatmul.mubr.bf16.gmra.mxu0 %v423
        %v635 = vpop.f32.mrf.mxu0
        %v636 = vadd.f32 %v345, %v635
        %v637 = vpop.f32.mrf.mxu0
        %v638 = vadd.f32 %v349, %v637
        %v639 = vpop.f32.mrf.mxu0
        %v640 = vadd.f32 %v345, %v639
        %v641 = vpop.f32.mrf.mxu0
        %v642 = vadd.f32 %v349, %v641
        %643 = vmatprep.mubr.bf16.mxu0 0
        %644 = vmatmul.mubr.bf16.gmra.mxu0 %v424
        %v645 = vpop.f32.mrf.mxu0
        %v646 = vadd.f32 %v345, %v645
        %v647 = vpop.f32.mrf.mxu0
        %v648 = vadd.f32 %v349, %v647
        %v649 = vpop.f32.mrf.mxu0
        %v650 = vadd.f32 %v345, %v649
        %v651 = vpop.f32.mrf.mxu0
        %v652 = vadd.f32 %v349, %v651
        %653 = vmatprep.mubr.bf16.mxu0 0
        %654 = vmatmul.mubr.bf16.gmra.mxu0 %v425
        %v655 = vpop.f32.mrf.mxu0
        %v656 = vadd.f32 %v345, %v655
        %v657 = vpop.f32.mrf.mxu0
        %v658 = vadd.f32 %v349, %v657
        %v659 = vpop.f32.mrf.mxu0
        %v660 = vadd.f32 %v345, %v659
        %v661 = vpop.f32.mrf.mxu0
        %v662 = vadd.f32 %v349, %v661
        %663 = vmatprep.mubr.bf16.mxu0 0
        %664 = vmatmul.mubr.bf16.gmra.mxu0 %v426
        %v665 = vpop.f32.mrf.mxu0
        %v666 = vadd.f32 %v345, %v665
        %v667 = vpop.f32.mrf.mxu0
        %v668 = vadd.f32 %v349, %v667
        %v669 = vpop.f32.mrf.mxu0
        %v670 = vadd.f32 %v345, %v669
        %v671 = vpop.f32.mrf.mxu0
        %v672 = vadd.f32 %v349, %v671
        %673 = vmatprep.mubr.bf16.mxu0 0
        %674 = vmatmul.mubr.bf16.gmra.mxu0 %v427
        %v675 = vpop.f32.mrf.mxu0
        %v676 = vadd.f32 %v345, %v675
        %v677 = vpop.f32.mrf.mxu0
        %v678 = vadd.f32 %v349, %v677
        %v679 = vpop.f32.mrf.mxu0
        %v680 = vadd.f32 %v345, %v679
        %v681 = vpop.f32.mrf.mxu0
        %v682 = vadd.f32 %v349, %v681
        %683 = vmatprep.mubr.bf16.mxu0 0
        %684 = vmatmul.mubr.bf16.gmra.mxu0 %v428
        %v685 = vpop.f32.mrf.mxu0
        %v686 = vadd.f32 %v345, %v685
        %v687 = vpop.f32.mrf.mxu0
        %v688 = vadd.f32 %v349, %v687
        %v689 = vpop.f32.mrf.mxu0
        %v690 = vadd.f32 %v345, %v689
        %v691 = vpop.f32.mrf.mxu0
        %v692 = vadd.f32 %v349, %v691
        %693 = vmatprep.mubr.bf16.mxu0 0
        %694 = vmatmul.mubr.bf16.gmra.mxu0 %v429
        %v695 = vpop.f32.mrf.mxu0
        %v696 = vadd.f32 %v345, %v695
        %v697 = vpop.f32.mrf.mxu0
        %v698 = vadd.f32 %v349, %v697
        %v699 = vpop.f32.mrf.mxu0
        %v700 = vadd.f32 %v345, %v699
        %v701 = vpop.f32.mrf.mxu0
        %v702 = vadd.f32 %v349, %v701
        %703 = vmatprep.mubr.bf16.mxu0 0
        %704 = vmatmul.mubr.bf16.gmra.mxu0 %v430
        %v705 = vpop.f32.mrf.mxu0
        %v706 = vadd.f32 %v345, %v705
        %v707 = vpop.f32.mrf.mxu0
        %v708 = vadd.f32 %v349, %v707
        %v709 = vpop.f32.mrf.mxu0
        %v710 = vadd.f32 %v345, %v709
        %v711 = vpop.f32.mrf.mxu0
        %v712 = vadd.f32 %v349, %v711
        %713 = vmatprep.mubr.bf16.mxu0 0
        %714 = vmatmul.mubr.bf16.gmra.mxu0 %v431
        %v715 = vpop.f32.mrf.mxu0
        %v716 = vadd.f32 %v345, %v715
        %v717 = vpop.f32.mrf.mxu0
        %v718 = vadd.f32 %v349, %v717
        %v719 = vpop.f32.mrf.mxu0
        %v720 = vadd.f32 %v345, %v719
        %v721 = vpop.f32.mrf.mxu0
        %v722 = vadd.f32 %v349, %v721
        %723 = vmatprep.mubr.bf16.mxu0 0
        %724 = vmatmul.mubr.bf16.gmra.mxu0 %v432
        %v725 = vpop.f32.mrf.mxu0
        %v726 = vadd.f32 %v345, %v725
        %v727 = vpop.f32.mrf.mxu0
        %v728 = vadd.f32 %v349, %v727
        %v729 = vpop.f32.mrf.mxu0
        %v730 = vadd.f32 %v345, %v729
        %v731 = vpop.f32.mrf.mxu0
        %v732 = vadd.f32 %v349, %v731
        %733 = vmatprep.mubr.bf16.mxu0 0
        %734 = vmatmul.mubr.bf16.gmra.mxu0 %v433
        %v735 = vpop.f32.mrf.mxu0
        %v736 = vadd.f32 %v345, %v735
        %v737 = vpop.f32.mrf.mxu0
        %v738 = vadd.f32 %v349, %v737
        %v739 = vpop.f32.mrf.mxu0
        %v740 = vadd.f32 %v345, %v739
        %v741 = vpop.f32.mrf.mxu0
        %v742 = vadd.f32 %v349, %v741
        %743 = vmatprep.mubr.bf16.mxu0 0
        %744 = vmatmul.mubr.bf16.gmra.mxu0 %v434
        %v745 = vpop.f32.mrf.mxu0
        %v746 = vadd.f32 %v345, %v745
        %v747 = vpop.f32.mrf.mxu0
        %v748 = vadd.f32 %v349, %v747
        %v749 = vpop.f32.mrf.mxu0
        %v750 = vadd.f32 %v345, %v749
        %v751 = vpop.f32.mrf.mxu0
        %v752 = vadd.f32 %v349, %v751
        %753 = vmatprep.mubr.bf16.mxu0 0
        %754 = vmatmul.mubr.bf16.gmra.mxu0 %v435
        %v755 = vpop.f32.mrf.mxu0
        %v756 = vadd.f32 %v345, %v755
        %v757 = vpop.f32.mrf.mxu0
        %v758 = vadd.f32 %v349, %v757
        %v759 = vpop.f32.mrf.mxu0
        %v760 = vadd.f32 %v345, %v759
        %v761 = vpop.f32.mrf.mxu0
        %v762 = vadd.f32 %v349, %v761
        %763 = vmatprep.mubr.bf16.mxu0 0
        %764 = vmatmul.mubr.bf16.gmra.mxu0 %v436
        %v765 = vpop.f32.mrf.mxu0
        %v766 = vadd.f32 %v345, %v765
        %v767 = vpop.f32.mrf.mxu0
        %v768 = vadd.f32 %v349, %v767
        %v769 = vpop.f32.mrf.mxu0
        %v770 = vadd.f32 %v345, %v769
        %v771 = vpop.f32.mrf.mxu0
        %v772 = vadd.f32 %v349, %v771
        %773 = vdwg.mxu0
        %774 = vmatprep.subr.bf16.mxu0 0
        %775 = vmatpush1.bf16.msra.mxu0 %v556
        %776 = vmatprep.subr.bf16.mxu0 0
        %777 = vmatpush1.bf16.msra.mxu0 %v553
        %778 = vmatprep.subr.bf16.mxu0 0
        %779 = vmatpush1.bf16.msra.mxu0 %v550
        %780 = vmatprep.subr.bf16.mxu0 0
        %781 = vmatpush1.bf16.msra.mxu0 %v547
        %782 = vmatprep.subr.bf16.mxu0 0
        %783 = vmatpush1.bf16.msra.mxu0 %v544
        %784 = vmatprep.subr.bf16.mxu0 0
        %785 = vmatpush1.bf16.msra.mxu0 %v541
        %786 = vmatprep.subr.bf16.mxu0 0
        %787 = vmatpush1.bf16.msra.mxu0 %v538
        %788 = vmatprep.subr.bf16.mxu0 0
        %789 = vmatpush1.bf16.msra.mxu0 %v535
        %790 = vmatprep.subr.bf16.mxu0 0
        %791 = vmatpush2.bf16.msra.mxu0 0
        %792 = vmatprep.subr.bf16.mxu0 0
        %793 = vmatpush2.bf16.msra.mxu0 0
        %794 = vmatprep.subr.bf16.mxu0 0
        %795 = vmatpush2.bf16.msra.mxu0 0
        %796 = vmatprep.subr.bf16.mxu0 0
        %797 = vmatpush2.bf16.msra.mxu0 0
        %798 = vmatprep.subr.bf16.mxu0 0
        %799 = vmatpush2.bf16.msra.mxu0 0
        %800 = vmatprep.subr.bf16.mxu0 0
        %801 = vmatpush2.bf16.msra.mxu0 0
        %802 = vmatprep.subr.bf16.mxu0 0
        %803 = vmatpush2.bf16.msra.mxu0 0
        %804 = vmatprep.subr.bf16.mxu0 0
        %805 = vmatpush2.bf16.msra.mxu0 0
        %806 = vmatprep.mubr.bf16.mxu0 0
        %807 = vmatmul.mubr.bf16.gmra.mxu0 %v421
        %v808 = vpop.f32.mrf.mxu0
        %v809 = vadd.f32 %v353, %v808
        %v810 = vpop.f32.mrf.mxu0
        %v811 = vpop.f32.mrf.mxu0
        %v812 = vadd.f32 %v353, %v811
        %v813 = vpop.f32.mrf.mxu0
        %814 = vmatprep.mubr.bf16.mxu0 0
        %815 = vmatmul.mubr.bf16.gmra.mxu0 %v422
        %v816 = vpop.f32.mrf.mxu0
        %v817 = vadd.f32 %v353, %v816
        %v818 = vpop.f32.mrf.mxu0
        %v819 = vpop.f32.mrf.mxu0
        %v820 = vadd.f32 %v353, %v819
        %v821 = vpop.f32.mrf.mxu0
        %822 = vmatprep.mubr.bf16.mxu0 0
        %823 = vmatmul.mubr.bf16.gmra.mxu0 %v423
        %v824 = vpop.f32.mrf.mxu0
        %v825 = vadd.f32 %v353, %v824
        %v826 = vpop.f32.mrf.mxu0
        %v827 = vpop.f32.mrf.mxu0
        %v828 = vadd.f32 %v353, %v827
        %v829 = vpop.f32.mrf.mxu0
        %830 = vmatprep.mubr.bf16.mxu0 0
        %831 = vmatmul.mubr.bf16.gmra.mxu0 %v424
        %v832 = vpop.f32.mrf.mxu0
        %v833 = vadd.f32 %v353, %v832
        %v834 = vpop.f32.mrf.mxu0
        %v835 = vpop.f32.mrf.mxu0
        %v836 = vadd.f32 %v353, %v835
        %v837 = vpop.f32.mrf.mxu0
        %838 = vmatprep.mubr.bf16.mxu0 0
        %839 = vmatmul.mubr.bf16.gmra.mxu0 %v425
        %v840 = vpop.f32.mrf.mxu0
        %v841 = vadd.f32 %v353, %v840
        %v842 = vpop.f32.mrf.mxu0
        %v843 = vpop.f32.mrf.mxu0
        %v844 = vadd.f32 %v353, %v843
        %v845 = vpop.f32.mrf.mxu0
        %846 = vmatprep.mubr.bf16.mxu0 0
        %847 = vmatmul.mubr.bf16.gmra.mxu0 %v426
        %v848 = vpop.f32.mrf.mxu0
        %v849 = vadd.f32 %v353, %v848
        %v850 = vpop.f32.mrf.mxu0
        %v851 = vpop.f32.mrf.mxu0
        %v852 = vadd.f32 %v353, %v851
        %v853 = vpop.f32.mrf.mxu0
        %854 = vmatprep.mubr.bf16.mxu0 0
        %855 = vmatmul.mubr.bf16.gmra.mxu0 %v427
        %v856 = vpop.f32.mrf.mxu0
        %v857 = vadd.f32 %v353, %v856
        %v858 = vpop.f32.mrf.mxu0
        %v859 = vpop.f32.mrf.mxu0
        %v860 = vadd.f32 %v353, %v859
        %v861 = vpop.f32.mrf.mxu0
        %862 = vmatprep.mubr.bf16.mxu0 0
        %863 = vmatmul.mubr.bf16.gmra.mxu0 %v428
        %v864 = vpop.f32.mrf.mxu0
        %v865 = vadd.f32 %v353, %v864
        %v866 = vpop.f32.mrf.mxu0
        %v867 = vpop.f32.mrf.mxu0
        %v868 = vadd.f32 %v353, %v867
        %v869 = vpop.f32.mrf.mxu0
        %870 = vmatprep.mubr.bf16.mxu0 0
        %871 = vmatmul.mubr.bf16.gmra.mxu0 %v429
        %v872 = vpop.f32.mrf.mxu0
        %v873 = vadd.f32 %v353, %v872
        %v874 = vpop.f32.mrf.mxu0
        %v875 = vpop.f32.mrf.mxu0
        %v876 = vadd.f32 %v353, %v875
        %v877 = vpop.f32.mrf.mxu0
        %878 = vmatprep.mubr.bf16.mxu0 0
        %879 = vmatmul.mubr.bf16.gmra.mxu0 %v430
        %v880 = vpop.f32.mrf.mxu0
        %v881 = vadd.f32 %v353, %v880
        %v882 = vpop.f32.mrf.mxu0
        %v883 = vpop.f32.mrf.mxu0
        %v884 = vadd.f32 %v353, %v883
        %v885 = vpop.f32.mrf.mxu0
        %886 = vmatprep.mubr.bf16.mxu0 0
        %887 = vmatmul.mubr.bf16.gmra.mxu0 %v431
        %v888 = vpop.f32.mrf.mxu0
        %v889 = vadd.f32 %v353, %v888
        %v890 = vpop.f32.mrf.mxu0
        %v891 = vpop.f32.mrf.mxu0
        %v892 = vadd.f32 %v353, %v891
        %v893 = vpop.f32.mrf.mxu0
        %894 = vmatprep.mubr.bf16.mxu0 0
        %895 = vmatmul.mubr.bf16.gmra.mxu0 %v432
        %v896 = vpop.f32.mrf.mxu0
        %v897 = vadd.f32 %v353, %v896
        %v898 = vpop.f32.mrf.mxu0
        %v899 = vpop.f32.mrf.mxu0
        %v900 = vadd.f32 %v353, %v899
        %v901 = vpop.f32.mrf.mxu0
        %902 = vmatprep.mubr.bf16.mxu0 0
        %903 = vmatmul.mubr.bf16.gmra.mxu0 %v433
        %v904 = vpop.f32.mrf.mxu0
        %v905 = vadd.f32 %v353, %v904
        %v906 = vpop.f32.mrf.mxu0
        %v907 = vpop.f32.mrf.mxu0
        %v908 = vadd.f32 %v353, %v907
        %v909 = vpop.f32.mrf.mxu0
        %910 = vmatprep.mubr.bf16.mxu0 0
        %911 = vmatmul.mubr.bf16.gmra.mxu0 %v434
        %v912 = vpop.f32.mrf.mxu0
        %v913 = vadd.f32 %v353, %v912
        %v914 = vpop.f32.mrf.mxu0
        %v915 = vpop.f32.mrf.mxu0
        %v916 = vadd.f32 %v353, %v915
        %v917 = vpop.f32.mrf.mxu0
        %918 = vmatprep.mubr.bf16.mxu0 0
        %919 = vmatmul.mubr.bf16.gmra.mxu0 %v435
        %v920 = vpop.f32.mrf.mxu0
        %v921 = vadd.f32 %v353, %v920
        %v922 = vpop.f32.mrf.mxu0
        %v923 = vpop.f32.mrf.mxu0
        %v924 = vadd.f32 %v353, %v923
        %v925 = vpop.f32.mrf.mxu0
        %926 = vmatprep.mubr.bf16.mxu0 0
        %927 = vmatmul.mubr.bf16.gmra.mxu0 %v436
        %v928 = vpop.f32.mrf.mxu0
        %v929 = vadd.f32 %v353, %v928
        %v930 = vpop.f32.mrf.mxu0
        %v931 = vpop.f32.mrf.mxu0
        %v932 = vadd.f32 %v353, %v931
        %v933 = vpop.f32.mrf.mxu0
        %934 = vdwg.mxu0
        %v935 = vpack.c.bf16 %v620, %v616
        %v936 = vpack.c.bf16 %v622, %v618
        %v937 = vpack.c.bf16 %v812, %v809
        %v938 = vpack.c.bf16 %v630, %v626
        %v939 = vpack.c.bf16 %v632, %v628
        %v940 = vpack.c.bf16 %v820, %v817
        %v941 = vpack.c.bf16 %v640, %v636
        %v942 = vpack.c.bf16 %v642, %v638
        %v943 = vpack.c.bf16 %v828, %v825
        %v944 = vpack.c.bf16 %v650, %v646
        %v945 = vpack.c.bf16 %v652, %v648
        %v946 = vpack.c.bf16 %v836, %v833
        %v947 = vpack.c.bf16 %v660, %v656
        %v948 = vpack.c.bf16 %v662, %v658
        %v949 = vpack.c.bf16 %v844, %v841
        %v950 = vpack.c.bf16 %v670, %v666
        %v951 = vpack.c.bf16 %v672, %v668
        %v952 = vpack.c.bf16 %v852, %v849
        %v953 = vpack.c.bf16 %v680, %v676
        %v954 = vpack.c.bf16 %v682, %v678
        %v955 = vpack.c.bf16 %v860, %v857
        %v956 = vpack.c.bf16 %v690, %v686
        %v957 = vpack.c.bf16 %v692, %v688
        %v958 = vpack.c.bf16 %v868, %v865
        %v959 = vpack.c.bf16 %v700, %v696
        %v960 = vpack.c.bf16 %v702, %v698
        %v961 = vpack.c.bf16 %v876, %v873
        %v962 = vpack.c.bf16 %v710, %v706
        %v963 = vpack.c.bf16 %v712, %v708
        %v964 = vpack.c.bf16 %v884, %v881
        %v965 = vpack.c.bf16 %v720, %v716
        %v966 = vpack.c.bf16 %v722, %v718
        %v967 = vpack.c.bf16 %v892, %v889
        %v968 = vpack.c.bf16 %v730, %v726
        %v969 = vpack.c.bf16 %v732, %v728
        %v970 = vpack.c.bf16 %v900, %v897
        %v971 = vpack.c.bf16 %v740, %v736
        %v972 = vpack.c.bf16 %v742, %v738
        %v973 = vpack.c.bf16 %v908, %v905
        %v974 = vpack.c.bf16 %v750, %v746
        %v975 = vpack.c.bf16 %v752, %v748
        %v976 = vpack.c.bf16 %v916, %v913
        %v977 = vpack.c.bf16 %v760, %v756
        %v978 = vpack.c.bf16 %v762, %v758
        %v979 = vpack.c.bf16 %v924, %v921
        %v980 = vpack.c.bf16 %v770, %v766
        %v981 = vpack.c.bf16 %v772, %v768
        %v982 = vpack.c.bf16 %v932, %v929
        %v1031 = vunpack.c.l.b16 %v935
        %v1032 = vunpack.c.l.b16 %v936
        %v1033 = vunpack.c.l.b16 %v937
        %v1034 = vunpack.c.h.b16 %v935
        %v1035 = vunpack.c.h.b16 %v936
        %v1036 = vunpack.c.h.b16 %v937
        %v1037 = vunpack.c.l.b16 %v938
        %v1038 = vunpack.c.l.b16 %v939
        %v1039 = vunpack.c.l.b16 %v940
        %v1040 = vunpack.c.h.b16 %v938
        %v1041 = vunpack.c.h.b16 %v939
        %v1042 = vunpack.c.h.b16 %v940
        %v1043 = vunpack.c.l.b16 %v941
        %v1044 = vunpack.c.l.b16 %v942
        %v1045 = vunpack.c.l.b16 %v943
        %v1046 = vunpack.c.h.b16 %v941
        %v1047 = vunpack.c.h.b16 %v942
        %v1048 = vunpack.c.h.b16 %v943
        %v1049 = vunpack.c.l.b16 %v944
        %v1050 = vunpack.c.l.b16 %v945
        %v1051 = vunpack.c.l.b16 %v946
        %v1052 = vunpack.c.h.b16 %v944
        %v1053 = vunpack.c.h.b16 %v945
        %v1054 = vunpack.c.h.b16 %v946
        %v1055 = vunpack.c.l.b16 %v947
        %v1056 = vunpack.c.l.b16 %v948
        %v1057 = vunpack.c.l.b16 %v949
        %v1058 = vunpack.c.h.b16 %v947
        %v1059 = vunpack.c.h.b16 %v948
        %v1060 = vunpack.c.h.b16 %v949
        %v1061 = vunpack.c.l.b16 %v950
        %v1062 = vunpack.c.l.b16 %v951
        %v1063 = vunpack.c.l.b16 %v952
        %v1064 = vunpack.c.h.b16 %v950
        %v1065 = vunpack.c.h.b16 %v951
        %v1066 = vunpack.c.h.b16 %v952
        %v1067 = vunpack.c.l.b16 %v953
        %v1068 = vunpack.c.l.b16 %v954
        %v1069 = vunpack.c.l.b16 %v955
        %v1070 = vunpack.c.h.b16 %v953
        %v1071 = vunpack.c.h.b16 %v954
        %v1072 = vunpack.c.h.b16 %v955
        %v1073 = vunpack.c.l.b16 %v956
        %v1074 = vunpack.c.l.b16 %v957
        %v1075 = vunpack.c.l.b16 %v958
        %v1076 = vunpack.c.h.b16 %v956
        %v1077 = vunpack.c.h.b16 %v957
        %v1078 = vunpack.c.h.b16 %v958
        %v1079 = vunpack.c.l.b16 %v959
        %v1080 = vunpack.c.l.b16 %v960
        %v1081 = vunpack.c.l.b16 %v961
        %v1082 = vunpack.c.h.b16 %v959
        %v1083 = vunpack.c.h.b16 %v960
        %v1084 = vunpack.c.h.b16 %v961
        %v1085 = vunpack.c.l.b16 %v962
        %v1086 = vunpack.c.l.b16 %v963
        %v1087 = vunpack.c.l.b16 %v964
        %v1088 = vunpack.c.h.b16 %v962
        %v1089 = vunpack.c.h.b16 %v963
        %v1090 = vunpack.c.h.b16 %v964
        %v1091 = vunpack.c.l.b16 %v965
        %v1092 = vunpack.c.l.b16 %v966
        %v1093 = vunpack.c.l.b16 %v967
        %v1094 = vunpack.c.h.b16 %v965
        %v1095 = vunpack.c.h.b16 %v966
        %v1096 = vunpack.c.h.b16 %v967
        %v1097 = vunpack.c.l.b16 %v968
        %v1098 = vunpack.c.l.b16 %v969
        %v1099 = vunpack.c.l.b16 %v970
        %v1100 = vunpack.c.h.b16 %v968
        %v1101 = vunpack.c.h.b16 %v969
        %v1102 = vunpack.c.h.b16 %v970
        %v1103 = vunpack.c.l.b16 %v971
        %v1104 = vunpack.c.l.b16 %v972
        %v1105 = vunpack.c.l.b16 %v973
        %v1106 = vunpack.c.h.b16 %v971
        %v1107 = vunpack.c.h.b16 %v972
        %v1108 = vunpack.c.h.b16 %v973
        %v1109 = vunpack.c.l.b16 %v974
        %v1110 = vunpack.c.l.b16 %v975
        %v1111 = vunpack.c.l.b16 %v976
        %v1112 = vunpack.c.h.b16 %v974
        %v1113 = vunpack.c.h.b16 %v975
        %v1114 = vunpack.c.h.b16 %v976
        %v1115 = vunpack.c.l.b16 %v977
        %v1116 = vunpack.c.l.b16 %v978
        %v1117 = vunpack.c.l.b16 %v979
        %v1118 = vunpack.c.h.b16 %v977
        %v1119 = vunpack.c.h.b16 %v978
        %v1120 = vunpack.c.h.b16 %v979
        %v1121 = vunpack.c.l.b16 %v980
        %v1122 = vunpack.c.l.b16 %v981
        %v1123 = vunpack.c.l.b16 %v982
        %v1124 = vunpack.c.h.b16 %v980
        %v1125 = vunpack.c.h.b16 %v981
        %v1126 = vunpack.c.h.b16 %v982
        %v1127 = vpack.c.b16 %v1032, %v1031
        %v1128 = vpack.c.b16 %v1033, %v1033
        %v1129 = vpack.c.b16 %v1035, %v1034
        %v1130 = vpack.c.b16 %v1036, %v1036
        %v1131 = vpack.c.b16 %v1038, %v1037
        %v1132 = vpack.c.b16 %v1039, %v1039
        %v1133 = vpack.c.b16 %v1041, %v1040
        %v1134 = vpack.c.b16 %v1042, %v1042
        %v1135 = vpack.c.b16 %v1044, %v1043
        %v1136 = vpack.c.b16 %v1045, %v1045
        %v1137 = vpack.c.b16 %v1047, %v1046
        %v1138 = vpack.c.b16 %v1048, %v1048
        %v1139 = vpack.c.b16 %v1050, %v1049
        %v1140 = vpack.c.b16 %v1051, %v1051
        %v1141 = vpack.c.b16 %v1053, %v1052
        %v1142 = vpack.c.b16 %v1054, %v1054
        %v1143 = vpack.c.b16 %v1056, %v1055
        %v1144 = vpack.c.b16 %v1057, %v1057
        %v1145 = vpack.c.b16 %v1059, %v1058
        %v1146 = vpack.c.b16 %v1060, %v1060
        %v1147 = vpack.c.b16 %v1062, %v1061
        %v1148 = vpack.c.b16 %v1063, %v1063
        %v1149 = vpack.c.b16 %v1065, %v1064
        %v1150 = vpack.c.b16 %v1066, %v1066
        %v1151 = vpack.c.b16 %v1068, %v1067
        %v1152 = vpack.c.b16 %v1069, %v1069
        %v1153 = vpack.c.b16 %v1071, %v1070
        %v1154 = vpack.c.b16 %v1072, %v1072
        %v1155 = vpack.c.b16 %v1074, %v1073
        %v1156 = vpack.c.b16 %v1075, %v1075
        %v1157 = vpack.c.b16 %v1077, %v1076
        %v1158 = vpack.c.b16 %v1078, %v1078
        %v1159 = vpack.c.b16 %v1080, %v1079
        %v1160 = vpack.c.b16 %v1081, %v1081
        %v1161 = vpack.c.b16 %v1083, %v1082
        %v1162 = vpack.c.b16 %v1084, %v1084
        %v1163 = vpack.c.b16 %v1086, %v1085
        %v1164 = vpack.c.b16 %v1087, %v1087
        %v1165 = vpack.c.b16 %v1089, %v1088
        %v1166 = vpack.c.b16 %v1090, %v1090
        %v1167 = vpack.c.b16 %v1092, %v1091
        %v1168 = vpack.c.b16 %v1093, %v1093
        %v1169 = vpack.c.b16 %v1095, %v1094
        %v1170 = vpack.c.b16 %v1096, %v1096
        %v1171 = vpack.c.b16 %v1098, %v1097
        %v1172 = vpack.c.b16 %v1099, %v1099
        %v1173 = vpack.c.b16 %v1101, %v1100
        %v1174 = vpack.c.b16 %v1102, %v1102
        %v1175 = vpack.c.b16 %v1104, %v1103
        %v1176 = vpack.c.b16 %v1105, %v1105
        %v1177 = vpack.c.b16 %v1107, %v1106
        %v1178 = vpack.c.b16 %v1108, %v1108
        %v1179 = vpack.c.b16 %v1110, %v1109
        %v1180 = vpack.c.b16 %v1111, %v1111
        %v1181 = vpack.c.b16 %v1113, %v1112
        %v1182 = vpack.c.b16 %v1114, %v1114
        %v1183 = vpack.c.b16 %v1116, %v1115
        %v1184 = vpack.c.b16 %v1117, %v1117
        %v1185 = vpack.c.b16 %v1119, %v1118
        %v1186 = vpack.c.b16 %v1120, %v1120
        %v1187 = vpack.c.b16 %v1122, %v1121
        %v1188 = vpack.c.b16 %v1123, %v1123
        %v1189 = vpack.c.b16 %v1125, %v1124
        %v1190 = vpack.c.b16 %v1126, %v1126
        %1255 = vst [vmem:[#allocation2] sm:$0xff] %v1127
        %1256 = vst [vmem:[#allocation2 + $0x8] sm:$0xf] %v1128
        %1257 = vst [vmem:[#allocation2 + $0xc] sm:$0xff] %v1129
        %1258 = vst [vmem:[#allocation2 + $0x14] sm:$0xf] %v1130
        %1259 = vst [vmem:[#allocation2 + $0x18] sm:$0xff] %v1131
        %1260 = vst [vmem:[#allocation2 + $0x20] sm:$0xf] %v1132
        %1261 = vst [vmem:[#allocation2 + $0x24] sm:$0xff] %v1133
        %1262 = vst [vmem:[#allocation2 + $0x2c] sm:$0xf] %v1134
        %1263 = vst [vmem:[#allocation2 + $0x30] sm:$0xff] %v1135
        %1264 = vst [vmem:[#allocation2 + $0x38] sm:$0xf] %v1136
        %1265 = vst [vmem:[#allocation2 + $0x3c] sm:$0xff] %v1137
        %1266 = vst [vmem:[#allocation2 + $0x44] sm:$0xf] %v1138
        %1267 = vst [vmem:[#allocation2 + $0x48] sm:$0xff] %v1139
        %1268 = vst [vmem:[#allocation2 + $0x50] sm:$0xf] %v1140
        %1269 = vst [vmem:[#allocation2 + $0x54] sm:$0xff] %v1141
        %1270 = vst [vmem:[#allocation2 + $0x5c] sm:$0xf] %v1142
        %1271 = vst [vmem:[#allocation2 + $0x60] sm:$0xff] %v1143
        %1272 = vst [vmem:[#allocation2 + $0x68] sm:$0xf] %v1144
        %1273 = vst [vmem:[#allocation2 + $0x6c] sm:$0xff] %v1145
        %1274 = vst [vmem:[#allocation2 + $0x74] sm:$0xf] %v1146
        %1275 = vst [vmem:[#allocation2 + $0x78] sm:$0xff] %v1147
        %1276 = vst [vmem:[#allocation2 + $0x80] sm:$0xf] %v1148
        %1277 = vst [vmem:[#allocation2 + $0x84] sm:$0xff] %v1149
        %1278 = vst [vmem:[#allocation2 + $0x8c] sm:$0xf] %v1150
        %1279 = vst [vmem:[#allocation2 + $0x90] sm:$0xff] %v1151
        %1280 = vst [vmem:[#allocation2 + $0x98] sm:$0xf] %v1152
        %1281 = vst [vmem:[#allocation2 + $0x9c] sm:$0xff] %v1153
        %1282 = vst [vmem:[#allocation2 + $0xa4] sm:$0xf] %v1154
        %1283 = vst [vmem:[#allocation2 + $0xa8] sm:$0xff] %v1155
        %1284 = vst [vmem:[#allocation2 + $0xb0] sm:$0xf] %v1156
        %1285 = vst [vmem:[#allocation2 + $0xb4] sm:$0xff] %v1157
        %1286 = vst [vmem:[#allocation2 + $0xbc] sm:$0xf] %v1158
        %1287 = vst [vmem:[#allocation2 + $0xc0] sm:$0xff] %v1159
        %1288 = vst [vmem:[#allocation2 + $0xc8] sm:$0xf] %v1160
        %1289 = vst [vmem:[#allocation2 + $0xcc] sm:$0xff] %v1161
        %1290 = vst [vmem:[#allocation2 + $0xd4] sm:$0xf] %v1162
        %1291 = vst [vmem:[#allocation2 + $0xd8] sm:$0xff] %v1163
        %1292 = vst [vmem:[#allocation2 + $0xe0] sm:$0xf] %v1164
        %1293 = vst [vmem:[#allocation2 + $0xe4] sm:$0xff] %v1165
        %1294 = vst [vmem:[#allocation2 + $0xec] sm:$0xf] %v1166
        %1295 = vst [vmem:[#allocation2 + $0xf0] sm:$0xff] %v1167
        %1296 = vst [vmem:[#allocation2 + $0xf8] sm:$0xf] %v1168
        %1297 = vst [vmem:[#allocation2 + $0xfc] sm:$0xff] %v1169
        %1298 = vst [vmem:[#allocation2 + $0x104] sm:$0xf] %v1170
        %1299 = vst [vmem:[#allocation2 + $0x108] sm:$0xff] %v1171
        %1300 = vst [vmem:[#allocation2 + $0x110] sm:$0xf] %v1172
        %1301 = vst [vmem:[#allocation2 + $0x114] sm:$0xff] %v1173
        %1302 = vst [vmem:[#allocation2 + $0x11c] sm:$0xf] %v1174
        %1303 = vst [vmem:[#allocation2 + $0x120] sm:$0xff] %v1175
        %1304 = vst [vmem:[#allocation2 + $0x128] sm:$0xf] %v1176
        %1305 = vst [vmem:[#allocation2 + $0x12c] sm:$0xff] %v1177
        %1306 = vst [vmem:[#allocation2 + $0x134] sm:$0xf] %v1178
        %1307 = vst [vmem:[#allocation2 + $0x138] sm:$0xff] %v1179
        %1308 = vst [vmem:[#allocation2 + $0x140] sm:$0xf] %v1180
        %1309 = vst [vmem:[#allocation2 + $0x144] sm:$0xff] %v1181
        %1310 = vst [vmem:[#allocation2 + $0x14c] sm:$0xf] %v1182
        %1311 = vst [vmem:[#allocation2 + $0x150] sm:$0xff] %v1183
        %1312 = vst [vmem:[#allocation2 + $0x158] sm:$0xf] %v1184
        %1313 = vst [vmem:[#allocation2 + $0x15c] sm:$0xff] %v1185
        %1314 = vst [vmem:[#allocation2 + $0x164] sm:$0xf] %v1186
        %1315 = vst [vmem:[#allocation2 + $0x168] sm:$0xff] %v1187
        %1316 = vst [vmem:[#allocation2 + $0x170] sm:$0xf] %v1188
        %1317 = vst [vmem:[#allocation2 + $0x174] sm:$0xff] %v1189
        %1318 = vst [vmem:[#allocation2 + $0x17c] sm:$0xf] %v1190
        %v1319 = vld [vmem:[#allocation2] sm:$0xf]
        %v1320 = vld [vmem:[#allocation2 + $0xc] sm:$0xf]
        %v1321 = vld [vmem:[#allocation2 + $0x18] sm:$0xf]
        %v1322 = vld [vmem:[#allocation2 + $0x24] sm:$0xf]
        %v1323 = vld [vmem:[#allocation2 + $0x30] sm:$0xf]
        %v1324 = vld [vmem:[#allocation2 + $0x3c] sm:$0xf]
        %v1325 = vld [vmem:[#allocation2 + $0x48] sm:$0xf]
        %v1326 = vld [vmem:[#allocation2 + $0x54] sm:$0xf]
        %v1327 = vld [vmem:[#allocation2 + $0x4] sm:$0xf]
        %v1328 = vld [vmem:[#allocation2 + $0x10] sm:$0xf]
        %v1329 = vld [vmem:[#allocation2 + $0x1c] sm:$0xf]
        %v1330 = vld [vmem:[#allocation2 + $0x28] sm:$0xf]
        %v1331 = vld [vmem:[#allocation2 + $0x34] sm:$0xf]
        %v1332 = vld [vmem:[#allocation2 + $0x40] sm:$0xf]
        %v1333 = vld [vmem:[#allocation2 + $0x4c] sm:$0xf]
        %v1334 = vld [vmem:[#allocation2 + $0x58] sm:$0xf]
        %v1335 = vld [vmem:[#allocation2 + $0x8] sm:$0xf]
        %v1336 = vld [vmem:[#allocation2 + $0x14] sm:$0xf]
        %v1337 = vld [vmem:[#allocation2 + $0x20] sm:$0xf]
        %v1338 = vld [vmem:[#allocation2 + $0x2c] sm:$0xf]
        %v1339 = vld [vmem:[#allocation2 + $0x38] sm:$0xf]
        %v1340 = vld [vmem:[#allocation2 + $0x44] sm:$0xf]
        %v1341 = vld [vmem:[#allocation2 + $0x50] sm:$0xf]
        %v1342 = vld [vmem:[#allocation2 + $0x5c] sm:$0xf]
        %v1351 = vunpack.c.l.b16 %v1319
        %v1352 = vunpack.c.l.b16 %v1320
        %v1353 = vunpack.c.l.b16 %v1321
        %v1354 = vunpack.c.l.b16 %v1322
        %v1355 = vunpack.c.l.b16 %v1323
        %v1356 = vunpack.c.l.b16 %v1324
        %v1357 = vunpack.c.l.b16 %v1325
        %v1358 = vunpack.c.l.b16 %v1326
        %v1359 = vpack.c.b16 %v1352, %v1351
        %v1360 = vpack.c.b16 %v1354, %v1353
        %v1361 = vpack.c.b16 %v1356, %v1355
        %v1362 = vpack.c.b16 %v1358, %v1357
        %v1371 = vunpack.c.l.b16 %v1327
        %v1372 = vunpack.c.l.b16 %v1328
        %v1373 = vunpack.c.l.b16 %v1329
        %v1374 = vunpack.c.l.b16 %v1330
        %v1375 = vunpack.c.l.b16 %v1331
        %v1376 = vunpack.c.l.b16 %v1332
        %v1377 = vunpack.c.l.b16 %v1333
        %v1378 = vunpack.c.l.b16 %v1334
        %v1379 = vpack.c.b16 %v1372, %v1371
        %v1380 = vpack.c.b16 %v1374, %v1373
        %v1381 = vpack.c.b16 %v1376, %v1375
        %v1382 = vpack.c.b16 %v1378, %v1377
        %vm1383 = vcmask 261120
        %v1385 = vsel %vm1383, %v1359, 0
        %v1388 = vsel %vm1383, %v1360, 0
        %v1391 = vsel %vm1383, %v1361, 0
        %v1394 = vsel %vm1383, %v1362, 0
        %v1397 = vsel %vm1383, %v1379, 0
        %v1400 = vsel %vm1383, %v1380, 0
        %v1403 = vsel %vm1383, %v1381, 0
        %v1406 = vsel %vm1383, %v1382, 0
        %1408 = vmatprep.subr.bf16.mxu0 0
        %1409 = vmatpush1.bf16.xpose.msra.mxu0 0
        %1410 = vmatprep.subr.bf16.mxu0 0
        %1411 = vmatpush1.bf16.xpose.msra.mxu0 0
        %1412 = vmatprep.subr.bf16.mxu0 0
        %1413 = vmatpush1.bf16.xpose.msra.mxu0 0
        %1414 = vmatprep.subr.bf16.mxu0 0
        %1415 = vmatpush1.bf16.xpose.msra.mxu0 0
        %1416 = vmatprep.subr.bf16.mxu0 0
        %1417 = vmatpush1.bf16.xpose.msra.mxu0 %v1406
        %1418 = vmatprep.subr.bf16.mxu0 0
        %1419 = vmatpush1.bf16.xpose.msra.mxu0 %v1403
        %1420 = vmatprep.subr.bf16.mxu0 0
        %1421 = vmatpush1.bf16.xpose.msra.mxu0 %v1400
        %1422 = vmatprep.subr.bf16.mxu0 0
        %1423 = vmatpush1.bf16.xpose.msra.mxu0 %v1397
        %1424 = vmatprep.subr.bf16.mxu0 0
        %1425 = vmatpush2.bf16.xpose.msra.mxu0 0
        %1426 = vmatprep.subr.bf16.mxu0 0
        %1427 = vmatpush2.bf16.xpose.msra.mxu0 0
        %1428 = vmatprep.subr.bf16.mxu0 0
        %1429 = vmatpush2.bf16.xpose.msra.mxu0 0
        %1430 = vmatprep.subr.bf16.mxu0 0
        %1431 = vmatpush2.bf16.xpose.msra.mxu0 0
        %1432 = vmatprep.subr.bf16.mxu0 0
        %1433 = vmatpush2.bf16.xpose.msra.mxu0 0
        %1434 = vmatprep.subr.bf16.mxu0 0
        %1435 = vmatpush2.bf16.xpose.msra.mxu0 0
        %1436 = vmatprep.subr.bf16.mxu0 0
        %1437 = vmatpush2.bf16.xpose.msra.mxu0 0
        %1438 = vmatprep.subr.bf16.mxu0 0
        %1439 = vmatpush2.bf16.xpose.msra.mxu0 0
        %1440 = vmatprep.mubr.bf16.mxu0 0
        %1441 = vmatmul.mubr.bf16.gmra.mxu0 %v1385
        %v1442 = vpop.f32.mrf.mxu0
        %v1443 = vadd.f32 0.0, %v1442
        %v1444 = vpop.f32.mrf.mxu0
        %v1445 = vpop.f32.mrf.mxu0
        %v1446 = vadd.f32 0.0, %v1445
        %v1447 = vpop.f32.mrf.mxu0
        %1448 = vmatprep.mubr.bf16.mxu0 0
        %1449 = vmatmul.mubr.bf16.gmra.mxu0 %v1388
        %v1450 = vpop.f32.mrf.mxu0
        %v1451 = vadd.f32 0.0, %v1450
        %v1452 = vpop.f32.mrf.mxu0
        %v1453 = vpop.f32.mrf.mxu0
        %v1454 = vadd.f32 0.0, %v1453
        %v1455 = vpop.f32.mrf.mxu0
        %1456 = vmatprep.mubr.bf16.mxu0 0
        %1457 = vmatmul.mubr.bf16.gmra.mxu0 %v1391
        %v1458 = vpop.f32.mrf.mxu0
        %v1459 = vadd.f32 0.0, %v1458
        %v1460 = vpop.f32.mrf.mxu0
        %v1461 = vpop.f32.mrf.mxu0
        %v1462 = vadd.f32 0.0, %v1461
        %v1463 = vpop.f32.mrf.mxu0
        %1464 = vmatprep.mubr.bf16.mxu0 0
        %1465 = vmatmul.mubr.bf16.gmra.mxu0 %v1394
        %v1466 = vpop.f32.mrf.mxu0
        %v1467 = vadd.f32 0.0, %v1466
        %v1468 = vpop.f32.mrf.mxu0
        %v1469 = vpop.f32.mrf.mxu0
        %v1470 = vadd.f32 0.0, %v1469
        %v1471 = vpop.f32.mrf.mxu0
        %1472 = vdwg.mxu0
        %vm1473 = vcmask 523264
        %v1474 = vsel %vm1473, %v1443, -inf
        %1475 = vmax.xlane.f32.xlu0 %v1474
        %v1476 = vpop.xlane.xlu0 %1475
        %v1477 = vsel %vm1473, %v1446, -inf
        %1478 = vmax.xlane.f32.xlu0 %v1477
        %v1479 = vpop.xlane.xlu0 %1478
        %v1480 = vsel %vm1473, %v1451, -inf
        %1481 = vmax.xlane.f32.xlu0 %v1480
        %v1482 = vpop.xlane.xlu0 %1481
        %v1483 = vsel %vm1473, %v1454, -inf
        %1484 = vmax.xlane.f32.xlu0 %v1483
        %v1485 = vpop.xlane.xlu0 %1484
        %v1486 = vsel %vm1473, %v1459, -inf
        %1487 = vmax.xlane.f32.xlu0 %v1486
        %v1488 = vpop.xlane.xlu0 %1487
        %v1489 = vsel %vm1473, %v1462, -inf
        %1490 = vmax.xlane.f32.xlu0 %v1489
        %v1491 = vpop.xlane.xlu0 %1490
        %v1492 = vsel %vm1473, %v1467, -inf
        %1493 = vmax.xlane.f32.xlu0 %v1492
        %v1494 = vpop.xlane.xlu0 %1493
        %v1495 = vsel %vm1473, %v1470, -inf
        %1496 = vmax.xlane.f32.xlu0 %v1495
        %v1497 = vpop.xlane.xlu0 %1496
        %v1498 = vsub.f32 %v1443, %v1476
        %v1499 = vsub.f32 %v1446, %v1479
        %v1500 = vsub.f32 %v1451, %v1482
        %v1501 = vsub.f32 %v1454, %v1485
        %v1502 = vsub.f32 %v1459, %v1488
        %v1503 = vsub.f32 %v1462, %v1491
        %v1504 = vsub.f32 %v1467, %v1494
        %v1505 = vsub.f32 %v1470, %v1497
        %v1506 = vmul.f32 %v1498, 1.442695
        %v1507 = vpow.pop %v1506
        %v1508 = vmul.f32 %v1499, 1.442695
        %v1509 = vpow.pop %v1508
        %v1510 = vmul.f32 %v1500, 1.442695
        %v1511 = vpow.pop %v1510
        %v1512 = vmul.f32 %v1501, 1.442695
        %v1513 = vpow.pop %v1512
        %v1514 = vmul.f32 %v1502, 1.442695
        %v1515 = vpow.pop %v1514
        %v1516 = vmul.f32 %v1503, 1.442695
        %v1517 = vpow.pop %v1516
        %v1518 = vmul.f32 %v1504, 1.442695
        %v1519 = vpow.pop %v1518
        %v1520 = vmul.f32 %v1505, 1.442695
        %v1521 = vpow.pop %v1520
        %v1522 = vsel %vm1473, %v1507, 0.0
        %1523 = vadd.xlane.f32.xlu0 %v1522
        %v1524 = vpop.xlane.xlu0 %1523
        %v1525 = vsel %vm1473, %v1509, 0.0
        %1526 = vadd.xlane.f32.xlu0 %v1525
        %v1527 = vpop.xlane.xlu0 %1526
        %v1528 = vsel %vm1473, %v1511, 0.0
        %1529 = vadd.xlane.f32.xlu0 %v1528
        %v1530 = vpop.xlane.xlu0 %1529
        %v1531 = vsel %vm1473, %v1513, 0.0
        %1532 = vadd.xlane.f32.xlu0 %v1531
        %v1533 = vpop.xlane.xlu0 %1532
        %v1534 = vsel %vm1473, %v1515, 0.0
        %1535 = vadd.xlane.f32.xlu0 %v1534
        %v1536 = vpop.xlane.xlu0 %1535
        %v1537 = vsel %vm1473, %v1517, 0.0
        %1538 = vadd.xlane.f32.xlu0 %v1537
        %v1539 = vpop.xlane.xlu0 %1538
        %v1540 = vsel %vm1473, %v1519, 0.0
        %1541 = vadd.xlane.f32.xlu0 %v1540
        %v1542 = vpop.xlane.xlu0 %1541
        %v1543 = vsel %vm1473, %v1521, 0.0
        %1544 = vadd.xlane.f32.xlu0 %v1543
        %v1545 = vpop.xlane.xlu0 %1544
        %v1546 = vrcp.pop %v1524
        %v1547 = vrcp.pop %v1527
        %v1548 = vrcp.pop %v1530
        %v1549 = vrcp.pop %v1533
        %v1550 = vrcp.pop %v1536
        %v1551 = vrcp.pop %v1539
        %v1552 = vrcp.pop %v1542
        %v1553 = vrcp.pop %v1545
        %v1554 = vmul.f32 %v1507, %v1546
        %v1555 = vmul.f32 %v1509, %v1547
        %v1556 = vmul.f32 %v1511, %v1548
        %v1557 = vmul.f32 %v1513, %v1549
        %v1558 = vmul.f32 %v1515, %v1550
        %v1559 = vmul.f32 %v1517, %v1551
        %v1560 = vmul.f32 %v1519, %v1552
        %v1561 = vmul.f32 %v1521, %v1553
        %v1562 = vpack.c.bf16 %v1555, %v1554
        %v1563 = vpack.c.bf16 %v1557, %v1556
        %v1564 = vpack.c.bf16 %v1559, %v1558
        %v1565 = vpack.c.bf16 %v1561, %v1560
        %v1574 = vunpack.c.l.b16 %v1335
        %v1575 = vunpack.c.l.b16 %v1336
        %v1576 = vunpack.c.l.b16 %v1337
        %v1577 = vunpack.c.l.b16 %v1338
        %v1578 = vunpack.c.l.b16 %v1339
        %v1579 = vunpack.c.l.b16 %v1340
        %v1580 = vunpack.c.l.b16 %v1341
        %v1581 = vunpack.c.l.b16 %v1342
        %v1582 = vpack.c.b16 %v1575, %v1574
        %v1583 = vpack.c.b16 %v1577, %v1576
        %v1584 = vpack.c.b16 %v1579, %v1578
        %v1585 = vpack.c.b16 %v1581, %v1580
        %v1591 = vsel %vm1473, %v1562, 0
        %v1594 = vsel %vm1473, %v1563, 0
        %v1597 = vsel %vm1473, %v1564, 0
        %v1600 = vsel %vm1473, %v1565, 0
        %1602 = vmatprep.subr.bf16.mxu0 0
        %1603 = vmatpush1.bf16.msra.mxu0 0
        %1604 = vmatprep.subr.bf16.mxu0 0
        %1605 = vmatpush1.bf16.msra.mxu0 0
        %1606 = vmatprep.subr.bf16.mxu0 0
        %1607 = vmatpush1.bf16.msra.mxu0 0
        %1608 = vmatprep.subr.bf16.mxu0 0
        %1609 = vmatpush1.bf16.msra.mxu0 0
        %1610 = vmatprep.subr.bf16.mxu0 0
        %1611 = vmatpush1.bf16.msra.mxu0 %v1585
        %1612 = vmatprep.subr.bf16.mxu0 0
        %1613 = vmatpush1.bf16.msra.mxu0 %v1584
        %1614 = vmatprep.subr.bf16.mxu0 0
        %1615 = vmatpush1.bf16.msra.mxu0 %v1583
        %1616 = vmatprep.subr.bf16.mxu0 0
        %1617 = vmatpush1.bf16.msra.mxu0 %v1582
        %1618 = vmatprep.subr.bf16.mxu0 0
        %1619 = vmatpush2.bf16.msra.mxu0 0
        %1620 = vmatprep.subr.bf16.mxu0 0
        %1621 = vmatpush2.bf16.msra.mxu0 0
        %1622 = vmatprep.subr.bf16.mxu0 0
        %1623 = vmatpush2.bf16.msra.mxu0 0
        %1624 = vmatprep.subr.bf16.mxu0 0
        %1625 = vmatpush2.bf16.msra.mxu0 0
        %1626 = vmatprep.subr.bf16.mxu0 0
        %1627 = vmatpush2.bf16.msra.mxu0 0
        %1628 = vmatprep.subr.bf16.mxu0 0
        %1629 = vmatpush2.bf16.msra.mxu0 0
        %1630 = vmatprep.subr.bf16.mxu0 0
        %1631 = vmatpush2.bf16.msra.mxu0 0
        %1632 = vmatprep.subr.bf16.mxu0 0
        %1633 = vmatpush2.bf16.msra.mxu0 0
        %1634 = vmatprep.mubr.bf16.mxu0 0
        %1635 = vmatmul.mubr.bf16.gmra.mxu0 %v1591
        %v1636 = vpop.f32.mrf.mxu0
        %v1637 = vadd.f32 0.0, %v1636
        %v1638 = vpop.f32.mrf.mxu0
        %v1639 = vpop.f32.mrf.mxu0
        %v1640 = vadd.f32 0.0, %v1639
        %v1641 = vpop.f32.mrf.mxu0
        %1642 = vmatprep.mubr.bf16.mxu0 0
        %1643 = vmatmul.mubr.bf16.gmra.mxu0 %v1594
        %v1644 = vpop.f32.mrf.mxu0
        %v1645 = vadd.f32 0.0, %v1644
        %v1646 = vpop.f32.mrf.mxu0
        %v1647 = vpop.f32.mrf.mxu0
        %v1648 = vadd.f32 0.0, %v1647
        %v1649 = vpop.f32.mrf.mxu0
        %1650 = vmatprep.mubr.bf16.mxu0 0
        %1651 = vmatmul.mubr.bf16.gmra.mxu0 %v1597
        %v1652 = vpop.f32.mrf.mxu0
        %v1653 = vadd.f32 0.0, %v1652
        %v1654 = vpop.f32.mrf.mxu0
        %v1655 = vpop.f32.mrf.mxu0
        %v1656 = vadd.f32 0.0, %v1655
        %v1657 = vpop.f32.mrf.mxu0
        %1658 = vmatprep.mubr.bf16.mxu0 0
        %1659 = vmatmul.mubr.bf16.gmra.mxu0 %v1600
        %v1660 = vpop.f32.mrf.mxu0
        %v1661 = vadd.f32 0.0, %v1660
        %v1662 = vpop.f32.mrf.mxu0
        %v1663 = vpop.f32.mrf.mxu0
        %v1664 = vadd.f32 0.0, %v1663
        %v1665 = vpop.f32.mrf.mxu0
        %1666 = vdwg.mxu0
        %v1667 = vpack.c.bf16 %v1640, %v1637
        %v1668 = vpack.c.bf16 %v1648, %v1645
        %v1669 = vpack.c.bf16 %v1656, %v1653
        %v1670 = vpack.c.bf16 %v1664, %v1661
        %v1675 = vunpack.c.l.b16 %v1667
        %v1676 = vunpack.c.h.b16 %v1667
        %v1677 = vunpack.c.l.b16 %v1668
        %v1678 = vunpack.c.h.b16 %v1668
        %v1679 = vunpack.c.l.b16 %v1669
        %v1680 = vunpack.c.h.b16 %v1669
        %v1681 = vunpack.c.l.b16 %v1670
        %v1682 = vunpack.c.h.b16 %v1670
        %v1683 = vpack.c.b16 %v1675, %v1675
        %v1684 = vpack.c.b16 %v1676, %v1676
        %v1685 = vpack.c.b16 %v1677, %v1677
        %v1686 = vpack.c.b16 %v1678, %v1678
        %v1687 = vpack.c.b16 %v1679, %v1679
        %v1688 = vpack.c.b16 %v1680, %v1680
        %v1689 = vpack.c.b16 %v1681, %v1681
        %v1690 = vpack.c.b16 %v1682, %v1682
        %vm1699 = vcmask 257024
        %1700 = vst.msk [vmem:[#allocation3] sm:$0xf] %vm1699, %v1683
        %1701 = vst.msk [vmem:[#allocation3 + $0x4] sm:$0xf] %vm1699, %v1684
        %1702 = vst.msk [vmem:[#allocation3 + $0x8] sm:$0xf] %vm1699, %v1685
        %1703 = vst.msk [vmem:[#allocation3 + $0xc] sm:$0xf] %vm1699, %v1686
        %1704 = vst.msk [vmem:[#allocation3 + $0x10] sm:$0xf] %vm1699, %v1687
        %1705 = vst.msk [vmem:[#allocation3 + $0x14] sm:$0xf] %vm1699, %v1688
        %1706 = vst.msk [vmem:[#allocation3 + $0x18] sm:$0xf] %vm1699, %v1689
        %1707 = vst.msk [vmem:[#allocation3 + $0x1c] sm:$0xf] %vm1699, %v1690
        %v1708 = vld [vmem:[#allocation2] sm:$0xf]
        %v1709 = vld [vmem:[#allocation2 + $0xc] sm:$0xf]
        %v1710 = vld [vmem:[#allocation2 + $0x18] sm:$0xf]
        %v1711 = vld [vmem:[#allocation2 + $0x24] sm:$0xf]
        %v1712 = vld [vmem:[#allocation2 + $0x30] sm:$0xf]
        %v1713 = vld [vmem:[#allocation2 + $0x3c] sm:$0xf]
        %v1714 = vld [vmem:[#allocation2 + $0x48] sm:$0xf]
        %v1715 = vld [vmem:[#allocation2 + $0x54] sm:$0xf]
        %v1716 = vld [vmem:[#allocation2 + $0x4] sm:$0xf]
        %v1717 = vld [vmem:[#allocation2 + $0x10] sm:$0xf]
        %v1718 = vld [vmem:[#allocation2 + $0x1c] sm:$0xf]
        %v1719 = vld [vmem:[#allocation2 + $0x28] sm:$0xf]
        %v1720 = vld [vmem:[#allocation2 + $0x34] sm:$0xf]
        %v1721 = vld [vmem:[#allocation2 + $0x40] sm:$0xf]
        %v1722 = vld [vmem:[#allocation2 + $0x4c] sm:$0xf]
        %v1723 = vld [vmem:[#allocation2 + $0x58] sm:$0xf]
        %v1724 = vld [vmem:[#allocation2 + $0x8] sm:$0xf]
        %v1725 = vld [vmem:[#allocation2 + $0x14] sm:$0xf]
        %v1726 = vld [vmem:[#allocation2 + $0x20] sm:$0xf]
        %v1727 = vld [vmem:[#allocation2 + $0x2c] sm:$0xf]
        %v1728 = vld [vmem:[#allocation2 + $0x38] sm:$0xf]
        %v1729 = vld [vmem:[#allocation2 + $0x44] sm:$0xf]
        %v1730 = vld [vmem:[#allocation2 + $0x50] sm:$0xf]
        %v1731 = vld [vmem:[#allocation2 + $0x5c] sm:$0xf]
        %v1740 = vunpack.c.l.b16 %v1708
        %v1741 = vunpack.c.l.b16 %v1709
        %v1742 = vunpack.c.l.b16 %v1710
        %v1743 = vunpack.c.l.b16 %v1711
        %v1744 = vunpack.c.l.b16 %v1712
        %v1745 = vunpack.c.l.b16 %v1713
        %v1746 = vunpack.c.l.b16 %v1714
        %v1747 = vunpack.c.l.b16 %v1715
        %v1748 = vpack.c.b16 %v1741, %v1740
        %v1749 = vpack.c.b16 %v1743, %v1742
        %v1750 = vpack.c.b16 %v1745, %v1744
        %v1751 = vpack.c.b16 %v1747, %v1746
        %1752 = vrot.lane.b32.xlu0 %v1748, 96
        %v1753 = vpop.permute.xlu0 %1752
        %1754 = vrot.lane.b32.xlu0 %v1749, 96
        %v1755 = vpop.permute.xlu0 %1754
        %1756 = vrot.lane.b32.xlu0 %v1750, 96
        %v1757 = vpop.permute.xlu0 %1756
        %1758 = vrot.lane.b32.xlu0 %v1751, 96
        %v1759 = vpop.permute.xlu0 %1758
        %v1768 = vunpack.c.l.b16 %v1716
        %v1769 = vunpack.c.l.b16 %v1717
        %v1770 = vunpack.c.l.b16 %v1718
        %v1771 = vunpack.c.l.b16 %v1719
        %v1772 = vunpack.c.l.b16 %v1720
        %v1773 = vunpack.c.l.b16 %v1721
        %v1774 = vunpack.c.l.b16 %v1722
        %v1775 = vunpack.c.l.b16 %v1723
        %v1776 = vpack.c.b16 %v1769, %v1768
        %v1777 = vpack.c.b16 %v1771, %v1770
        %v1778 = vpack.c.b16 %v1773, %v1772
        %v1779 = vpack.c.b16 %v1775, %v1774
        %1780 = vrot.lane.b32.xlu0 %v1776, 96
        %v1781 = vpop.permute.xlu0 %1780
        %1782 = vrot.lane.b32.xlu0 %v1777, 96
        %v1783 = vpop.permute.xlu0 %1782
        %1784 = vrot.lane.b32.xlu0 %v1778, 96
        %v1785 = vpop.permute.xlu0 %1784
        %1786 = vrot.lane.b32.xlu0 %v1779, 96
        %v1787 = vpop.permute.xlu0 %1786
        %v1789 = vsel %vm1383, %v1753, 0
        %v1792 = vsel %vm1383, %v1755, 0
        %v1795 = vsel %vm1383, %v1757, 0
        %v1798 = vsel %vm1383, %v1759, 0
        %v1801 = vsel %vm1383, %v1781, 0
        %v1804 = vsel %vm1383, %v1783, 0
        %v1807 = vsel %vm1383, %v1785, 0
        %v1810 = vsel %vm1383, %v1787, 0
        %1812 = vmatprep.subr.bf16.mxu0 0
        %1813 = vmatpush1.bf16.xpose.msra.mxu0 0
        %1814 = vmatprep.subr.bf16.mxu0 0
        %1815 = vmatpush1.bf16.xpose.msra.mxu0 0
        %1816 = vmatprep.subr.bf16.mxu0 0
        %1817 = vmatpush1.bf16.xpose.msra.mxu0 0
        %1818 = vmatprep.subr.bf16.mxu0 0
        %1819 = vmatpush1.bf16.xpose.msra.mxu0 0
        %1820 = vmatprep.subr.bf16.mxu0 0
        %1821 = vmatpush1.bf16.xpose.msra.mxu0 %v1810
        %1822 = vmatprep.subr.bf16.mxu0 0
        %1823 = vmatpush1.bf16.xpose.msra.mxu0 %v1807
        %1824 = vmatprep.subr.bf16.mxu0 0
        %1825 = vmatpush1.bf16.xpose.msra.mxu0 %v1804
        %1826 = vmatprep.subr.bf16.mxu0 0
        %1827 = vmatpush1.bf16.xpose.msra.mxu0 %v1801
        %1828 = vmatprep.subr.bf16.mxu0 0
        %1829 = vmatpush2.bf16.xpose.msra.mxu0 0
        %1830 = vmatprep.subr.bf16.mxu0 0
        %1831 = vmatpush2.bf16.xpose.msra.mxu0 0
        %1832 = vmatprep.subr.bf16.mxu0 0
        %1833 = vmatpush2.bf16.xpose.msra.mxu0 0
        %1834 = vmatprep.subr.bf16.mxu0 0
        %1835 = vmatpush2.bf16.xpose.msra.mxu0 0
        %1836 = vmatprep.subr.bf16.mxu0 0
        %1837 = vmatpush2.bf16.xpose.msra.mxu0 0
        %1838 = vmatprep.subr.bf16.mxu0 0
        %1839 = vmatpush2.bf16.xpose.msra.mxu0 0
        %1840 = vmatprep.subr.bf16.mxu0 0
        %1841 = vmatpush2.bf16.xpose.msra.mxu0 0
        %1842 = vmatprep.subr.bf16.mxu0 0
        %1843 = vmatpush2.bf16.xpose.msra.mxu0 0
        %1844 = vmatprep.mubr.bf16.mxu0 0
        %1845 = vmatmul.mubr.bf16.gmra.mxu0 %v1789
        %v1846 = vpop.f32.mrf.mxu0
        %v1847 = vadd.f32 0.0, %v1846
        %v1848 = vpop.f32.mrf.mxu0
        %v1849 = vpop.f32.mrf.mxu0
        %v1850 = vadd.f32 0.0, %v1849
        %v1851 = vpop.f32.mrf.mxu0
        %1852 = vmatprep.mubr.bf16.mxu0 0
        %1853 = vmatmul.mubr.bf16.gmra.mxu0 %v1792
        %v1854 = vpop.f32.mrf.mxu0
        %v1855 = vadd.f32 0.0, %v1854
        %v1856 = vpop.f32.mrf.mxu0
        %v1857 = vpop.f32.mrf.mxu0
        %v1858 = vadd.f32 0.0, %v1857
        %v1859 = vpop.f32.mrf.mxu0
        %1860 = vmatprep.mubr.bf16.mxu0 0
        %1861 = vmatmul.mubr.bf16.gmra.mxu0 %v1795
        %v1862 = vpop.f32.mrf.mxu0
        %v1863 = vadd.f32 0.0, %v1862
        %v1864 = vpop.f32.mrf.mxu0
        %v1865 = vpop.f32.mrf.mxu0
        %v1866 = vadd.f32 0.0, %v1865
        %v1867 = vpop.f32.mrf.mxu0
        %1868 = vmatprep.mubr.bf16.mxu0 0
        %1869 = vmatmul.mubr.bf16.gmra.mxu0 %v1798
        %v1870 = vpop.f32.mrf.mxu0
        %v1871 = vadd.f32 0.0, %v1870
        %v1872 = vpop.f32.mrf.mxu0
        %v1873 = vpop.f32.mrf.mxu0
        %v1874 = vadd.f32 0.0, %v1873
        %v1875 = vpop.f32.mrf.mxu0
        %1876 = vdwg.mxu0
        %v1877 = vsel %vm1473, %v1847, -inf
        %1878 = vmax.xlane.f32.xlu0 %v1877
        %v1879 = vpop.xlane.xlu0 %1878
        %v1880 = vsel %vm1473, %v1850, -inf
        %1881 = vmax.xlane.f32.xlu0 %v1880
        %v1882 = vpop.xlane.xlu0 %1881
        %v1883 = vsel %vm1473, %v1855, -inf
        %1884 = vmax.xlane.f32.xlu0 %v1883
        %v1885 = vpop.xlane.xlu0 %1884
        %v1886 = vsel %vm1473, %v1858, -inf
        %1887 = vmax.xlane.f32.xlu0 %v1886
        %v1888 = vpop.xlane.xlu0 %1887
        %v1889 = vsel %vm1473, %v1863, -inf
        %1890 = vmax.xlane.f32.xlu0 %v1889
        %v1891 = vpop.xlane.xlu0 %1890
        %v1892 = vsel %vm1473, %v1866, -inf
        %1893 = vmax.xlane.f32.xlu0 %v1892
        %v1894 = vpop.xlane.xlu0 %1893
        %v1895 = vsel %vm1473, %v1871, -inf
        %1896 = vmax.xlane.f32.xlu0 %v1895
        %v1897 = vpop.xlane.xlu0 %1896
        %v1898 = vsel %vm1473, %v1874, -inf
        %1899 = vmax.xlane.f32.xlu0 %v1898
        %v1900 = vpop.xlane.xlu0 %1899
        %v1901 = vsub.f32 %v1847, %v1879
        %v1902 = vsub.f32 %v1850, %v1882
        %v1903 = vsub.f32 %v1855, %v1885
        %v1904 = vsub.f32 %v1858, %v1888
        %v1905 = vsub.f32 %v1863, %v1891
        %v1906 = vsub.f32 %v1866, %v1894
        %v1907 = vsub.f32 %v1871, %v1897
        %v1908 = vsub.f32 %v1874, %v1900
        %v1909 = vmul.f32 %v1901, 1.442695
        %v1910 = vpow.pop %v1909
        %v1911 = vmul.f32 %v1902, 1.442695
        %v1912 = vpow.pop %v1911
        %v1913 = vmul.f32 %v1903, 1.442695
        %v1914 = vpow.pop %v1913
        %v1915 = vmul.f32 %v1904, 1.442695
        %v1916 = vpow.pop %v1915
        %v1917 = vmul.f32 %v1905, 1.442695
        %v1918 = vpow.pop %v1917
        %v1919 = vmul.f32 %v1906, 1.442695
        %v1920 = vpow.pop %v1919
        %v1921 = vmul.f32 %v1907, 1.442695
        %v1922 = vpow.pop %v1921
        %v1923 = vmul.f32 %v1908, 1.442695
        %v1924 = vpow.pop %v1923
        %v1925 = vsel %vm1473, %v1910, 0.0
        %1926 = vadd.xlane.f32.xlu0 %v1925
        %v1927 = vpop.xlane.xlu0 %1926
        %v1928 = vsel %vm1473, %v1912, 0.0
        %1929 = vadd.xlane.f32.xlu0 %v1928
        %v1930 = vpop.xlane.xlu0 %1929
        %v1931 = vsel %vm1473, %v1914, 0.0
        %1932 = vadd.xlane.f32.xlu0 %v1931
        %v1933 = vpop.xlane.xlu0 %1932
        %v1934 = vsel %vm1473, %v1916, 0.0
        %1935 = vadd.xlane.f32.xlu0 %v1934
        %v1936 = vpop.xlane.xlu0 %1935
        %v1937 = vsel %vm1473, %v1918, 0.0
        %1938 = vadd.xlane.f32.xlu0 %v1937
        %v1939 = vpop.xlane.xlu0 %1938
        %v1940 = vsel %vm1473, %v1920, 0.0
        %1941 = vadd.xlane.f32.xlu0 %v1940
        %v1942 = vpop.xlane.xlu0 %1941
        %v1943 = vsel %vm1473, %v1922, 0.0
        %1944 = vadd.xlane.f32.xlu0 %v1943
        %v1945 = vpop.xlane.xlu0 %1944
        %v1946 = vsel %vm1473, %v1924, 0.0
        %1947 = vadd.xlane.f32.xlu0 %v1946
        %v1948 = vpop.xlane.xlu0 %1947
        %v1949 = vrcp.pop %v1927
        %v1950 = vrcp.pop %v1930
        %v1951 = vrcp.pop %v1933
        %v1952 = vrcp.pop %v1936
        %v1953 = vrcp.pop %v1939
        %v1954 = vrcp.pop %v1942
        %v1955 = vrcp.pop %v1945
        %v1956 = vrcp.pop %v1948
        %v1957 = vmul.f32 %v1910, %v1949
        %v1958 = vmul.f32 %v1912, %v1950
        %v1959 = vmul.f32 %v1914, %v1951
        %v1960 = vmul.f32 %v1916, %v1952
        %v1961 = vmul.f32 %v1918, %v1953
        %v1962 = vmul.f32 %v1920, %v1954
        %v1963 = vmul.f32 %v1922, %v1955
        %v1964 = vmul.f32 %v1924, %v1956
        %v1965 = vpack.c.bf16 %v1958, %v1957
        %v1966 = vpack.c.bf16 %v1960, %v1959
        %v1967 = vpack.c.bf16 %v1962, %v1961
        %v1968 = vpack.c.bf16 %v1964, %v1963
        %v1977 = vunpack.c.l.b16 %v1724
        %v1978 = vunpack.c.l.b16 %v1725
        %v1979 = vunpack.c.l.b16 %v1726
        %v1980 = vunpack.c.l.b16 %v1727
        %v1981 = vunpack.c.l.b16 %v1728
        %v1982 = vunpack.c.l.b16 %v1729
        %v1983 = vunpack.c.l.b16 %v1730
        %v1984 = vunpack.c.l.b16 %v1731
        %v1985 = vpack.c.b16 %v1978, %v1977
        %v1986 = vpack.c.b16 %v1980, %v1979
        %v1987 = vpack.c.b16 %v1982, %v1981
        %v1988 = vpack.c.b16 %v1984, %v1983
        %1989 = vrot.lane.b32.xlu0 %v1985, 96
        %v1990 = vpop.permute.xlu0 %1989
        %1991 = vrot.lane.b32.xlu0 %v1986, 96
        %v1992 = vpop.permute.xlu0 %1991
        %1993 = vrot.lane.b32.xlu0 %v1987, 96
        %v1994 = vpop.permute.xlu0 %1993
        %1995 = vrot.lane.b32.xlu0 %v1988, 96
        %v1996 = vpop.permute.xlu0 %1995
        %v2002 = vsel %vm1473, %v1965, 0
        %v2005 = vsel %vm1473, %v1966, 0
        %v2008 = vsel %vm1473, %v1967, 0
        %v2011 = vsel %vm1473, %v1968, 0
        %2013 = vmatprep.subr.bf16.mxu0 0
        %2014 = vmatpush1.bf16.msra.mxu0 0
        %2015 = vmatprep.subr.bf16.mxu0 0
        %2016 = vmatpush1.bf16.msra.mxu0 0
        %2017 = vmatprep.subr.bf16.mxu0 0
        %2018 = vmatpush1.bf16.msra.mxu0 0
        %2019 = vmatprep.subr.bf16.mxu0 0
        %2020 = vmatpush1.bf16.msra.mxu0 0
        %2021 = vmatprep.subr.bf16.mxu0 0
        %2022 = vmatpush1.bf16.msra.mxu0 %v1996
        %2023 = vmatprep.subr.bf16.mxu0 0
        %2024 = vmatpush1.bf16.msra.mxu0 %v1994
        %2025 = vmatprep.subr.bf16.mxu0 0
        %2026 = vmatpush1.bf16.msra.mxu0 %v1992
        %2027 = vmatprep.subr.bf16.mxu0 0
        %2028 = vmatpush1.bf16.msra.mxu0 %v1990
        %2029 = vmatprep.subr.bf16.mxu0 0
        %2030 = vmatpush2.bf16.msra.mxu0 0
        %2031 = vmatprep.subr.bf16.mxu0 0
        %2032 = vmatpush2.bf16.msra.mxu0 0
        %2033 = vmatprep.subr.bf16.mxu0 0
        %2034 = vmatpush2.bf16.msra.mxu0 0
        %2035 = vmatprep.subr.bf16.mxu0 0
        %2036 = vmatpush2.bf16.msra.mxu0 0
        %2037 = vmatprep.subr.bf16.mxu0 0
        %2038 = vmatpush2.bf16.msra.mxu0 0
        %2039 = vmatprep.subr.bf16.mxu0 0
        %2040 = vmatpush2.bf16.msra.mxu0 0
        %2041 = vmatprep.subr.bf16.mxu0 0
        %2042 = vmatpush2.bf16.msra.mxu0 0
        %2043 = vmatprep.subr.bf16.mxu0 0
        %2044 = vmatpush2.bf16.msra.mxu0 0
        %2045 = vmatprep.mubr.bf16.mxu0 0
        %2046 = vmatmul.mubr.bf16.gmra.mxu0 %v2002
        %v2047 = vpop.f32.mrf.mxu0
        %v2048 = vadd.f32 0.0, %v2047
        %v2049 = vpop.f32.mrf.mxu0
        %v2050 = vpop.f32.mrf.mxu0
        %v2051 = vadd.f32 0.0, %v2050
        %v2052 = vpop.f32.mrf.mxu0
        %2053 = vmatprep.mubr.bf16.mxu0 0
        %2054 = vmatmul.mubr.bf16.gmra.mxu0 %v2005
        %v2055 = vpop.f32.mrf.mxu0
        %v2056 = vadd.f32 0.0, %v2055
        %v2057 = vpop.f32.mrf.mxu0
        %v2058 = vpop.f32.mrf.mxu0
        %v2059 = vadd.f32 0.0, %v2058
        %v2060 = vpop.f32.mrf.mxu0
        %2061 = vmatprep.mubr.bf16.mxu0 0
        %2062 = vmatmul.mubr.bf16.gmra.mxu0 %v2008
        %v2063 = vpop.f32.mrf.mxu0
        %v2064 = vadd.f32 0.0, %v2063
        %v2065 = vpop.f32.mrf.mxu0
        %v2066 = vpop.f32.mrf.mxu0
        %v2067 = vadd.f32 0.0, %v2066
        %v2068 = vpop.f32.mrf.mxu0
        %2069 = vmatprep.mubr.bf16.mxu0 0
        %2070 = vmatmul.mubr.bf16.gmra.mxu0 %v2011
        %v2071 = vpop.f32.mrf.mxu0
        %v2072 = vadd.f32 0.0, %v2071
        %v2073 = vpop.f32.mrf.mxu0
        %v2074 = vpop.f32.mrf.mxu0
        %v2075 = vadd.f32 0.0, %v2074
        %v2076 = vpop.f32.mrf.mxu0
        %2077 = vdwg.mxu0
        %v2078 = vpack.c.bf16 %v2051, %v2048
        %v2079 = vpack.c.bf16 %v2059, %v2056
        %v2080 = vpack.c.bf16 %v2067, %v2064
        %v2081 = vpack.c.bf16 %v2075, %v2072
        %v2086 = vunpack.c.l.b16 %v2078
        %v2087 = vunpack.c.h.b16 %v2078
        %v2088 = vunpack.c.l.b16 %v2079
        %v2089 = vunpack.c.h.b16 %v2079
        %v2090 = vunpack.c.l.b16 %v2080
        %v2091 = vunpack.c.h.b16 %v2080
        %v2092 = vunpack.c.l.b16 %v2081
        %v2093 = vunpack.c.h.b16 %v2081
        %v2094 = vpack.c.b16 %v2086, %v2086
        %v2095 = vpack.c.b16 %v2087, %v2087
        %v2096 = vpack.c.b16 %v2088, %v2088
        %v2097 = vpack.c.b16 %v2089, %v2089
        %v2098 = vpack.c.b16 %v2090, %v2090
        %v2099 = vpack.c.b16 %v2091, %v2091
        %v2100 = vpack.c.b16 %v2092, %v2092
        %v2101 = vpack.c.b16 %v2093, %v2093
        %2102 = vrot.lane.b32.xlu0 %v2094, 32
        %v2103 = vpop.permute.xlu0 %2102
        %2104 = vrot.lane.b32.xlu0 %v2095, 32
        %v2105 = vpop.permute.xlu0 %2104
        %2106 = vrot.lane.b32.xlu0 %v2096, 32
        %v2107 = vpop.permute.xlu0 %2106
        %2108 = vrot.lane.b32.xlu0 %v2097, 32
        %v2109 = vpop.permute.xlu0 %2108
        %2110 = vrot.lane.b32.xlu0 %v2098, 32
        %v2111 = vpop.permute.xlu0 %2110
        %2112 = vrot.lane.b32.xlu0 %v2099, 32
        %v2113 = vpop.permute.xlu0 %2112
        %2114 = vrot.lane.b32.xlu0 %v2100, 32
        %v2115 = vpop.permute.xlu0 %2114
        %2116 = vrot.lane.b32.xlu0 %v2101, 32
        %v2117 = vpop.permute.xlu0 %2116
        %vm2126 = vcmask 519424
        %2127 = vst.msk [vmem:[#allocation3] sm:$0xf] %vm2126, %v2103
        %2128 = vst.msk [vmem:[#allocation3 + $0x4] sm:$0xf] %vm2126, %v2105
        %2129 = vst.msk [vmem:[#allocation3 + $0x8] sm:$0xf] %vm2126, %v2107
        %2130 = vst.msk [vmem:[#allocation3 + $0xc] sm:$0xf] %vm2126, %v2109
        %2131 = vst.msk [vmem:[#allocation3 + $0x10] sm:$0xf] %vm2126, %v2111
        %2132 = vst.msk [vmem:[#allocation3 + $0x14] sm:$0xf] %vm2126, %v2113
        %2133 = vst.msk [vmem:[#allocation3 + $0x18] sm:$0xf] %vm2126, %v2115
        %2134 = vst.msk [vmem:[#allocation3 + $0x1c] sm:$0xf] %vm2126, %v2117
        %v2135 = vld [vmem:[#allocation2] sm:$0xf]
        %v2136 = vld [vmem:[#allocation2 + $0xc] sm:$0xf]
        %v2137 = vld [vmem:[#allocation2 + $0x18] sm:$0xf]
        %v2138 = vld [vmem:[#allocation2 + $0x24] sm:$0xf]
        %v2139 = vld [vmem:[#allocation2 + $0x30] sm:$0xf]
        %v2140 = vld [vmem:[#allocation2 + $0x3c] sm:$0xf]
        %v2141 = vld [vmem:[#allocation2 + $0x48] sm:$0xf]
        %v2142 = vld [vmem:[#allocation2 + $0x54] sm:$0xf]
        %v2143 = vld [vmem:[#allocation2 + $0x4] sm:$0xf]
        %v2144 = vld [vmem:[#allocation2 + $0x10] sm:$0xf]
        %v2145 = vld [vmem:[#allocation2 + $0x1c] sm:$0xf]
        %v2146 = vld [vmem:[#allocation2 + $0x28] sm:$0xf]
        %v2147 = vld [vmem:[#allocation2 + $0x34] sm:$0xf]
        %v2148 = vld [vmem:[#allocation2 + $0x40] sm:$0xf]
        %v2149 = vld [vmem:[#allocation2 + $0x4c] sm:$0xf]
        %v2150 = vld [vmem:[#allocation2 + $0x58] sm:$0xf]
        %v2151 = vld [vmem:[#allocation2 + $0x8] sm:$0xf]
        %v2152 = vld [vmem:[#allocation2 + $0x14] sm:$0xf]
        %v2153 = vld [vmem:[#allocation2 + $0x20] sm:$0xf]
        %v2154 = vld [vmem:[#allocation2 + $0x2c] sm:$0xf]
        %v2155 = vld [vmem:[#allocation2 + $0x38] sm:$0xf]
        %v2156 = vld [vmem:[#allocation2 + $0x44] sm:$0xf]
        %v2157 = vld [vmem:[#allocation2 + $0x50] sm:$0xf]
        %v2158 = vld [vmem:[#allocation2 + $0x5c] sm:$0xf]
        %v2167 = vunpack.c.l.b16 %v2135
        %v2168 = vunpack.c.l.b16 %v2136
        %v2169 = vunpack.c.l.b16 %v2137
        %v2170 = vunpack.c.l.b16 %v2138
        %v2171 = vunpack.c.l.b16 %v2139
        %v2172 = vunpack.c.l.b16 %v2140
        %v2173 = vunpack.c.l.b16 %v2141
        %v2174 = vunpack.c.l.b16 %v2142
        %v2175 = vpack.c.b16 %v2168, %v2167
        %v2176 = vpack.c.b16 %v2170, %v2169
        %v2177 = vpack.c.b16 %v2172, %v2171
        %v2178 = vpack.c.b16 %v2174, %v2173
        %2179 = vrot.lane.b32.xlu0 %v2175, 64
        %v2180 = vpop.permute.xlu0 %2179
        %2181 = vrot.lane.b32.xlu0 %v2176, 64
        %v2182 = vpop.permute.xlu0 %2181
        %2183 = vrot.lane.b32.xlu0 %v2177, 64
        %v2184 = vpop.permute.xlu0 %2183
        %2185 = vrot.lane.b32.xlu0 %v2178, 64
        %v2186 = vpop.permute.xlu0 %2185
        %v2195 = vunpack.c.l.b16 %v2143
        %v2196 = vunpack.c.l.b16 %v2144
        %v2197 = vunpack.c.l.b16 %v2145
        %v2198 = vunpack.c.l.b16 %v2146
        %v2199 = vunpack.c.l.b16 %v2147
        %v2200 = vunpack.c.l.b16 %v2148
        %v2201 = vunpack.c.l.b16 %v2149
        %v2202 = vunpack.c.l.b16 %v2150
        %v2203 = vpack.c.b16 %v2196, %v2195
        %v2204 = vpack.c.b16 %v2198, %v2197
        %v2205 = vpack.c.b16 %v2200, %v2199
        %v2206 = vpack.c.b16 %v2202, %v2201
        %2207 = vrot.lane.b32.xlu0 %v2203, 64
        %v2208 = vpop.permute.xlu0 %2207
        %2209 = vrot.lane.b32.xlu0 %v2204, 64
        %v2210 = vpop.permute.xlu0 %2209
        %2211 = vrot.lane.b32.xlu0 %v2205, 64
        %v2212 = vpop.permute.xlu0 %2211
        %2213 = vrot.lane.b32.xlu0 %v2206, 64
        %v2214 = vpop.permute.xlu0 %2213
        %v2216 = vsel %vm1383, %v2180, 0
        %v2219 = vsel %vm1383, %v2182, 0
        %v2222 = vsel %vm1383, %v2184, 0
        %v2225 = vsel %vm1383, %v2186, 0
        %v2228 = vsel %vm1383, %v2208, 0
        %v2231 = vsel %vm1383, %v2210, 0
        %v2234 = vsel %vm1383, %v2212, 0
        %v2237 = vsel %vm1383, %v2214, 0
        %2239 = vmatprep.subr.bf16.mxu0 0
        %2240 = vmatpush1.bf16.xpose.msra.mxu0 0
        %2241 = vmatprep.subr.bf16.mxu0 0
        %2242 = vmatpush1.bf16.xpose.msra.mxu0 0
        %2243 = vmatprep.subr.bf16.mxu0 0
        %2244 = vmatpush1.bf16.xpose.msra.mxu0 0
        %2245 = vmatprep.subr.bf16.mxu0 0
        %2246 = vmatpush1.bf16.xpose.msra.mxu0 0
        %2247 = vmatprep.subr.bf16.mxu0 0
        %2248 = vmatpush1.bf16.xpose.msra.mxu0 %v2237
        %2249 = vmatprep.subr.bf16.mxu0 0
        %2250 = vmatpush1.bf16.xpose.msra.mxu0 %v2234
        %2251 = vmatprep.subr.bf16.mxu0 0
        %2252 = vmatpush1.bf16.xpose.msra.mxu0 %v2231
        %2253 = vmatprep.subr.bf16.mxu0 0
        %2254 = vmatpush1.bf16.xpose.msra.mxu0 %v2228
        %2255 = vmatprep.subr.bf16.mxu0 0
        %2256 = vmatpush2.bf16.xpose.msra.mxu0 0
        %2257 = vmatprep.subr.bf16.mxu0 0
        %2258 = vmatpush2.bf16.xpose.msra.mxu0 0
        %2259 = vmatprep.subr.bf16.mxu0 0
        %2260 = vmatpush2.bf16.xpose.msra.mxu0 0
        %2261 = vmatprep.subr.bf16.mxu0 0
        %2262 = vmatpush2.bf16.xpose.msra.mxu0 0
        %2263 = vmatprep.subr.bf16.mxu0 0
        %2264 = vmatpush2.bf16.xpose.msra.mxu0 0
        %2265 = vmatprep.subr.bf16.mxu0 0
        %2266 = vmatpush2.bf16.xpose.msra.mxu0 0
        %2267 = vmatprep.subr.bf16.mxu0 0
        %2268 = vmatpush2.bf16.xpose.msra.mxu0 0
        %2269 = vmatprep.subr.bf16.mxu0 0
        %2270 = vmatpush2.bf16.xpose.msra.mxu0 0
        %2271 = vmatprep.mubr.bf16.mxu0 0
        %2272 = vmatmul.mubr.bf16.gmra.mxu0 %v2216
        %v2273 = vpop.f32.mrf.mxu0
        %v2274 = vadd.f32 0.0, %v2273
        %v2275 = vpop.f32.mrf.mxu0
        %v2276 = vpop.f32.mrf.mxu0
        %v2277 = vadd.f32 0.0, %v2276
        %v2278 = vpop.f32.mrf.mxu0
        %2279 = vmatprep.mubr.bf16.mxu0 0
        %2280 = vmatmul.mubr.bf16.gmra.mxu0 %v2219
        %v2281 = vpop.f32.mrf.mxu0
        %v2282 = vadd.f32 0.0, %v2281
        %v2283 = vpop.f32.mrf.mxu0
        %v2284 = vpop.f32.mrf.mxu0
        %v2285 = vadd.f32 0.0, %v2284
        %v2286 = vpop.f32.mrf.mxu0
        %2287 = vmatprep.mubr.bf16.mxu0 0
        %2288 = vmatmul.mubr.bf16.gmra.mxu0 %v2222
        %v2289 = vpop.f32.mrf.mxu0
        %v2290 = vadd.f32 0.0, %v2289
        %v2291 = vpop.f32.mrf.mxu0
        %v2292 = vpop.f32.mrf.mxu0
        %v2293 = vadd.f32 0.0, %v2292
        %v2294 = vpop.f32.mrf.mxu0
        %2295 = vmatprep.mubr.bf16.mxu0 0
        %2296 = vmatmul.mubr.bf16.gmra.mxu0 %v2225
        %v2297 = vpop.f32.mrf.mxu0
        %v2298 = vadd.f32 0.0, %v2297
        %v2299 = vpop.f32.mrf.mxu0
        %v2300 = vpop.f32.mrf.mxu0
        %v2301 = vadd.f32 0.0, %v2300
        %v2302 = vpop.f32.mrf.mxu0
        %2303 = vdwg.mxu0
        %v2304 = vsel %vm1473, %v2274, -inf
        %2305 = vmax.xlane.f32.xlu0 %v2304
        %v2306 = vpop.xlane.xlu0 %2305
        %v2307 = vsel %vm1473, %v2277, -inf
        %2308 = vmax.xlane.f32.xlu0 %v2307
        %v2309 = vpop.xlane.xlu0 %2308
        %v2310 = vsel %vm1473, %v2282, -inf
        %2311 = vmax.xlane.f32.xlu0 %v2310
        %v2312 = vpop.xlane.xlu0 %2311
        %v2313 = vsel %vm1473, %v2285, -inf
        %2314 = vmax.xlane.f32.xlu0 %v2313
        %v2315 = vpop.xlane.xlu0 %2314
        %v2316 = vsel %vm1473, %v2290, -inf
        %2317 = vmax.xlane.f32.xlu0 %v2316
        %v2318 = vpop.xlane.xlu0 %2317
        %v2319 = vsel %vm1473, %v2293, -inf
        %2320 = vmax.xlane.f32.xlu0 %v2319
        %v2321 = vpop.xlane.xlu0 %2320
        %v2322 = vsel %vm1473, %v2298, -inf
        %2323 = vmax.xlane.f32.xlu0 %v2322
        %v2324 = vpop.xlane.xlu0 %2323
        %v2325 = vsel %vm1473, %v2301, -inf
        %2326 = vmax.xlane.f32.xlu0 %v2325
        %v2327 = vpop.xlane.xlu0 %2326
        %v2328 = vsub.f32 %v2274, %v2306
        %v2329 = vsub.f32 %v2277, %v2309
        %v2330 = vsub.f32 %v2282, %v2312
        %v2331 = vsub.f32 %v2285, %v2315
        %v2332 = vsub.f32 %v2290, %v2318
        %v2333 = vsub.f32 %v2293, %v2321
        %v2334 = vsub.f32 %v2298, %v2324
        %v2335 = vsub.f32 %v2301, %v2327
        %v2336 = vmul.f32 %v2328, 1.442695
        %v2337 = vpow.pop %v2336
        %v2338 = vmul.f32 %v2329, 1.442695
        %v2339 = vpow.pop %v2338
        %v2340 = vmul.f32 %v2330, 1.442695
        %v2341 = vpow.pop %v2340
        %v2342 = vmul.f32 %v2331, 1.442695
        %v2343 = vpow.pop %v2342
        %v2344 = vmul.f32 %v2332, 1.442695
        %v2345 = vpow.pop %v2344
        %v2346 = vmul.f32 %v2333, 1.442695
        %v2347 = vpow.pop %v2346
        %v2348 = vmul.f32 %v2334, 1.442695
        %v2349 = vpow.pop %v2348
        %v2350 = vmul.f32 %v2335, 1.442695
        %v2351 = vpow.pop %v2350
        %v2352 = vsel %vm1473, %v2337, 0.0
        %2353 = vadd.xlane.f32.xlu0 %v2352
        %v2354 = vpop.xlane.xlu0 %2353
        %v2355 = vsel %vm1473, %v2339, 0.0
        %2356 = vadd.xlane.f32.xlu0 %v2355
        %v2357 = vpop.xlane.xlu0 %2356
        %v2358 = vsel %vm1473, %v2341, 0.0
        %2359 = vadd.xlane.f32.xlu0 %v2358
        %v2360 = vpop.xlane.xlu0 %2359
        %v2361 = vsel %vm1473, %v2343, 0.0
        %2362 = vadd.xlane.f32.xlu0 %v2361
        %v2363 = vpop.xlane.xlu0 %2362
        %v2364 = vsel %vm1473, %v2345, 0.0
        %2365 = vadd.xlane.f32.xlu0 %v2364
        %v2366 = vpop.xlane.xlu0 %2365
        %v2367 = vsel %vm1473, %v2347, 0.0
        %2368 = vadd.xlane.f32.xlu0 %v2367
        %v2369 = vpop.xlane.xlu0 %2368
        %v2370 = vsel %vm1473, %v2349, 0.0
        %2371 = vadd.xlane.f32.xlu0 %v2370
        %v2372 = vpop.xlane.xlu0 %2371
        %v2373 = vsel %vm1473, %v2351, 0.0
        %2374 = vadd.xlane.f32.xlu0 %v2373
        %v2375 = vpop.xlane.xlu0 %2374
        %v2376 = vrcp.pop %v2354
        %v2377 = vrcp.pop %v2357
        %v2378 = vrcp.pop %v2360
        %v2379 = vrcp.pop %v2363
        %v2380 = vrcp.pop %v2366
        %v2381 = vrcp.pop %v2369
        %v2382 = vrcp.pop %v2372
        %v2383 = vrcp.pop %v2375
        %v2384 = vmul.f32 %v2337, %v2376
        %v2385 = vmul.f32 %v2339, %v2377
        %v2386 = vmul.f32 %v2341, %v2378
        %v2387 = vmul.f32 %v2343, %v2379
        %v2388 = vmul.f32 %v2345, %v2380
        %v2389 = vmul.f32 %v2347, %v2381
        %v2390 = vmul.f32 %v2349, %v2382
        %v2391 = vmul.f32 %v2351, %v2383
        %v2392 = vpack.c.bf16 %v2385, %v2384
        %v2393 = vpack.c.bf16 %v2387, %v2386
        %v2394 = vpack.c.bf16 %v2389, %v2388
        %v2395 = vpack.c.bf16 %v2391, %v2390
        %v2404 = vunpack.c.l.b16 %v2151
        %v2405 = vunpack.c.l.b16 %v2152
        %v2406 = vunpack.c.l.b16 %v2153
        %v2407 = vunpack.c.l.b16 %v2154
        %v2408 = vunpack.c.l.b16 %v2155
        %v2409 = vunpack.c.l.b16 %v2156
        %v2410 = vunpack.c.l.b16 %v2157
        %v2411 = vunpack.c.l.b16 %v2158
        %v2412 = vpack.c.b16 %v2405, %v2404
        %v2413 = vpack.c.b16 %v2407, %v2406
        %v2414 = vpack.c.b16 %v2409, %v2408
        %v2415 = vpack.c.b16 %v2411, %v2410
        %2416 = vrot.lane.b32.xlu0 %v2412, 64
        %v2417 = vpop.permute.xlu0 %2416
        %2418 = vrot.lane.b32.xlu0 %v2413, 64
        %v2419 = vpop.permute.xlu0 %2418
        %2420 = vrot.lane.b32.xlu0 %v2414, 64
        %v2421 = vpop.permute.xlu0 %2420
        %2422 = vrot.lane.b32.xlu0 %v2415, 64
        %v2423 = vpop.permute.xlu0 %2422
        %v2429 = vsel %vm1473, %v2392, 0
        %v2432 = vsel %vm1473, %v2393, 0
        %v2435 = vsel %vm1473, %v2394, 0
        %v2438 = vsel %vm1473, %v2395, 0
        %2440 = vmatprep.subr.bf16.mxu0 0
        %2441 = vmatpush1.bf16.msra.mxu0 0
        %2442 = vmatprep.subr.bf16.mxu0 0
        %2443 = vmatpush1.bf16.msra.mxu0 0
        %2444 = vmatprep.subr.bf16.mxu0 0
        %2445 = vmatpush1.bf16.msra.mxu0 0
        %2446 = vmatprep.subr.bf16.mxu0 0
        %2447 = vmatpush1.bf16.msra.mxu0 0
        %2448 = vmatprep.subr.bf16.mxu0 0
        %2449 = vmatpush1.bf16.msra.mxu0 %v2423
        %2450 = vmatprep.subr.bf16.mxu0 0
        %2451 = vmatpush1.bf16.msra.mxu0 %v2421
        %2452 = vmatprep.subr.bf16.mxu0 0
        %2453 = vmatpush1.bf16.msra.mxu0 %v2419
        %2454 = vmatprep.subr.bf16.mxu0 0
        %2455 = vmatpush1.bf16.msra.mxu0 %v2417
        %2456 = vmatprep.subr.bf16.mxu0 0
        %2457 = vmatpush2.bf16.msra.mxu0 0
        %2458 = vmatprep.subr.bf16.mxu0 0
        %2459 = vmatpush2.bf16.msra.mxu0 0
        %2460 = vmatprep.subr.bf16.mxu0 0
        %2461 = vmatpush2.bf16.msra.mxu0 0
        %2462 = vmatprep.subr.bf16.mxu0 0
        %2463 = vmatpush2.bf16.msra.mxu0 0
        %2464 = vmatprep.subr.bf16.mxu0 0
        %2465 = vmatpush2.bf16.msra.mxu0 0
        %2466 = vmatprep.subr.bf16.mxu0 0
        %2467 = vmatpush2.bf16.msra.mxu0 0
        %2468 = vmatprep.subr.bf16.mxu0 0
        %2469 = vmatpush2.bf16.msra.mxu0 0
        %2470 = vmatprep.subr.bf16.mxu0 0
        %2471 = vmatpush2.bf16.msra.mxu0 0
        %2472 = vmatprep.mubr.bf16.mxu0 0
        %2473 = vmatmul.mubr.bf16.gmra.mxu0 %v2429
        %v2474 = vpop.f32.mrf.mxu0
        %v2475 = vadd.f32 0.0, %v2474
        %v2476 = vpop.f32.mrf.mxu0
        %v2477 = vpop.f32.mrf.mxu0
        %v2478 = vadd.f32 0.0, %v2477
        %v2479 = vpop.f32.mrf.mxu0
        %2480 = vmatprep.mubr.bf16.mxu0 0
        %2481 = vmatmul.mubr.bf16.gmra.mxu0 %v2432
        %v2482 = vpop.f32.mrf.mxu0
        %v2483 = vadd.f32 0.0, %v2482
        %v2484 = vpop.f32.mrf.mxu0
        %v2485 = vpop.f32.mrf.mxu0
        %v2486 = vadd.f32 0.0, %v2485
        %v2487 = vpop.f32.mrf.mxu0
        %2488 = vmatprep.mubr.bf16.mxu0 0
        %2489 = vmatmul.mubr.bf16.gmra.mxu0 %v2435
        %v2490 = vpop.f32.mrf.mxu0
        %v2491 = vadd.f32 0.0, %v2490
        %v2492 = vpop.f32.mrf.mxu0
        %v2493 = vpop.f32.mrf.mxu0
        %v2494 = vadd.f32 0.0, %v2493
        %v2495 = vpop.f32.mrf.mxu0
        %2496 = vmatprep.mubr.bf16.mxu0 0
        %2497 = vmatmul.mubr.bf16.gmra.mxu0 %v2438
        %v2498 = vpop.f32.mrf.mxu0
        %v2499 = vadd.f32 0.0, %v2498
        %v2500 = vpop.f32.mrf.mxu0
        %v2501 = vpop.f32.mrf.mxu0
        %v2502 = vadd.f32 0.0, %v2501
        %v2503 = vpop.f32.mrf.mxu0
        %2504 = vdwg.mxu0
        %v2505 = vpack.c.bf16 %v2478, %v2475
        %v2506 = vpack.c.bf16 %v2486, %v2483
        %v2507 = vpack.c.bf16 %v2494, %v2491
        %v2508 = vpack.c.bf16 %v2502, %v2499
        %v2513 = vunpack.c.l.b16 %v2505
        %v2514 = vunpack.c.h.b16 %v2505
        %v2515 = vunpack.c.l.b16 %v2506
        %v2516 = vunpack.c.h.b16 %v2506
        %v2517 = vunpack.c.l.b16 %v2507
        %v2518 = vunpack.c.h.b16 %v2507
        %v2519 = vunpack.c.l.b16 %v2508
        %v2520 = vunpack.c.h.b16 %v2508
        %v2521 = vpack.c.b16 %v2513, %v2513
        %v2522 = vpack.c.b16 %v2514, %v2514
        %v2523 = vpack.c.b16 %v2515, %v2515
        %v2524 = vpack.c.b16 %v2516, %v2516
        %v2525 = vpack.c.b16 %v2517, %v2517
        %v2526 = vpack.c.b16 %v2518, %v2518
        %v2527 = vpack.c.b16 %v2519, %v2519
        %v2528 = vpack.c.b16 %v2520, %v2520
        %2529 = vrot.lane.b32.xlu0 %v2521, 64
        %v2530 = vpop.permute.xlu0 %2529
        %2531 = vrot.lane.b32.xlu0 %v2522, 64
        %v2532 = vpop.permute.xlu0 %2531
        %2533 = vrot.lane.b32.xlu0 %v2523, 64
        %v2534 = vpop.permute.xlu0 %2533
        %2535 = vrot.lane.b32.xlu0 %v2524, 64
        %v2536 = vpop.permute.xlu0 %2535
        %2537 = vrot.lane.b32.xlu0 %v2525, 64
        %v2538 = vpop.permute.xlu0 %2537
        %2539 = vrot.lane.b32.xlu0 %v2526, 64
        %v2540 = vpop.permute.xlu0 %2539
        %2541 = vrot.lane.b32.xlu0 %v2527, 64
        %v2542 = vpop.permute.xlu0 %2541
        %2543 = vrot.lane.b32.xlu0 %v2528, 64
        %v2544 = vpop.permute.xlu0 %2543
        %vm2553 = vcmask 781824
        %2554 = vst.msk [vmem:[#allocation3] sm:$0xf] %vm2553, %v2530
        %2555 = vst.msk [vmem:[#allocation3 + $0x4] sm:$0xf] %vm2553, %v2532
        %2556 = vst.msk [vmem:[#allocation3 + $0x8] sm:$0xf] %vm2553, %v2534
        %2557 = vst.msk [vmem:[#allocation3 + $0xc] sm:$0xf] %vm2553, %v2536
        %2558 = vst.msk [vmem:[#allocation3 + $0x10] sm:$0xf] %vm2553, %v2538
        %2559 = vst.msk [vmem:[#allocation3 + $0x14] sm:$0xf] %vm2553, %v2540
        %2560 = vst.msk [vmem:[#allocation3 + $0x18] sm:$0xf] %vm2553, %v2542
        %2561 = vst.msk [vmem:[#allocation3 + $0x1c] sm:$0xf] %vm2553, %v2544
        %v2562 = vld [vmem:[#allocation2] sm:$0xf]
        %v2563 = vld [vmem:[#allocation2 + $0xc] sm:$0xf]
        %v2564 = vld [vmem:[#allocation2 + $0x18] sm:$0xf]
        %v2565 = vld [vmem:[#allocation2 + $0x24] sm:$0xf]
        %v2566 = vld [vmem:[#allocation2 + $0x30] sm:$0xf]
        %v2567 = vld [vmem:[#allocation2 + $0x3c] sm:$0xf]
        %v2568 = vld [vmem:[#allocation2 + $0x48] sm:$0xf]
        %v2569 = vld [vmem:[#allocation2 + $0x54] sm:$0xf]
        %v2570 = vld [vmem:[#allocation2 + $0x4] sm:$0xf]
        %v2571 = vld [vmem:[#allocation2 + $0x10] sm:$0xf]
        %v2572 = vld [vmem:[#allocation2 + $0x1c] sm:$0xf]
        %v2573 = vld [vmem:[#allocation2 + $0x28] sm:$0xf]
        %v2574 = vld [vmem:[#allocation2 + $0x34] sm:$0xf]
        %v2575 = vld [vmem:[#allocation2 + $0x40] sm:$0xf]
        %v2576 = vld [vmem:[#allocation2 + $0x4c] sm:$0xf]
        %v2577 = vld [vmem:[#allocation2 + $0x58] sm:$0xf]
        %v2578 = vld [vmem:[#allocation2 + $0x8] sm:$0xf]
        %v2579 = vld [vmem:[#allocation2 + $0x14] sm:$0xf]
        %v2580 = vld [vmem:[#allocation2 + $0x20] sm:$0xf]
        %v2581 = vld [vmem:[#allocation2 + $0x2c] sm:$0xf]
        %v2582 = vld [vmem:[#allocation2 + $0x38] sm:$0xf]
        %v2583 = vld [vmem:[#allocation2 + $0x44] sm:$0xf]
        %v2584 = vld [vmem:[#allocation2 + $0x50] sm:$0xf]
        %v2585 = vld [vmem:[#allocation2 + $0x5c] sm:$0xf]
        %v2594 = vunpack.c.l.b16 %v2562
        %v2595 = vunpack.c.l.b16 %v2563
        %v2596 = vunpack.c.l.b16 %v2564
        %v2597 = vunpack.c.l.b16 %v2565
        %v2598 = vunpack.c.l.b16 %v2566
        %v2599 = vunpack.c.l.b16 %v2567
        %v2600 = vunpack.c.l.b16 %v2568
        %v2601 = vunpack.c.l.b16 %v2569
        %v2602 = vpack.c.b16 %v2595, %v2594
        %v2603 = vpack.c.b16 %v2597, %v2596
        %v2604 = vpack.c.b16 %v2599, %v2598
        %v2605 = vpack.c.b16 %v2601, %v2600
        %2606 = vrot.lane.b32.xlu0 %v2602, 32
        %v2607 = vpop.permute.xlu0 %2606
        %2608 = vrot.lane.b32.xlu0 %v2603, 32
        %v2609 = vpop.permute.xlu0 %2608
        %2610 = vrot.lane.b32.xlu0 %v2604, 32
        %v2611 = vpop.permute.xlu0 %2610
        %2612 = vrot.lane.b32.xlu0 %v2605, 32
        %v2613 = vpop.permute.xlu0 %2612
        %v2622 = vunpack.c.l.b16 %v2570
        %v2623 = vunpack.c.l.b16 %v2571
        %v2624 = vunpack.c.l.b16 %v2572
        %v2625 = vunpack.c.l.b16 %v2573
        %v2626 = vunpack.c.l.b16 %v2574
        %v2627 = vunpack.c.l.b16 %v2575
        %v2628 = vunpack.c.l.b16 %v2576
        %v2629 = vunpack.c.l.b16 %v2577
        %v2630 = vpack.c.b16 %v2623, %v2622
        %v2631 = vpack.c.b16 %v2625, %v2624
        %v2632 = vpack.c.b16 %v2627, %v2626
        %v2633 = vpack.c.b16 %v2629, %v2628
        %2634 = vrot.lane.b32.xlu0 %v2630, 32
        %v2635 = vpop.permute.xlu0 %2634
        %2636 = vrot.lane.b32.xlu0 %v2631, 32
        %v2637 = vpop.permute.xlu0 %2636
        %2638 = vrot.lane.b32.xlu0 %v2632, 32
        %v2639 = vpop.permute.xlu0 %2638
        %2640 = vrot.lane.b32.xlu0 %v2633, 32
        %v2641 = vpop.permute.xlu0 %2640
        %v2643 = vsel %vm1383, %v2607, 0
        %v2646 = vsel %vm1383, %v2609, 0
        %v2649 = vsel %vm1383, %v2611, 0
        %v2652 = vsel %vm1383, %v2613, 0
        %v2655 = vsel %vm1383, %v2635, 0
        %v2658 = vsel %vm1383, %v2637, 0
        %v2661 = vsel %vm1383, %v2639, 0
        %v2664 = vsel %vm1383, %v2641, 0
        %2666 = vmatprep.subr.bf16.mxu0 0
        %2667 = vmatpush1.bf16.xpose.msra.mxu0 0
        %2668 = vmatprep.subr.bf16.mxu0 0
        %2669 = vmatpush1.bf16.xpose.msra.mxu0 0
        %2670 = vmatprep.subr.bf16.mxu0 0
        %2671 = vmatpush1.bf16.xpose.msra.mxu0 0
        %2672 = vmatprep.subr.bf16.mxu0 0
        %2673 = vmatpush1.bf16.xpose.msra.mxu0 0
        %2674 = vmatprep.subr.bf16.mxu0 0
        %2675 = vmatpush1.bf16.xpose.msra.mxu0 %v2664
        %2676 = vmatprep.subr.bf16.mxu0 0
        %2677 = vmatpush1.bf16.xpose.msra.mxu0 %v2661
        %2678 = vmatprep.subr.bf16.mxu0 0
        %2679 = vmatpush1.bf16.xpose.msra.mxu0 %v2658
        %2680 = vmatprep.subr.bf16.mxu0 0
        %2681 = vmatpush1.bf16.xpose.msra.mxu0 %v2655
        %2682 = vmatprep.subr.bf16.mxu0 0
        %2683 = vmatpush2.bf16.xpose.msra.mxu0 0
        %2684 = vmatprep.subr.bf16.mxu0 0
        %2685 = vmatpush2.bf16.xpose.msra.mxu0 0
        %2686 = vmatprep.subr.bf16.mxu0 0
        %2687 = vmatpush2.bf16.xpose.msra.mxu0 0
        %2688 = vmatprep.subr.bf16.mxu0 0
        %2689 = vmatpush2.bf16.xpose.msra.mxu0 0
        %2690 = vmatprep.subr.bf16.mxu0 0
        %2691 = vmatpush2.bf16.xpose.msra.mxu0 0
        %2692 = vmatprep.subr.bf16.mxu0 0
        %2693 = vmatpush2.bf16.xpose.msra.mxu0 0
        %2694 = vmatprep.subr.bf16.mxu0 0
        %2695 = vmatpush2.bf16.xpose.msra.mxu0 0
        %2696 = vmatprep.subr.bf16.mxu0 0
        %2697 = vmatpush2.bf16.xpose.msra.mxu0 0
        %2698 = vmatprep.mubr.bf16.mxu0 0
        %2699 = vmatmul.mubr.bf16.gmra.mxu0 %v2643
        %v2700 = vpop.f32.mrf.mxu0
        %v2701 = vadd.f32 0.0, %v2700
        %v2702 = vpop.f32.mrf.mxu0
        %v2703 = vpop.f32.mrf.mxu0
        %v2704 = vadd.f32 0.0, %v2703
        %v2705 = vpop.f32.mrf.mxu0
        %2706 = vmatprep.mubr.bf16.mxu0 0
        %2707 = vmatmul.mubr.bf16.gmra.mxu0 %v2646
        %v2708 = vpop.f32.mrf.mxu0
        %v2709 = vadd.f32 0.0, %v2708
        %v2710 = vpop.f32.mrf.mxu0
        %v2711 = vpop.f32.mrf.mxu0
        %v2712 = vadd.f32 0.0, %v2711
        %v2713 = vpop.f32.mrf.mxu0
        %2714 = vmatprep.mubr.bf16.mxu0 0
        %2715 = vmatmul.mubr.bf16.gmra.mxu0 %v2649
        %v2716 = vpop.f32.mrf.mxu0
        %v2717 = vadd.f32 0.0, %v2716
        %v2718 = vpop.f32.mrf.mxu0
        %v2719 = vpop.f32.mrf.mxu0
        %v2720 = vadd.f32 0.0, %v2719
        %v2721 = vpop.f32.mrf.mxu0
        %2722 = vmatprep.mubr.bf16.mxu0 0
        %2723 = vmatmul.mubr.bf16.gmra.mxu0 %v2652
        %v2724 = vpop.f32.mrf.mxu0
        %v2725 = vadd.f32 0.0, %v2724
        %v2726 = vpop.f32.mrf.mxu0
        %v2727 = vpop.f32.mrf.mxu0
        %v2728 = vadd.f32 0.0, %v2727
        %v2729 = vpop.f32.mrf.mxu0
        %2730 = vdwg.mxu0
        %v2731 = vsel %vm1473, %v2701, -inf
        %2732 = vmax.xlane.f32.xlu0 %v2731
        %v2733 = vpop.xlane.xlu0 %2732
        %v2734 = vsel %vm1473, %v2704, -inf
        %2735 = vmax.xlane.f32.xlu0 %v2734
        %v2736 = vpop.xlane.xlu0 %2735
        %v2737 = vsel %vm1473, %v2709, -inf
        %2738 = vmax.xlane.f32.xlu0 %v2737
        %v2739 = vpop.xlane.xlu0 %2738
        %v2740 = vsel %vm1473, %v2712, -inf
        %2741 = vmax.xlane.f32.xlu0 %v2740
        %v2742 = vpop.xlane.xlu0 %2741
        %v2743 = vsel %vm1473, %v2717, -inf
        %2744 = vmax.xlane.f32.xlu0 %v2743
        %v2745 = vpop.xlane.xlu0 %2744
        %v2746 = vsel %vm1473, %v2720, -inf
        %2747 = vmax.xlane.f32.xlu0 %v2746
        %v2748 = vpop.xlane.xlu0 %2747
        %v2749 = vsel %vm1473, %v2725, -inf
        %2750 = vmax.xlane.f32.xlu0 %v2749
        %v2751 = vpop.xlane.xlu0 %2750
        %v2752 = vsel %vm1473, %v2728, -inf
        %2753 = vmax.xlane.f32.xlu0 %v2752
        %v2754 = vpop.xlane.xlu0 %2753
        %v2755 = vsub.f32 %v2701, %v2733
        %v2756 = vsub.f32 %v2704, %v2736
        %v2757 = vsub.f32 %v2709, %v2739
        %v2758 = vsub.f32 %v2712, %v2742
        %v2759 = vsub.f32 %v2717, %v2745
        %v2760 = vsub.f32 %v2720, %v2748
        %v2761 = vsub.f32 %v2725, %v2751
        %v2762 = vsub.f32 %v2728, %v2754
        %v2763 = vmul.f32 %v2755, 1.442695
        %v2764 = vpow.pop %v2763
        %v2765 = vmul.f32 %v2756, 1.442695
        %v2766 = vpow.pop %v2765
        %v2767 = vmul.f32 %v2757, 1.442695
        %v2768 = vpow.pop %v2767
        %v2769 = vmul.f32 %v2758, 1.442695
        %v2770 = vpow.pop %v2769
        %v2771 = vmul.f32 %v2759, 1.442695
        %v2772 = vpow.pop %v2771
        %v2773 = vmul.f32 %v2760, 1.442695
        %v2774 = vpow.pop %v2773
        %v2775 = vmul.f32 %v2761, 1.442695
        %v2776 = vpow.pop %v2775
        %v2777 = vmul.f32 %v2762, 1.442695
        %v2778 = vpow.pop %v2777
        %v2779 = vsel %vm1473, %v2764, 0.0
        %2780 = vadd.xlane.f32.xlu0 %v2779
        %v2781 = vpop.xlane.xlu0 %2780
        %v2782 = vsel %vm1473, %v2766, 0.0
        %2783 = vadd.xlane.f32.xlu0 %v2782
        %v2784 = vpop.xlane.xlu0 %2783
        %v2785 = vsel %vm1473, %v2768, 0.0
        %2786 = vadd.xlane.f32.xlu0 %v2785
        %v2787 = vpop.xlane.xlu0 %2786
        %v2788 = vsel %vm1473, %v2770, 0.0
        %2789 = vadd.xlane.f32.xlu0 %v2788
        %v2790 = vpop.xlane.xlu0 %2789
        %v2791 = vsel %vm1473, %v2772, 0.0
        %2792 = vadd.xlane.f32.xlu0 %v2791
        %v2793 = vpop.xlane.xlu0 %2792
        %v2794 = vsel %vm1473, %v2774, 0.0
        %2795 = vadd.xlane.f32.xlu0 %v2794
        %v2796 = vpop.xlane.xlu0 %2795
        %v2797 = vsel %vm1473, %v2776, 0.0
        %2798 = vadd.xlane.f32.xlu0 %v2797
        %v2799 = vpop.xlane.xlu0 %2798
        %v2800 = vsel %vm1473, %v2778, 0.0
        %2801 = vadd.xlane.f32.xlu0 %v2800
        %v2802 = vpop.xlane.xlu0 %2801
        %v2803 = vrcp.pop %v2781
        %v2804 = vrcp.pop %v2784
        %v2805 = vrcp.pop %v2787
        %v2806 = vrcp.pop %v2790
        %v2807 = vrcp.pop %v2793
        %v2808 = vrcp.pop %v2796
        %v2809 = vrcp.pop %v2799
        %v2810 = vrcp.pop %v2802
        %v2811 = vmul.f32 %v2764, %v2803
        %v2812 = vmul.f32 %v2766, %v2804
        %v2813 = vmul.f32 %v2768, %v2805
        %v2814 = vmul.f32 %v2770, %v2806
        %v2815 = vmul.f32 %v2772, %v2807
        %v2816 = vmul.f32 %v2774, %v2808
        %v2817 = vmul.f32 %v2776, %v2809
        %v2818 = vmul.f32 %v2778, %v2810
        %v2819 = vpack.c.bf16 %v2812, %v2811
        %v2820 = vpack.c.bf16 %v2814, %v2813
        %v2821 = vpack.c.bf16 %v2816, %v2815
        %v2822 = vpack.c.bf16 %v2818, %v2817
        %v2831 = vunpack.c.l.b16 %v2578
        %v2832 = vunpack.c.l.b16 %v2579
        %v2833 = vunpack.c.l.b16 %v2580
        %v2834 = vunpack.c.l.b16 %v2581
        %v2835 = vunpack.c.l.b16 %v2582
        %v2836 = vunpack.c.l.b16 %v2583
        %v2837 = vunpack.c.l.b16 %v2584
        %v2838 = vunpack.c.l.b16 %v2585
        %v2839 = vpack.c.b16 %v2832, %v2831
        %v2840 = vpack.c.b16 %v2834, %v2833
        %v2841 = vpack.c.b16 %v2836, %v2835
        %v2842 = vpack.c.b16 %v2838, %v2837
        %2843 = vrot.lane.b32.xlu0 %v2839, 32
        %v2844 = vpop.permute.xlu0 %2843
        %2845 = vrot.lane.b32.xlu0 %v2840, 32
        %v2846 = vpop.permute.xlu0 %2845
        %2847 = vrot.lane.b32.xlu0 %v2841, 32
        %v2848 = vpop.permute.xlu0 %2847
        %2849 = vrot.lane.b32.xlu0 %v2842, 32
        %v2850 = vpop.permute.xlu0 %2849
        %v2856 = vsel %vm1473, %v2819, 0
        %v2859 = vsel %vm1473, %v2820, 0
        %v2862 = vsel %vm1473, %v2821, 0
        %v2865 = vsel %vm1473, %v2822, 0
        %2867 = vmatprep.subr.bf16.mxu0 0
        %2868 = vmatpush1.bf16.msra.mxu0 0
        %2869 = vmatprep.subr.bf16.mxu0 0
        %2870 = vmatpush1.bf16.msra.mxu0 0
        %2871 = vmatprep.subr.bf16.mxu0 0
        %2872 = vmatpush1.bf16.msra.mxu0 0
        %2873 = vmatprep.subr.bf16.mxu0 0
        %2874 = vmatpush1.bf16.msra.mxu0 0
        %2875 = vmatprep.subr.bf16.mxu0 0
        %2876 = vmatpush1.bf16.msra.mxu0 %v2850
        %2877 = vmatprep.subr.bf16.mxu0 0
        %2878 = vmatpush1.bf16.msra.mxu0 %v2848
        %2879 = vmatprep.subr.bf16.mxu0 0
        %2880 = vmatpush1.bf16.msra.mxu0 %v2846
        %2881 = vmatprep.subr.bf16.mxu0 0
        %2882 = vmatpush1.bf16.msra.mxu0 %v2844
        %2883 = vmatprep.subr.bf16.mxu0 0
        %2884 = vmatpush2.bf16.msra.mxu0 0
        %2885 = vmatprep.subr.bf16.mxu0 0
        %2886 = vmatpush2.bf16.msra.mxu0 0
        %2887 = vmatprep.subr.bf16.mxu0 0
        %2888 = vmatpush2.bf16.msra.mxu0 0
        %2889 = vmatprep.subr.bf16.mxu0 0
        %2890 = vmatpush2.bf16.msra.mxu0 0
        %2891 = vmatprep.subr.bf16.mxu0 0
        %2892 = vmatpush2.bf16.msra.mxu0 0
        %2893 = vmatprep.subr.bf16.mxu0 0
        %2894 = vmatpush2.bf16.msra.mxu0 0
        %2895 = vmatprep.subr.bf16.mxu0 0
        %2896 = vmatpush2.bf16.msra.mxu0 0
        %2897 = vmatprep.subr.bf16.mxu0 0
        %2898 = vmatpush2.bf16.msra.mxu0 0
        %2899 = vmatprep.mubr.bf16.mxu0 0
        %2900 = vmatmul.mubr.bf16.gmra.mxu0 %v2856
        %v2901 = vpop.f32.mrf.mxu0
        %v2902 = vadd.f32 0.0, %v2901
        %v2903 = vpop.f32.mrf.mxu0
        %v2904 = vpop.f32.mrf.mxu0
        %v2905 = vadd.f32 0.0, %v2904
        %v2906 = vpop.f32.mrf.mxu0
        %2907 = vmatprep.mubr.bf16.mxu0 0
        %2908 = vmatmul.mubr.bf16.gmra.mxu0 %v2859
        %v2909 = vpop.f32.mrf.mxu0
        %v2910 = vadd.f32 0.0, %v2909
        %v2911 = vpop.f32.mrf.mxu0
        %v2912 = vpop.f32.mrf.mxu0
        %v2913 = vadd.f32 0.0, %v2912
        %v2914 = vpop.f32.mrf.mxu0
        %2915 = vmatprep.mubr.bf16.mxu0 0
        %2916 = vmatmul.mubr.bf16.gmra.mxu0 %v2862
        %v2917 = vpop.f32.mrf.mxu0
        %v2918 = vadd.f32 0.0, %v2917
        %v2919 = vpop.f32.mrf.mxu0
        %v2920 = vpop.f32.mrf.mxu0
        %v2921 = vadd.f32 0.0, %v2920
        %v2922 = vpop.f32.mrf.mxu0
        %2923 = vmatprep.mubr.bf16.mxu0 0
        %2924 = vmatmul.mubr.bf16.gmra.mxu0 %v2865
        %v2925 = vpop.f32.mrf.mxu0
        %v2926 = vadd.f32 0.0, %v2925
        %v2927 = vpop.f32.mrf.mxu0
        %v2928 = vpop.f32.mrf.mxu0
        %v2929 = vadd.f32 0.0, %v2928
        %v2930 = vpop.f32.mrf.mxu0
        %2931 = vdwg.mxu0
        %v2932 = vpack.c.bf16 %v2905, %v2902
        %v2933 = vpack.c.bf16 %v2913, %v2910
        %v2934 = vpack.c.bf16 %v2921, %v2918
        %v2935 = vpack.c.bf16 %v2929, %v2926
        %v2940 = vunpack.c.l.b16 %v2932
        %v2941 = vunpack.c.h.b16 %v2932
        %v2942 = vunpack.c.l.b16 %v2933
        %v2943 = vunpack.c.h.b16 %v2933
        %v2944 = vunpack.c.l.b16 %v2934
        %v2945 = vunpack.c.h.b16 %v2934
        %v2946 = vunpack.c.l.b16 %v2935
        %v2947 = vunpack.c.h.b16 %v2935
        %v2948 = vpack.c.b16 %v2940, %v2940
        %v2949 = vpack.c.b16 %v2941, %v2941
        %v2950 = vpack.c.b16 %v2942, %v2942
        %v2951 = vpack.c.b16 %v2943, %v2943
        %v2952 = vpack.c.b16 %v2944, %v2944
        %v2953 = vpack.c.b16 %v2945, %v2945
        %v2954 = vpack.c.b16 %v2946, %v2946
        %v2955 = vpack.c.b16 %v2947, %v2947
        %2956 = vrot.lane.b32.xlu0 %v2948, 96
        %v2957 = vpop.permute.xlu0 %2956
        %2958 = vrot.lane.b32.xlu0 %v2949, 96
        %v2959 = vpop.permute.xlu0 %2958
        %2960 = vrot.lane.b32.xlu0 %v2950, 96
        %v2961 = vpop.permute.xlu0 %2960
        %2962 = vrot.lane.b32.xlu0 %v2951, 96
        %v2963 = vpop.permute.xlu0 %2962
        %2964 = vrot.lane.b32.xlu0 %v2952, 96
        %v2965 = vpop.permute.xlu0 %2964
        %2966 = vrot.lane.b32.xlu0 %v2953, 96
        %v2967 = vpop.permute.xlu0 %2966
        %2968 = vrot.lane.b32.xlu0 %v2954, 96
        %v2969 = vpop.permute.xlu0 %2968
        %2970 = vrot.lane.b32.xlu0 %v2955, 96
        %v2971 = vpop.permute.xlu0 %2970
        %vm2980 = vcmask 1044224
        %2981 = vst.msk [vmem:[#allocation3] sm:$0xf] %vm2980, %v2957
        %2982 = vst.msk [vmem:[#allocation3 + $0x4] sm:$0xf] %vm2980, %v2959
        %2983 = vst.msk [vmem:[#allocation3 + $0x8] sm:$0xf] %vm2980, %v2961
        %2984 = vst.msk [vmem:[#allocation3 + $0xc] sm:$0xf] %vm2980, %v2963
        %2985 = vst.msk [vmem:[#allocation3 + $0x10] sm:$0xf] %vm2980, %v2965
        %2986 = vst.msk [vmem:[#allocation3 + $0x14] sm:$0xf] %vm2980, %v2967
        %2987 = vst.msk [vmem:[#allocation3 + $0x18] sm:$0xf] %vm2980, %v2969
        %2988 = vst.msk [vmem:[#allocation3 + $0x1c] sm:$0xf] %vm2980, %v2971
        %v2989 = vld [vmem:[#allocation2 + $0x60] sm:$0xf]
        %v2990 = vld [vmem:[#allocation2 + $0x6c] sm:$0xf]
        %v2991 = vld [vmem:[#allocation2 + $0x78] sm:$0xf]
        %v2992 = vld [vmem:[#allocation2 + $0x84] sm:$0xf]
        %v2993 = vld [vmem:[#allocation2 + $0x90] sm:$0xf]
        %v2994 = vld [vmem:[#allocation2 + $0x9c] sm:$0xf]
        %v2995 = vld [vmem:[#allocation2 + $0xa8] sm:$0xf]
        %v2996 = vld [vmem:[#allocation2 + $0xb4] sm:$0xf]
        %v2997 = vld [vmem:[#allocation2 + $0x64] sm:$0xf]
        %v2998 = vld [vmem:[#allocation2 + $0x70] sm:$0xf]
        %v2999 = vld [vmem:[#allocation2 + $0x7c] sm:$0xf]
        %v3000 = vld [vmem:[#allocation2 + $0x88] sm:$0xf]
        %v3001 = vld [vmem:[#allocation2 + $0x94] sm:$0xf]
        %v3002 = vld [vmem:[#allocation2 + $0xa0] sm:$0xf]
        %v3003 = vld [vmem:[#allocation2 + $0xac] sm:$0xf]
        %v3004 = vld [vmem:[#allocation2 + $0xb8] sm:$0xf]
        %v3005 = vld [vmem:[#allocation2 + $0x68] sm:$0xf]
        %v3006 = vld [vmem:[#allocation2 + $0x74] sm:$0xf]
        %v3007 = vld [vmem:[#allocation2 + $0x80] sm:$0xf]
        %v3008 = vld [vmem:[#allocation2 + $0x8c] sm:$0xf]
        %v3009 = vld [vmem:[#allocation2 + $0x98] sm:$0xf]
        %v3010 = vld [vmem:[#allocation2 + $0xa4] sm:$0xf]
        %v3011 = vld [vmem:[#allocation2 + $0xb0] sm:$0xf]
        %v3012 = vld [vmem:[#allocation2 + $0xbc] sm:$0xf]
        %v3021 = vunpack.c.l.b16 %v2989
        %v3022 = vunpack.c.l.b16 %v2990
        %v3023 = vunpack.c.l.b16 %v2991
        %v3024 = vunpack.c.l.b16 %v2992
        %v3025 = vunpack.c.l.b16 %v2993
        %v3026 = vunpack.c.l.b16 %v2994
        %v3027 = vunpack.c.l.b16 %v2995
        %v3028 = vunpack.c.l.b16 %v2996
        %v3029 = vpack.c.b16 %v3022, %v3021
        %v3030 = vpack.c.b16 %v3024, %v3023
        %v3031 = vpack.c.b16 %v3026, %v3025
        %v3032 = vpack.c.b16 %v3028, %v3027
        %v3041 = vunpack.c.l.b16 %v2997
        %v3042 = vunpack.c.l.b16 %v2998
        %v3043 = vunpack.c.l.b16 %v2999
        %v3044 = vunpack.c.l.b16 %v3000
        %v3045 = vunpack.c.l.b16 %v3001
        %v3046 = vunpack.c.l.b16 %v3002
        %v3047 = vunpack.c.l.b16 %v3003
        %v3048 = vunpack.c.l.b16 %v3004
        %v3049 = vpack.c.b16 %v3042, %v3041
        %v3050 = vpack.c.b16 %v3044, %v3043
        %v3051 = vpack.c.b16 %v3046, %v3045
        %v3052 = vpack.c.b16 %v3048, %v3047
        %v3054 = vsel %vm1383, %v3029, 0
        %v3057 = vsel %vm1383, %v3030, 0
        %v3060 = vsel %vm1383, %v3031, 0
        %v3063 = vsel %vm1383, %v3032, 0
        %v3066 = vsel %vm1383, %v3049, 0
        %v3069 = vsel %vm1383, %v3050, 0
        %v3072 = vsel %vm1383, %v3051, 0
        %v3075 = vsel %vm1383, %v3052, 0
        %3077 = vmatprep.subr.bf16.mxu0 0
        %3078 = vmatpush1.bf16.xpose.msra.mxu0 0
        %3079 = vmatprep.subr.bf16.mxu0 0
        %3080 = vmatpush1.bf16.xpose.msra.mxu0 0
        %3081 = vmatprep.subr.bf16.mxu0 0
        %3082 = vmatpush1.bf16.xpose.msra.mxu0 0
        %3083 = vmatprep.subr.bf16.mxu0 0
        %3084 = vmatpush1.bf16.xpose.msra.mxu0 0
        %3085 = vmatprep.subr.bf16.mxu0 0
        %3086 = vmatpush1.bf16.xpose.msra.mxu0 %v3075
        %3087 = vmatprep.subr.bf16.mxu0 0
        %3088 = vmatpush1.bf16.xpose.msra.mxu0 %v3072
        %3089 = vmatprep.subr.bf16.mxu0 0
        %3090 = vmatpush1.bf16.xpose.msra.mxu0 %v3069
        %3091 = vmatprep.subr.bf16.mxu0 0
        %3092 = vmatpush1.bf16.xpose.msra.mxu0 %v3066
        %3093 = vmatprep.subr.bf16.mxu0 0
        %3094 = vmatpush2.bf16.xpose.msra.mxu0 0
        %3095 = vmatprep.subr.bf16.mxu0 0
        %3096 = vmatpush2.bf16.xpose.msra.mxu0 0
        %3097 = vmatprep.subr.bf16.mxu0 0
        %3098 = vmatpush2.bf16.xpose.msra.mxu0 0
        %3099 = vmatprep.subr.bf16.mxu0 0
        %3100 = vmatpush2.bf16.xpose.msra.mxu0 0
        %3101 = vmatprep.subr.bf16.mxu0 0
        %3102 = vmatpush2.bf16.xpose.msra.mxu0 0
        %3103 = vmatprep.subr.bf16.mxu0 0
        %3104 = vmatpush2.bf16.xpose.msra.mxu0 0
        %3105 = vmatprep.subr.bf16.mxu0 0
        %3106 = vmatpush2.bf16.xpose.msra.mxu0 0
        %3107 = vmatprep.subr.bf16.mxu0 0
        %3108 = vmatpush2.bf16.xpose.msra.mxu0 0
        %3109 = vmatprep.mubr.bf16.mxu0 0
        %3110 = vmatmul.mubr.bf16.gmra.mxu0 %v3054
        %v3111 = vpop.f32.mrf.mxu0
        %v3112 = vadd.f32 0.0, %v3111
        %v3113 = vpop.f32.mrf.mxu0
        %v3114 = vpop.f32.mrf.mxu0
        %v3115 = vadd.f32 0.0, %v3114
        %v3116 = vpop.f32.mrf.mxu0
        %3117 = vmatprep.mubr.bf16.mxu0 0
        %3118 = vmatmul.mubr.bf16.gmra.mxu0 %v3057
        %v3119 = vpop.f32.mrf.mxu0
        %v3120 = vadd.f32 0.0, %v3119
        %v3121 = vpop.f32.mrf.mxu0
        %v3122 = vpop.f32.mrf.mxu0
        %v3123 = vadd.f32 0.0, %v3122
        %v3124 = vpop.f32.mrf.mxu0
        %3125 = vmatprep.mubr.bf16.mxu0 0
        %3126 = vmatmul.mubr.bf16.gmra.mxu0 %v3060
        %v3127 = vpop.f32.mrf.mxu0
        %v3128 = vadd.f32 0.0, %v3127
        %v3129 = vpop.f32.mrf.mxu0
        %v3130 = vpop.f32.mrf.mxu0
        %v3131 = vadd.f32 0.0, %v3130
        %v3132 = vpop.f32.mrf.mxu0
        %3133 = vmatprep.mubr.bf16.mxu0 0
        %3134 = vmatmul.mubr.bf16.gmra.mxu0 %v3063
        %v3135 = vpop.f32.mrf.mxu0
        %v3136 = vadd.f32 0.0, %v3135
        %v3137 = vpop.f32.mrf.mxu0
        %v3138 = vpop.f32.mrf.mxu0
        %v3139 = vadd.f32 0.0, %v3138
        %v3140 = vpop.f32.mrf.mxu0
        %3141 = vdwg.mxu0
        %v3142 = vsel %vm1473, %v3112, -inf
        %3143 = vmax.xlane.f32.xlu0 %v3142
        %v3144 = vpop.xlane.xlu0 %3143
        %v3145 = vsel %vm1473, %v3115, -inf
        %3146 = vmax.xlane.f32.xlu0 %v3145
        %v3147 = vpop.xlane.xlu0 %3146
        %v3148 = vsel %vm1473, %v3120, -inf
        %3149 = vmax.xlane.f32.xlu0 %v3148
        %v3150 = vpop.xlane.xlu0 %3149
        %v3151 = vsel %vm1473, %v3123, -inf
        %3152 = vmax.xlane.f32.xlu0 %v3151
        %v3153 = vpop.xlane.xlu0 %3152
        %v3154 = vsel %vm1473, %v3128, -inf
        %3155 = vmax.xlane.f32.xlu0 %v3154
        %v3156 = vpop.xlane.xlu0 %3155
        %v3157 = vsel %vm1473, %v3131, -inf
        %3158 = vmax.xlane.f32.xlu0 %v3157
        %v3159 = vpop.xlane.xlu0 %3158
        %v3160 = vsel %vm1473, %v3136, -inf
        %3161 = vmax.xlane.f32.xlu0 %v3160
        %v3162 = vpop.xlane.xlu0 %3161
        %v3163 = vsel %vm1473, %v3139, -inf
        %3164 = vmax.xlane.f32.xlu0 %v3163
        %v3165 = vpop.xlane.xlu0 %3164
        %v3166 = vsub.f32 %v3112, %v3144
        %v3167 = vsub.f32 %v3115, %v3147
        %v3168 = vsub.f32 %v3120, %v3150
        %v3169 = vsub.f32 %v3123, %v3153
        %v3170 = vsub.f32 %v3128, %v3156
        %v3171 = vsub.f32 %v3131, %v3159
        %v3172 = vsub.f32 %v3136, %v3162
        %v3173 = vsub.f32 %v3139, %v3165
        %v3174 = vmul.f32 %v3166, 1.442695
        %v3175 = vpow.pop %v3174
        %v3176 = vmul.f32 %v3167, 1.442695
        %v3177 = vpow.pop %v3176
        %v3178 = vmul.f32 %v3168, 1.442695
        %v3179 = vpow.pop %v3178
        %v3180 = vmul.f32 %v3169, 1.442695
        %v3181 = vpow.pop %v3180
        %v3182 = vmul.f32 %v3170, 1.442695
        %v3183 = vpow.pop %v3182
        %v3184 = vmul.f32 %v3171, 1.442695
        %v3185 = vpow.pop %v3184
        %v3186 = vmul.f32 %v3172, 1.442695
        %v3187 = vpow.pop %v3186
        %v3188 = vmul.f32 %v3173, 1.442695
        %v3189 = vpow.pop %v3188
        %v3190 = vsel %vm1473, %v3175, 0.0
        %3191 = vadd.xlane.f32.xlu0 %v3190
        %v3192 = vpop.xlane.xlu0 %3191
        %v3193 = vsel %vm1473, %v3177, 0.0
        %3194 = vadd.xlane.f32.xlu0 %v3193
        %v3195 = vpop.xlane.xlu0 %3194
        %v3196 = vsel %vm1473, %v3179, 0.0
        %3197 = vadd.xlane.f32.xlu0 %v3196
        %v3198 = vpop.xlane.xlu0 %3197
        %v3199 = vsel %vm1473, %v3181, 0.0
        %3200 = vadd.xlane.f32.xlu0 %v3199
        %v3201 = vpop.xlane.xlu0 %3200
        %v3202 = vsel %vm1473, %v3183, 0.0
        %3203 = vadd.xlane.f32.xlu0 %v3202
        %v3204 = vpop.xlane.xlu0 %3203
        %v3205 = vsel %vm1473, %v3185, 0.0
        %3206 = vadd.xlane.f32.xlu0 %v3205
        %v3207 = vpop.xlane.xlu0 %3206
        %v3208 = vsel %vm1473, %v3187, 0.0
        %3209 = vadd.xlane.f32.xlu0 %v3208
        %v3210 = vpop.xlane.xlu0 %3209
        %v3211 = vsel %vm1473, %v3189, 0.0
        %3212 = vadd.xlane.f32.xlu0 %v3211
        %v3213 = vpop.xlane.xlu0 %3212
        %v3214 = vrcp.pop %v3192
        %v3215 = vrcp.pop %v3195
        %v3216 = vrcp.pop %v3198
        %v3217 = vrcp.pop %v3201
        %v3218 = vrcp.pop %v3204
        %v3219 = vrcp.pop %v3207
        %v3220 = vrcp.pop %v3210
        %v3221 = vrcp.pop %v3213
        %v3222 = vmul.f32 %v3175, %v3214
        %v3223 = vmul.f32 %v3177, %v3215
        %v3224 = vmul.f32 %v3179, %v3216
        %v3225 = vmul.f32 %v3181, %v3217
        %v3226 = vmul.f32 %v3183, %v3218
        %v3227 = vmul.f32 %v3185, %v3219
        %v3228 = vmul.f32 %v3187, %v3220
        %v3229 = vmul.f32 %v3189, %v3221
        %v3230 = vpack.c.bf16 %v3223, %v3222
        %v3231 = vpack.c.bf16 %v3225, %v3224
        %v3232 = vpack.c.bf16 %v3227, %v3226
        %v3233 = vpack.c.bf16 %v3229, %v3228
        %v3242 = vunpack.c.l.b16 %v3005
        %v3243 = vunpack.c.l.b16 %v3006
        %v3244 = vunpack.c.l.b16 %v3007
        %v3245 = vunpack.c.l.b16 %v3008
        %v3246 = vunpack.c.l.b16 %v3009
        %v3247 = vunpack.c.l.b16 %v3010
        %v3248 = vunpack.c.l.b16 %v3011
        %v3249 = vunpack.c.l.b16 %v3012
        %v3250 = vpack.c.b16 %v3243, %v3242
        %v3251 = vpack.c.b16 %v3245, %v3244
        %v3252 = vpack.c.b16 %v3247, %v3246
        %v3253 = vpack.c.b16 %v3249, %v3248
        %v3259 = vsel %vm1473, %v3230, 0
        %v3262 = vsel %vm1473, %v3231, 0
        %v3265 = vsel %vm1473, %v3232, 0
        %v3268 = vsel %vm1473, %v3233, 0
        %3270 = vmatprep.subr.bf16.mxu0 0
        %3271 = vmatpush1.bf16.msra.mxu0 0
        %3272 = vmatprep.subr.bf16.mxu0 0
        %3273 = vmatpush1.bf16.msra.mxu0 0
        %3274 = vmatprep.subr.bf16.mxu0 0
        %3275 = vmatpush1.bf16.msra.mxu0 0
        %3276 = vmatprep.subr.bf16.mxu0 0
        %3277 = vmatpush1.bf16.msra.mxu0 0
        %3278 = vmatprep.subr.bf16.mxu0 0
        %3279 = vmatpush1.bf16.msra.mxu0 %v3253
        %3280 = vmatprep.subr.bf16.mxu0 0
        %3281 = vmatpush1.bf16.msra.mxu0 %v3252
        %3282 = vmatprep.subr.bf16.mxu0 0
        %3283 = vmatpush1.bf16.msra.mxu0 %v3251
        %3284 = vmatprep.subr.bf16.mxu0 0
        %3285 = vmatpush1.bf16.msra.mxu0 %v3250
        %3286 = vmatprep.subr.bf16.mxu0 0
        %3287 = vmatpush2.bf16.msra.mxu0 0
        %3288 = vmatprep.subr.bf16.mxu0 0
        %3289 = vmatpush2.bf16.msra.mxu0 0
        %3290 = vmatprep.subr.bf16.mxu0 0
        %3291 = vmatpush2.bf16.msra.mxu0 0
        %3292 = vmatprep.subr.bf16.mxu0 0
        %3293 = vmatpush2.bf16.msra.mxu0 0
        %3294 = vmatprep.subr.bf16.mxu0 0
        %3295 = vmatpush2.bf16.msra.mxu0 0
        %3296 = vmatprep.subr.bf16.mxu0 0
        %3297 = vmatpush2.bf16.msra.mxu0 0
        %3298 = vmatprep.subr.bf16.mxu0 0
        %3299 = vmatpush2.bf16.msra.mxu0 0
        %3300 = vmatprep.subr.bf16.mxu0 0
        %3301 = vmatpush2.bf16.msra.mxu0 0
        %3302 = vmatprep.mubr.bf16.mxu0 0
        %3303 = vmatmul.mubr.bf16.gmra.mxu0 %v3259
        %v3304 = vpop.f32.mrf.mxu0
        %v3305 = vadd.f32 0.0, %v3304
        %v3306 = vpop.f32.mrf.mxu0
        %v3307 = vpop.f32.mrf.mxu0
        %v3308 = vadd.f32 0.0, %v3307
        %v3309 = vpop.f32.mrf.mxu0
        %3310 = vmatprep.mubr.bf16.mxu0 0
        %3311 = vmatmul.mubr.bf16.gmra.mxu0 %v3262
        %v3312 = vpop.f32.mrf.mxu0
        %v3313 = vadd.f32 0.0, %v3312
        %v3314 = vpop.f32.mrf.mxu0
        %v3315 = vpop.f32.mrf.mxu0
        %v3316 = vadd.f32 0.0, %v3315
        %v3317 = vpop.f32.mrf.mxu0
        %3318 = vmatprep.mubr.bf16.mxu0 0
        %3319 = vmatmul.mubr.bf16.gmra.mxu0 %v3265
        %v3320 = vpop.f32.mrf.mxu0
        %v3321 = vadd.f32 0.0, %v3320
        %v3322 = vpop.f32.mrf.mxu0
        %v3323 = vpop.f32.mrf.mxu0
        %v3324 = vadd.f32 0.0, %v3323
        %v3325 = vpop.f32.mrf.mxu0
        %3326 = vmatprep.mubr.bf16.mxu0 0
        %3327 = vmatmul.mubr.bf16.gmra.mxu0 %v3268
        %v3328 = vpop.f32.mrf.mxu0
        %v3329 = vadd.f32 0.0, %v3328
        %v3330 = vpop.f32.mrf.mxu0
        %v3331 = vpop.f32.mrf.mxu0
        %v3332 = vadd.f32 0.0, %v3331
        %v3333 = vpop.f32.mrf.mxu0
        %3334 = vdwg.mxu0
        %v3335 = vpack.c.bf16 %v3308, %v3305
        %v3336 = vpack.c.bf16 %v3316, %v3313
        %v3337 = vpack.c.bf16 %v3324, %v3321
        %v3338 = vpack.c.bf16 %v3332, %v3329
        %v3343 = vunpack.c.l.b16 %v3335
        %v3344 = vunpack.c.h.b16 %v3335
        %v3345 = vunpack.c.l.b16 %v3336
        %v3346 = vunpack.c.h.b16 %v3336
        %v3347 = vunpack.c.l.b16 %v3337
        %v3348 = vunpack.c.h.b16 %v3337
        %v3349 = vunpack.c.l.b16 %v3338
        %v3350 = vunpack.c.h.b16 %v3338
        %v3351 = vpack.c.b16 %v3343, %v3343
        %v3352 = vpack.c.b16 %v3344, %v3344
        %v3353 = vpack.c.b16 %v3345, %v3345
        %v3354 = vpack.c.b16 %v3346, %v3346
        %v3355 = vpack.c.b16 %v3347, %v3347
        %v3356 = vpack.c.b16 %v3348, %v3348
        %v3357 = vpack.c.b16 %v3349, %v3349
        %v3358 = vpack.c.b16 %v3350, %v3350
        %3367 = vst.msk [vmem:[#allocation3 + $0x20] sm:$0xf] %vm1699, %v3351
        %3368 = vst.msk [vmem:[#allocation3 + $0x24] sm:$0xf] %vm1699, %v3352
        %3369 = vst.msk [vmem:[#allocation3 + $0x28] sm:$0xf] %vm1699, %v3353
        %3370 = vst.msk [vmem:[#allocation3 + $0x2c] sm:$0xf] %vm1699, %v3354
        %3371 = vst.msk [vmem:[#allocation3 + $0x30] sm:$0xf] %vm1699, %v3355
        %3372 = vst.msk [vmem:[#allocation3 + $0x34] sm:$0xf] %vm1699, %v3356
        %3373 = vst.msk [vmem:[#allocation3 + $0x38] sm:$0xf] %vm1699, %v3357
        %3374 = vst.msk [vmem:[#allocation3 + $0x3c] sm:$0xf] %vm1699, %v3358
        %v3375 = vld [vmem:[#allocation2 + $0x60] sm:$0xf]
        %v3376 = vld [vmem:[#allocation2 + $0x6c] sm:$0xf]
        %v3377 = vld [vmem:[#allocation2 + $0x78] sm:$0xf]
        %v3378 = vld [vmem:[#allocation2 + $0x84] sm:$0xf]
        %v3379 = vld [vmem:[#allocation2 + $0x90] sm:$0xf]
        %v3380 = vld [vmem:[#allocation2 + $0x9c] sm:$0xf]
        %v3381 = vld [vmem:[#allocation2 + $0xa8] sm:$0xf]
        %v3382 = vld [vmem:[#allocation2 + $0xb4] sm:$0xf]
        %v3383 = vld [vmem:[#allocation2 + $0x64] sm:$0xf]
        %v3384 = vld [vmem:[#allocation2 + $0x70] sm:$0xf]
        %v3385 = vld [vmem:[#allocation2 + $0x7c] sm:$0xf]
        %v3386 = vld [vmem:[#allocation2 + $0x88] sm:$0xf]
        %v3387 = vld [vmem:[#allocation2 + $0x94] sm:$0xf]
        %v3388 = vld [vmem:[#allocation2 + $0xa0] sm:$0xf]
        %v3389 = vld [vmem:[#allocation2 + $0xac] sm:$0xf]
        %v3390 = vld [vmem:[#allocation2 + $0xb8] sm:$0xf]
        %v3391 = vld [vmem:[#allocation2 + $0x68] sm:$0xf]
        %v3392 = vld [vmem:[#allocation2 + $0x74] sm:$0xf]
        %v3393 = vld [vmem:[#allocation2 + $0x80] sm:$0xf]
        %v3394 = vld [vmem:[#allocation2 + $0x8c] sm:$0xf]
        %v3395 = vld [vmem:[#allocation2 + $0x98] sm:$0xf]
        %v3396 = vld [vmem:[#allocation2 + $0xa4] sm:$0xf]
        %v3397 = vld [vmem:[#allocation2 + $0xb0] sm:$0xf]
        %v3398 = vld [vmem:[#allocation2 + $0xbc] sm:$0xf]
        %v3407 = vunpack.c.l.b16 %v3375
        %v3408 = vunpack.c.l.b16 %v3376
        %v3409 = vunpack.c.l.b16 %v3377
        %v3410 = vunpack.c.l.b16 %v3378
        %v3411 = vunpack.c.l.b16 %v3379
        %v3412 = vunpack.c.l.b16 %v3380
        %v3413 = vunpack.c.l.b16 %v3381
        %v3414 = vunpack.c.l.b16 %v3382
        %v3415 = vpack.c.b16 %v3408, %v3407
        %v3416 = vpack.c.b16 %v3410, %v3409
        %v3417 = vpack.c.b16 %v3412, %v3411
        %v3418 = vpack.c.b16 %v3414, %v3413
        %3419 = vrot.lane.b32.xlu0 %v3415, 96
        %v3420 = vpop.permute.xlu0 %3419
        %3421 = vrot.lane.b32.xlu0 %v3416, 96
        %v3422 = vpop.permute.xlu0 %3421
        %3423 = vrot.lane.b32.xlu0 %v3417, 96
        %v3424 = vpop.permute.xlu0 %3423
        %3425 = vrot.lane.b32.xlu0 %v3418, 96
        %v3426 = vpop.permute.xlu0 %3425
        %v3435 = vunpack.c.l.b16 %v3383
        %v3436 = vunpack.c.l.b16 %v3384
        %v3437 = vunpack.c.l.b16 %v3385
        %v3438 = vunpack.c.l.b16 %v3386
        %v3439 = vunpack.c.l.b16 %v3387
        %v3440 = vunpack.c.l.b16 %v3388
        %v3441 = vunpack.c.l.b16 %v3389
        %v3442 = vunpack.c.l.b16 %v3390
        %v3443 = vpack.c.b16 %v3436, %v3435
        %v3444 = vpack.c.b16 %v3438, %v3437
        %v3445 = vpack.c.b16 %v3440, %v3439
        %v3446 = vpack.c.b16 %v3442, %v3441
        %3447 = vrot.lane.b32.xlu0 %v3443, 96
        %v3448 = vpop.permute.xlu0 %3447
        %3449 = vrot.lane.b32.xlu0 %v3444, 96
        %v3450 = vpop.permute.xlu0 %3449
        %3451 = vrot.lane.b32.xlu0 %v3445, 96
        %v3452 = vpop.permute.xlu0 %3451
        %3453 = vrot.lane.b32.xlu0 %v3446, 96
        %v3454 = vpop.permute.xlu0 %3453
        %v3456 = vsel %vm1383, %v3420, 0
        %v3459 = vsel %vm1383, %v3422, 0
        %v3462 = vsel %vm1383, %v3424, 0
        %v3465 = vsel %vm1383, %v3426, 0
        %v3468 = vsel %vm1383, %v3448, 0
        %v3471 = vsel %vm1383, %v3450, 0
        %v3474 = vsel %vm1383, %v3452, 0
        %v3477 = vsel %vm1383, %v3454, 0
        %3479 = vmatprep.subr.bf16.mxu0 0
        %3480 = vmatpush1.bf16.xpose.msra.mxu0 0
        %3481 = vmatprep.subr.bf16.mxu0 0
        %3482 = vmatpush1.bf16.xpose.msra.mxu0 0
        %3483 = vmatprep.subr.bf16.mxu0 0
        %3484 = vmatpush1.bf16.xpose.msra.mxu0 0
        %3485 = vmatprep.subr.bf16.mxu0 0
        %3486 = vmatpush1.bf16.xpose.msra.mxu0 0
        %3487 = vmatprep.subr.bf16.mxu0 0
        %3488 = vmatpush1.bf16.xpose.msra.mxu0 %v3477
        %3489 = vmatprep.subr.bf16.mxu0 0
        %3490 = vmatpush1.bf16.xpose.msra.mxu0 %v3474
        %3491 = vmatprep.subr.bf16.mxu0 0
        %3492 = vmatpush1.bf16.xpose.msra.mxu0 %v3471
        %3493 = vmatprep.subr.bf16.mxu0 0
        %3494 = vmatpush1.bf16.xpose.msra.mxu0 %v3468
        %3495 = vmatprep.subr.bf16.mxu0 0
        %3496 = vmatpush2.bf16.xpose.msra.mxu0 0
        %3497 = vmatprep.subr.bf16.mxu0 0
        %3498 = vmatpush2.bf16.xpose.msra.mxu0 0
        %3499 = vmatprep.subr.bf16.mxu0 0
        %3500 = vmatpush2.bf16.xpose.msra.mxu0 0
        %3501 = vmatprep.subr.bf16.mxu0 0
        %3502 = vmatpush2.bf16.xpose.msra.mxu0 0
        %3503 = vmatprep.subr.bf16.mxu0 0
        %3504 = vmatpush2.bf16.xpose.msra.mxu0 0
        %3505 = vmatprep.subr.bf16.mxu0 0
        %3506 = vmatpush2.bf16.xpose.msra.mxu0 0
        %3507 = vmatprep.subr.bf16.mxu0 0
        %3508 = vmatpush2.bf16.xpose.msra.mxu0 0
        %3509 = vmatprep.subr.bf16.mxu0 0
        %3510 = vmatpush2.bf16.xpose.msra.mxu0 0
        %3511 = vmatprep.mubr.bf16.mxu0 0
        %3512 = vmatmul.mubr.bf16.gmra.mxu0 %v3456
        %v3513 = vpop.f32.mrf.mxu0
        %v3514 = vadd.f32 0.0, %v3513
        %v3515 = vpop.f32.mrf.mxu0
        %v3516 = vpop.f32.mrf.mxu0
        %v3517 = vadd.f32 0.0, %v3516
        %v3518 = vpop.f32.mrf.mxu0
        %3519 = vmatprep.mubr.bf16.mxu0 0
        %3520 = vmatmul.mubr.bf16.gmra.mxu0 %v3459
        %v3521 = vpop.f32.mrf.mxu0
        %v3522 = vadd.f32 0.0, %v3521
        %v3523 = vpop.f32.mrf.mxu0
        %v3524 = vpop.f32.mrf.mxu0
        %v3525 = vadd.f32 0.0, %v3524
        %v3526 = vpop.f32.mrf.mxu0
        %3527 = vmatprep.mubr.bf16.mxu0 0
        %3528 = vmatmul.mubr.bf16.gmra.mxu0 %v3462
        %v3529 = vpop.f32.mrf.mxu0
        %v3530 = vadd.f32 0.0, %v3529
        %v3531 = vpop.f32.mrf.mxu0
        %v3532 = vpop.f32.mrf.mxu0
        %v3533 = vadd.f32 0.0, %v3532
        %v3534 = vpop.f32.mrf.mxu0
        %3535 = vmatprep.mubr.bf16.mxu0 0
        %3536 = vmatmul.mubr.bf16.gmra.mxu0 %v3465
        %v3537 = vpop.f32.mrf.mxu0
        %v3538 = vadd.f32 0.0, %v3537
        %v3539 = vpop.f32.mrf.mxu0
        %v3540 = vpop.f32.mrf.mxu0
        %v3541 = vadd.f32 0.0, %v3540
        %v3542 = vpop.f32.mrf.mxu0
        %3543 = vdwg.mxu0
        %v3544 = vsel %vm1473, %v3514, -inf
        %3545 = vmax.xlane.f32.xlu0 %v3544
        %v3546 = vpop.xlane.xlu0 %3545
        %v3547 = vsel %vm1473, %v3517, -inf
        %3548 = vmax.xlane.f32.xlu0 %v3547
        %v3549 = vpop.xlane.xlu0 %3548
        %v3550 = vsel %vm1473, %v3522, -inf
        %3551 = vmax.xlane.f32.xlu0 %v3550
        %v3552 = vpop.xlane.xlu0 %3551
        %v3553 = vsel %vm1473, %v3525, -inf
        %3554 = vmax.xlane.f32.xlu0 %v3553
        %v3555 = vpop.xlane.xlu0 %3554
        %v3556 = vsel %vm1473, %v3530, -inf
        %3557 = vmax.xlane.f32.xlu0 %v3556
        %v3558 = vpop.xlane.xlu0 %3557
        %v3559 = vsel %vm1473, %v3533, -inf
        %3560 = vmax.xlane.f32.xlu0 %v3559
        %v3561 = vpop.xlane.xlu0 %3560
        %v3562 = vsel %vm1473, %v3538, -inf
        %3563 = vmax.xlane.f32.xlu0 %v3562
        %v3564 = vpop.xlane.xlu0 %3563
        %v3565 = vsel %vm1473, %v3541, -inf
        %3566 = vmax.xlane.f32.xlu0 %v3565
        %v3567 = vpop.xlane.xlu0 %3566
        %v3568 = vsub.f32 %v3514, %v3546
        %v3569 = vsub.f32 %v3517, %v3549
        %v3570 = vsub.f32 %v3522, %v3552
        %v3571 = vsub.f32 %v3525, %v3555
        %v3572 = vsub.f32 %v3530, %v3558
        %v3573 = vsub.f32 %v3533, %v3561
        %v3574 = vsub.f32 %v3538, %v3564
        %v3575 = vsub.f32 %v3541, %v3567
        %v3576 = vmul.f32 %v3568, 1.442695
        %v3577 = vpow.pop %v3576
        %v3578 = vmul.f32 %v3569, 1.442695
        %v3579 = vpow.pop %v3578
        %v3580 = vmul.f32 %v3570, 1.442695
        %v3581 = vpow.pop %v3580
        %v3582 = vmul.f32 %v3571, 1.442695
        %v3583 = vpow.pop %v3582
        %v3584 = vmul.f32 %v3572, 1.442695
        %v3585 = vpow.pop %v3584
        %v3586 = vmul.f32 %v3573, 1.442695
        %v3587 = vpow.pop %v3586
        %v3588 = vmul.f32 %v3574, 1.442695
        %v3589 = vpow.pop %v3588
        %v3590 = vmul.f32 %v3575, 1.442695
        %v3591 = vpow.pop %v3590
        %v3592 = vsel %vm1473, %v3577, 0.0
        %3593 = vadd.xlane.f32.xlu0 %v3592
        %v3594 = vpop.xlane.xlu0 %3593
        %v3595 = vsel %vm1473, %v3579, 0.0
        %3596 = vadd.xlane.f32.xlu0 %v3595
        %v3597 = vpop.xlane.xlu0 %3596
        %v3598 = vsel %vm1473, %v3581, 0.0
        %3599 = vadd.xlane.f32.xlu0 %v3598
        %v3600 = vpop.xlane.xlu0 %3599
        %v3601 = vsel %vm1473, %v3583, 0.0
        %3602 = vadd.xlane.f32.xlu0 %v3601
        %v3603 = vpop.xlane.xlu0 %3602
        %v3604 = vsel %vm1473, %v3585, 0.0
        %3605 = vadd.xlane.f32.xlu0 %v3604
        %v3606 = vpop.xlane.xlu0 %3605
        %v3607 = vsel %vm1473, %v3587, 0.0
        %3608 = vadd.xlane.f32.xlu0 %v3607
        %v3609 = vpop.xlane.xlu0 %3608
        %v3610 = vsel %vm1473, %v3589, 0.0
        %3611 = vadd.xlane.f32.xlu0 %v3610
        %v3612 = vpop.xlane.xlu0 %3611
        %v3613 = vsel %vm1473, %v3591, 0.0
        %3614 = vadd.xlane.f32.xlu0 %v3613
        %v3615 = vpop.xlane.xlu0 %3614
        %v3616 = vrcp.pop %v3594
        %v3617 = vrcp.pop %v3597
        %v3618 = vrcp.pop %v3600
        %v3619 = vrcp.pop %v3603
        %v3620 = vrcp.pop %v3606
        %v3621 = vrcp.pop %v3609
        %v3622 = vrcp.pop %v3612
        %v3623 = vrcp.pop %v3615
        %v3624 = vmul.f32 %v3577, %v3616
        %v3625 = vmul.f32 %v3579, %v3617
        %v3626 = vmul.f32 %v3581, %v3618
        %v3627 = vmul.f32 %v3583, %v3619
        %v3628 = vmul.f32 %v3585, %v3620
        %v3629 = vmul.f32 %v3587, %v3621
        %v3630 = vmul.f32 %v3589, %v3622
        %v3631 = vmul.f32 %v3591, %v3623
        %v3632 = vpack.c.bf16 %v3625, %v3624
        %v3633 = vpack.c.bf16 %v3627, %v3626
        %v3634 = vpack.c.bf16 %v3629, %v3628
        %v3635 = vpack.c.bf16 %v3631, %v3630
        %v3644 = vunpack.c.l.b16 %v3391
        %v3645 = vunpack.c.l.b16 %v3392
        %v3646 = vunpack.c.l.b16 %v3393
        %v3647 = vunpack.c.l.b16 %v3394
        %v3648 = vunpack.c.l.b16 %v3395
        %v3649 = vunpack.c.l.b16 %v3396
        %v3650 = vunpack.c.l.b16 %v3397
        %v3651 = vunpack.c.l.b16 %v3398
        %v3652 = vpack.c.b16 %v3645, %v3644
        %v3653 = vpack.c.b16 %v3647, %v3646
        %v3654 = vpack.c.b16 %v3649, %v3648
        %v3655 = vpack.c.b16 %v3651, %v3650
        %3656 = vrot.lane.b32.xlu0 %v3652, 96
        %v3657 = vpop.permute.xlu0 %3656
        %3658 = vrot.lane.b32.xlu0 %v3653, 96
        %v3659 = vpop.permute.xlu0 %3658
        %3660 = vrot.lane.b32.xlu0 %v3654, 96
        %v3661 = vpop.permute.xlu0 %3660
        %3662 = vrot.lane.b32.xlu0 %v3655, 96
        %v3663 = vpop.permute.xlu0 %3662
        %v3669 = vsel %vm1473, %v3632, 0
        %v3672 = vsel %vm1473, %v3633, 0
        %v3675 = vsel %vm1473, %v3634, 0
        %v3678 = vsel %vm1473, %v3635, 0
        %3680 = vmatprep.subr.bf16.mxu0 0
        %3681 = vmatpush1.bf16.msra.mxu0 0
        %3682 = vmatprep.subr.bf16.mxu0 0
        %3683 = vmatpush1.bf16.msra.mxu0 0
        %3684 = vmatprep.subr.bf16.mxu0 0
        %3685 = vmatpush1.bf16.msra.mxu0 0
        %3686 = vmatprep.subr.bf16.mxu0 0
        %3687 = vmatpush1.bf16.msra.mxu0 0
        %3688 = vmatprep.subr.bf16.mxu0 0
        %3689 = vmatpush1.bf16.msra.mxu0 %v3663
        %3690 = vmatprep.subr.bf16.mxu0 0
        %3691 = vmatpush1.bf16.msra.mxu0 %v3661
        %3692 = vmatprep.subr.bf16.mxu0 0
        %3693 = vmatpush1.bf16.msra.mxu0 %v3659
        %3694 = vmatprep.subr.bf16.mxu0 0
        %3695 = vmatpush1.bf16.msra.mxu0 %v3657
        %3696 = vmatprep.subr.bf16.mxu0 0
        %3697 = vmatpush2.bf16.msra.mxu0 0
        %3698 = vmatprep.subr.bf16.mxu0 0
        %3699 = vmatpush2.bf16.msra.mxu0 0
        %3700 = vmatprep.subr.bf16.mxu0 0
        %3701 = vmatpush2.bf16.msra.mxu0 0
        %3702 = vmatprep.subr.bf16.mxu0 0
        %3703 = vmatpush2.bf16.msra.mxu0 0
        %3704 = vmatprep.subr.bf16.mxu0 0
        %3705 = vmatpush2.bf16.msra.mxu0 0
        %3706 = vmatprep.subr.bf16.mxu0 0
        %3707 = vmatpush2.bf16.msra.mxu0 0
        %3708 = vmatprep.subr.bf16.mxu0 0
        %3709 = vmatpush2.bf16.msra.mxu0 0
        %3710 = vmatprep.subr.bf16.mxu0 0
        %3711 = vmatpush2.bf16.msra.mxu0 0
        %3712 = vmatprep.mubr.bf16.mxu0 0
        %3713 = vmatmul.mubr.bf16.gmra.mxu0 %v3669
        %v3714 = vpop.f32.mrf.mxu0
        %v3715 = vadd.f32 0.0, %v3714
        %v3716 = vpop.f32.mrf.mxu0
        %v3717 = vpop.f32.mrf.mxu0
        %v3718 = vadd.f32 0.0, %v3717
        %v3719 = vpop.f32.mrf.mxu0
        %3720 = vmatprep.mubr.bf16.mxu0 0
        %3721 = vmatmul.mubr.bf16.gmra.mxu0 %v3672
        %v3722 = vpop.f32.mrf.mxu0
        %v3723 = vadd.f32 0.0, %v3722
        %v3724 = vpop.f32.mrf.mxu0
        %v3725 = vpop.f32.mrf.mxu0
        %v3726 = vadd.f32 0.0, %v3725
        %v3727 = vpop.f32.mrf.mxu0
        %3728 = vmatprep.mubr.bf16.mxu0 0
        %3729 = vmatmul.mubr.bf16.gmra.mxu0 %v3675
        %v3730 = vpop.f32.mrf.mxu0
        %v3731 = vadd.f32 0.0, %v3730
        %v3732 = vpop.f32.mrf.mxu0
        %v3733 = vpop.f32.mrf.mxu0
        %v3734 = vadd.f32 0.0, %v3733
        %v3735 = vpop.f32.mrf.mxu0
        %3736 = vmatprep.mubr.bf16.mxu0 0
        %3737 = vmatmul.mubr.bf16.gmra.mxu0 %v3678
        %v3738 = vpop.f32.mrf.mxu0
        %v3739 = vadd.f32 0.0, %v3738
        %v3740 = vpop.f32.mrf.mxu0
        %v3741 = vpop.f32.mrf.mxu0
        %v3742 = vadd.f32 0.0, %v3741
        %v3743 = vpop.f32.mrf.mxu0
        %3744 = vdwg.mxu0
        %v3745 = vpack.c.bf16 %v3718, %v3715
        %v3746 = vpack.c.bf16 %v3726, %v3723
        %v3747 = vpack.c.bf16 %v3734, %v3731
        %v3748 = vpack.c.bf16 %v3742, %v3739
        %v3753 = vunpack.c.l.b16 %v3745
        %v3754 = vunpack.c.h.b16 %v3745
        %v3755 = vunpack.c.l.b16 %v3746
        %v3756 = vunpack.c.h.b16 %v3746
        %v3757 = vunpack.c.l.b16 %v3747
        %v3758 = vunpack.c.h.b16 %v3747
        %v3759 = vunpack.c.l.b16 %v3748
        %v3760 = vunpack.c.h.b16 %v3748
        %v3761 = vpack.c.b16 %v3753, %v3753
        %v3762 = vpack.c.b16 %v3754, %v3754
        %v3763 = vpack.c.b16 %v3755, %v3755
        %v3764 = vpack.c.b16 %v3756, %v3756
        %v3765 = vpack.c.b16 %v3757, %v3757
        %v3766 = vpack.c.b16 %v3758, %v3758
        %v3767 = vpack.c.b16 %v3759, %v3759
        %v3768 = vpack.c.b16 %v3760, %v3760
        %3769 = vrot.lane.b32.xlu0 %v3761, 32
        %v3770 = vpop.permute.xlu0 %3769
        %3771 = vrot.lane.b32.xlu0 %v3762, 32
        %v3772 = vpop.permute.xlu0 %3771
        %3773 = vrot.lane.b32.xlu0 %v3763, 32
        %v3774 = vpop.permute.xlu0 %3773
        %3775 = vrot.lane.b32.xlu0 %v3764, 32
        %v3776 = vpop.permute.xlu0 %3775
        %3777 = vrot.lane.b32.xlu0 %v3765, 32
        %v3778 = vpop.permute.xlu0 %3777
        %3779 = vrot.lane.b32.xlu0 %v3766, 32
        %v3780 = vpop.permute.xlu0 %3779
        %3781 = vrot.lane.b32.xlu0 %v3767, 32
        %v3782 = vpop.permute.xlu0 %3781
        %3783 = vrot.lane.b32.xlu0 %v3768, 32
        %v3784 = vpop.permute.xlu0 %3783
        %3793 = vst.msk [vmem:[#allocation3 + $0x20] sm:$0xf] %vm2126, %v3770
        %3794 = vst.msk [vmem:[#allocation3 + $0x24] sm:$0xf] %vm2126, %v3772
        %3795 = vst.msk [vmem:[#allocation3 + $0x28] sm:$0xf] %vm2126, %v3774
        %3796 = vst.msk [vmem:[#allocation3 + $0x2c] sm:$0xf] %vm2126, %v3776
        %3797 = vst.msk [vmem:[#allocation3 + $0x30] sm:$0xf] %vm2126, %v3778
        %3798 = vst.msk [vmem:[#allocation3 + $0x34] sm:$0xf] %vm2126, %v3780
        %3799 = vst.msk [vmem:[#allocation3 + $0x38] sm:$0xf] %vm2126, %v3782
        %3800 = vst.msk [vmem:[#allocation3 + $0x3c] sm:$0xf] %vm2126, %v3784
        %v3801 = vld [vmem:[#allocation2 + $0x60] sm:$0xf]
        %v3802 = vld [vmem:[#allocation2 + $0x6c] sm:$0xf]
        %v3803 = vld [vmem:[#allocation2 + $0x78] sm:$0xf]
        %v3804 = vld [vmem:[#allocation2 + $0x84] sm:$0xf]
        %v3805 = vld [vmem:[#allocation2 + $0x90] sm:$0xf]
        %v3806 = vld [vmem:[#allocation2 + $0x9c] sm:$0xf]
        %v3807 = vld [vmem:[#allocation2 + $0xa8] sm:$0xf]
        %v3808 = vld [vmem:[#allocation2 + $0xb4] sm:$0xf]
        %v3809 = vld [vmem:[#allocation2 + $0x64] sm:$0xf]
        %v3810 = vld [vmem:[#allocation2 + $0x70] sm:$0xf]
        %v3811 = vld [vmem:[#allocation2 + $0x7c] sm:$0xf]
        %v3812 = vld [vmem:[#allocation2 + $0x88] sm:$0xf]
        %v3813 = vld [vmem:[#allocation2 + $0x94] sm:$0xf]
        %v3814 = vld [vmem:[#allocation2 + $0xa0] sm:$0xf]
        %v3815 = vld [vmem:[#allocation2 + $0xac] sm:$0xf]
        %v3816 = vld [vmem:[#allocation2 + $0xb8] sm:$0xf]
        %v3817 = vld [vmem:[#allocation2 + $0x68] sm:$0xf]
        %v3818 = vld [vmem:[#allocation2 + $0x74] sm:$0xf]
        %v3819 = vld [vmem:[#allocation2 + $0x80] sm:$0xf]
        %v3820 = vld [vmem:[#allocation2 + $0x8c] sm:$0xf]
        %v3821 = vld [vmem:[#allocation2 + $0x98] sm:$0xf]
        %v3822 = vld [vmem:[#allocation2 + $0xa4] sm:$0xf]
        %v3823 = vld [vmem:[#allocation2 + $0xb0] sm:$0xf]
        %v3824 = vld [vmem:[#allocation2 + $0xbc] sm:$0xf]
        %v3833 = vunpack.c.l.b16 %v3801
        %v3834 = vunpack.c.l.b16 %v3802
        %v3835 = vunpack.c.l.b16 %v3803
        %v3836 = vunpack.c.l.b16 %v3804
        %v3837 = vunpack.c.l.b16 %v3805
        %v3838 = vunpack.c.l.b16 %v3806
        %v3839 = vunpack.c.l.b16 %v3807
        %v3840 = vunpack.c.l.b16 %v3808
        %v3841 = vpack.c.b16 %v3834, %v3833
        %v3842 = vpack.c.b16 %v3836, %v3835
        %v3843 = vpack.c.b16 %v3838, %v3837
        %v3844 = vpack.c.b16 %v3840, %v3839
        %3845 = vrot.lane.b32.xlu0 %v3841, 64
        %v3846 = vpop.permute.xlu0 %3845
        %3847 = vrot.lane.b32.xlu0 %v3842, 64
        %v3848 = vpop.permute.xlu0 %3847
        %3849 = vrot.lane.b32.xlu0 %v3843, 64
        %v3850 = vpop.permute.xlu0 %3849
        %3851 = vrot.lane.b32.xlu0 %v3844, 64
        %v3852 = vpop.permute.xlu0 %3851
        %v3861 = vunpack.c.l.b16 %v3809
        %v3862 = vunpack.c.l.b16 %v3810
        %v3863 = vunpack.c.l.b16 %v3811
        %v3864 = vunpack.c.l.b16 %v3812
        %v3865 = vunpack.c.l.b16 %v3813
        %v3866 = vunpack.c.l.b16 %v3814
        %v3867 = vunpack.c.l.b16 %v3815
        %v3868 = vunpack.c.l.b16 %v3816
        %v3869 = vpack.c.b16 %v3862, %v3861
        %v3870 = vpack.c.b16 %v3864, %v3863
        %v3871 = vpack.c.b16 %v3866, %v3865
        %v3872 = vpack.c.b16 %v3868, %v3867
        %3873 = vrot.lane.b32.xlu0 %v3869, 64
        %v3874 = vpop.permute.xlu0 %3873
        %3875 = vrot.lane.b32.xlu0 %v3870, 64
        %v3876 = vpop.permute.xlu0 %3875
        %3877 = vrot.lane.b32.xlu0 %v3871, 64
        %v3878 = vpop.permute.xlu0 %3877
        %3879 = vrot.lane.b32.xlu0 %v3872, 64
        %v3880 = vpop.permute.xlu0 %3879
        %v3882 = vsel %vm1383, %v3846, 0
        %v3885 = vsel %vm1383, %v3848, 0
        %v3888 = vsel %vm1383, %v3850, 0
        %v3891 = vsel %vm1383, %v3852, 0
        %v3894 = vsel %vm1383, %v3874, 0
        %v3897 = vsel %vm1383, %v3876, 0
        %v3900 = vsel %vm1383, %v3878, 0
        %v3903 = vsel %vm1383, %v3880, 0
        %3905 = vmatprep.subr.bf16.mxu0 0
        %3906 = vmatpush1.bf16.xpose.msra.mxu0 0
        %3907 = vmatprep.subr.bf16.mxu0 0
        %3908 = vmatpush1.bf16.xpose.msra.mxu0 0
        %3909 = vmatprep.subr.bf16.mxu0 0
        %3910 = vmatpush1.bf16.xpose.msra.mxu0 0
        %3911 = vmatprep.subr.bf16.mxu0 0
        %3912 = vmatpush1.bf16.xpose.msra.mxu0 0
        %3913 = vmatprep.subr.bf16.mxu0 0
        %3914 = vmatpush1.bf16.xpose.msra.mxu0 %v3903
        %3915 = vmatprep.subr.bf16.mxu0 0
        %3916 = vmatpush1.bf16.xpose.msra.mxu0 %v3900
        %3917 = vmatprep.subr.bf16.mxu0 0
        %3918 = vmatpush1.bf16.xpose.msra.mxu0 %v3897
        %3919 = vmatprep.subr.bf16.mxu0 0
        %3920 = vmatpush1.bf16.xpose.msra.mxu0 %v3894
        %3921 = vmatprep.subr.bf16.mxu0 0
        %3922 = vmatpush2.bf16.xpose.msra.mxu0 0
        %3923 = vmatprep.subr.bf16.mxu0 0
        %3924 = vmatpush2.bf16.xpose.msra.mxu0 0
        %3925 = vmatprep.subr.bf16.mxu0 0
        %3926 = vmatpush2.bf16.xpose.msra.mxu0 0
        %3927 = vmatprep.subr.bf16.mxu0 0
        %3928 = vmatpush2.bf16.xpose.msra.mxu0 0
        %3929 = vmatprep.subr.bf16.mxu0 0
        %3930 = vmatpush2.bf16.xpose.msra.mxu0 0
        %3931 = vmatprep.subr.bf16.mxu0 0
        %3932 = vmatpush2.bf16.xpose.msra.mxu0 0
        %3933 = vmatprep.subr.bf16.mxu0 0
        %3934 = vmatpush2.bf16.xpose.msra.mxu0 0
        %3935 = vmatprep.subr.bf16.mxu0 0
        %3936 = vmatpush2.bf16.xpose.msra.mxu0 0
        %3937 = vmatprep.mubr.bf16.mxu0 0
        %3938 = vmatmul.mubr.bf16.gmra.mxu0 %v3882
        %v3939 = vpop.f32.mrf.mxu0
        %v3940 = vadd.f32 0.0, %v3939
        %v3941 = vpop.f32.mrf.mxu0
        %v3942 = vpop.f32.mrf.mxu0
        %v3943 = vadd.f32 0.0, %v3942
        %v3944 = vpop.f32.mrf.mxu0
        %3945 = vmatprep.mubr.bf16.mxu0 0
        %3946 = vmatmul.mubr.bf16.gmra.mxu0 %v3885
        %v3947 = vpop.f32.mrf.mxu0
        %v3948 = vadd.f32 0.0, %v3947
        %v3949 = vpop.f32.mrf.mxu0
        %v3950 = vpop.f32.mrf.mxu0
        %v3951 = vadd.f32 0.0, %v3950
        %v3952 = vpop.f32.mrf.mxu0
        %3953 = vmatprep.mubr.bf16.mxu0 0
        %3954 = vmatmul.mubr.bf16.gmra.mxu0 %v3888
        %v3955 = vpop.f32.mrf.mxu0
        %v3956 = vadd.f32 0.0, %v3955
        %v3957 = vpop.f32.mrf.mxu0
        %v3958 = vpop.f32.mrf.mxu0
        %v3959 = vadd.f32 0.0, %v3958
        %v3960 = vpop.f32.mrf.mxu0
        %3961 = vmatprep.mubr.bf16.mxu0 0
        %3962 = vmatmul.mubr.bf16.gmra.mxu0 %v3891
        %v3963 = vpop.f32.mrf.mxu0
        %v3964 = vadd.f32 0.0, %v3963
        %v3965 = vpop.f32.mrf.mxu0
        %v3966 = vpop.f32.mrf.mxu0
        %v3967 = vadd.f32 0.0, %v3966
        %v3968 = vpop.f32.mrf.mxu0
        %3969 = vdwg.mxu0
        %v3970 = vsel %vm1473, %v3940, -inf
        %3971 = vmax.xlane.f32.xlu0 %v3970
        %v3972 = vpop.xlane.xlu0 %3971
        %v3973 = vsel %vm1473, %v3943, -inf
        %3974 = vmax.xlane.f32.xlu0 %v3973
        %v3975 = vpop.xlane.xlu0 %3974
        %v3976 = vsel %vm1473, %v3948, -inf
        %3977 = vmax.xlane.f32.xlu0 %v3976
        %v3978 = vpop.xlane.xlu0 %3977
        %v3979 = vsel %vm1473, %v3951, -inf
        %3980 = vmax.xlane.f32.xlu0 %v3979
        %v3981 = vpop.xlane.xlu0 %3980
        %v3982 = vsel %vm1473, %v3956, -inf
        %3983 = vmax.xlane.f32.xlu0 %v3982
        %v3984 = vpop.xlane.xlu0 %3983
        %v3985 = vsel %vm1473, %v3959, -inf
        %3986 = vmax.xlane.f32.xlu0 %v3985
        %v3987 = vpop.xlane.xlu0 %3986
        %v3988 = vsel %vm1473, %v3964, -inf
        %3989 = vmax.xlane.f32.xlu0 %v3988
        %v3990 = vpop.xlane.xlu0 %3989
        %v3991 = vsel %vm1473, %v3967, -inf
        %3992 = vmax.xlane.f32.xlu0 %v3991
        %v3993 = vpop.xlane.xlu0 %3992
        %v3994 = vsub.f32 %v3940, %v3972
        %v3995 = vsub.f32 %v3943, %v3975
        %v3996 = vsub.f32 %v3948, %v3978
        %v3997 = vsub.f32 %v3951, %v3981
        %v3998 = vsub.f32 %v3956, %v3984
        %v3999 = vsub.f32 %v3959, %v3987
        %v4000 = vsub.f32 %v3964, %v3990
        %v4001 = vsub.f32 %v3967, %v3993
        %v4002 = vmul.f32 %v3994, 1.442695
        %v4003 = vpow.pop %v4002
        %v4004 = vmul.f32 %v3995, 1.442695
        %v4005 = vpow.pop %v4004
        %v4006 = vmul.f32 %v3996, 1.442695
        %v4007 = vpow.pop %v4006
        %v4008 = vmul.f32 %v3997, 1.442695
        %v4009 = vpow.pop %v4008
        %v4010 = vmul.f32 %v3998, 1.442695
        %v4011 = vpow.pop %v4010
        %v4012 = vmul.f32 %v3999, 1.442695
        %v4013 = vpow.pop %v4012
        %v4014 = vmul.f32 %v4000, 1.442695
        %v4015 = vpow.pop %v4014
        %v4016 = vmul.f32 %v4001, 1.442695
        %v4017 = vpow.pop %v4016
        %v4018 = vsel %vm1473, %v4003, 0.0
        %4019 = vadd.xlane.f32.xlu0 %v4018
        %v4020 = vpop.xlane.xlu0 %4019
        %v4021 = vsel %vm1473, %v4005, 0.0
        %4022 = vadd.xlane.f32.xlu0 %v4021
        %v4023 = vpop.xlane.xlu0 %4022
        %v4024 = vsel %vm1473, %v4007, 0.0
        %4025 = vadd.xlane.f32.xlu0 %v4024
        %v4026 = vpop.xlane.xlu0 %4025
        %v4027 = vsel %vm1473, %v4009, 0.0
        %4028 = vadd.xlane.f32.xlu0 %v4027
        %v4029 = vpop.xlane.xlu0 %4028
        %v4030 = vsel %vm1473, %v4011, 0.0
        %4031 = vadd.xlane.f32.xlu0 %v4030
        %v4032 = vpop.xlane.xlu0 %4031
        %v4033 = vsel %vm1473, %v4013, 0.0
        %4034 = vadd.xlane.f32.xlu0 %v4033
        %v4035 = vpop.xlane.xlu0 %4034
        %v4036 = vsel %vm1473, %v4015, 0.0
        %4037 = vadd.xlane.f32.xlu0 %v4036
        %v4038 = vpop.xlane.xlu0 %4037
        %v4039 = vsel %vm1473, %v4017, 0.0
        %4040 = vadd.xlane.f32.xlu0 %v4039
        %v4041 = vpop.xlane.xlu0 %4040
        %v4042 = vrcp.pop %v4020
        %v4043 = vrcp.pop %v4023
        %v4044 = vrcp.pop %v4026
        %v4045 = vrcp.pop %v4029
        %v4046 = vrcp.pop %v4032
        %v4047 = vrcp.pop %v4035
        %v4048 = vrcp.pop %v4038
        %v4049 = vrcp.pop %v4041
        %v4050 = vmul.f32 %v4003, %v4042
        %v4051 = vmul.f32 %v4005, %v4043
        %v4052 = vmul.f32 %v4007, %v4044
        %v4053 = vmul.f32 %v4009, %v4045
        %v4054 = vmul.f32 %v4011, %v4046
        %v4055 = vmul.f32 %v4013, %v4047
        %v4056 = vmul.f32 %v4015, %v4048
        %v4057 = vmul.f32 %v4017, %v4049
        %v4058 = vpack.c.bf16 %v4051, %v4050
        %v4059 = vpack.c.bf16 %v4053, %v4052
        %v4060 = vpack.c.bf16 %v4055, %v4054
        %v4061 = vpack.c.bf16 %v4057, %v4056
        %v4070 = vunpack.c.l.b16 %v3817
        %v4071 = vunpack.c.l.b16 %v3818
        %v4072 = vunpack.c.l.b16 %v3819
        %v4073 = vunpack.c.l.b16 %v3820
        %v4074 = vunpack.c.l.b16 %v3821
        %v4075 = vunpack.c.l.b16 %v3822
        %v4076 = vunpack.c.l.b16 %v3823
        %v4077 = vunpack.c.l.b16 %v3824
        %v4078 = vpack.c.b16 %v4071, %v4070
        %v4079 = vpack.c.b16 %v4073, %v4072
        %v4080 = vpack.c.b16 %v4075, %v4074
        %v4081 = vpack.c.b16 %v4077, %v4076
        %4082 = vrot.lane.b32.xlu0 %v4078, 64
        %v4083 = vpop.permute.xlu0 %4082
        %4084 = vrot.lane.b32.xlu0 %v4079, 64
        %v4085 = vpop.permute.xlu0 %4084
        %4086 = vrot.lane.b32.xlu0 %v4080, 64
        %v4087 = vpop.permute.xlu0 %4086
        %4088 = vrot.lane.b32.xlu0 %v4081, 64
        %v4089 = vpop.permute.xlu0 %4088
        %v4095 = vsel %vm1473, %v4058, 0
        %v4098 = vsel %vm1473, %v4059, 0
        %v4101 = vsel %vm1473, %v4060, 0
        %v4104 = vsel %vm1473, %v4061, 0
        %4106 = vmatprep.subr.bf16.mxu0 0
        %4107 = vmatpush1.bf16.msra.mxu0 0
        %4108 = vmatprep.subr.bf16.mxu0 0
        %4109 = vmatpush1.bf16.msra.mxu0 0
        %4110 = vmatprep.subr.bf16.mxu0 0
        %4111 = vmatpush1.bf16.msra.mxu0 0
        %4112 = vmatprep.subr.bf16.mxu0 0
        %4113 = vmatpush1.bf16.msra.mxu0 0
        %4114 = vmatprep.subr.bf16.mxu0 0
        %4115 = vmatpush1.bf16.msra.mxu0 %v4089
        %4116 = vmatprep.subr.bf16.mxu0 0
        %4117 = vmatpush1.bf16.msra.mxu0 %v4087
        %4118 = vmatprep.subr.bf16.mxu0 0
        %4119 = vmatpush1.bf16.msra.mxu0 %v4085
        %4120 = vmatprep.subr.bf16.mxu0 0
        %4121 = vmatpush1.bf16.msra.mxu0 %v4083
        %4122 = vmatprep.subr.bf16.mxu0 0
        %4123 = vmatpush2.bf16.msra.mxu0 0
        %4124 = vmatprep.subr.bf16.mxu0 0
        %4125 = vmatpush2.bf16.msra.mxu0 0
        %4126 = vmatprep.subr.bf16.mxu0 0
        %4127 = vmatpush2.bf16.msra.mxu0 0
        %4128 = vmatprep.subr.bf16.mxu0 0
        %4129 = vmatpush2.bf16.msra.mxu0 0
        %4130 = vmatprep.subr.bf16.mxu0 0
        %4131 = vmatpush2.bf16.msra.mxu0 0
        %4132 = vmatprep.subr.bf16.mxu0 0
        %4133 = vmatpush2.bf16.msra.mxu0 0
        %4134 = vmatprep.subr.bf16.mxu0 0
        %4135 = vmatpush2.bf16.msra.mxu0 0
        %4136 = vmatprep.subr.bf16.mxu0 0
        %4137 = vmatpush2.bf16.msra.mxu0 0
        %4138 = vmatprep.mubr.bf16.mxu0 0
        %4139 = vmatmul.mubr.bf16.gmra.mxu0 %v4095
        %v4140 = vpop.f32.mrf.mxu0
        %v4141 = vadd.f32 0.0, %v4140
        %v4142 = vpop.f32.mrf.mxu0
        %v4143 = vpop.f32.mrf.mxu0
        %v4144 = vadd.f32 0.0, %v4143
        %v4145 = vpop.f32.mrf.mxu0
        %4146 = vmatprep.mubr.bf16.mxu0 0
        %4147 = vmatmul.mubr.bf16.gmra.mxu0 %v4098
        %v4148 = vpop.f32.mrf.mxu0
        %v4149 = vadd.f32 0.0, %v4148
        %v4150 = vpop.f32.mrf.mxu0
        %v4151 = vpop.f32.mrf.mxu0
        %v4152 = vadd.f32 0.0, %v4151
        %v4153 = vpop.f32.mrf.mxu0
        %4154 = vmatprep.mubr.bf16.mxu0 0
        %4155 = vmatmul.mubr.bf16.gmra.mxu0 %v4101
        %v4156 = vpop.f32.mrf.mxu0
        %v4157 = vadd.f32 0.0, %v4156
        %v4158 = vpop.f32.mrf.mxu0
        %v4159 = vpop.f32.mrf.mxu0
        %v4160 = vadd.f32 0.0, %v4159
        %v4161 = vpop.f32.mrf.mxu0
        %4162 = vmatprep.mubr.bf16.mxu0 0
        %4163 = vmatmul.mubr.bf16.gmra.mxu0 %v4104
        %v4164 = vpop.f32.mrf.mxu0
        %v4165 = vadd.f32 0.0, %v4164
        %v4166 = vpop.f32.mrf.mxu0
        %v4167 = vpop.f32.mrf.mxu0
        %v4168 = vadd.f32 0.0, %v4167
        %v4169 = vpop.f32.mrf.mxu0
        %4170 = vdwg.mxu0
        %v4171 = vpack.c.bf16 %v4144, %v4141
        %v4172 = vpack.c.bf16 %v4152, %v4149
        %v4173 = vpack.c.bf16 %v4160, %v4157
        %v4174 = vpack.c.bf16 %v4168, %v4165
        %v4179 = vunpack.c.l.b16 %v4171
        %v4180 = vunpack.c.h.b16 %v4171
        %v4181 = vunpack.c.l.b16 %v4172
        %v4182 = vunpack.c.h.b16 %v4172
        %v4183 = vunpack.c.l.b16 %v4173
        %v4184 = vunpack.c.h.b16 %v4173
        %v4185 = vunpack.c.l.b16 %v4174
        %v4186 = vunpack.c.h.b16 %v4174
        %v4187 = vpack.c.b16 %v4179, %v4179
        %v4188 = vpack.c.b16 %v4180, %v4180
        %v4189 = vpack.c.b16 %v4181, %v4181
        %v4190 = vpack.c.b16 %v4182, %v4182
        %v4191 = vpack.c.b16 %v4183, %v4183
        %v4192 = vpack.c.b16 %v4184, %v4184
        %v4193 = vpack.c.b16 %v4185, %v4185
        %v4194 = vpack.c.b16 %v4186, %v4186
        %4195 = vrot.lane.b32.xlu0 %v4187, 64
        %v4196 = vpop.permute.xlu0 %4195
        %4197 = vrot.lane.b32.xlu0 %v4188, 64
        %v4198 = vpop.permute.xlu0 %4197
        %4199 = vrot.lane.b32.xlu0 %v4189, 64
        %v4200 = vpop.permute.xlu0 %4199
        %4201 = vrot.lane.b32.xlu0 %v4190, 64
        %v4202 = vpop.permute.xlu0 %4201
        %4203 = vrot.lane.b32.xlu0 %v4191, 64
        %v4204 = vpop.permute.xlu0 %4203
        %4205 = vrot.lane.b32.xlu0 %v4192, 64
        %v4206 = vpop.permute.xlu0 %4205
        %4207 = vrot.lane.b32.xlu0 %v4193, 64
        %v4208 = vpop.permute.xlu0 %4207
        %4209 = vrot.lane.b32.xlu0 %v4194, 64
        %v4210 = vpop.permute.xlu0 %4209
        %4219 = vst.msk [vmem:[#allocation3 + $0x20] sm:$0xf] %vm2553, %v4196
        %4220 = vst.msk [vmem:[#allocation3 + $0x24] sm:$0xf] %vm2553, %v4198
        %4221 = vst.msk [vmem:[#allocation3 + $0x28] sm:$0xf] %vm2553, %v4200
        %4222 = vst.msk [vmem:[#allocation3 + $0x2c] sm:$0xf] %vm2553, %v4202
        %4223 = vst.msk [vmem:[#allocation3 + $0x30] sm:$0xf] %vm2553, %v4204
        %4224 = vst.msk [vmem:[#allocation3 + $0x34] sm:$0xf] %vm2553, %v4206
        %4225 = vst.msk [vmem:[#allocation3 + $0x38] sm:$0xf] %vm2553, %v4208
        %4226 = vst.msk [vmem:[#allocation3 + $0x3c] sm:$0xf] %vm2553, %v4210
        %v4227 = vld [vmem:[#allocation2 + $0x60] sm:$0xf]
        %v4228 = vld [vmem:[#allocation2 + $0x6c] sm:$0xf]
        %v4229 = vld [vmem:[#allocation2 + $0x78] sm:$0xf]
        %v4230 = vld [vmem:[#allocation2 + $0x84] sm:$0xf]
        %v4231 = vld [vmem:[#allocation2 + $0x90] sm:$0xf]
        %v4232 = vld [vmem:[#allocation2 + $0x9c] sm:$0xf]
        %v4233 = vld [vmem:[#allocation2 + $0xa8] sm:$0xf]
        %v4234 = vld [vmem:[#allocation2 + $0xb4] sm:$0xf]
        %v4235 = vld [vmem:[#allocation2 + $0x64] sm:$0xf]
        %v4236 = vld [vmem:[#allocation2 + $0x70] sm:$0xf]
        %v4237 = vld [vmem:[#allocation2 + $0x7c] sm:$0xf]
        %v4238 = vld [vmem:[#allocation2 + $0x88] sm:$0xf]
        %v4239 = vld [vmem:[#allocation2 + $0x94] sm:$0xf]
        %v4240 = vld [vmem:[#allocation2 + $0xa0] sm:$0xf]
        %v4241 = vld [vmem:[#allocation2 + $0xac] sm:$0xf]
        %v4242 = vld [vmem:[#allocation2 + $0xb8] sm:$0xf]
        %v4243 = vld [vmem:[#allocation2 + $0x68] sm:$0xf]
        %v4244 = vld [vmem:[#allocation2 + $0x74] sm:$0xf]
        %v4245 = vld [vmem:[#allocation2 + $0x80] sm:$0xf]
        %v4246 = vld [vmem:[#allocation2 + $0x8c] sm:$0xf]
        %v4247 = vld [vmem:[#allocation2 + $0x98] sm:$0xf]
        %v4248 = vld [vmem:[#allocation2 + $0xa4] sm:$0xf]
        %v4249 = vld [vmem:[#allocation2 + $0xb0] sm:$0xf]
        %v4250 = vld [vmem:[#allocation2 + $0xbc] sm:$0xf]
        %v4259 = vunpack.c.l.b16 %v4227
        %v4260 = vunpack.c.l.b16 %v4228
        %v4261 = vunpack.c.l.b16 %v4229
        %v4262 = vunpack.c.l.b16 %v4230
        %v4263 = vunpack.c.l.b16 %v4231
        %v4264 = vunpack.c.l.b16 %v4232
        %v4265 = vunpack.c.l.b16 %v4233
        %v4266 = vunpack.c.l.b16 %v4234
        %v4267 = vpack.c.b16 %v4260, %v4259
        %v4268 = vpack.c.b16 %v4262, %v4261
        %v4269 = vpack.c.b16 %v4264, %v4263
        %v4270 = vpack.c.b16 %v4266, %v4265
        %4271 = vrot.lane.b32.xlu0 %v4267, 32
        %v4272 = vpop.permute.xlu0 %4271
        %4273 = vrot.lane.b32.xlu0 %v4268, 32
        %v4274 = vpop.permute.xlu0 %4273
        %4275 = vrot.lane.b32.xlu0 %v4269, 32
        %v4276 = vpop.permute.xlu0 %4275
        %4277 = vrot.lane.b32.xlu0 %v4270, 32
        %v4278 = vpop.permute.xlu0 %4277
        %v4287 = vunpack.c.l.b16 %v4235
        %v4288 = vunpack.c.l.b16 %v4236
        %v4289 = vunpack.c.l.b16 %v4237
        %v4290 = vunpack.c.l.b16 %v4238
        %v4291 = vunpack.c.l.b16 %v4239
        %v4292 = vunpack.c.l.b16 %v4240
        %v4293 = vunpack.c.l.b16 %v4241
        %v4294 = vunpack.c.l.b16 %v4242
        %v4295 = vpack.c.b16 %v4288, %v4287
        %v4296 = vpack.c.b16 %v4290, %v4289
        %v4297 = vpack.c.b16 %v4292, %v4291
        %v4298 = vpack.c.b16 %v4294, %v4293
        %4299 = vrot.lane.b32.xlu0 %v4295, 32
        %v4300 = vpop.permute.xlu0 %4299
        %4301 = vrot.lane.b32.xlu0 %v4296, 32
        %v4302 = vpop.permute.xlu0 %4301
        %4303 = vrot.lane.b32.xlu0 %v4297, 32
        %v4304 = vpop.permute.xlu0 %4303
        %4305 = vrot.lane.b32.xlu0 %v4298, 32
        %v4306 = vpop.permute.xlu0 %4305
        %v4308 = vsel %vm1383, %v4272, 0
        %v4311 = vsel %vm1383, %v4274, 0
        %v4314 = vsel %vm1383, %v4276, 0
        %v4317 = vsel %vm1383, %v4278, 0
        %v4320 = vsel %vm1383, %v4300, 0
        %v4323 = vsel %vm1383, %v4302, 0
        %v4326 = vsel %vm1383, %v4304, 0
        %v4329 = vsel %vm1383, %v4306, 0
        %4331 = vmatprep.subr.bf16.mxu0 0
        %4332 = vmatpush1.bf16.xpose.msra.mxu0 0
        %4333 = vmatprep.subr.bf16.mxu0 0
        %4334 = vmatpush1.bf16.xpose.msra.mxu0 0
        %4335 = vmatprep.subr.bf16.mxu0 0
        %4336 = vmatpush1.bf16.xpose.msra.mxu0 0
        %4337 = vmatprep.subr.bf16.mxu0 0
        %4338 = vmatpush1.bf16.xpose.msra.mxu0 0
        %4339 = vmatprep.subr.bf16.mxu0 0
        %4340 = vmatpush1.bf16.xpose.msra.mxu0 %v4329
        %4341 = vmatprep.subr.bf16.mxu0 0
        %4342 = vmatpush1.bf16.xpose.msra.mxu0 %v4326
        %4343 = vmatprep.subr.bf16.mxu0 0
        %4344 = vmatpush1.bf16.xpose.msra.mxu0 %v4323
        %4345 = vmatprep.subr.bf16.mxu0 0
        %4346 = vmatpush1.bf16.xpose.msra.mxu0 %v4320
        %4347 = vmatprep.subr.bf16.mxu0 0
        %4348 = vmatpush2.bf16.xpose.msra.mxu0 0
        %4349 = vmatprep.subr.bf16.mxu0 0
        %4350 = vmatpush2.bf16.xpose.msra.mxu0 0
        %4351 = vmatprep.subr.bf16.mxu0 0
        %4352 = vmatpush2.bf16.xpose.msra.mxu0 0
        %4353 = vmatprep.subr.bf16.mxu0 0
        %4354 = vmatpush2.bf16.xpose.msra.mxu0 0
        %4355 = vmatprep.subr.bf16.mxu0 0
        %4356 = vmatpush2.bf16.xpose.msra.mxu0 0
        %4357 = vmatprep.subr.bf16.mxu0 0
        %4358 = vmatpush2.bf16.xpose.msra.mxu0 0
        %4359 = vmatprep.subr.bf16.mxu0 0
        %4360 = vmatpush2.bf16.xpose.msra.mxu0 0
        %4361 = vmatprep.subr.bf16.mxu0 0
        %4362 = vmatpush2.bf16.xpose.msra.mxu0 0
        %4363 = vmatprep.mubr.bf16.mxu0 0
        %4364 = vmatmul.mubr.bf16.gmra.mxu0 %v4308
        %v4365 = vpop.f32.mrf.mxu0
        %v4366 = vadd.f32 0.0, %v4365
        %v4367 = vpop.f32.mrf.mxu0
        %v4368 = vpop.f32.mrf.mxu0
        %v4369 = vadd.f32 0.0, %v4368
        %v4370 = vpop.f32.mrf.mxu0
        %4371 = vmatprep.mubr.bf16.mxu0 0
        %4372 = vmatmul.mubr.bf16.gmra.mxu0 %v4311
        %v4373 = vpop.f32.mrf.mxu0
        %v4374 = vadd.f32 0.0, %v4373
        %v4375 = vpop.f32.mrf.mxu0
        %v4376 = vpop.f32.mrf.mxu0
        %v4377 = vadd.f32 0.0, %v4376
        %v4378 = vpop.f32.mrf.mxu0
        %4379 = vmatprep.mubr.bf16.mxu0 0
        %4380 = vmatmul.mubr.bf16.gmra.mxu0 %v4314
        %v4381 = vpop.f32.mrf.mxu0
        %v4382 = vadd.f32 0.0, %v4381
        %v4383 = vpop.f32.mrf.mxu0
        %v4384 = vpop.f32.mrf.mxu0
        %v4385 = vadd.f32 0.0, %v4384
        %v4386 = vpop.f32.mrf.mxu0
        %4387 = vmatprep.mubr.bf16.mxu0 0
        %4388 = vmatmul.mubr.bf16.gmra.mxu0 %v4317
        %v4389 = vpop.f32.mrf.mxu0
        %v4390 = vadd.f32 0.0, %v4389
        %v4391 = vpop.f32.mrf.mxu0
        %v4392 = vpop.f32.mrf.mxu0
        %v4393 = vadd.f32 0.0, %v4392
        %v4394 = vpop.f32.mrf.mxu0
        %4395 = vdwg.mxu0
        %v4396 = vsel %vm1473, %v4366, -inf
        %4397 = vmax.xlane.f32.xlu0 %v4396
        %v4398 = vpop.xlane.xlu0 %4397
        %v4399 = vsel %vm1473, %v4369, -inf
        %4400 = vmax.xlane.f32.xlu0 %v4399
        %v4401 = vpop.xlane.xlu0 %4400
        %v4402 = vsel %vm1473, %v4374, -inf
        %4403 = vmax.xlane.f32.xlu0 %v4402
        %v4404 = vpop.xlane.xlu0 %4403
        %v4405 = vsel %vm1473, %v4377, -inf
        %4406 = vmax.xlane.f32.xlu0 %v4405
        %v4407 = vpop.xlane.xlu0 %4406
        %v4408 = vsel %vm1473, %v4382, -inf
        %4409 = vmax.xlane.f32.xlu0 %v4408
        %v4410 = vpop.xlane.xlu0 %4409
        %v4411 = vsel %vm1473, %v4385, -inf
        %4412 = vmax.xlane.f32.xlu0 %v4411
        %v4413 = vpop.xlane.xlu0 %4412
        %v4414 = vsel %vm1473, %v4390, -inf
        %4415 = vmax.xlane.f32.xlu0 %v4414
        %v4416 = vpop.xlane.xlu0 %4415
        %v4417 = vsel %vm1473, %v4393, -inf
        %4418 = vmax.xlane.f32.xlu0 %v4417
        %v4419 = vpop.xlane.xlu0 %4418
        %v4420 = vsub.f32 %v4366, %v4398
        %v4421 = vsub.f32 %v4369, %v4401
        %v4422 = vsub.f32 %v4374, %v4404
        %v4423 = vsub.f32 %v4377, %v4407
        %v4424 = vsub.f32 %v4382, %v4410
        %v4425 = vsub.f32 %v4385, %v4413
        %v4426 = vsub.f32 %v4390, %v4416
        %v4427 = vsub.f32 %v4393, %v4419
        %v4428 = vmul.f32 %v4420, 1.442695
        %v4429 = vpow.pop %v4428
        %v4430 = vmul.f32 %v4421, 1.442695
        %v4431 = vpow.pop %v4430
        %v4432 = vmul.f32 %v4422, 1.442695
        %v4433 = vpow.pop %v4432
        %v4434 = vmul.f32 %v4423, 1.442695
        %v4435 = vpow.pop %v4434
        %v4436 = vmul.f32 %v4424, 1.442695
        %v4437 = vpow.pop %v4436
        %v4438 = vmul.f32 %v4425, 1.442695
        %v4439 = vpow.pop %v4438
        %v4440 = vmul.f32 %v4426, 1.442695
        %v4441 = vpow.pop %v4440
        %v4442 = vmul.f32 %v4427, 1.442695
        %v4443 = vpow.pop %v4442
        %v4444 = vsel %vm1473, %v4429, 0.0
        %4445 = vadd.xlane.f32.xlu0 %v4444
        %v4446 = vpop.xlane.xlu0 %4445
        %v4447 = vsel %vm1473, %v4431, 0.0
        %4448 = vadd.xlane.f32.xlu0 %v4447
        %v4449 = vpop.xlane.xlu0 %4448
        %v4450 = vsel %vm1473, %v4433, 0.0
        %4451 = vadd.xlane.f32.xlu0 %v4450
        %v4452 = vpop.xlane.xlu0 %4451
        %v4453 = vsel %vm1473, %v4435, 0.0
        %4454 = vadd.xlane.f32.xlu0 %v4453
        %v4455 = vpop.xlane.xlu0 %4454
        %v4456 = vsel %vm1473, %v4437, 0.0
        %4457 = vadd.xlane.f32.xlu0 %v4456
        %v4458 = vpop.xlane.xlu0 %4457
        %v4459 = vsel %vm1473, %v4439, 0.0
        %4460 = vadd.xlane.f32.xlu0 %v4459
        %v4461 = vpop.xlane.xlu0 %4460
        %v4462 = vsel %vm1473, %v4441, 0.0
        %4463 = vadd.xlane.f32.xlu0 %v4462
        %v4464 = vpop.xlane.xlu0 %4463
        %v4465 = vsel %vm1473, %v4443, 0.0
        %4466 = vadd.xlane.f32.xlu0 %v4465
        %v4467 = vpop.xlane.xlu0 %4466
        %v4468 = vrcp.pop %v4446
        %v4469 = vrcp.pop %v4449
        %v4470 = vrcp.pop %v4452
        %v4471 = vrcp.pop %v4455
        %v4472 = vrcp.pop %v4458
        %v4473 = vrcp.pop %v4461
        %v4474 = vrcp.pop %v4464
        %v4475 = vrcp.pop %v4467
        %v4476 = vmul.f32 %v4429, %v4468
        %v4477 = vmul.f32 %v4431, %v4469
        %v4478 = vmul.f32 %v4433, %v4470
        %v4479 = vmul.f32 %v4435, %v4471
        %v4480 = vmul.f32 %v4437, %v4472
        %v4481 = vmul.f32 %v4439, %v4473
        %v4482 = vmul.f32 %v4441, %v4474
        %v4483 = vmul.f32 %v4443, %v4475
        %v4484 = vpack.c.bf16 %v4477, %v4476
        %v4485 = vpack.c.bf16 %v4479, %v4478
        %v4486 = vpack.c.bf16 %v4481, %v4480
        %v4487 = vpack.c.bf16 %v4483, %v4482
        %v4496 = vunpack.c.l.b16 %v4243
        %v4497 = vunpack.c.l.b16 %v4244
        %v4498 = vunpack.c.l.b16 %v4245
        %v4499 = vunpack.c.l.b16 %v4246
        %v4500 = vunpack.c.l.b16 %v4247
        %v4501 = vunpack.c.l.b16 %v4248
        %v4502 = vunpack.c.l.b16 %v4249
        %v4503 = vunpack.c.l.b16 %v4250
        %v4504 = vpack.c.b16 %v4497, %v4496
        %v4505 = vpack.c.b16 %v4499, %v4498
        %v4506 = vpack.c.b16 %v4501, %v4500
        %v4507 = vpack.c.b16 %v4503, %v4502
        %4508 = vrot.lane.b32.xlu0 %v4504, 32
        %v4509 = vpop.permute.xlu0 %4508
        %4510 = vrot.lane.b32.xlu0 %v4505, 32
        %v4511 = vpop.permute.xlu0 %4510
        %4512 = vrot.lane.b32.xlu0 %v4506, 32
        %v4513 = vpop.permute.xlu0 %4512
        %4514 = vrot.lane.b32.xlu0 %v4507, 32
        %v4515 = vpop.permute.xlu0 %4514
        %v4521 = vsel %vm1473, %v4484, 0
        %v4524 = vsel %vm1473, %v4485, 0
        %v4527 = vsel %vm1473, %v4486, 0
        %v4530 = vsel %vm1473, %v4487, 0
        %4532 = vmatprep.subr.bf16.mxu0 0
        %4533 = vmatpush1.bf16.msra.mxu0 0
        %4534 = vmatprep.subr.bf16.mxu0 0
        %4535 = vmatpush1.bf16.msra.mxu0 0
        %4536 = vmatprep.subr.bf16.mxu0 0
        %4537 = vmatpush1.bf16.msra.mxu0 0
        %4538 = vmatprep.subr.bf16.mxu0 0
        %4539 = vmatpush1.bf16.msra.mxu0 0
        %4540 = vmatprep.subr.bf16.mxu0 0
        %4541 = vmatpush1.bf16.msra.mxu0 %v4515
        %4542 = vmatprep.subr.bf16.mxu0 0
        %4543 = vmatpush1.bf16.msra.mxu0 %v4513
        %4544 = vmatprep.subr.bf16.mxu0 0
        %4545 = vmatpush1.bf16.msra.mxu0 %v4511
        %4546 = vmatprep.subr.bf16.mxu0 0
        %4547 = vmatpush1.bf16.msra.mxu0 %v4509
        %4548 = vmatprep.subr.bf16.mxu0 0
        %4549 = vmatpush2.bf16.msra.mxu0 0
        %4550 = vmatprep.subr.bf16.mxu0 0
        %4551 = vmatpush2.bf16.msra.mxu0 0
        %4552 = vmatprep.subr.bf16.mxu0 0
        %4553 = vmatpush2.bf16.msra.mxu0 0
        %4554 = vmatprep.subr.bf16.mxu0 0
        %4555 = vmatpush2.bf16.msra.mxu0 0
        %4556 = vmatprep.subr.bf16.mxu0 0
        %4557 = vmatpush2.bf16.msra.mxu0 0
        %4558 = vmatprep.subr.bf16.mxu0 0
        %4559 = vmatpush2.bf16.msra.mxu0 0
        %4560 = vmatprep.subr.bf16.mxu0 0
        %4561 = vmatpush2.bf16.msra.mxu0 0
        %4562 = vmatprep.subr.bf16.mxu0 0
        %4563 = vmatpush2.bf16.msra.mxu0 0
        %4564 = vmatprep.mubr.bf16.mxu0 0
        %4565 = vmatmul.mubr.bf16.gmra.mxu0 %v4521
        %v4566 = vpop.f32.mrf.mxu0
        %v4567 = vadd.f32 0.0, %v4566
        %v4568 = vpop.f32.mrf.mxu0
        %v4569 = vpop.f32.mrf.mxu0
        %v4570 = vadd.f32 0.0, %v4569
        %v4571 = vpop.f32.mrf.mxu0
        %4572 = vmatprep.mubr.bf16.mxu0 0
        %4573 = vmatmul.mubr.bf16.gmra.mxu0 %v4524
        %v4574 = vpop.f32.mrf.mxu0
        %v4575 = vadd.f32 0.0, %v4574
        %v4576 = vpop.f32.mrf.mxu0
        %v4577 = vpop.f32.mrf.mxu0
        %v4578 = vadd.f32 0.0, %v4577
        %v4579 = vpop.f32.mrf.mxu0
        %4580 = vmatprep.mubr.bf16.mxu0 0
        %4581 = vmatmul.mubr.bf16.gmra.mxu0 %v4527
        %v4582 = vpop.f32.mrf.mxu0
        %v4583 = vadd.f32 0.0, %v4582
        %v4584 = vpop.f32.mrf.mxu0
        %v4585 = vpop.f32.mrf.mxu0
        %v4586 = vadd.f32 0.0, %v4585
        %v4587 = vpop.f32.mrf.mxu0
        %4588 = vmatprep.mubr.bf16.mxu0 0
        %4589 = vmatmul.mubr.bf16.gmra.mxu0 %v4530
        %v4590 = vpop.f32.mrf.mxu0
        %v4591 = vadd.f32 0.0, %v4590
        %v4592 = vpop.f32.mrf.mxu0
        %v4593 = vpop.f32.mrf.mxu0
        %v4594 = vadd.f32 0.0, %v4593
        %v4595 = vpop.f32.mrf.mxu0
        %4596 = vdwg.mxu0
        %v4597 = vpack.c.bf16 %v4570, %v4567
        %v4598 = vpack.c.bf16 %v4578, %v4575
        %v4599 = vpack.c.bf16 %v4586, %v4583
        %v4600 = vpack.c.bf16 %v4594, %v4591
        %v4605 = vunpack.c.l.b16 %v4597
        %v4606 = vunpack.c.h.b16 %v4597
        %v4607 = vunpack.c.l.b16 %v4598
        %v4608 = vunpack.c.h.b16 %v4598
        %v4609 = vunpack.c.l.b16 %v4599
        %v4610 = vunpack.c.h.b16 %v4599
        %v4611 = vunpack.c.l.b16 %v4600
        %v4612 = vunpack.c.h.b16 %v4600
        %v4613 = vpack.c.b16 %v4605, %v4605
        %v4614 = vpack.c.b16 %v4606, %v4606
        %v4615 = vpack.c.b16 %v4607, %v4607
        %v4616 = vpack.c.b16 %v4608, %v4608
        %v4617 = vpack.c.b16 %v4609, %v4609
        %v4618 = vpack.c.b16 %v4610, %v4610
        %v4619 = vpack.c.b16 %v4611, %v4611
        %v4620 = vpack.c.b16 %v4612, %v4612
        %4621 = vrot.lane.b32.xlu0 %v4613, 96
        %v4622 = vpop.permute.xlu0 %4621
        %4623 = vrot.lane.b32.xlu0 %v4614, 96
        %v4624 = vpop.permute.xlu0 %4623
        %4625 = vrot.lane.b32.xlu0 %v4615, 96
        %v4626 = vpop.permute.xlu0 %4625
        %4627 = vrot.lane.b32.xlu0 %v4616, 96
        %v4628 = vpop.permute.xlu0 %4627
        %4629 = vrot.lane.b32.xlu0 %v4617, 96
        %v4630 = vpop.permute.xlu0 %4629
        %4631 = vrot.lane.b32.xlu0 %v4618, 96
        %v4632 = vpop.permute.xlu0 %4631
        %4633 = vrot.lane.b32.xlu0 %v4619, 96
        %v4634 = vpop.permute.xlu0 %4633
        %4635 = vrot.lane.b32.xlu0 %v4620, 96
        %v4636 = vpop.permute.xlu0 %4635
        %4645 = vst.msk [vmem:[#allocation3 + $0x20] sm:$0xf] %vm2980, %v4622
        %4646 = vst.msk [vmem:[#allocation3 + $0x24] sm:$0xf] %vm2980, %v4624
        %4647 = vst.msk [vmem:[#allocation3 + $0x28] sm:$0xf] %vm2980, %v4626
        %4648 = vst.msk [vmem:[#allocation3 + $0x2c] sm:$0xf] %vm2980, %v4628
        %4649 = vst.msk [vmem:[#allocation3 + $0x30] sm:$0xf] %vm2980, %v4630
        %4650 = vst.msk [vmem:[#allocation3 + $0x34] sm:$0xf] %vm2980, %v4632
        %4651 = vst.msk [vmem:[#allocation3 + $0x38] sm:$0xf] %vm2980, %v4634
        %4652 = vst.msk [vmem:[#allocation3 + $0x3c] sm:$0xf] %vm2980, %v4636
        %v4653 = vld [vmem:[#allocation2 + $0xc0] sm:$0xf]
        %v4654 = vld [vmem:[#allocation2 + $0xcc] sm:$0xf]
        %v4655 = vld [vmem:[#allocation2 + $0xd8] sm:$0xf]
        %v4656 = vld [vmem:[#allocation2 + $0xe4] sm:$0xf]
        %v4657 = vld [vmem:[#allocation2 + $0xf0] sm:$0xf]
        %v4658 = vld [vmem:[#allocation2 + $0xfc] sm:$0xf]
        %v4659 = vld [vmem:[#allocation2 + $0x108] sm:$0xf]
        %v4660 = vld [vmem:[#allocation2 + $0x114] sm:$0xf]
        %v4661 = vld [vmem:[#allocation2 + $0xc4] sm:$0xf]
        %v4662 = vld [vmem:[#allocation2 + $0xd0] sm:$0xf]
        %v4663 = vld [vmem:[#allocation2 + $0xdc] sm:$0xf]
        %v4664 = vld [vmem:[#allocation2 + $0xe8] sm:$0xf]
        %v4665 = vld [vmem:[#allocation2 + $0xf4] sm:$0xf]
        %v4666 = vld [vmem:[#allocation2 + $0x100] sm:$0xf]
        %v4667 = vld [vmem:[#allocation2 + $0x10c] sm:$0xf]
        %v4668 = vld [vmem:[#allocation2 + $0x118] sm:$0xf]
        %v4669 = vld [vmem:[#allocation2 + $0xc8] sm:$0xf]
        %v4670 = vld [vmem:[#allocation2 + $0xd4] sm:$0xf]
        %v4671 = vld [vmem:[#allocation2 + $0xe0] sm:$0xf]
        %v4672 = vld [vmem:[#allocation2 + $0xec] sm:$0xf]
        %v4673 = vld [vmem:[#allocation2 + $0xf8] sm:$0xf]
        %v4674 = vld [vmem:[#allocation2 + $0x104] sm:$0xf]
        %v4675 = vld [vmem:[#allocation2 + $0x110] sm:$0xf]
        %v4676 = vld [vmem:[#allocation2 + $0x11c] sm:$0xf]
        %v4685 = vunpack.c.l.b16 %v4653
        %v4686 = vunpack.c.l.b16 %v4654
        %v4687 = vunpack.c.l.b16 %v4655
        %v4688 = vunpack.c.l.b16 %v4656
        %v4689 = vunpack.c.l.b16 %v4657
        %v4690 = vunpack.c.l.b16 %v4658
        %v4691 = vunpack.c.l.b16 %v4659
        %v4692 = vunpack.c.l.b16 %v4660
        %v4693 = vpack.c.b16 %v4686, %v4685
        %v4694 = vpack.c.b16 %v4688, %v4687
        %v4695 = vpack.c.b16 %v4690, %v4689
        %v4696 = vpack.c.b16 %v4692, %v4691
        %v4705 = vunpack.c.l.b16 %v4661
        %v4706 = vunpack.c.l.b16 %v4662
        %v4707 = vunpack.c.l.b16 %v4663
        %v4708 = vunpack.c.l.b16 %v4664
        %v4709 = vunpack.c.l.b16 %v4665
        %v4710 = vunpack.c.l.b16 %v4666
        %v4711 = vunpack.c.l.b16 %v4667
        %v4712 = vunpack.c.l.b16 %v4668
        %v4713 = vpack.c.b16 %v4706, %v4705
        %v4714 = vpack.c.b16 %v4708, %v4707
        %v4715 = vpack.c.b16 %v4710, %v4709
        %v4716 = vpack.c.b16 %v4712, %v4711
        %v4718 = vsel %vm1383, %v4693, 0
        %v4721 = vsel %vm1383, %v4694, 0
        %v4724 = vsel %vm1383, %v4695, 0
        %v4727 = vsel %vm1383, %v4696, 0
        %v4730 = vsel %vm1383, %v4713, 0
        %v4733 = vsel %vm1383, %v4714, 0
        %v4736 = vsel %vm1383, %v4715, 0
        %v4739 = vsel %vm1383, %v4716, 0
        %4741 = vmatprep.subr.bf16.mxu0 0
        %4742 = vmatpush1.bf16.xpose.msra.mxu0 0
        %4743 = vmatprep.subr.bf16.mxu0 0
        %4744 = vmatpush1.bf16.xpose.msra.mxu0 0
        %4745 = vmatprep.subr.bf16.mxu0 0
        %4746 = vmatpush1.bf16.xpose.msra.mxu0 0
        %4747 = vmatprep.subr.bf16.mxu0 0
        %4748 = vmatpush1.bf16.xpose.msra.mxu0 0
        %4749 = vmatprep.subr.bf16.mxu0 0
        %4750 = vmatpush1.bf16.xpose.msra.mxu0 %v4739
        %4751 = vmatprep.subr.bf16.mxu0 0
        %4752 = vmatpush1.bf16.xpose.msra.mxu0 %v4736
        %4753 = vmatprep.subr.bf16.mxu0 0
        %4754 = vmatpush1.bf16.xpose.msra.mxu0 %v4733
        %4755 = vmatprep.subr.bf16.mxu0 0
        %4756 = vmatpush1.bf16.xpose.msra.mxu0 %v4730
        %4757 = vmatprep.subr.bf16.mxu0 0
        %4758 = vmatpush2.bf16.xpose.msra.mxu0 0
        %4759 = vmatprep.subr.bf16.mxu0 0
        %4760 = vmatpush2.bf16.xpose.msra.mxu0 0
        %4761 = vmatprep.subr.bf16.mxu0 0
        %4762 = vmatpush2.bf16.xpose.msra.mxu0 0
        %4763 = vmatprep.subr.bf16.mxu0 0
        %4764 = vmatpush2.bf16.xpose.msra.mxu0 0
        %4765 = vmatprep.subr.bf16.mxu0 0
        %4766 = vmatpush2.bf16.xpose.msra.mxu0 0
        %4767 = vmatprep.subr.bf16.mxu0 0
        %4768 = vmatpush2.bf16.xpose.msra.mxu0 0
        %4769 = vmatprep.subr.bf16.mxu0 0
        %4770 = vmatpush2.bf16.xpose.msra.mxu0 0
        %4771 = vmatprep.subr.bf16.mxu0 0
        %4772 = vmatpush2.bf16.xpose.msra.mxu0 0
        %4773 = vmatprep.mubr.bf16.mxu0 0
        %4774 = vmatmul.mubr.bf16.gmra.mxu0 %v4718
        %v4775 = vpop.f32.mrf.mxu0
        %v4776 = vadd.f32 0.0, %v4775
        %v4777 = vpop.f32.mrf.mxu0
        %v4778 = vpop.f32.mrf.mxu0
        %v4779 = vadd.f32 0.0, %v4778
        %v4780 = vpop.f32.mrf.mxu0
        %4781 = vmatprep.mubr.bf16.mxu0 0
        %4782 = vmatmul.mubr.bf16.gmra.mxu0 %v4721
        %v4783 = vpop.f32.mrf.mxu0
        %v4784 = vadd.f32 0.0, %v4783
        %v4785 = vpop.f32.mrf.mxu0
        %v4786 = vpop.f32.mrf.mxu0
        %v4787 = vadd.f32 0.0, %v4786
        %v4788 = vpop.f32.mrf.mxu0
        %4789 = vmatprep.mubr.bf16.mxu0 0
        %4790 = vmatmul.mubr.bf16.gmra.mxu0 %v4724
        %v4791 = vpop.f32.mrf.mxu0
        %v4792 = vadd.f32 0.0, %v4791
        %v4793 = vpop.f32.mrf.mxu0
        %v4794 = vpop.f32.mrf.mxu0
        %v4795 = vadd.f32 0.0, %v4794
        %v4796 = vpop.f32.mrf.mxu0
        %4797 = vmatprep.mubr.bf16.mxu0 0
        %4798 = vmatmul.mubr.bf16.gmra.mxu0 %v4727
        %v4799 = vpop.f32.mrf.mxu0
        %v4800 = vadd.f32 0.0, %v4799
        %v4801 = vpop.f32.mrf.mxu0
        %v4802 = vpop.f32.mrf.mxu0
        %v4803 = vadd.f32 0.0, %v4802
        %v4804 = vpop.f32.mrf.mxu0
        %4805 = vdwg.mxu0
        %v4806 = vsel %vm1473, %v4776, -inf
        %4807 = vmax.xlane.f32.xlu0 %v4806
        %v4808 = vpop.xlane.xlu0 %4807
        %v4809 = vsel %vm1473, %v4779, -inf
        %4810 = vmax.xlane.f32.xlu0 %v4809
        %v4811 = vpop.xlane.xlu0 %4810
        %v4812 = vsel %vm1473, %v4784, -inf
        %4813 = vmax.xlane.f32.xlu0 %v4812
        %v4814 = vpop.xlane.xlu0 %4813
        %v4815 = vsel %vm1473, %v4787, -inf
        %4816 = vmax.xlane.f32.xlu0 %v4815
        %v4817 = vpop.xlane.xlu0 %4816
        %v4818 = vsel %vm1473, %v4792, -inf
        %4819 = vmax.xlane.f32.xlu0 %v4818
        %v4820 = vpop.xlane.xlu0 %4819
        %v4821 = vsel %vm1473, %v4795, -inf
        %4822 = vmax.xlane.f32.xlu0 %v4821
        %v4823 = vpop.xlane.xlu0 %4822
        %v4824 = vsel %vm1473, %v4800, -inf
        %4825 = vmax.xlane.f32.xlu0 %v4824
        %v4826 = vpop.xlane.xlu0 %4825
        %v4827 = vsel %vm1473, %v4803, -inf
        %4828 = vmax.xlane.f32.xlu0 %v4827
        %v4829 = vpop.xlane.xlu0 %4828
        %v4830 = vsub.f32 %v4776, %v4808
        %v4831 = vsub.f32 %v4779, %v4811
        %v4832 = vsub.f32 %v4784, %v4814
        %v4833 = vsub.f32 %v4787, %v4817
        %v4834 = vsub.f32 %v4792, %v4820
        %v4835 = vsub.f32 %v4795, %v4823
        %v4836 = vsub.f32 %v4800, %v4826
        %v4837 = vsub.f32 %v4803, %v4829
        %v4838 = vmul.f32 %v4830, 1.442695
        %v4839 = vpow.pop %v4838
        %v4840 = vmul.f32 %v4831, 1.442695
        %v4841 = vpow.pop %v4840
        %v4842 = vmul.f32 %v4832, 1.442695
        %v4843 = vpow.pop %v4842
        %v4844 = vmul.f32 %v4833, 1.442695
        %v4845 = vpow.pop %v4844
        %v4846 = vmul.f32 %v4834, 1.442695
        %v4847 = vpow.pop %v4846
        %v4848 = vmul.f32 %v4835, 1.442695
        %v4849 = vpow.pop %v4848
        %v4850 = vmul.f32 %v4836, 1.442695
        %v4851 = vpow.pop %v4850
        %v4852 = vmul.f32 %v4837, 1.442695
        %v4853 = vpow.pop %v4852
        %v4854 = vsel %vm1473, %v4839, 0.0
        %4855 = vadd.xlane.f32.xlu0 %v4854
        %v4856 = vpop.xlane.xlu0 %4855
        %v4857 = vsel %vm1473, %v4841, 0.0
        %4858 = vadd.xlane.f32.xlu0 %v4857
        %v4859 = vpop.xlane.xlu0 %4858
        %v4860 = vsel %vm1473, %v4843, 0.0
        %4861 = vadd.xlane.f32.xlu0 %v4860
        %v4862 = vpop.xlane.xlu0 %4861
        %v4863 = vsel %vm1473, %v4845, 0.0
        %4864 = vadd.xlane.f32.xlu0 %v4863
        %v4865 = vpop.xlane.xlu0 %4864
        %v4866 = vsel %vm1473, %v4847, 0.0
        %4867 = vadd.xlane.f32.xlu0 %v4866
        %v4868 = vpop.xlane.xlu0 %4867
        %v4869 = vsel %vm1473, %v4849, 0.0
        %4870 = vadd.xlane.f32.xlu0 %v4869
        %v4871 = vpop.xlane.xlu0 %4870
        %v4872 = vsel %vm1473, %v4851, 0.0
        %4873 = vadd.xlane.f32.xlu0 %v4872
        %v4874 = vpop.xlane.xlu0 %4873
        %v4875 = vsel %vm1473, %v4853, 0.0
        %4876 = vadd.xlane.f32.xlu0 %v4875
        %v4877 = vpop.xlane.xlu0 %4876
        %v4878 = vrcp.pop %v4856
        %v4879 = vrcp.pop %v4859
        %v4880 = vrcp.pop %v4862
        %v4881 = vrcp.pop %v4865
        %v4882 = vrcp.pop %v4868
        %v4883 = vrcp.pop %v4871
        %v4884 = vrcp.pop %v4874
        %v4885 = vrcp.pop %v4877
        %v4886 = vmul.f32 %v4839, %v4878
        %v4887 = vmul.f32 %v4841, %v4879
        %v4888 = vmul.f32 %v4843, %v4880
        %v4889 = vmul.f32 %v4845, %v4881
        %v4890 = vmul.f32 %v4847, %v4882
        %v4891 = vmul.f32 %v4849, %v4883
        %v4892 = vmul.f32 %v4851, %v4884
        %v4893 = vmul.f32 %v4853, %v4885
        %v4894 = vpack.c.bf16 %v4887, %v4886
        %v4895 = vpack.c.bf16 %v4889, %v4888
        %v4896 = vpack.c.bf16 %v4891, %v4890
        %v4897 = vpack.c.bf16 %v4893, %v4892
        %v4906 = vunpack.c.l.b16 %v4669
        %v4907 = vunpack.c.l.b16 %v4670
        %v4908 = vunpack.c.l.b16 %v4671
        %v4909 = vunpack.c.l.b16 %v4672
        %v4910 = vunpack.c.l.b16 %v4673
        %v4911 = vunpack.c.l.b16 %v4674
        %v4912 = vunpack.c.l.b16 %v4675
        %v4913 = vunpack.c.l.b16 %v4676
        %v4914 = vpack.c.b16 %v4907, %v4906
        %v4915 = vpack.c.b16 %v4909, %v4908
        %v4916 = vpack.c.b16 %v4911, %v4910
        %v4917 = vpack.c.b16 %v4913, %v4912
        %v4923 = vsel %vm1473, %v4894, 0
        %v4926 = vsel %vm1473, %v4895, 0
        %v4929 = vsel %vm1473, %v4896, 0
        %v4932 = vsel %vm1473, %v4897, 0
        %4934 = vmatprep.subr.bf16.mxu0 0
        %4935 = vmatpush1.bf16.msra.mxu0 0
        %4936 = vmatprep.subr.bf16.mxu0 0
        %4937 = vmatpush1.bf16.msra.mxu0 0
        %4938 = vmatprep.subr.bf16.mxu0 0
        %4939 = vmatpush1.bf16.msra.mxu0 0
        %4940 = vmatprep.subr.bf16.mxu0 0
        %4941 = vmatpush1.bf16.msra.mxu0 0
        %4942 = vmatprep.subr.bf16.mxu0 0
        %4943 = vmatpush1.bf16.msra.mxu0 %v4917
        %4944 = vmatprep.subr.bf16.mxu0 0
        %4945 = vmatpush1.bf16.msra.mxu0 %v4916
        %4946 = vmatprep.subr.bf16.mxu0 0
        %4947 = vmatpush1.bf16.msra.mxu0 %v4915
        %4948 = vmatprep.subr.bf16.mxu0 0
        %4949 = vmatpush1.bf16.msra.mxu0 %v4914
        %4950 = vmatprep.subr.bf16.mxu0 0
        %4951 = vmatpush2.bf16.msra.mxu0 0
        %4952 = vmatprep.subr.bf16.mxu0 0
        %4953 = vmatpush2.bf16.msra.mxu0 0
        %4954 = vmatprep.subr.bf16.mxu0 0
        %4955 = vmatpush2.bf16.msra.mxu0 0
        %4956 = vmatprep.subr.bf16.mxu0 0
        %4957 = vmatpush2.bf16.msra.mxu0 0
        %4958 = vmatprep.subr.bf16.mxu0 0
        %4959 = vmatpush2.bf16.msra.mxu0 0
        %4960 = vmatprep.subr.bf16.mxu0 0
        %4961 = vmatpush2.bf16.msra.mxu0 0
        %4962 = vmatprep.subr.bf16.mxu0 0
        %4963 = vmatpush2.bf16.msra.mxu0 0
        %4964 = vmatprep.subr.bf16.mxu0 0
        %4965 = vmatpush2.bf16.msra.mxu0 0
        %4966 = vmatprep.mubr.bf16.mxu0 0
        %4967 = vmatmul.mubr.bf16.gmra.mxu0 %v4923
        %v4968 = vpop.f32.mrf.mxu0
        %v4969 = vadd.f32 0.0, %v4968
        %v4970 = vpop.f32.mrf.mxu0
        %v4971 = vpop.f32.mrf.mxu0
        %v4972 = vadd.f32 0.0, %v4971
        %v4973 = vpop.f32.mrf.mxu0
        %4974 = vmatprep.mubr.bf16.mxu0 0
        %4975 = vmatmul.mubr.bf16.gmra.mxu0 %v4926
        %v4976 = vpop.f32.mrf.mxu0
        %v4977 = vadd.f32 0.0, %v4976
        %v4978 = vpop.f32.mrf.mxu0
        %v4979 = vpop.f32.mrf.mxu0
        %v4980 = vadd.f32 0.0, %v4979
        %v4981 = vpop.f32.mrf.mxu0
        %4982 = vmatprep.mubr.bf16.mxu0 0
        %4983 = vmatmul.mubr.bf16.gmra.mxu0 %v4929
        %v4984 = vpop.f32.mrf.mxu0
        %v4985 = vadd.f32 0.0, %v4984
        %v4986 = vpop.f32.mrf.mxu0
        %v4987 = vpop.f32.mrf.mxu0
        %v4988 = vadd.f32 0.0, %v4987
        %v4989 = vpop.f32.mrf.mxu0
        %4990 = vmatprep.mubr.bf16.mxu0 0
        %4991 = vmatmul.mubr.bf16.gmra.mxu0 %v4932
        %v4992 = vpop.f32.mrf.mxu0
        %v4993 = vadd.f32 0.0, %v4992
        %v4994 = vpop.f32.mrf.mxu0
        %v4995 = vpop.f32.mrf.mxu0
        %v4996 = vadd.f32 0.0, %v4995
        %v4997 = vpop.f32.mrf.mxu0
        %4998 = vdwg.mxu0
        %v4999 = vpack.c.bf16 %v4972, %v4969
        %v5000 = vpack.c.bf16 %v4980, %v4977
        %v5001 = vpack.c.bf16 %v4988, %v4985
        %v5002 = vpack.c.bf16 %v4996, %v4993
        %v5007 = vunpack.c.l.b16 %v4999
        %v5008 = vunpack.c.h.b16 %v4999
        %v5009 = vunpack.c.l.b16 %v5000
        %v5010 = vunpack.c.h.b16 %v5000
        %v5011 = vunpack.c.l.b16 %v5001
        %v5012 = vunpack.c.h.b16 %v5001
        %v5013 = vunpack.c.l.b16 %v5002
        %v5014 = vunpack.c.h.b16 %v5002
        %v5015 = vpack.c.b16 %v5007, %v5007
        %v5016 = vpack.c.b16 %v5008, %v5008
        %v5017 = vpack.c.b16 %v5009, %v5009
        %v5018 = vpack.c.b16 %v5010, %v5010
        %v5019 = vpack.c.b16 %v5011, %v5011
        %v5020 = vpack.c.b16 %v5012, %v5012
        %v5021 = vpack.c.b16 %v5013, %v5013
        %v5022 = vpack.c.b16 %v5014, %v5014
        %5031 = vst.msk [vmem:[#allocation3 + $0x40] sm:$0xf] %vm1699, %v5015
        %5032 = vst.msk [vmem:[#allocation3 + $0x44] sm:$0xf] %vm1699, %v5016
        %5033 = vst.msk [vmem:[#allocation3 + $0x48] sm:$0xf] %vm1699, %v5017
        %5034 = vst.msk [vmem:[#allocation3 + $0x4c] sm:$0xf] %vm1699, %v5018
        %5035 = vst.msk [vmem:[#allocation3 + $0x50] sm:$0xf] %vm1699, %v5019
        %5036 = vst.msk [vmem:[#allocation3 + $0x54] sm:$0xf] %vm1699, %v5020
        %5037 = vst.msk [vmem:[#allocation3 + $0x58] sm:$0xf] %vm1699, %v5021
        %5038 = vst.msk [vmem:[#allocation3 + $0x5c] sm:$0xf] %vm1699, %v5022
        %v5039 = vld [vmem:[#allocation2 + $0xc0] sm:$0xf]
        %v5040 = vld [vmem:[#allocation2 + $0xcc] sm:$0xf]
        %v5041 = vld [vmem:[#allocation2 + $0xd8] sm:$0xf]
        %v5042 = vld [vmem:[#allocation2 + $0xe4] sm:$0xf]
        %v5043 = vld [vmem:[#allocation2 + $0xf0] sm:$0xf]
        %v5044 = vld [vmem:[#allocation2 + $0xfc] sm:$0xf]
        %v5045 = vld [vmem:[#allocation2 + $0x108] sm:$0xf]
        %v5046 = vld [vmem:[#allocation2 + $0x114] sm:$0xf]
        %v5047 = vld [vmem:[#allocation2 + $0xc4] sm:$0xf]
        %v5048 = vld [vmem:[#allocation2 + $0xd0] sm:$0xf]
        %v5049 = vld [vmem:[#allocation2 + $0xdc] sm:$0xf]
        %v5050 = vld [vmem:[#allocation2 + $0xe8] sm:$0xf]
        %v5051 = vld [vmem:[#allocation2 + $0xf4] sm:$0xf]
        %v5052 = vld [vmem:[#allocation2 + $0x100] sm:$0xf]
        %v5053 = vld [vmem:[#allocation2 + $0x10c] sm:$0xf]
        %v5054 = vld [vmem:[#allocation2 + $0x118] sm:$0xf]
        %v5055 = vld [vmem:[#allocation2 + $0xc8] sm:$0xf]
        %v5056 = vld [vmem:[#allocation2 + $0xd4] sm:$0xf]
        %v5057 = vld [vmem:[#allocation2 + $0xe0] sm:$0xf]
        %v5058 = vld [vmem:[#allocation2 + $0xec] sm:$0xf]
        %v5059 = vld [vmem:[#allocation2 + $0xf8] sm:$0xf]
        %v5060 = vld [vmem:[#allocation2 + $0x104] sm:$0xf]
        %v5061 = vld [vmem:[#allocation2 + $0x110] sm:$0xf]
        %v5062 = vld [vmem:[#allocation2 + $0x11c] sm:$0xf]
        %v5071 = vunpack.c.l.b16 %v5039
        %v5072 = vunpack.c.l.b16 %v5040
        %v5073 = vunpack.c.l.b16 %v5041
        %v5074 = vunpack.c.l.b16 %v5042
        %v5075 = vunpack.c.l.b16 %v5043
        %v5076 = vunpack.c.l.b16 %v5044
        %v5077 = vunpack.c.l.b16 %v5045
        %v5078 = vunpack.c.l.b16 %v5046
        %v5079 = vpack.c.b16 %v5072, %v5071
        %v5080 = vpack.c.b16 %v5074, %v5073
        %v5081 = vpack.c.b16 %v5076, %v5075
        %v5082 = vpack.c.b16 %v5078, %v5077
        %5083 = vrot.lane.b32.xlu0 %v5079, 96
        %v5084 = vpop.permute.xlu0 %5083
        %5085 = vrot.lane.b32.xlu0 %v5080, 96
        %v5086 = vpop.permute.xlu0 %5085
        %5087 = vrot.lane.b32.xlu0 %v5081, 96
        %v5088 = vpop.permute.xlu0 %5087
        %5089 = vrot.lane.b32.xlu0 %v5082, 96
        %v5090 = vpop.permute.xlu0 %5089
        %v5099 = vunpack.c.l.b16 %v5047
        %v5100 = vunpack.c.l.b16 %v5048
        %v5101 = vunpack.c.l.b16 %v5049
        %v5102 = vunpack.c.l.b16 %v5050
        %v5103 = vunpack.c.l.b16 %v5051
        %v5104 = vunpack.c.l.b16 %v5052
        %v5105 = vunpack.c.l.b16 %v5053
        %v5106 = vunpack.c.l.b16 %v5054
        %v5107 = vpack.c.b16 %v5100, %v5099
        %v5108 = vpack.c.b16 %v5102, %v5101
        %v5109 = vpack.c.b16 %v5104, %v5103
        %v5110 = vpack.c.b16 %v5106, %v5105
        %5111 = vrot.lane.b32.xlu0 %v5107, 96
        %v5112 = vpop.permute.xlu0 %5111
        %5113 = vrot.lane.b32.xlu0 %v5108, 96
        %v5114 = vpop.permute.xlu0 %5113
        %5115 = vrot.lane.b32.xlu0 %v5109, 96
        %v5116 = vpop.permute.xlu0 %5115
        %5117 = vrot.lane.b32.xlu0 %v5110, 96
        %v5118 = vpop.permute.xlu0 %5117
        %v5120 = vsel %vm1383, %v5084, 0
        %v5123 = vsel %vm1383, %v5086, 0
        %v5126 = vsel %vm1383, %v5088, 0
        %v5129 = vsel %vm1383, %v5090, 0
        %v5132 = vsel %vm1383, %v5112, 0
        %v5135 = vsel %vm1383, %v5114, 0
        %v5138 = vsel %vm1383, %v5116, 0
        %v5141 = vsel %vm1383, %v5118, 0
        %5143 = vmatprep.subr.bf16.mxu0 0
        %5144 = vmatpush1.bf16.xpose.msra.mxu0 0
        %5145 = vmatprep.subr.bf16.mxu0 0
        %5146 = vmatpush1.bf16.xpose.msra.mxu0 0
        %5147 = vmatprep.subr.bf16.mxu0 0
        %5148 = vmatpush1.bf16.xpose.msra.mxu0 0
        %5149 = vmatprep.subr.bf16.mxu0 0
        %5150 = vmatpush1.bf16.xpose.msra.mxu0 0
        %5151 = vmatprep.subr.bf16.mxu0 0
        %5152 = vmatpush1.bf16.xpose.msra.mxu0 %v5141
        %5153 = vmatprep.subr.bf16.mxu0 0
        %5154 = vmatpush1.bf16.xpose.msra.mxu0 %v5138
        %5155 = vmatprep.subr.bf16.mxu0 0
        %5156 = vmatpush1.bf16.xpose.msra.mxu0 %v5135
        %5157 = vmatprep.subr.bf16.mxu0 0
        %5158 = vmatpush1.bf16.xpose.msra.mxu0 %v5132
        %5159 = vmatprep.subr.bf16.mxu0 0
        %5160 = vmatpush2.bf16.xpose.msra.mxu0 0
        %5161 = vmatprep.subr.bf16.mxu0 0
        %5162 = vmatpush2.bf16.xpose.msra.mxu0 0
        %5163 = vmatprep.subr.bf16.mxu0 0
        %5164 = vmatpush2.bf16.xpose.msra.mxu0 0
        %5165 = vmatprep.subr.bf16.mxu0 0
        %5166 = vmatpush2.bf16.xpose.msra.mxu0 0
        %5167 = vmatprep.subr.bf16.mxu0 0
        %5168 = vmatpush2.bf16.xpose.msra.mxu0 0
        %5169 = vmatprep.subr.bf16.mxu0 0
        %5170 = vmatpush2.bf16.xpose.msra.mxu0 0
        %5171 = vmatprep.subr.bf16.mxu0 0
        %5172 = vmatpush2.bf16.xpose.msra.mxu0 0
        %5173 = vmatprep.subr.bf16.mxu0 0
        %5174 = vmatpush2.bf16.xpose.msra.mxu0 0
        %5175 = vmatprep.mubr.bf16.mxu0 0
        %5176 = vmatmul.mubr.bf16.gmra.mxu0 %v5120
        %v5177 = vpop.f32.mrf.mxu0
        %v5178 = vadd.f32 0.0, %v5177
        %v5179 = vpop.f32.mrf.mxu0
        %v5180 = vpop.f32.mrf.mxu0
        %v5181 = vadd.f32 0.0, %v5180
        %v5182 = vpop.f32.mrf.mxu0
        %5183 = vmatprep.mubr.bf16.mxu0 0
        %5184 = vmatmul.mubr.bf16.gmra.mxu0 %v5123
        %v5185 = vpop.f32.mrf.mxu0
        %v5186 = vadd.f32 0.0, %v5185
        %v5187 = vpop.f32.mrf.mxu0
        %v5188 = vpop.f32.mrf.mxu0
        %v5189 = vadd.f32 0.0, %v5188
        %v5190 = vpop.f32.mrf.mxu0
        %5191 = vmatprep.mubr.bf16.mxu0 0
        %5192 = vmatmul.mubr.bf16.gmra.mxu0 %v5126
        %v5193 = vpop.f32.mrf.mxu0
        %v5194 = vadd.f32 0.0, %v5193
        %v5195 = vpop.f32.mrf.mxu0
        %v5196 = vpop.f32.mrf.mxu0
        %v5197 = vadd.f32 0.0, %v5196
        %v5198 = vpop.f32.mrf.mxu0
        %5199 = vmatprep.mubr.bf16.mxu0 0
        %5200 = vmatmul.mubr.bf16.gmra.mxu0 %v5129
        %v5201 = vpop.f32.mrf.mxu0
        %v5202 = vadd.f32 0.0, %v5201
        %v5203 = vpop.f32.mrf.mxu0
        %v5204 = vpop.f32.mrf.mxu0
        %v5205 = vadd.f32 0.0, %v5204
        %v5206 = vpop.f32.mrf.mxu0
        %5207 = vdwg.mxu0
        %v5208 = vsel %vm1473, %v5178, -inf
        %5209 = vmax.xlane.f32.xlu0 %v5208
        %v5210 = vpop.xlane.xlu0 %5209
        %v5211 = vsel %vm1473, %v5181, -inf
        %5212 = vmax.xlane.f32.xlu0 %v5211
        %v5213 = vpop.xlane.xlu0 %5212
        %v5214 = vsel %vm1473, %v5186, -inf
        %5215 = vmax.xlane.f32.xlu0 %v5214
        %v5216 = vpop.xlane.xlu0 %5215
        %v5217 = vsel %vm1473, %v5189, -inf
        %5218 = vmax.xlane.f32.xlu0 %v5217
        %v5219 = vpop.xlane.xlu0 %5218
        %v5220 = vsel %vm1473, %v5194, -inf
        %5221 = vmax.xlane.f32.xlu0 %v5220
        %v5222 = vpop.xlane.xlu0 %5221
        %v5223 = vsel %vm1473, %v5197, -inf
        %5224 = vmax.xlane.f32.xlu0 %v5223
        %v5225 = vpop.xlane.xlu0 %5224
        %v5226 = vsel %vm1473, %v5202, -inf
        %5227 = vmax.xlane.f32.xlu0 %v5226
        %v5228 = vpop.xlane.xlu0 %5227
        %v5229 = vsel %vm1473, %v5205, -inf
        %5230 = vmax.xlane.f32.xlu0 %v5229
        %v5231 = vpop.xlane.xlu0 %5230
        %v5232 = vsub.f32 %v5178, %v5210
        %v5233 = vsub.f32 %v5181, %v5213
        %v5234 = vsub.f32 %v5186, %v5216
        %v5235 = vsub.f32 %v5189, %v5219
        %v5236 = vsub.f32 %v5194, %v5222
        %v5237 = vsub.f32 %v5197, %v5225
        %v5238 = vsub.f32 %v5202, %v5228
        %v5239 = vsub.f32 %v5205, %v5231
        %v5240 = vmul.f32 %v5232, 1.442695
        %v5241 = vpow.pop %v5240
        %v5242 = vmul.f32 %v5233, 1.442695
        %v5243 = vpow.pop %v5242
        %v5244 = vmul.f32 %v5234, 1.442695
        %v5245 = vpow.pop %v5244
        %v5246 = vmul.f32 %v5235, 1.442695
        %v5247 = vpow.pop %v5246
        %v5248 = vmul.f32 %v5236, 1.442695
        %v5249 = vpow.pop %v5248
        %v5250 = vmul.f32 %v5237, 1.442695
        %v5251 = vpow.pop %v5250
        %v5252 = vmul.f32 %v5238, 1.442695
        %v5253 = vpow.pop %v5252
        %v5254 = vmul.f32 %v5239, 1.442695
        %v5255 = vpow.pop %v5254
        %v5256 = vsel %vm1473, %v5241, 0.0
        %5257 = vadd.xlane.f32.xlu0 %v5256
        %v5258 = vpop.xlane.xlu0 %5257
        %v5259 = vsel %vm1473, %v5243, 0.0
        %5260 = vadd.xlane.f32.xlu0 %v5259
        %v5261 = vpop.xlane.xlu0 %5260
        %v5262 = vsel %vm1473, %v5245, 0.0
        %5263 = vadd.xlane.f32.xlu0 %v5262
        %v5264 = vpop.xlane.xlu0 %5263
        %v5265 = vsel %vm1473, %v5247, 0.0
        %5266 = vadd.xlane.f32.xlu0 %v5265
        %v5267 = vpop.xlane.xlu0 %5266
        %v5268 = vsel %vm1473, %v5249, 0.0
        %5269 = vadd.xlane.f32.xlu0 %v5268
        %v5270 = vpop.xlane.xlu0 %5269
        %v5271 = vsel %vm1473, %v5251, 0.0
        %5272 = vadd.xlane.f32.xlu0 %v5271
        %v5273 = vpop.xlane.xlu0 %5272
        %v5274 = vsel %vm1473, %v5253, 0.0
        %5275 = vadd.xlane.f32.xlu0 %v5274
        %v5276 = vpop.xlane.xlu0 %5275
        %v5277 = vsel %vm1473, %v5255, 0.0
        %5278 = vadd.xlane.f32.xlu0 %v5277
        %v5279 = vpop.xlane.xlu0 %5278
        %v5280 = vrcp.pop %v5258
        %v5281 = vrcp.pop %v5261
        %v5282 = vrcp.pop %v5264
        %v5283 = vrcp.pop %v5267
        %v5284 = vrcp.pop %v5270
        %v5285 = vrcp.pop %v5273
        %v5286 = vrcp.pop %v5276
        %v5287 = vrcp.pop %v5279
        %v5288 = vmul.f32 %v5241, %v5280
        %v5289 = vmul.f32 %v5243, %v5281
        %v5290 = vmul.f32 %v5245, %v5282
        %v5291 = vmul.f32 %v5247, %v5283
        %v5292 = vmul.f32 %v5249, %v5284
        %v5293 = vmul.f32 %v5251, %v5285
        %v5294 = vmul.f32 %v5253, %v5286
        %v5295 = vmul.f32 %v5255, %v5287
        %v5296 = vpack.c.bf16 %v5289, %v5288
        %v5297 = vpack.c.bf16 %v5291, %v5290
        %v5298 = vpack.c.bf16 %v5293, %v5292
        %v5299 = vpack.c.bf16 %v5295, %v5294
        %v5308 = vunpack.c.l.b16 %v5055
        %v5309 = vunpack.c.l.b16 %v5056
        %v5310 = vunpack.c.l.b16 %v5057
        %v5311 = vunpack.c.l.b16 %v5058
        %v5312 = vunpack.c.l.b16 %v5059
        %v5313 = vunpack.c.l.b16 %v5060
        %v5314 = vunpack.c.l.b16 %v5061
        %v5315 = vunpack.c.l.b16 %v5062
        %v5316 = vpack.c.b16 %v5309, %v5308
        %v5317 = vpack.c.b16 %v5311, %v5310
        %v5318 = vpack.c.b16 %v5313, %v5312
        %v5319 = vpack.c.b16 %v5315, %v5314
        %5320 = vrot.lane.b32.xlu0 %v5316, 96
        %v5321 = vpop.permute.xlu0 %5320
        %5322 = vrot.lane.b32.xlu0 %v5317, 96
        %v5323 = vpop.permute.xlu0 %5322
        %5324 = vrot.lane.b32.xlu0 %v5318, 96
        %v5325 = vpop.permute.xlu0 %5324
        %5326 = vrot.lane.b32.xlu0 %v5319, 96
        %v5327 = vpop.permute.xlu0 %5326
        %v5333 = vsel %vm1473, %v5296, 0
        %v5336 = vsel %vm1473, %v5297, 0
        %v5339 = vsel %vm1473, %v5298, 0
        %v5342 = vsel %vm1473, %v5299, 0
        %5344 = vmatprep.subr.bf16.mxu0 0
        %5345 = vmatpush1.bf16.msra.mxu0 0
        %5346 = vmatprep.subr.bf16.mxu0 0
        %5347 = vmatpush1.bf16.msra.mxu0 0
        %5348 = vmatprep.subr.bf16.mxu0 0
        %5349 = vmatpush1.bf16.msra.mxu0 0
        %5350 = vmatprep.subr.bf16.mxu0 0
        %5351 = vmatpush1.bf16.msra.mxu0 0
        %5352 = vmatprep.subr.bf16.mxu0 0
        %5353 = vmatpush1.bf16.msra.mxu0 %v5327
        %5354 = vmatprep.subr.bf16.mxu0 0
        %5355 = vmatpush1.bf16.msra.mxu0 %v5325
        %5356 = vmatprep.subr.bf16.mxu0 0
        %5357 = vmatpush1.bf16.msra.mxu0 %v5323
        %5358 = vmatprep.subr.bf16.mxu0 0
        %5359 = vmatpush1.bf16.msra.mxu0 %v5321
        %5360 = vmatprep.subr.bf16.mxu0 0
        %5361 = vmatpush2.bf16.msra.mxu0 0
        %5362 = vmatprep.subr.bf16.mxu0 0
        %5363 = vmatpush2.bf16.msra.mxu0 0
        %5364 = vmatprep.subr.bf16.mxu0 0
        %5365 = vmatpush2.bf16.msra.mxu0 0
        %5366 = vmatprep.subr.bf16.mxu0 0
        %5367 = vmatpush2.bf16.msra.mxu0 0
        %5368 = vmatprep.subr.bf16.mxu0 0
        %5369 = vmatpush2.bf16.msra.mxu0 0
        %5370 = vmatprep.subr.bf16.mxu0 0
        %5371 = vmatpush2.bf16.msra.mxu0 0
        %5372 = vmatprep.subr.bf16.mxu0 0
        %5373 = vmatpush2.bf16.msra.mxu0 0
        %5374 = vmatprep.subr.bf16.mxu0 0
        %5375 = vmatpush2.bf16.msra.mxu0 0
        %5376 = vmatprep.mubr.bf16.mxu0 0
        %5377 = vmatmul.mubr.bf16.gmra.mxu0 %v5333
        %v5378 = vpop.f32.mrf.mxu0
        %v5379 = vadd.f32 0.0, %v5378
        %v5380 = vpop.f32.mrf.mxu0
        %v5381 = vpop.f32.mrf.mxu0
        %v5382 = vadd.f32 0.0, %v5381
        %v5383 = vpop.f32.mrf.mxu0
        %5384 = vmatprep.mubr.bf16.mxu0 0
        %5385 = vmatmul.mubr.bf16.gmra.mxu0 %v5336
        %v5386 = vpop.f32.mrf.mxu0
        %v5387 = vadd.f32 0.0, %v5386
        %v5388 = vpop.f32.mrf.mxu0
        %v5389 = vpop.f32.mrf.mxu0
        %v5390 = vadd.f32 0.0, %v5389
        %v5391 = vpop.f32.mrf.mxu0
        %5392 = vmatprep.mubr.bf16.mxu0 0
        %5393 = vmatmul.mubr.bf16.gmra.mxu0 %v5339
        %v5394 = vpop.f32.mrf.mxu0
        %v5395 = vadd.f32 0.0, %v5394
        %v5396 = vpop.f32.mrf.mxu0
        %v5397 = vpop.f32.mrf.mxu0
        %v5398 = vadd.f32 0.0, %v5397
        %v5399 = vpop.f32.mrf.mxu0
        %5400 = vmatprep.mubr.bf16.mxu0 0
        %5401 = vmatmul.mubr.bf16.gmra.mxu0 %v5342
        %v5402 = vpop.f32.mrf.mxu0
        %v5403 = vadd.f32 0.0, %v5402
        %v5404 = vpop.f32.mrf.mxu0
        %v5405 = vpop.f32.mrf.mxu0
        %v5406 = vadd.f32 0.0, %v5405
        %v5407 = vpop.f32.mrf.mxu0
        %5408 = vdwg.mxu0
        %v5409 = vpack.c.bf16 %v5382, %v5379
        %v5410 = vpack.c.bf16 %v5390, %v5387
        %v5411 = vpack.c.bf16 %v5398, %v5395
        %v5412 = vpack.c.bf16 %v5406, %v5403
        %v5417 = vunpack.c.l.b16 %v5409
        %v5418 = vunpack.c.h.b16 %v5409
        %v5419 = vunpack.c.l.b16 %v5410
        %v5420 = vunpack.c.h.b16 %v5410
        %v5421 = vunpack.c.l.b16 %v5411
        %v5422 = vunpack.c.h.b16 %v5411
        %v5423 = vunpack.c.l.b16 %v5412
        %v5424 = vunpack.c.h.b16 %v5412
        %v5425 = vpack.c.b16 %v5417, %v5417
        %v5426 = vpack.c.b16 %v5418, %v5418
        %v5427 = vpack.c.b16 %v5419, %v5419
        %v5428 = vpack.c.b16 %v5420, %v5420
        %v5429 = vpack.c.b16 %v5421, %v5421
        %v5430 = vpack.c.b16 %v5422, %v5422
        %v5431 = vpack.c.b16 %v5423, %v5423
        %v5432 = vpack.c.b16 %v5424, %v5424
        %5433 = vrot.lane.b32.xlu0 %v5425, 32
        %v5434 = vpop.permute.xlu0 %5433
        %5435 = vrot.lane.b32.xlu0 %v5426, 32
        %v5436 = vpop.permute.xlu0 %5435
        %5437 = vrot.lane.b32.xlu0 %v5427, 32
        %v5438 = vpop.permute.xlu0 %5437
        %5439 = vrot.lane.b32.xlu0 %v5428, 32
        %v5440 = vpop.permute.xlu0 %5439
        %5441 = vrot.lane.b32.xlu0 %v5429, 32
        %v5442 = vpop.permute.xlu0 %5441
        %5443 = vrot.lane.b32.xlu0 %v5430, 32
        %v5444 = vpop.permute.xlu0 %5443
        %5445 = vrot.lane.b32.xlu0 %v5431, 32
        %v5446 = vpop.permute.xlu0 %5445
        %5447 = vrot.lane.b32.xlu0 %v5432, 32
        %v5448 = vpop.permute.xlu0 %5447
        %5457 = vst.msk [vmem:[#allocation3 + $0x40] sm:$0xf] %vm2126, %v5434
        %5458 = vst.msk [vmem:[#allocation3 + $0x44] sm:$0xf] %vm2126, %v5436
        %5459 = vst.msk [vmem:[#allocation3 + $0x48] sm:$0xf] %vm2126, %v5438
        %5460 = vst.msk [vmem:[#allocation3 + $0x4c] sm:$0xf] %vm2126, %v5440
        %5461 = vst.msk [vmem:[#allocation3 + $0x50] sm:$0xf] %vm2126, %v5442
        %5462 = vst.msk [vmem:[#allocation3 + $0x54] sm:$0xf] %vm2126, %v5444
        %5463 = vst.msk [vmem:[#allocation3 + $0x58] sm:$0xf] %vm2126, %v5446
        %5464 = vst.msk [vmem:[#allocation3 + $0x5c] sm:$0xf] %vm2126, %v5448
        %v5465 = vld [vmem:[#allocation2 + $0xc0] sm:$0xf]
        %v5466 = vld [vmem:[#allocation2 + $0xcc] sm:$0xf]
        %v5467 = vld [vmem:[#allocation2 + $0xd8] sm:$0xf]
        %v5468 = vld [vmem:[#allocation2 + $0xe4] sm:$0xf]
        %v5469 = vld [vmem:[#allocation2 + $0xf0] sm:$0xf]
        %v5470 = vld [vmem:[#allocation2 + $0xfc] sm:$0xf]
        %v5471 = vld [vmem:[#allocation2 + $0x108] sm:$0xf]
        %v5472 = vld [vmem:[#allocation2 + $0x114] sm:$0xf]
        %v5473 = vld [vmem:[#allocation2 + $0xc4] sm:$0xf]
        %v5474 = vld [vmem:[#allocation2 + $0xd0] sm:$0xf]
        %v5475 = vld [vmem:[#allocation2 + $0xdc] sm:$0xf]
        %v5476 = vld [vmem:[#allocation2 + $0xe8] sm:$0xf]
        %v5477 = vld [vmem:[#allocation2 + $0xf4] sm:$0xf]
        %v5478 = vld [vmem:[#allocation2 + $0x100] sm:$0xf]
        %v5479 = vld [vmem:[#allocation2 + $0x10c] sm:$0xf]
        %v5480 = vld [vmem:[#allocation2 + $0x118] sm:$0xf]
        %v5481 = vld [vmem:[#allocation2 + $0xc8] sm:$0xf]
        %v5482 = vld [vmem:[#allocation2 + $0xd4] sm:$0xf]
        %v5483 = vld [vmem:[#allocation2 + $0xe0] sm:$0xf]
        %v5484 = vld [vmem:[#allocation2 + $0xec] sm:$0xf]
        %v5485 = vld [vmem:[#allocation2 + $0xf8] sm:$0xf]
        %v5486 = vld [vmem:[#allocation2 + $0x104] sm:$0xf]
        %v5487 = vld [vmem:[#allocation2 + $0x110] sm:$0xf]
        %v5488 = vld [vmem:[#allocation2 + $0x11c] sm:$0xf]
        %v5497 = vunpack.c.l.b16 %v5465
        %v5498 = vunpack.c.l.b16 %v5466
        %v5499 = vunpack.c.l.b16 %v5467
        %v5500 = vunpack.c.l.b16 %v5468
        %v5501 = vunpack.c.l.b16 %v5469
        %v5502 = vunpack.c.l.b16 %v5470
        %v5503 = vunpack.c.l.b16 %v5471
        %v5504 = vunpack.c.l.b16 %v5472
        %v5505 = vpack.c.b16 %v5498, %v5497
        %v5506 = vpack.c.b16 %v5500, %v5499
        %v5507 = vpack.c.b16 %v5502, %v5501
        %v5508 = vpack.c.b16 %v5504, %v5503
        %5509 = vrot.lane.b32.xlu0 %v5505, 64
        %v5510 = vpop.permute.xlu0 %5509
        %5511 = vrot.lane.b32.xlu0 %v5506, 64
        %v5512 = vpop.permute.xlu0 %5511
        %5513 = vrot.lane.b32.xlu0 %v5507, 64
        %v5514 = vpop.permute.xlu0 %5513
        %5515 = vrot.lane.b32.xlu0 %v5508, 64
        %v5516 = vpop.permute.xlu0 %5515
        %v5525 = vunpack.c.l.b16 %v5473
        %v5526 = vunpack.c.l.b16 %v5474
        %v5527 = vunpack.c.l.b16 %v5475
        %v5528 = vunpack.c.l.b16 %v5476
        %v5529 = vunpack.c.l.b16 %v5477
        %v5530 = vunpack.c.l.b16 %v5478
        %v5531 = vunpack.c.l.b16 %v5479
        %v5532 = vunpack.c.l.b16 %v5480
        %v5533 = vpack.c.b16 %v5526, %v5525
        %v5534 = vpack.c.b16 %v5528, %v5527
        %v5535 = vpack.c.b16 %v5530, %v5529
        %v5536 = vpack.c.b16 %v5532, %v5531
        %5537 = vrot.lane.b32.xlu0 %v5533, 64
        %v5538 = vpop.permute.xlu0 %5537
        %5539 = vrot.lane.b32.xlu0 %v5534, 64
        %v5540 = vpop.permute.xlu0 %5539
        %5541 = vrot.lane.b32.xlu0 %v5535, 64
        %v5542 = vpop.permute.xlu0 %5541
        %5543 = vrot.lane.b32.xlu0 %v5536, 64
        %v5544 = vpop.permute.xlu0 %5543
        %v5546 = vsel %vm1383, %v5510, 0
        %v5549 = vsel %vm1383, %v5512, 0
        %v5552 = vsel %vm1383, %v5514, 0
        %v5555 = vsel %vm1383, %v5516, 0
        %v5558 = vsel %vm1383, %v5538, 0
        %v5561 = vsel %vm1383, %v5540, 0
        %v5564 = vsel %vm1383, %v5542, 0
        %v5567 = vsel %vm1383, %v5544, 0
        %5569 = vmatprep.subr.bf16.mxu0 0
        %5570 = vmatpush1.bf16.xpose.msra.mxu0 0
        %5571 = vmatprep.subr.bf16.mxu0 0
        %5572 = vmatpush1.bf16.xpose.msra.mxu0 0
        %5573 = vmatprep.subr.bf16.mxu0 0
        %5574 = vmatpush1.bf16.xpose.msra.mxu0 0
        %5575 = vmatprep.subr.bf16.mxu0 0
        %5576 = vmatpush1.bf16.xpose.msra.mxu0 0
        %5577 = vmatprep.subr.bf16.mxu0 0
        %5578 = vmatpush1.bf16.xpose.msra.mxu0 %v5567
        %5579 = vmatprep.subr.bf16.mxu0 0
        %5580 = vmatpush1.bf16.xpose.msra.mxu0 %v5564
        %5581 = vmatprep.subr.bf16.mxu0 0
        %5582 = vmatpush1.bf16.xpose.msra.mxu0 %v5561
        %5583 = vmatprep.subr.bf16.mxu0 0
        %5584 = vmatpush1.bf16.xpose.msra.mxu0 %v5558
        %5585 = vmatprep.subr.bf16.mxu0 0
        %5586 = vmatpush2.bf16.xpose.msra.mxu0 0
        %5587 = vmatprep.subr.bf16.mxu0 0
        %5588 = vmatpush2.bf16.xpose.msra.mxu0 0
        %5589 = vmatprep.subr.bf16.mxu0 0
        %5590 = vmatpush2.bf16.xpose.msra.mxu0 0
        %5591 = vmatprep.subr.bf16.mxu0 0
        %5592 = vmatpush2.bf16.xpose.msra.mxu0 0
        %5593 = vmatprep.subr.bf16.mxu0 0
        %5594 = vmatpush2.bf16.xpose.msra.mxu0 0
        %5595 = vmatprep.subr.bf16.mxu0 0
        %5596 = vmatpush2.bf16.xpose.msra.mxu0 0
        %5597 = vmatprep.subr.bf16.mxu0 0
        %5598 = vmatpush2.bf16.xpose.msra.mxu0 0
        %5599 = vmatprep.subr.bf16.mxu0 0
        %5600 = vmatpush2.bf16.xpose.msra.mxu0 0
        %5601 = vmatprep.mubr.bf16.mxu0 0
        %5602 = vmatmul.mubr.bf16.gmra.mxu0 %v5546
        %v5603 = vpop.f32.mrf.mxu0
        %v5604 = vadd.f32 0.0, %v5603
        %v5605 = vpop.f32.mrf.mxu0
        %v5606 = vpop.f32.mrf.mxu0
        %v5607 = vadd.f32 0.0, %v5606
        %v5608 = vpop.f32.mrf.mxu0
        %5609 = vmatprep.mubr.bf16.mxu0 0
        %5610 = vmatmul.mubr.bf16.gmra.mxu0 %v5549
        %v5611 = vpop.f32.mrf.mxu0
        %v5612 = vadd.f32 0.0, %v5611
        %v5613 = vpop.f32.mrf.mxu0
        %v5614 = vpop.f32.mrf.mxu0
        %v5615 = vadd.f32 0.0, %v5614
        %v5616 = vpop.f32.mrf.mxu0
        %5617 = vmatprep.mubr.bf16.mxu0 0
        %5618 = vmatmul.mubr.bf16.gmra.mxu0 %v5552
        %v5619 = vpop.f32.mrf.mxu0
        %v5620 = vadd.f32 0.0, %v5619
        %v5621 = vpop.f32.mrf.mxu0
        %v5622 = vpop.f32.mrf.mxu0
        %v5623 = vadd.f32 0.0, %v5622
        %v5624 = vpop.f32.mrf.mxu0
        %5625 = vmatprep.mubr.bf16.mxu0 0
        %5626 = vmatmul.mubr.bf16.gmra.mxu0 %v5555
        %v5627 = vpop.f32.mrf.mxu0
        %v5628 = vadd.f32 0.0, %v5627
        %v5629 = vpop.f32.mrf.mxu0
        %v5630 = vpop.f32.mrf.mxu0
        %v5631 = vadd.f32 0.0, %v5630
        %v5632 = vpop.f32.mrf.mxu0
        %5633 = vdwg.mxu0
        %v5634 = vsel %vm1473, %v5604, -inf
        %5635 = vmax.xlane.f32.xlu0 %v5634
        %v5636 = vpop.xlane.xlu0 %5635
        %v5637 = vsel %vm1473, %v5607, -inf
        %5638 = vmax.xlane.f32.xlu0 %v5637
        %v5639 = vpop.xlane.xlu0 %5638
        %v5640 = vsel %vm1473, %v5612, -inf
        %5641 = vmax.xlane.f32.xlu0 %v5640
        %v5642 = vpop.xlane.xlu0 %5641
        %v5643 = vsel %vm1473, %v5615, -inf
        %5644 = vmax.xlane.f32.xlu0 %v5643
        %v5645 = vpop.xlane.xlu0 %5644
        %v5646 = vsel %vm1473, %v5620, -inf
        %5647 = vmax.xlane.f32.xlu0 %v5646
        %v5648 = vpop.xlane.xlu0 %5647
        %v5649 = vsel %vm1473, %v5623, -inf
        %5650 = vmax.xlane.f32.xlu0 %v5649
        %v5651 = vpop.xlane.xlu0 %5650
        %v5652 = vsel %vm1473, %v5628, -inf
        %5653 = vmax.xlane.f32.xlu0 %v5652
        %v5654 = vpop.xlane.xlu0 %5653
        %v5655 = vsel %vm1473, %v5631, -inf
        %5656 = vmax.xlane.f32.xlu0 %v5655
        %v5657 = vpop.xlane.xlu0 %5656
        %v5658 = vsub.f32 %v5604, %v5636
        %v5659 = vsub.f32 %v5607, %v5639
        %v5660 = vsub.f32 %v5612, %v5642
        %v5661 = vsub.f32 %v5615, %v5645
        %v5662 = vsub.f32 %v5620, %v5648
        %v5663 = vsub.f32 %v5623, %v5651
        %v5664 = vsub.f32 %v5628, %v5654
        %v5665 = vsub.f32 %v5631, %v5657
        %v5666 = vmul.f32 %v5658, 1.442695
        %v5667 = vpow.pop %v5666
        %v5668 = vmul.f32 %v5659, 1.442695
        %v5669 = vpow.pop %v5668
        %v5670 = vmul.f32 %v5660, 1.442695
        %v5671 = vpow.pop %v5670
        %v5672 = vmul.f32 %v5661, 1.442695
        %v5673 = vpow.pop %v5672
        %v5674 = vmul.f32 %v5662, 1.442695
        %v5675 = vpow.pop %v5674
        %v5676 = vmul.f32 %v5663, 1.442695
        %v5677 = vpow.pop %v5676
        %v5678 = vmul.f32 %v5664, 1.442695
        %v5679 = vpow.pop %v5678
        %v5680 = vmul.f32 %v5665, 1.442695
        %v5681 = vpow.pop %v5680
        %v5682 = vsel %vm1473, %v5667, 0.0
        %5683 = vadd.xlane.f32.xlu0 %v5682
        %v5684 = vpop.xlane.xlu0 %5683
        %v5685 = vsel %vm1473, %v5669, 0.0
        %5686 = vadd.xlane.f32.xlu0 %v5685
        %v5687 = vpop.xlane.xlu0 %5686
        %v5688 = vsel %vm1473, %v5671, 0.0
        %5689 = vadd.xlane.f32.xlu0 %v5688
        %v5690 = vpop.xlane.xlu0 %5689
        %v5691 = vsel %vm1473, %v5673, 0.0
        %5692 = vadd.xlane.f32.xlu0 %v5691
        %v5693 = vpop.xlane.xlu0 %5692
        %v5694 = vsel %vm1473, %v5675, 0.0
        %5695 = vadd.xlane.f32.xlu0 %v5694
        %v5696 = vpop.xlane.xlu0 %5695
        %v5697 = vsel %vm1473, %v5677, 0.0
        %5698 = vadd.xlane.f32.xlu0 %v5697
        %v5699 = vpop.xlane.xlu0 %5698
        %v5700 = vsel %vm1473, %v5679, 0.0
        %5701 = vadd.xlane.f32.xlu0 %v5700
        %v5702 = vpop.xlane.xlu0 %5701
        %v5703 = vsel %vm1473, %v5681, 0.0
        %5704 = vadd.xlane.f32.xlu0 %v5703
        %v5705 = vpop.xlane.xlu0 %5704
        %v5706 = vrcp.pop %v5684
        %v5707 = vrcp.pop %v5687
        %v5708 = vrcp.pop %v5690
        %v5709 = vrcp.pop %v5693
        %v5710 = vrcp.pop %v5696
        %v5711 = vrcp.pop %v5699
        %v5712 = vrcp.pop %v5702
        %v5713 = vrcp.pop %v5705
        %v5714 = vmul.f32 %v5667, %v5706
        %v5715 = vmul.f32 %v5669, %v5707
        %v5716 = vmul.f32 %v5671, %v5708
        %v5717 = vmul.f32 %v5673, %v5709
        %v5718 = vmul.f32 %v5675, %v5710
        %v5719 = vmul.f32 %v5677, %v5711
        %v5720 = vmul.f32 %v5679, %v5712
        %v5721 = vmul.f32 %v5681, %v5713
        %v5722 = vpack.c.bf16 %v5715, %v5714
        %v5723 = vpack.c.bf16 %v5717, %v5716
        %v5724 = vpack.c.bf16 %v5719, %v5718
        %v5725 = vpack.c.bf16 %v5721, %v5720
        %v5734 = vunpack.c.l.b16 %v5481
        %v5735 = vunpack.c.l.b16 %v5482
        %v5736 = vunpack.c.l.b16 %v5483
        %v5737 = vunpack.c.l.b16 %v5484
        %v5738 = vunpack.c.l.b16 %v5485
        %v5739 = vunpack.c.l.b16 %v5486
        %v5740 = vunpack.c.l.b16 %v5487
        %v5741 = vunpack.c.l.b16 %v5488
        %v5742 = vpack.c.b16 %v5735, %v5734
        %v5743 = vpack.c.b16 %v5737, %v5736
        %v5744 = vpack.c.b16 %v5739, %v5738
        %v5745 = vpack.c.b16 %v5741, %v5740
        %5746 = vrot.lane.b32.xlu0 %v5742, 64
        %v5747 = vpop.permute.xlu0 %5746
        %5748 = vrot.lane.b32.xlu0 %v5743, 64
        %v5749 = vpop.permute.xlu0 %5748
        %5750 = vrot.lane.b32.xlu0 %v5744, 64
        %v5751 = vpop.permute.xlu0 %5750
        %5752 = vrot.lane.b32.xlu0 %v5745, 64
        %v5753 = vpop.permute.xlu0 %5752
        %v5759 = vsel %vm1473, %v5722, 0
        %v5762 = vsel %vm1473, %v5723, 0
        %v5765 = vsel %vm1473, %v5724, 0
        %v5768 = vsel %vm1473, %v5725, 0
        %5770 = vmatprep.subr.bf16.mxu0 0
        %5771 = vmatpush1.bf16.msra.mxu0 0
        %5772 = vmatprep.subr.bf16.mxu0 0
        %5773 = vmatpush1.bf16.msra.mxu0 0
        %5774 = vmatprep.subr.bf16.mxu0 0
        %5775 = vmatpush1.bf16.msra.mxu0 0
        %5776 = vmatprep.subr.bf16.mxu0 0
        %5777 = vmatpush1.bf16.msra.mxu0 0
        %5778 = vmatprep.subr.bf16.mxu0 0
        %5779 = vmatpush1.bf16.msra.mxu0 %v5753
        %5780 = vmatprep.subr.bf16.mxu0 0
        %5781 = vmatpush1.bf16.msra.mxu0 %v5751
        %5782 = vmatprep.subr.bf16.mxu0 0
        %5783 = vmatpush1.bf16.msra.mxu0 %v5749
        %5784 = vmatprep.subr.bf16.mxu0 0
        %5785 = vmatpush1.bf16.msra.mxu0 %v5747
        %5786 = vmatprep.subr.bf16.mxu0 0
        %5787 = vmatpush2.bf16.msra.mxu0 0
        %5788 = vmatprep.subr.bf16.mxu0 0
        %5789 = vmatpush2.bf16.msra.mxu0 0
        %5790 = vmatprep.subr.bf16.mxu0 0
        %5791 = vmatpush2.bf16.msra.mxu0 0
        %5792 = vmatprep.subr.bf16.mxu0 0
        %5793 = vmatpush2.bf16.msra.mxu0 0
        %5794 = vmatprep.subr.bf16.mxu0 0
        %5795 = vmatpush2.bf16.msra.mxu0 0
        %5796 = vmatprep.subr.bf16.mxu0 0
        %5797 = vmatpush2.bf16.msra.mxu0 0
        %5798 = vmatprep.subr.bf16.mxu0 0
        %5799 = vmatpush2.bf16.msra.mxu0 0
        %5800 = vmatprep.subr.bf16.mxu0 0
        %5801 = vmatpush2.bf16.msra.mxu0 0
        %5802 = vmatprep.mubr.bf16.mxu0 0
        %5803 = vmatmul.mubr.bf16.gmra.mxu0 %v5759
        %v5804 = vpop.f32.mrf.mxu0
        %v5805 = vadd.f32 0.0, %v5804
        %v5806 = vpop.f32.mrf.mxu0
        %v5807 = vpop.f32.mrf.mxu0
        %v5808 = vadd.f32 0.0, %v5807
        %v5809 = vpop.f32.mrf.mxu0
        %5810 = vmatprep.mubr.bf16.mxu0 0
        %5811 = vmatmul.mubr.bf16.gmra.mxu0 %v5762
        %v5812 = vpop.f32.mrf.mxu0
        %v5813 = vadd.f32 0.0, %v5812
        %v5814 = vpop.f32.mrf.mxu0
        %v5815 = vpop.f32.mrf.mxu0
        %v5816 = vadd.f32 0.0, %v5815
        %v5817 = vpop.f32.mrf.mxu0
        %5818 = vmatprep.mubr.bf16.mxu0 0
        %5819 = vmatmul.mubr.bf16.gmra.mxu0 %v5765
        %v5820 = vpop.f32.mrf.mxu0
        %v5821 = vadd.f32 0.0, %v5820
        %v5822 = vpop.f32.mrf.mxu0
        %v5823 = vpop.f32.mrf.mxu0
        %v5824 = vadd.f32 0.0, %v5823
        %v5825 = vpop.f32.mrf.mxu0
        %5826 = vmatprep.mubr.bf16.mxu0 0
        %5827 = vmatmul.mubr.bf16.gmra.mxu0 %v5768
        %v5828 = vpop.f32.mrf.mxu0
        %v5829 = vadd.f32 0.0, %v5828
        %v5830 = vpop.f32.mrf.mxu0
        %v5831 = vpop.f32.mrf.mxu0
        %v5832 = vadd.f32 0.0, %v5831
        %v5833 = vpop.f32.mrf.mxu0
        %5834 = vdwg.mxu0
        %v5835 = vpack.c.bf16 %v5808, %v5805
        %v5836 = vpack.c.bf16 %v5816, %v5813
        %v5837 = vpack.c.bf16 %v5824, %v5821
        %v5838 = vpack.c.bf16 %v5832, %v5829
        %v5843 = vunpack.c.l.b16 %v5835
        %v5844 = vunpack.c.h.b16 %v5835
        %v5845 = vunpack.c.l.b16 %v5836
        %v5846 = vunpack.c.h.b16 %v5836
        %v5847 = vunpack.c.l.b16 %v5837
        %v5848 = vunpack.c.h.b16 %v5837
        %v5849 = vunpack.c.l.b16 %v5838
        %v5850 = vunpack.c.h.b16 %v5838
        %v5851 = vpack.c.b16 %v5843, %v5843
        %v5852 = vpack.c.b16 %v5844, %v5844
        %v5853 = vpack.c.b16 %v5845, %v5845
        %v5854 = vpack.c.b16 %v5846, %v5846
        %v5855 = vpack.c.b16 %v5847, %v5847
        %v5856 = vpack.c.b16 %v5848, %v5848
        %v5857 = vpack.c.b16 %v5849, %v5849
        %v5858 = vpack.c.b16 %v5850, %v5850
        %5859 = vrot.lane.b32.xlu0 %v5851, 64
        %v5860 = vpop.permute.xlu0 %5859
        %5861 = vrot.lane.b32.xlu0 %v5852, 64
        %v5862 = vpop.permute.xlu0 %5861
        %5863 = vrot.lane.b32.xlu0 %v5853, 64
        %v5864 = vpop.permute.xlu0 %5863
        %5865 = vrot.lane.b32.xlu0 %v5854, 64
        %v5866 = vpop.permute.xlu0 %5865
        %5867 = vrot.lane.b32.xlu0 %v5855, 64
        %v5868 = vpop.permute.xlu0 %5867
        %5869 = vrot.lane.b32.xlu0 %v5856, 64
        %v5870 = vpop.permute.xlu0 %5869
        %5871 = vrot.lane.b32.xlu0 %v5857, 64
        %v5872 = vpop.permute.xlu0 %5871
        %5873 = vrot.lane.b32.xlu0 %v5858, 64
        %v5874 = vpop.permute.xlu0 %5873
        %5883 = vst.msk [vmem:[#allocation3 + $0x40] sm:$0xf] %vm2553, %v5860
        %5884 = vst.msk [vmem:[#allocation3 + $0x44] sm:$0xf] %vm2553, %v5862
        %5885 = vst.msk [vmem:[#allocation3 + $0x48] sm:$0xf] %vm2553, %v5864
        %5886 = vst.msk [vmem:[#allocation3 + $0x4c] sm:$0xf] %vm2553, %v5866
        %5887 = vst.msk [vmem:[#allocation3 + $0x50] sm:$0xf] %vm2553, %v5868
        %5888 = vst.msk [vmem:[#allocation3 + $0x54] sm:$0xf] %vm2553, %v5870
        %5889 = vst.msk [vmem:[#allocation3 + $0x58] sm:$0xf] %vm2553, %v5872
        %5890 = vst.msk [vmem:[#allocation3 + $0x5c] sm:$0xf] %vm2553, %v5874
        %v5891 = vld [vmem:[#allocation2 + $0xc0] sm:$0xf]
        %v5892 = vld [vmem:[#allocation2 + $0xcc] sm:$0xf]
        %v5893 = vld [vmem:[#allocation2 + $0xd8] sm:$0xf]
        %v5894 = vld [vmem:[#allocation2 + $0xe4] sm:$0xf]
        %v5895 = vld [vmem:[#allocation2 + $0xf0] sm:$0xf]
        %v5896 = vld [vmem:[#allocation2 + $0xfc] sm:$0xf]
        %v5897 = vld [vmem:[#allocation2 + $0x108] sm:$0xf]
        %v5898 = vld [vmem:[#allocation2 + $0x114] sm:$0xf]
        %v5899 = vld [vmem:[#allocation2 + $0xc4] sm:$0xf]
        %v5900 = vld [vmem:[#allocation2 + $0xd0] sm:$0xf]
        %v5901 = vld [vmem:[#allocation2 + $0xdc] sm:$0xf]
        %v5902 = vld [vmem:[#allocation2 + $0xe8] sm:$0xf]
        %v5903 = vld [vmem:[#allocation2 + $0xf4] sm:$0xf]
        %v5904 = vld [vmem:[#allocation2 + $0x100] sm:$0xf]
        %v5905 = vld [vmem:[#allocation2 + $0x10c] sm:$0xf]
        %v5906 = vld [vmem:[#allocation2 + $0x118] sm:$0xf]
        %v5907 = vld [vmem:[#allocation2 + $0xc8] sm:$0xf]
        %v5908 = vld [vmem:[#allocation2 + $0xd4] sm:$0xf]
        %v5909 = vld [vmem:[#allocation2 + $0xe0] sm:$0xf]
        %v5910 = vld [vmem:[#allocation2 + $0xec] sm:$0xf]
        %v5911 = vld [vmem:[#allocation2 + $0xf8] sm:$0xf]
        %v5912 = vld [vmem:[#allocation2 + $0x104] sm:$0xf]
        %v5913 = vld [vmem:[#allocation2 + $0x110] sm:$0xf]
        %v5914 = vld [vmem:[#allocation2 + $0x11c] sm:$0xf]
        %v5923 = vunpack.c.l.b16 %v5891
        %v5924 = vunpack.c.l.b16 %v5892
        %v5925 = vunpack.c.l.b16 %v5893
        %v5926 = vunpack.c.l.b16 %v5894
        %v5927 = vunpack.c.l.b16 %v5895
        %v5928 = vunpack.c.l.b16 %v5896
        %v5929 = vunpack.c.l.b16 %v5897
        %v5930 = vunpack.c.l.b16 %v5898
        %v5931 = vpack.c.b16 %v5924, %v5923
        %v5932 = vpack.c.b16 %v5926, %v5925
        %v5933 = vpack.c.b16 %v5928, %v5927
        %v5934 = vpack.c.b16 %v5930, %v5929
        %5935 = vrot.lane.b32.xlu0 %v5931, 32
        %v5936 = vpop.permute.xlu0 %5935
        %5937 = vrot.lane.b32.xlu0 %v5932, 32
        %v5938 = vpop.permute.xlu0 %5937
        %5939 = vrot.lane.b32.xlu0 %v5933, 32
        %v5940 = vpop.permute.xlu0 %5939
        %5941 = vrot.lane.b32.xlu0 %v5934, 32
        %v5942 = vpop.permute.xlu0 %5941
        %v5951 = vunpack.c.l.b16 %v5899
        %v5952 = vunpack.c.l.b16 %v5900
        %v5953 = vunpack.c.l.b16 %v5901
        %v5954 = vunpack.c.l.b16 %v5902
        %v5955 = vunpack.c.l.b16 %v5903
        %v5956 = vunpack.c.l.b16 %v5904
        %v5957 = vunpack.c.l.b16 %v5905
        %v5958 = vunpack.c.l.b16 %v5906
        %v5959 = vpack.c.b16 %v5952, %v5951
        %v5960 = vpack.c.b16 %v5954, %v5953
        %v5961 = vpack.c.b16 %v5956, %v5955
        %v5962 = vpack.c.b16 %v5958, %v5957
        %5963 = vrot.lane.b32.xlu0 %v5959, 32
        %v5964 = vpop.permute.xlu0 %5963
        %5965 = vrot.lane.b32.xlu0 %v5960, 32
        %v5966 = vpop.permute.xlu0 %5965
        %5967 = vrot.lane.b32.xlu0 %v5961, 32
        %v5968 = vpop.permute.xlu0 %5967
        %5969 = vrot.lane.b32.xlu0 %v5962, 32
        %v5970 = vpop.permute.xlu0 %5969
        %v5972 = vsel %vm1383, %v5936, 0
        %v5975 = vsel %vm1383, %v5938, 0
        %v5978 = vsel %vm1383, %v5940, 0
        %v5981 = vsel %vm1383, %v5942, 0
        %v5984 = vsel %vm1383, %v5964, 0
        %v5987 = vsel %vm1383, %v5966, 0
        %v5990 = vsel %vm1383, %v5968, 0
        %v5993 = vsel %vm1383, %v5970, 0
        %5995 = vmatprep.subr.bf16.mxu0 0
        %5996 = vmatpush1.bf16.xpose.msra.mxu0 0
        %5997 = vmatprep.subr.bf16.mxu0 0
        %5998 = vmatpush1.bf16.xpose.msra.mxu0 0
        %5999 = vmatprep.subr.bf16.mxu0 0
        %6000 = vmatpush1.bf16.xpose.msra.mxu0 0
        %6001 = vmatprep.subr.bf16.mxu0 0
        %6002 = vmatpush1.bf16.xpose.msra.mxu0 0
        %6003 = vmatprep.subr.bf16.mxu0 0
        %6004 = vmatpush1.bf16.xpose.msra.mxu0 %v5993
        %6005 = vmatprep.subr.bf16.mxu0 0
        %6006 = vmatpush1.bf16.xpose.msra.mxu0 %v5990
        %6007 = vmatprep.subr.bf16.mxu0 0
        %6008 = vmatpush1.bf16.xpose.msra.mxu0 %v5987
        %6009 = vmatprep.subr.bf16.mxu0 0
        %6010 = vmatpush1.bf16.xpose.msra.mxu0 %v5984
        %6011 = vmatprep.subr.bf16.mxu0 0
        %6012 = vmatpush2.bf16.xpose.msra.mxu0 0
        %6013 = vmatprep.subr.bf16.mxu0 0
        %6014 = vmatpush2.bf16.xpose.msra.mxu0 0
        %6015 = vmatprep.subr.bf16.mxu0 0
        %6016 = vmatpush2.bf16.xpose.msra.mxu0 0
        %6017 = vmatprep.subr.bf16.mxu0 0
        %6018 = vmatpush2.bf16.xpose.msra.mxu0 0
        %6019 = vmatprep.subr.bf16.mxu0 0
        %6020 = vmatpush2.bf16.xpose.msra.mxu0 0
        %6021 = vmatprep.subr.bf16.mxu0 0
        %6022 = vmatpush2.bf16.xpose.msra.mxu0 0
        %6023 = vmatprep.subr.bf16.mxu0 0
        %6024 = vmatpush2.bf16.xpose.msra.mxu0 0
        %6025 = vmatprep.subr.bf16.mxu0 0
        %6026 = vmatpush2.bf16.xpose.msra.mxu0 0
        %6027 = vmatprep.mubr.bf16.mxu0 0
        %6028 = vmatmul.mubr.bf16.gmra.mxu0 %v5972
        %v6029 = vpop.f32.mrf.mxu0
        %v6030 = vadd.f32 0.0, %v6029
        %v6031 = vpop.f32.mrf.mxu0
        %v6032 = vpop.f32.mrf.mxu0
        %v6033 = vadd.f32 0.0, %v6032
        %v6034 = vpop.f32.mrf.mxu0
        %6035 = vmatprep.mubr.bf16.mxu0 0
        %6036 = vmatmul.mubr.bf16.gmra.mxu0 %v5975
        %v6037 = vpop.f32.mrf.mxu0
        %v6038 = vadd.f32 0.0, %v6037
        %v6039 = vpop.f32.mrf.mxu0
        %v6040 = vpop.f32.mrf.mxu0
        %v6041 = vadd.f32 0.0, %v6040
        %v6042 = vpop.f32.mrf.mxu0
        %6043 = vmatprep.mubr.bf16.mxu0 0
        %6044 = vmatmul.mubr.bf16.gmra.mxu0 %v5978
        %v6045 = vpop.f32.mrf.mxu0
        %v6046 = vadd.f32 0.0, %v6045
        %v6047 = vpop.f32.mrf.mxu0
        %v6048 = vpop.f32.mrf.mxu0
        %v6049 = vadd.f32 0.0, %v6048
        %v6050 = vpop.f32.mrf.mxu0
        %6051 = vmatprep.mubr.bf16.mxu0 0
        %6052 = vmatmul.mubr.bf16.gmra.mxu0 %v5981
        %v6053 = vpop.f32.mrf.mxu0
        %v6054 = vadd.f32 0.0, %v6053
        %v6055 = vpop.f32.mrf.mxu0
        %v6056 = vpop.f32.mrf.mxu0
        %v6057 = vadd.f32 0.0, %v6056
        %v6058 = vpop.f32.mrf.mxu0
        %6059 = vdwg.mxu0
        %v6060 = vsel %vm1473, %v6030, -inf
        %6061 = vmax.xlane.f32.xlu0 %v6060
        %v6062 = vpop.xlane.xlu0 %6061
        %v6063 = vsel %vm1473, %v6033, -inf
        %6064 = vmax.xlane.f32.xlu0 %v6063
        %v6065 = vpop.xlane.xlu0 %6064
        %v6066 = vsel %vm1473, %v6038, -inf
        %6067 = vmax.xlane.f32.xlu0 %v6066
        %v6068 = vpop.xlane.xlu0 %6067
        %v6069 = vsel %vm1473, %v6041, -inf
        %6070 = vmax.xlane.f32.xlu0 %v6069
        %v6071 = vpop.xlane.xlu0 %6070
        %v6072 = vsel %vm1473, %v6046, -inf
        %6073 = vmax.xlane.f32.xlu0 %v6072
        %v6074 = vpop.xlane.xlu0 %6073
        %v6075 = vsel %vm1473, %v6049, -inf
        %6076 = vmax.xlane.f32.xlu0 %v6075
        %v6077 = vpop.xlane.xlu0 %6076
        %v6078 = vsel %vm1473, %v6054, -inf
        %6079 = vmax.xlane.f32.xlu0 %v6078
        %v6080 = vpop.xlane.xlu0 %6079
        %v6081 = vsel %vm1473, %v6057, -inf
        %6082 = vmax.xlane.f32.xlu0 %v6081
        %v6083 = vpop.xlane.xlu0 %6082
        %v6084 = vsub.f32 %v6030, %v6062
        %v6085 = vsub.f32 %v6033, %v6065
        %v6086 = vsub.f32 %v6038, %v6068
        %v6087 = vsub.f32 %v6041, %v6071
        %v6088 = vsub.f32 %v6046, %v6074
        %v6089 = vsub.f32 %v6049, %v6077
        %v6090 = vsub.f32 %v6054, %v6080
        %v6091 = vsub.f32 %v6057, %v6083
        %v6092 = vmul.f32 %v6084, 1.442695
        %v6093 = vpow.pop %v6092
        %v6094 = vmul.f32 %v6085, 1.442695
        %v6095 = vpow.pop %v6094
        %v6096 = vmul.f32 %v6086, 1.442695
        %v6097 = vpow.pop %v6096
        %v6098 = vmul.f32 %v6087, 1.442695
        %v6099 = vpow.pop %v6098
        %v6100 = vmul.f32 %v6088, 1.442695
        %v6101 = vpow.pop %v6100
        %v6102 = vmul.f32 %v6089, 1.442695
        %v6103 = vpow.pop %v6102
        %v6104 = vmul.f32 %v6090, 1.442695
        %v6105 = vpow.pop %v6104
        %v6106 = vmul.f32 %v6091, 1.442695
        %v6107 = vpow.pop %v6106
        %v6108 = vsel %vm1473, %v6093, 0.0
        %6109 = vadd.xlane.f32.xlu0 %v6108
        %v6110 = vpop.xlane.xlu0 %6109
        %v6111 = vsel %vm1473, %v6095, 0.0
        %6112 = vadd.xlane.f32.xlu0 %v6111
        %v6113 = vpop.xlane.xlu0 %6112
        %v6114 = vsel %vm1473, %v6097, 0.0
        %6115 = vadd.xlane.f32.xlu0 %v6114
        %v6116 = vpop.xlane.xlu0 %6115
        %v6117 = vsel %vm1473, %v6099, 0.0
        %6118 = vadd.xlane.f32.xlu0 %v6117
        %v6119 = vpop.xlane.xlu0 %6118
        %v6120 = vsel %vm1473, %v6101, 0.0
        %6121 = vadd.xlane.f32.xlu0 %v6120
        %v6122 = vpop.xlane.xlu0 %6121
        %v6123 = vsel %vm1473, %v6103, 0.0
        %6124 = vadd.xlane.f32.xlu0 %v6123
        %v6125 = vpop.xlane.xlu0 %6124
        %v6126 = vsel %vm1473, %v6105, 0.0
        %6127 = vadd.xlane.f32.xlu0 %v6126
        %v6128 = vpop.xlane.xlu0 %6127
        %v6129 = vsel %vm1473, %v6107, 0.0
        %6130 = vadd.xlane.f32.xlu0 %v6129
        %v6131 = vpop.xlane.xlu0 %6130
        %v6132 = vrcp.pop %v6110
        %v6133 = vrcp.pop %v6113
        %v6134 = vrcp.pop %v6116
        %v6135 = vrcp.pop %v6119
        %v6136 = vrcp.pop %v6122
        %v6137 = vrcp.pop %v6125
        %v6138 = vrcp.pop %v6128
        %v6139 = vrcp.pop %v6131
        %v6140 = vmul.f32 %v6093, %v6132
        %v6141 = vmul.f32 %v6095, %v6133
        %v6142 = vmul.f32 %v6097, %v6134
        %v6143 = vmul.f32 %v6099, %v6135
        %v6144 = vmul.f32 %v6101, %v6136
        %v6145 = vmul.f32 %v6103, %v6137
        %v6146 = vmul.f32 %v6105, %v6138
        %v6147 = vmul.f32 %v6107, %v6139
        %v6148 = vpack.c.bf16 %v6141, %v6140
        %v6149 = vpack.c.bf16 %v6143, %v6142
        %v6150 = vpack.c.bf16 %v6145, %v6144
        %v6151 = vpack.c.bf16 %v6147, %v6146
        %v6160 = vunpack.c.l.b16 %v5907
        %v6161 = vunpack.c.l.b16 %v5908
        %v6162 = vunpack.c.l.b16 %v5909
        %v6163 = vunpack.c.l.b16 %v5910
        %v6164 = vunpack.c.l.b16 %v5911
        %v6165 = vunpack.c.l.b16 %v5912
        %v6166 = vunpack.c.l.b16 %v5913
        %v6167 = vunpack.c.l.b16 %v5914
        %v6168 = vpack.c.b16 %v6161, %v6160
        %v6169 = vpack.c.b16 %v6163, %v6162
        %v6170 = vpack.c.b16 %v6165, %v6164
        %v6171 = vpack.c.b16 %v6167, %v6166
        %6172 = vrot.lane.b32.xlu0 %v6168, 32
        %v6173 = vpop.permute.xlu0 %6172
        %6174 = vrot.lane.b32.xlu0 %v6169, 32
        %v6175 = vpop.permute.xlu0 %6174
        %6176 = vrot.lane.b32.xlu0 %v6170, 32
        %v6177 = vpop.permute.xlu0 %6176
        %6178 = vrot.lane.b32.xlu0 %v6171, 32
        %v6179 = vpop.permute.xlu0 %6178
        %v6185 = vsel %vm1473, %v6148, 0
        %v6188 = vsel %vm1473, %v6149, 0
        %v6191 = vsel %vm1473, %v6150, 0
        %v6194 = vsel %vm1473, %v6151, 0
        %6196 = vmatprep.subr.bf16.mxu0 0
        %6197 = vmatpush1.bf16.msra.mxu0 0
        %6198 = vmatprep.subr.bf16.mxu0 0
        %6199 = vmatpush1.bf16.msra.mxu0 0
        %6200 = vmatprep.subr.bf16.mxu0 0
        %6201 = vmatpush1.bf16.msra.mxu0 0
        %6202 = vmatprep.subr.bf16.mxu0 0
        %6203 = vmatpush1.bf16.msra.mxu0 0
        %6204 = vmatprep.subr.bf16.mxu0 0
        %6205 = vmatpush1.bf16.msra.mxu0 %v6179
        %6206 = vmatprep.subr.bf16.mxu0 0
        %6207 = vmatpush1.bf16.msra.mxu0 %v6177
        %6208 = vmatprep.subr.bf16.mxu0 0
        %6209 = vmatpush1.bf16.msra.mxu0 %v6175
        %6210 = vmatprep.subr.bf16.mxu0 0
        %6211 = vmatpush1.bf16.msra.mxu0 %v6173
        %6212 = vmatprep.subr.bf16.mxu0 0
        %6213 = vmatpush2.bf16.msra.mxu0 0
        %6214 = vmatprep.subr.bf16.mxu0 0
        %6215 = vmatpush2.bf16.msra.mxu0 0
        %6216 = vmatprep.subr.bf16.mxu0 0
        %6217 = vmatpush2.bf16.msra.mxu0 0
        %6218 = vmatprep.subr.bf16.mxu0 0
        %6219 = vmatpush2.bf16.msra.mxu0 0
        %6220 = vmatprep.subr.bf16.mxu0 0
        %6221 = vmatpush2.bf16.msra.mxu0 0
        %6222 = vmatprep.subr.bf16.mxu0 0
        %6223 = vmatpush2.bf16.msra.mxu0 0
        %6224 = vmatprep.subr.bf16.mxu0 0
        %6225 = vmatpush2.bf16.msra.mxu0 0
        %6226 = vmatprep.subr.bf16.mxu0 0
        %6227 = vmatpush2.bf16.msra.mxu0 0
        %6228 = vmatprep.mubr.bf16.mxu0 0
        %6229 = vmatmul.mubr.bf16.gmra.mxu0 %v6185
        %v6230 = vpop.f32.mrf.mxu0
        %v6231 = vadd.f32 0.0, %v6230
        %v6232 = vpop.f32.mrf.mxu0
        %v6233 = vpop.f32.mrf.mxu0
        %v6234 = vadd.f32 0.0, %v6233
        %v6235 = vpop.f32.mrf.mxu0
        %6236 = vmatprep.mubr.bf16.mxu0 0
        %6237 = vmatmul.mubr.bf16.gmra.mxu0 %v6188
        %v6238 = vpop.f32.mrf.mxu0
        %v6239 = vadd.f32 0.0, %v6238
        %v6240 = vpop.f32.mrf.mxu0
        %v6241 = vpop.f32.mrf.mxu0
        %v6242 = vadd.f32 0.0, %v6241
        %v6243 = vpop.f32.mrf.mxu0
        %6244 = vmatprep.mubr.bf16.mxu0 0
        %6245 = vmatmul.mubr.bf16.gmra.mxu0 %v6191
        %v6246 = vpop.f32.mrf.mxu0
        %v6247 = vadd.f32 0.0, %v6246
        %v6248 = vpop.f32.mrf.mxu0
        %v6249 = vpop.f32.mrf.mxu0
        %v6250 = vadd.f32 0.0, %v6249
        %v6251 = vpop.f32.mrf.mxu0
        %6252 = vmatprep.mubr.bf16.mxu0 0
        %6253 = vmatmul.mubr.bf16.gmra.mxu0 %v6194
        %v6254 = vpop.f32.mrf.mxu0
        %v6255 = vadd.f32 0.0, %v6254
        %v6256 = vpop.f32.mrf.mxu0
        %v6257 = vpop.f32.mrf.mxu0
        %v6258 = vadd.f32 0.0, %v6257
        %v6259 = vpop.f32.mrf.mxu0
        %6260 = vdwg.mxu0
        %v6261 = vpack.c.bf16 %v6234, %v6231
        %v6262 = vpack.c.bf16 %v6242, %v6239
        %v6263 = vpack.c.bf16 %v6250, %v6247
        %v6264 = vpack.c.bf16 %v6258, %v6255
        %v6269 = vunpack.c.l.b16 %v6261
        %v6270 = vunpack.c.h.b16 %v6261
        %v6271 = vunpack.c.l.b16 %v6262
        %v6272 = vunpack.c.h.b16 %v6262
        %v6273 = vunpack.c.l.b16 %v6263
        %v6274 = vunpack.c.h.b16 %v6263
        %v6275 = vunpack.c.l.b16 %v6264
        %v6276 = vunpack.c.h.b16 %v6264
        %v6277 = vpack.c.b16 %v6269, %v6269
        %v6278 = vpack.c.b16 %v6270, %v6270
        %v6279 = vpack.c.b16 %v6271, %v6271
        %v6280 = vpack.c.b16 %v6272, %v6272
        %v6281 = vpack.c.b16 %v6273, %v6273
        %v6282 = vpack.c.b16 %v6274, %v6274
        %v6283 = vpack.c.b16 %v6275, %v6275
        %v6284 = vpack.c.b16 %v6276, %v6276
        %6285 = vrot.lane.b32.xlu0 %v6277, 96
        %v6286 = vpop.permute.xlu0 %6285
        %6287 = vrot.lane.b32.xlu0 %v6278, 96
        %v6288 = vpop.permute.xlu0 %6287
        %6289 = vrot.lane.b32.xlu0 %v6279, 96
        %v6290 = vpop.permute.xlu0 %6289
        %6291 = vrot.lane.b32.xlu0 %v6280, 96
        %v6292 = vpop.permute.xlu0 %6291
        %6293 = vrot.lane.b32.xlu0 %v6281, 96
        %v6294 = vpop.permute.xlu0 %6293
        %6295 = vrot.lane.b32.xlu0 %v6282, 96
        %v6296 = vpop.permute.xlu0 %6295
        %6297 = vrot.lane.b32.xlu0 %v6283, 96
        %v6298 = vpop.permute.xlu0 %6297
        %6299 = vrot.lane.b32.xlu0 %v6284, 96
        %v6300 = vpop.permute.xlu0 %6299
        %6309 = vst.msk [vmem:[#allocation3 + $0x40] sm:$0xf] %vm2980, %v6286
        %6310 = vst.msk [vmem:[#allocation3 + $0x44] sm:$0xf] %vm2980, %v6288
        %6311 = vst.msk [vmem:[#allocation3 + $0x48] sm:$0xf] %vm2980, %v6290
        %6312 = vst.msk [vmem:[#allocation3 + $0x4c] sm:$0xf] %vm2980, %v6292
        %6313 = vst.msk [vmem:[#allocation3 + $0x50] sm:$0xf] %vm2980, %v6294
        %6314 = vst.msk [vmem:[#allocation3 + $0x54] sm:$0xf] %vm2980, %v6296
        %6315 = vst.msk [vmem:[#allocation3 + $0x58] sm:$0xf] %vm2980, %v6298
        %6316 = vst.msk [vmem:[#allocation3 + $0x5c] sm:$0xf] %vm2980, %v6300
        %v6317 = vld [vmem:[#allocation2 + $0x120] sm:$0xf]
        %v6318 = vld [vmem:[#allocation2 + $0x12c] sm:$0xf]
        %v6319 = vld [vmem:[#allocation2 + $0x138] sm:$0xf]
        %v6320 = vld [vmem:[#allocation2 + $0x144] sm:$0xf]
        %v6321 = vld [vmem:[#allocation2 + $0x150] sm:$0xf]
        %v6322 = vld [vmem:[#allocation2 + $0x15c] sm:$0xf]
        %v6323 = vld [vmem:[#allocation2 + $0x168] sm:$0xf]
        %v6324 = vld [vmem:[#allocation2 + $0x174] sm:$0xf]
        %v6325 = vld [vmem:[#allocation2 + $0x124] sm:$0xf]
        %v6326 = vld [vmem:[#allocation2 + $0x130] sm:$0xf]
        %v6327 = vld [vmem:[#allocation2 + $0x13c] sm:$0xf]
        %v6328 = vld [vmem:[#allocation2 + $0x148] sm:$0xf]
        %v6329 = vld [vmem:[#allocation2 + $0x154] sm:$0xf]
        %v6330 = vld [vmem:[#allocation2 + $0x160] sm:$0xf]
        %v6331 = vld [vmem:[#allocation2 + $0x16c] sm:$0xf]
        %v6332 = vld [vmem:[#allocation2 + $0x178] sm:$0xf]
        %v6333 = vld [vmem:[#allocation2 + $0x128] sm:$0xf]
        %v6334 = vld [vmem:[#allocation2 + $0x134] sm:$0xf]
        %v6335 = vld [vmem:[#allocation2 + $0x140] sm:$0xf]
        %v6336 = vld [vmem:[#allocation2 + $0x14c] sm:$0xf]
        %v6337 = vld [vmem:[#allocation2 + $0x158] sm:$0xf]
        %v6338 = vld [vmem:[#allocation2 + $0x164] sm:$0xf]
        %v6339 = vld [vmem:[#allocation2 + $0x170] sm:$0xf]
        %v6340 = vld [vmem:[#allocation2 + $0x17c] sm:$0xf]
        %v6349 = vunpack.c.l.b16 %v6317
        %v6350 = vunpack.c.l.b16 %v6318
        %v6351 = vunpack.c.l.b16 %v6319
        %v6352 = vunpack.c.l.b16 %v6320
        %v6353 = vunpack.c.l.b16 %v6321
        %v6354 = vunpack.c.l.b16 %v6322
        %v6355 = vunpack.c.l.b16 %v6323
        %v6356 = vunpack.c.l.b16 %v6324
        %v6357 = vpack.c.b16 %v6350, %v6349
        %v6358 = vpack.c.b16 %v6352, %v6351
        %v6359 = vpack.c.b16 %v6354, %v6353
        %v6360 = vpack.c.b16 %v6356, %v6355
        %v6369 = vunpack.c.l.b16 %v6325
        %v6370 = vunpack.c.l.b16 %v6326
        %v6371 = vunpack.c.l.b16 %v6327
        %v6372 = vunpack.c.l.b16 %v6328
        %v6373 = vunpack.c.l.b16 %v6329
        %v6374 = vunpack.c.l.b16 %v6330
        %v6375 = vunpack.c.l.b16 %v6331
        %v6376 = vunpack.c.l.b16 %v6332
        %v6377 = vpack.c.b16 %v6370, %v6369
        %v6378 = vpack.c.b16 %v6372, %v6371
        %v6379 = vpack.c.b16 %v6374, %v6373
        %v6380 = vpack.c.b16 %v6376, %v6375
        %v6382 = vsel %vm1383, %v6357, 0
        %v6385 = vsel %vm1383, %v6358, 0
        %v6388 = vsel %vm1383, %v6359, 0
        %v6391 = vsel %vm1383, %v6360, 0
        %v6394 = vsel %vm1383, %v6377, 0
        %v6397 = vsel %vm1383, %v6378, 0
        %v6400 = vsel %vm1383, %v6379, 0
        %v6403 = vsel %vm1383, %v6380, 0
        %6405 = vmatprep.subr.bf16.mxu0 0
        %6406 = vmatpush1.bf16.xpose.msra.mxu0 0
        %6407 = vmatprep.subr.bf16.mxu0 0
        %6408 = vmatpush1.bf16.xpose.msra.mxu0 0
        %6409 = vmatprep.subr.bf16.mxu0 0
        %6410 = vmatpush1.bf16.xpose.msra.mxu0 0
        %6411 = vmatprep.subr.bf16.mxu0 0
        %6412 = vmatpush1.bf16.xpose.msra.mxu0 0
        %6413 = vmatprep.subr.bf16.mxu0 0
        %6414 = vmatpush1.bf16.xpose.msra.mxu0 %v6403
        %6415 = vmatprep.subr.bf16.mxu0 0
        %6416 = vmatpush1.bf16.xpose.msra.mxu0 %v6400
        %6417 = vmatprep.subr.bf16.mxu0 0
        %6418 = vmatpush1.bf16.xpose.msra.mxu0 %v6397
        %6419 = vmatprep.subr.bf16.mxu0 0
        %6420 = vmatpush1.bf16.xpose.msra.mxu0 %v6394
        %6421 = vmatprep.subr.bf16.mxu0 0
        %6422 = vmatpush2.bf16.xpose.msra.mxu0 0
        %6423 = vmatprep.subr.bf16.mxu0 0
        %6424 = vmatpush2.bf16.xpose.msra.mxu0 0
        %6425 = vmatprep.subr.bf16.mxu0 0
        %6426 = vmatpush2.bf16.xpose.msra.mxu0 0
        %6427 = vmatprep.subr.bf16.mxu0 0
        %6428 = vmatpush2.bf16.xpose.msra.mxu0 0
        %6429 = vmatprep.subr.bf16.mxu0 0
        %6430 = vmatpush2.bf16.xpose.msra.mxu0 0
        %6431 = vmatprep.subr.bf16.mxu0 0
        %6432 = vmatpush2.bf16.xpose.msra.mxu0 0
        %6433 = vmatprep.subr.bf16.mxu0 0
        %6434 = vmatpush2.bf16.xpose.msra.mxu0 0
        %6435 = vmatprep.subr.bf16.mxu0 0
        %6436 = vmatpush2.bf16.xpose.msra.mxu0 0
        %6437 = vmatprep.mubr.bf16.mxu0 0
        %6438 = vmatmul.mubr.bf16.gmra.mxu0 %v6382
        %v6439 = vpop.f32.mrf.mxu0
        %v6440 = vadd.f32 0.0, %v6439
        %v6441 = vpop.f32.mrf.mxu0
        %v6442 = vpop.f32.mrf.mxu0
        %v6443 = vadd.f32 0.0, %v6442
        %v6444 = vpop.f32.mrf.mxu0
        %6445 = vmatprep.mubr.bf16.mxu0 0
        %6446 = vmatmul.mubr.bf16.gmra.mxu0 %v6385
        %v6447 = vpop.f32.mrf.mxu0
        %v6448 = vadd.f32 0.0, %v6447
        %v6449 = vpop.f32.mrf.mxu0
        %v6450 = vpop.f32.mrf.mxu0
        %v6451 = vadd.f32 0.0, %v6450
        %v6452 = vpop.f32.mrf.mxu0
        %6453 = vmatprep.mubr.bf16.mxu0 0
        %6454 = vmatmul.mubr.bf16.gmra.mxu0 %v6388
        %v6455 = vpop.f32.mrf.mxu0
        %v6456 = vadd.f32 0.0, %v6455
        %v6457 = vpop.f32.mrf.mxu0
        %v6458 = vpop.f32.mrf.mxu0
        %v6459 = vadd.f32 0.0, %v6458
        %v6460 = vpop.f32.mrf.mxu0
        %6461 = vmatprep.mubr.bf16.mxu0 0
        %6462 = vmatmul.mubr.bf16.gmra.mxu0 %v6391
        %v6463 = vpop.f32.mrf.mxu0
        %v6464 = vadd.f32 0.0, %v6463
        %v6465 = vpop.f32.mrf.mxu0
        %v6466 = vpop.f32.mrf.mxu0
        %v6467 = vadd.f32 0.0, %v6466
        %v6468 = vpop.f32.mrf.mxu0
        %6469 = vdwg.mxu0
        %v6470 = vsel %vm1473, %v6440, -inf
        %6471 = vmax.xlane.f32.xlu0 %v6470
        %v6472 = vpop.xlane.xlu0 %6471
        %v6473 = vsel %vm1473, %v6443, -inf
        %6474 = vmax.xlane.f32.xlu0 %v6473
        %v6475 = vpop.xlane.xlu0 %6474
        %v6476 = vsel %vm1473, %v6448, -inf
        %6477 = vmax.xlane.f32.xlu0 %v6476
        %v6478 = vpop.xlane.xlu0 %6477
        %v6479 = vsel %vm1473, %v6451, -inf
        %6480 = vmax.xlane.f32.xlu0 %v6479
        %v6481 = vpop.xlane.xlu0 %6480
        %v6482 = vsel %vm1473, %v6456, -inf
        %6483 = vmax.xlane.f32.xlu0 %v6482
        %v6484 = vpop.xlane.xlu0 %6483
        %v6485 = vsel %vm1473, %v6459, -inf
        %6486 = vmax.xlane.f32.xlu0 %v6485
        %v6487 = vpop.xlane.xlu0 %6486
        %v6488 = vsel %vm1473, %v6464, -inf
        %6489 = vmax.xlane.f32.xlu0 %v6488
        %v6490 = vpop.xlane.xlu0 %6489
        %v6491 = vsel %vm1473, %v6467, -inf
        %6492 = vmax.xlane.f32.xlu0 %v6491
        %v6493 = vpop.xlane.xlu0 %6492
        %v6494 = vsub.f32 %v6440, %v6472
        %v6495 = vsub.f32 %v6443, %v6475
        %v6496 = vsub.f32 %v6448, %v6478
        %v6497 = vsub.f32 %v6451, %v6481
        %v6498 = vsub.f32 %v6456, %v6484
        %v6499 = vsub.f32 %v6459, %v6487
        %v6500 = vsub.f32 %v6464, %v6490
        %v6501 = vsub.f32 %v6467, %v6493
        %v6502 = vmul.f32 %v6494, 1.442695
        %v6503 = vpow.pop %v6502
        %v6504 = vmul.f32 %v6495, 1.442695
        %v6505 = vpow.pop %v6504
        %v6506 = vmul.f32 %v6496, 1.442695
        %v6507 = vpow.pop %v6506
        %v6508 = vmul.f32 %v6497, 1.442695
        %v6509 = vpow.pop %v6508
        %v6510 = vmul.f32 %v6498, 1.442695
        %v6511 = vpow.pop %v6510
        %v6512 = vmul.f32 %v6499, 1.442695
        %v6513 = vpow.pop %v6512
        %v6514 = vmul.f32 %v6500, 1.442695
        %v6515 = vpow.pop %v6514
        %v6516 = vmul.f32 %v6501, 1.442695
        %v6517 = vpow.pop %v6516
        %v6518 = vsel %vm1473, %v6503, 0.0
        %6519 = vadd.xlane.f32.xlu0 %v6518
        %v6520 = vpop.xlane.xlu0 %6519
        %v6521 = vsel %vm1473, %v6505, 0.0
        %6522 = vadd.xlane.f32.xlu0 %v6521
        %v6523 = vpop.xlane.xlu0 %6522
        %v6524 = vsel %vm1473, %v6507, 0.0
        %6525 = vadd.xlane.f32.xlu0 %v6524
        %v6526 = vpop.xlane.xlu0 %6525
        %v6527 = vsel %vm1473, %v6509, 0.0
        %6528 = vadd.xlane.f32.xlu0 %v6527
        %v6529 = vpop.xlane.xlu0 %6528
        %v6530 = vsel %vm1473, %v6511, 0.0
        %6531 = vadd.xlane.f32.xlu0 %v6530
        %v6532 = vpop.xlane.xlu0 %6531
        %v6533 = vsel %vm1473, %v6513, 0.0
        %6534 = vadd.xlane.f32.xlu0 %v6533
        %v6535 = vpop.xlane.xlu0 %6534
        %v6536 = vsel %vm1473, %v6515, 0.0
        %6537 = vadd.xlane.f32.xlu0 %v6536
        %v6538 = vpop.xlane.xlu0 %6537
        %v6539 = vsel %vm1473, %v6517, 0.0
        %6540 = vadd.xlane.f32.xlu0 %v6539
        %v6541 = vpop.xlane.xlu0 %6540
        %v6542 = vrcp.pop %v6520
        %v6543 = vrcp.pop %v6523
        %v6544 = vrcp.pop %v6526
        %v6545 = vrcp.pop %v6529
        %v6546 = vrcp.pop %v6532
        %v6547 = vrcp.pop %v6535
        %v6548 = vrcp.pop %v6538
        %v6549 = vrcp.pop %v6541
        %v6550 = vmul.f32 %v6503, %v6542
        %v6551 = vmul.f32 %v6505, %v6543
        %v6552 = vmul.f32 %v6507, %v6544
        %v6553 = vmul.f32 %v6509, %v6545
        %v6554 = vmul.f32 %v6511, %v6546
        %v6555 = vmul.f32 %v6513, %v6547
        %v6556 = vmul.f32 %v6515, %v6548
        %v6557 = vmul.f32 %v6517, %v6549
        %v6558 = vpack.c.bf16 %v6551, %v6550
        %v6559 = vpack.c.bf16 %v6553, %v6552
        %v6560 = vpack.c.bf16 %v6555, %v6554
        %v6561 = vpack.c.bf16 %v6557, %v6556
        %v6570 = vunpack.c.l.b16 %v6333
        %v6571 = vunpack.c.l.b16 %v6334
        %v6572 = vunpack.c.l.b16 %v6335
        %v6573 = vunpack.c.l.b16 %v6336
        %v6574 = vunpack.c.l.b16 %v6337
        %v6575 = vunpack.c.l.b16 %v6338
        %v6576 = vunpack.c.l.b16 %v6339
        %v6577 = vunpack.c.l.b16 %v6340
        %v6578 = vpack.c.b16 %v6571, %v6570
        %v6579 = vpack.c.b16 %v6573, %v6572
        %v6580 = vpack.c.b16 %v6575, %v6574
        %v6581 = vpack.c.b16 %v6577, %v6576
        %v6587 = vsel %vm1473, %v6558, 0
        %v6590 = vsel %vm1473, %v6559, 0
        %v6593 = vsel %vm1473, %v6560, 0
        %v6596 = vsel %vm1473, %v6561, 0
        %6598 = vmatprep.subr.bf16.mxu0 0
        %6599 = vmatpush1.bf16.msra.mxu0 0
        %6600 = vmatprep.subr.bf16.mxu0 0
        %6601 = vmatpush1.bf16.msra.mxu0 0
        %6602 = vmatprep.subr.bf16.mxu0 0
        %6603 = vmatpush1.bf16.msra.mxu0 0
        %6604 = vmatprep.subr.bf16.mxu0 0
        %6605 = vmatpush1.bf16.msra.mxu0 0
        %6606 = vmatprep.subr.bf16.mxu0 0
        %6607 = vmatpush1.bf16.msra.mxu0 %v6581
        %6608 = vmatprep.subr.bf16.mxu0 0
        %6609 = vmatpush1.bf16.msra.mxu0 %v6580
        %6610 = vmatprep.subr.bf16.mxu0 0
        %6611 = vmatpush1.bf16.msra.mxu0 %v6579
        %6612 = vmatprep.subr.bf16.mxu0 0
        %6613 = vmatpush1.bf16.msra.mxu0 %v6578
        %6614 = vmatprep.subr.bf16.mxu0 0
        %6615 = vmatpush2.bf16.msra.mxu0 0
        %6616 = vmatprep.subr.bf16.mxu0 0
        %6617 = vmatpush2.bf16.msra.mxu0 0
        %6618 = vmatprep.subr.bf16.mxu0 0
        %6619 = vmatpush2.bf16.msra.mxu0 0
        %6620 = vmatprep.subr.bf16.mxu0 0
        %6621 = vmatpush2.bf16.msra.mxu0 0
        %6622 = vmatprep.subr.bf16.mxu0 0
        %6623 = vmatpush2.bf16.msra.mxu0 0
        %6624 = vmatprep.subr.bf16.mxu0 0
        %6625 = vmatpush2.bf16.msra.mxu0 0
        %6626 = vmatprep.subr.bf16.mxu0 0
        %6627 = vmatpush2.bf16.msra.mxu0 0
        %6628 = vmatprep.subr.bf16.mxu0 0
        %6629 = vmatpush2.bf16.msra.mxu0 0
        %6630 = vmatprep.mubr.bf16.mxu0 0
        %6631 = vmatmul.mubr.bf16.gmra.mxu0 %v6587
        %v6632 = vpop.f32.mrf.mxu0
        %v6633 = vadd.f32 0.0, %v6632
        %v6634 = vpop.f32.mrf.mxu0
        %v6635 = vpop.f32.mrf.mxu0
        %v6636 = vadd.f32 0.0, %v6635
        %v6637 = vpop.f32.mrf.mxu0
        %6638 = vmatprep.mubr.bf16.mxu0 0
        %6639 = vmatmul.mubr.bf16.gmra.mxu0 %v6590
        %v6640 = vpop.f32.mrf.mxu0
        %v6641 = vadd.f32 0.0, %v6640
        %v6642 = vpop.f32.mrf.mxu0
        %v6643 = vpop.f32.mrf.mxu0
        %v6644 = vadd.f32 0.0, %v6643
        %v6645 = vpop.f32.mrf.mxu0
        %6646 = vmatprep.mubr.bf16.mxu0 0
        %6647 = vmatmul.mubr.bf16.gmra.mxu0 %v6593
        %v6648 = vpop.f32.mrf.mxu0
        %v6649 = vadd.f32 0.0, %v6648
        %v6650 = vpop.f32.mrf.mxu0
        %v6651 = vpop.f32.mrf.mxu0
        %v6652 = vadd.f32 0.0, %v6651
        %v6653 = vpop.f32.mrf.mxu0
        %6654 = vmatprep.mubr.bf16.mxu0 0
        %6655 = vmatmul.mubr.bf16.gmra.mxu0 %v6596
        %v6656 = vpop.f32.mrf.mxu0
        %v6657 = vadd.f32 0.0, %v6656
        %v6658 = vpop.f32.mrf.mxu0
        %v6659 = vpop.f32.mrf.mxu0
        %v6660 = vadd.f32 0.0, %v6659
        %v6661 = vpop.f32.mrf.mxu0
        %6662 = vdwg.mxu0
        %v6663 = vpack.c.bf16 %v6636, %v6633
        %v6664 = vpack.c.bf16 %v6644, %v6641
        %v6665 = vpack.c.bf16 %v6652, %v6649
        %v6666 = vpack.c.bf16 %v6660, %v6657
        %v6671 = vunpack.c.l.b16 %v6663
        %v6672 = vunpack.c.h.b16 %v6663
        %v6673 = vunpack.c.l.b16 %v6664
        %v6674 = vunpack.c.h.b16 %v6664
        %v6675 = vunpack.c.l.b16 %v6665
        %v6676 = vunpack.c.h.b16 %v6665
        %v6677 = vunpack.c.l.b16 %v6666
        %v6678 = vunpack.c.h.b16 %v6666
        %v6679 = vpack.c.b16 %v6671, %v6671
        %v6680 = vpack.c.b16 %v6672, %v6672
        %v6681 = vpack.c.b16 %v6673, %v6673
        %v6682 = vpack.c.b16 %v6674, %v6674
        %v6683 = vpack.c.b16 %v6675, %v6675
        %v6684 = vpack.c.b16 %v6676, %v6676
        %v6685 = vpack.c.b16 %v6677, %v6677
        %v6686 = vpack.c.b16 %v6678, %v6678
        %6695 = vst.msk [vmem:[#allocation3 + $0x60] sm:$0xf] %vm1699, %v6679
        %6696 = vst.msk [vmem:[#allocation3 + $0x64] sm:$0xf] %vm1699, %v6680
        %6697 = vst.msk [vmem:[#allocation3 + $0x68] sm:$0xf] %vm1699, %v6681
        %6698 = vst.msk [vmem:[#allocation3 + $0x6c] sm:$0xf] %vm1699, %v6682
        %6699 = vst.msk [vmem:[#allocation3 + $0x70] sm:$0xf] %vm1699, %v6683
        %6700 = vst.msk [vmem:[#allocation3 + $0x74] sm:$0xf] %vm1699, %v6684
        %6701 = vst.msk [vmem:[#allocation3 + $0x78] sm:$0xf] %vm1699, %v6685
        %6702 = vst.msk [vmem:[#allocation3 + $0x7c] sm:$0xf] %vm1699, %v6686
        %v6703 = vld [vmem:[#allocation2 + $0x120] sm:$0xf]
        %v6704 = vld [vmem:[#allocation2 + $0x12c] sm:$0xf]
        %v6705 = vld [vmem:[#allocation2 + $0x138] sm:$0xf]
        %v6706 = vld [vmem:[#allocation2 + $0x144] sm:$0xf]
        %v6707 = vld [vmem:[#allocation2 + $0x150] sm:$0xf]
        %v6708 = vld [vmem:[#allocation2 + $0x15c] sm:$0xf]
        %v6709 = vld [vmem:[#allocation2 + $0x168] sm:$0xf]
        %v6710 = vld [vmem:[#allocation2 + $0x174] sm:$0xf]
        %v6711 = vld [vmem:[#allocation2 + $0x124] sm:$0xf]
        %v6712 = vld [vmem:[#allocation2 + $0x130] sm:$0xf]
        %v6713 = vld [vmem:[#allocation2 + $0x13c] sm:$0xf]
        %v6714 = vld [vmem:[#allocation2 + $0x148] sm:$0xf]
        %v6715 = vld [vmem:[#allocation2 + $0x154] sm:$0xf]
        %v6716 = vld [vmem:[#allocation2 + $0x160] sm:$0xf]
        %v6717 = vld [vmem:[#allocation2 + $0x16c] sm:$0xf]
        %v6718 = vld [vmem:[#allocation2 + $0x178] sm:$0xf]
        %v6719 = vld [vmem:[#allocation2 + $0x128] sm:$0xf]
        %v6720 = vld [vmem:[#allocation2 + $0x134] sm:$0xf]
        %v6721 = vld [vmem:[#allocation2 + $0x140] sm:$0xf]
        %v6722 = vld [vmem:[#allocation2 + $0x14c] sm:$0xf]
        %v6723 = vld [vmem:[#allocation2 + $0x158] sm:$0xf]
        %v6724 = vld [vmem:[#allocation2 + $0x164] sm:$0xf]
        %v6725 = vld [vmem:[#allocation2 + $0x170] sm:$0xf]
        %v6726 = vld [vmem:[#allocation2 + $0x17c] sm:$0xf]
        %v6735 = vunpack.c.l.b16 %v6703
        %v6736 = vunpack.c.l.b16 %v6704
        %v6737 = vunpack.c.l.b16 %v6705
        %v6738 = vunpack.c.l.b16 %v6706
        %v6739 = vunpack.c.l.b16 %v6707
        %v6740 = vunpack.c.l.b16 %v6708
        %v6741 = vunpack.c.l.b16 %v6709
        %v6742 = vunpack.c.l.b16 %v6710
        %v6743 = vpack.c.b16 %v6736, %v6735
        %v6744 = vpack.c.b16 %v6738, %v6737
        %v6745 = vpack.c.b16 %v6740, %v6739
        %v6746 = vpack.c.b16 %v6742, %v6741
        %6747 = vrot.lane.b32.xlu0 %v6743, 96
        %v6748 = vpop.permute.xlu0 %6747
        %6749 = vrot.lane.b32.xlu0 %v6744, 96
        %v6750 = vpop.permute.xlu0 %6749
        %6751 = vrot.lane.b32.xlu0 %v6745, 96
        %v6752 = vpop.permute.xlu0 %6751
        %6753 = vrot.lane.b32.xlu0 %v6746, 96
        %v6754 = vpop.permute.xlu0 %6753
        %v6763 = vunpack.c.l.b16 %v6711
        %v6764 = vunpack.c.l.b16 %v6712
        %v6765 = vunpack.c.l.b16 %v6713
        %v6766 = vunpack.c.l.b16 %v6714
        %v6767 = vunpack.c.l.b16 %v6715
        %v6768 = vunpack.c.l.b16 %v6716
        %v6769 = vunpack.c.l.b16 %v6717
        %v6770 = vunpack.c.l.b16 %v6718
        %v6771 = vpack.c.b16 %v6764, %v6763
        %v6772 = vpack.c.b16 %v6766, %v6765
        %v6773 = vpack.c.b16 %v6768, %v6767
        %v6774 = vpack.c.b16 %v6770, %v6769
        %6775 = vrot.lane.b32.xlu0 %v6771, 96
        %v6776 = vpop.permute.xlu0 %6775
        %6777 = vrot.lane.b32.xlu0 %v6772, 96
        %v6778 = vpop.permute.xlu0 %6777
        %6779 = vrot.lane.b32.xlu0 %v6773, 96
        %v6780 = vpop.permute.xlu0 %6779
        %6781 = vrot.lane.b32.xlu0 %v6774, 96
        %v6782 = vpop.permute.xlu0 %6781
        %v6784 = vsel %vm1383, %v6748, 0
        %v6787 = vsel %vm1383, %v6750, 0
        %v6790 = vsel %vm1383, %v6752, 0
        %v6793 = vsel %vm1383, %v6754, 0
        %v6796 = vsel %vm1383, %v6776, 0
        %v6799 = vsel %vm1383, %v6778, 0
        %v6802 = vsel %vm1383, %v6780, 0
        %v6805 = vsel %vm1383, %v6782, 0
        %6807 = vmatprep.subr.bf16.mxu0 0
        %6808 = vmatpush1.bf16.xpose.msra.mxu0 0
        %6809 = vmatprep.subr.bf16.mxu0 0
        %6810 = vmatpush1.bf16.xpose.msra.mxu0 0
        %6811 = vmatprep.subr.bf16.mxu0 0
        %6812 = vmatpush1.bf16.xpose.msra.mxu0 0
        %6813 = vmatprep.subr.bf16.mxu0 0
        %6814 = vmatpush1.bf16.xpose.msra.mxu0 0
        %6815 = vmatprep.subr.bf16.mxu0 0
        %6816 = vmatpush1.bf16.xpose.msra.mxu0 %v6805
        %6817 = vmatprep.subr.bf16.mxu0 0
        %6818 = vmatpush1.bf16.xpose.msra.mxu0 %v6802
        %6819 = vmatprep.subr.bf16.mxu0 0
        %6820 = vmatpush1.bf16.xpose.msra.mxu0 %v6799
        %6821 = vmatprep.subr.bf16.mxu0 0
        %6822 = vmatpush1.bf16.xpose.msra.mxu0 %v6796
        %6823 = vmatprep.subr.bf16.mxu0 0
        %6824 = vmatpush2.bf16.xpose.msra.mxu0 0
        %6825 = vmatprep.subr.bf16.mxu0 0
        %6826 = vmatpush2.bf16.xpose.msra.mxu0 0
        %6827 = vmatprep.subr.bf16.mxu0 0
        %6828 = vmatpush2.bf16.xpose.msra.mxu0 0
        %6829 = vmatprep.subr.bf16.mxu0 0
        %6830 = vmatpush2.bf16.xpose.msra.mxu0 0
        %6831 = vmatprep.subr.bf16.mxu0 0
        %6832 = vmatpush2.bf16.xpose.msra.mxu0 0
        %6833 = vmatprep.subr.bf16.mxu0 0
        %6834 = vmatpush2.bf16.xpose.msra.mxu0 0
        %6835 = vmatprep.subr.bf16.mxu0 0
        %6836 = vmatpush2.bf16.xpose.msra.mxu0 0
        %6837 = vmatprep.subr.bf16.mxu0 0
        %6838 = vmatpush2.bf16.xpose.msra.mxu0 0
        %6839 = vmatprep.mubr.bf16.mxu0 0
        %6840 = vmatmul.mubr.bf16.gmra.mxu0 %v6784
        %v6841 = vpop.f32.mrf.mxu0
        %v6842 = vadd.f32 0.0, %v6841
        %v6843 = vpop.f32.mrf.mxu0
        %v6844 = vpop.f32.mrf.mxu0
        %v6845 = vadd.f32 0.0, %v6844
        %v6846 = vpop.f32.mrf.mxu0
        %6847 = vmatprep.mubr.bf16.mxu0 0
        %6848 = vmatmul.mubr.bf16.gmra.mxu0 %v6787
        %v6849 = vpop.f32.mrf.mxu0
        %v6850 = vadd.f32 0.0, %v6849
        %v6851 = vpop.f32.mrf.mxu0
        %v6852 = vpop.f32.mrf.mxu0
        %v6853 = vadd.f32 0.0, %v6852
        %v6854 = vpop.f32.mrf.mxu0
        %6855 = vmatprep.mubr.bf16.mxu0 0
        %6856 = vmatmul.mubr.bf16.gmra.mxu0 %v6790
        %v6857 = vpop.f32.mrf.mxu0
        %v6858 = vadd.f32 0.0, %v6857
        %v6859 = vpop.f32.mrf.mxu0
        %v6860 = vpop.f32.mrf.mxu0
        %v6861 = vadd.f32 0.0, %v6860
        %v6862 = vpop.f32.mrf.mxu0
        %6863 = vmatprep.mubr.bf16.mxu0 0
        %6864 = vmatmul.mubr.bf16.gmra.mxu0 %v6793
        %v6865 = vpop.f32.mrf.mxu0
        %v6866 = vadd.f32 0.0, %v6865
        %v6867 = vpop.f32.mrf.mxu0
        %v6868 = vpop.f32.mrf.mxu0
        %v6869 = vadd.f32 0.0, %v6868
        %v6870 = vpop.f32.mrf.mxu0
        %6871 = vdwg.mxu0
        %v6872 = vsel %vm1473, %v6842, -inf
        %6873 = vmax.xlane.f32.xlu0 %v6872
        %v6874 = vpop.xlane.xlu0 %6873
        %v6875 = vsel %vm1473, %v6845, -inf
        %6876 = vmax.xlane.f32.xlu0 %v6875
        %v6877 = vpop.xlane.xlu0 %6876
        %v6878 = vsel %vm1473, %v6850, -inf
        %6879 = vmax.xlane.f32.xlu0 %v6878
        %v6880 = vpop.xlane.xlu0 %6879
        %v6881 = vsel %vm1473, %v6853, -inf
        %6882 = vmax.xlane.f32.xlu0 %v6881
        %v6883 = vpop.xlane.xlu0 %6882
        %v6884 = vsel %vm1473, %v6858, -inf
        %6885 = vmax.xlane.f32.xlu0 %v6884
        %v6886 = vpop.xlane.xlu0 %6885
        %v6887 = vsel %vm1473, %v6861, -inf
        %6888 = vmax.xlane.f32.xlu0 %v6887
        %v6889 = vpop.xlane.xlu0 %6888
        %v6890 = vsel %vm1473, %v6866, -inf
        %6891 = vmax.xlane.f32.xlu0 %v6890
        %v6892 = vpop.xlane.xlu0 %6891
        %v6893 = vsel %vm1473, %v6869, -inf
        %6894 = vmax.xlane.f32.xlu0 %v6893
        %v6895 = vpop.xlane.xlu0 %6894
        %v6896 = vsub.f32 %v6842, %v6874
        %v6897 = vsub.f32 %v6845, %v6877
        %v6898 = vsub.f32 %v6850, %v6880
        %v6899 = vsub.f32 %v6853, %v6883
        %v6900 = vsub.f32 %v6858, %v6886
        %v6901 = vsub.f32 %v6861, %v6889
        %v6902 = vsub.f32 %v6866, %v6892
        %v6903 = vsub.f32 %v6869, %v6895
        %v6904 = vmul.f32 %v6896, 1.442695
        %v6905 = vpow.pop %v6904
        %v6906 = vmul.f32 %v6897, 1.442695
        %v6907 = vpow.pop %v6906
        %v6908 = vmul.f32 %v6898, 1.442695
        %v6909 = vpow.pop %v6908
        %v6910 = vmul.f32 %v6899, 1.442695
        %v6911 = vpow.pop %v6910
        %v6912 = vmul.f32 %v6900, 1.442695
        %v6913 = vpow.pop %v6912
        %v6914 = vmul.f32 %v6901, 1.442695
        %v6915 = vpow.pop %v6914
        %v6916 = vmul.f32 %v6902, 1.442695
        %v6917 = vpow.pop %v6916
        %v6918 = vmul.f32 %v6903, 1.442695
        %v6919 = vpow.pop %v6918
        %v6920 = vsel %vm1473, %v6905, 0.0
        %6921 = vadd.xlane.f32.xlu0 %v6920
        %v6922 = vpop.xlane.xlu0 %6921
        %v6923 = vsel %vm1473, %v6907, 0.0
        %6924 = vadd.xlane.f32.xlu0 %v6923
        %v6925 = vpop.xlane.xlu0 %6924
        %v6926 = vsel %vm1473, %v6909, 0.0
        %6927 = vadd.xlane.f32.xlu0 %v6926
        %v6928 = vpop.xlane.xlu0 %6927
        %v6929 = vsel %vm1473, %v6911, 0.0
        %6930 = vadd.xlane.f32.xlu0 %v6929
        %v6931 = vpop.xlane.xlu0 %6930
        %v6932 = vsel %vm1473, %v6913, 0.0
        %6933 = vadd.xlane.f32.xlu0 %v6932
        %v6934 = vpop.xlane.xlu0 %6933
        %v6935 = vsel %vm1473, %v6915, 0.0
        %6936 = vadd.xlane.f32.xlu0 %v6935
        %v6937 = vpop.xlane.xlu0 %6936
        %v6938 = vsel %vm1473, %v6917, 0.0
        %6939 = vadd.xlane.f32.xlu0 %v6938
        %v6940 = vpop.xlane.xlu0 %6939
        %v6941 = vsel %vm1473, %v6919, 0.0
        %6942 = vadd.xlane.f32.xlu0 %v6941
        %v6943 = vpop.xlane.xlu0 %6942
        %v6944 = vrcp.pop %v6922
        %v6945 = vrcp.pop %v6925
        %v6946 = vrcp.pop %v6928
        %v6947 = vrcp.pop %v6931
        %v6948 = vrcp.pop %v6934
        %v6949 = vrcp.pop %v6937
        %v6950 = vrcp.pop %v6940
        %v6951 = vrcp.pop %v6943
        %v6952 = vmul.f32 %v6905, %v6944
        %v6953 = vmul.f32 %v6907, %v6945
        %v6954 = vmul.f32 %v6909, %v6946
        %v6955 = vmul.f32 %v6911, %v6947
        %v6956 = vmul.f32 %v6913, %v6948
        %v6957 = vmul.f32 %v6915, %v6949
        %v6958 = vmul.f32 %v6917, %v6950
        %v6959 = vmul.f32 %v6919, %v6951
        %v6960 = vpack.c.bf16 %v6953, %v6952
        %v6961 = vpack.c.bf16 %v6955, %v6954
        %v6962 = vpack.c.bf16 %v6957, %v6956
        %v6963 = vpack.c.bf16 %v6959, %v6958
        %v6972 = vunpack.c.l.b16 %v6719
        %v6973 = vunpack.c.l.b16 %v6720
        %v6974 = vunpack.c.l.b16 %v6721
        %v6975 = vunpack.c.l.b16 %v6722
        %v6976 = vunpack.c.l.b16 %v6723
        %v6977 = vunpack.c.l.b16 %v6724
        %v6978 = vunpack.c.l.b16 %v6725
        %v6979 = vunpack.c.l.b16 %v6726
        %v6980 = vpack.c.b16 %v6973, %v6972
        %v6981 = vpack.c.b16 %v6975, %v6974
        %v6982 = vpack.c.b16 %v6977, %v6976
        %v6983 = vpack.c.b16 %v6979, %v6978
        %6984 = vrot.lane.b32.xlu0 %v6980, 96
        %v6985 = vpop.permute.xlu0 %6984
        %6986 = vrot.lane.b32.xlu0 %v6981, 96
        %v6987 = vpop.permute.xlu0 %6986
        %6988 = vrot.lane.b32.xlu0 %v6982, 96
        %v6989 = vpop.permute.xlu0 %6988
        %6990 = vrot.lane.b32.xlu0 %v6983, 96
        %v6991 = vpop.permute.xlu0 %6990
        %v6997 = vsel %vm1473, %v6960, 0
        %v7000 = vsel %vm1473, %v6961, 0
        %v7003 = vsel %vm1473, %v6962, 0
        %v7006 = vsel %vm1473, %v6963, 0
        %7008 = vmatprep.subr.bf16.mxu0 0
        %7009 = vmatpush1.bf16.msra.mxu0 0
        %7010 = vmatprep.subr.bf16.mxu0 0
        %7011 = vmatpush1.bf16.msra.mxu0 0
        %7012 = vmatprep.subr.bf16.mxu0 0
        %7013 = vmatpush1.bf16.msra.mxu0 0
        %7014 = vmatprep.subr.bf16.mxu0 0
        %7015 = vmatpush1.bf16.msra.mxu0 0
        %7016 = vmatprep.subr.bf16.mxu0 0
        %7017 = vmatpush1.bf16.msra.mxu0 %v6991
        %7018 = vmatprep.subr.bf16.mxu0 0
        %7019 = vmatpush1.bf16.msra.mxu0 %v6989
        %7020 = vmatprep.subr.bf16.mxu0 0
        %7021 = vmatpush1.bf16.msra.mxu0 %v6987
        %7022 = vmatprep.subr.bf16.mxu0 0
        %7023 = vmatpush1.bf16.msra.mxu0 %v6985
        %7024 = vmatprep.subr.bf16.mxu0 0
        %7025 = vmatpush2.bf16.msra.mxu0 0
        %7026 = vmatprep.subr.bf16.mxu0 0
        %7027 = vmatpush2.bf16.msra.mxu0 0
        %7028 = vmatprep.subr.bf16.mxu0 0
        %7029 = vmatpush2.bf16.msra.mxu0 0
        %7030 = vmatprep.subr.bf16.mxu0 0
        %7031 = vmatpush2.bf16.msra.mxu0 0
        %7032 = vmatprep.subr.bf16.mxu0 0
        %7033 = vmatpush2.bf16.msra.mxu0 0
        %7034 = vmatprep.subr.bf16.mxu0 0
        %7035 = vmatpush2.bf16.msra.mxu0 0
        %7036 = vmatprep.subr.bf16.mxu0 0
        %7037 = vmatpush2.bf16.msra.mxu0 0
        %7038 = vmatprep.subr.bf16.mxu0 0
        %7039 = vmatpush2.bf16.msra.mxu0 0
        %7040 = vmatprep.mubr.bf16.mxu0 0
        %7041 = vmatmul.mubr.bf16.gmra.mxu0 %v6997
        %v7042 = vpop.f32.mrf.mxu0
        %v7043 = vadd.f32 0.0, %v7042
        %v7044 = vpop.f32.mrf.mxu0
        %v7045 = vpop.f32.mrf.mxu0
        %v7046 = vadd.f32 0.0, %v7045
        %v7047 = vpop.f32.mrf.mxu0
        %7048 = vmatprep.mubr.bf16.mxu0 0
        %7049 = vmatmul.mubr.bf16.gmra.mxu0 %v7000
        %v7050 = vpop.f32.mrf.mxu0
        %v7051 = vadd.f32 0.0, %v7050
        %v7052 = vpop.f32.mrf.mxu0
        %v7053 = vpop.f32.mrf.mxu0
        %v7054 = vadd.f32 0.0, %v7053
        %v7055 = vpop.f32.mrf.mxu0
        %7056 = vmatprep.mubr.bf16.mxu0 0
        %7057 = vmatmul.mubr.bf16.gmra.mxu0 %v7003
        %v7058 = vpop.f32.mrf.mxu0
        %v7059 = vadd.f32 0.0, %v7058
        %v7060 = vpop.f32.mrf.mxu0
        %v7061 = vpop.f32.mrf.mxu0
        %v7062 = vadd.f32 0.0, %v7061
        %v7063 = vpop.f32.mrf.mxu0
        %7064 = vmatprep.mubr.bf16.mxu0 0
        %7065 = vmatmul.mubr.bf16.gmra.mxu0 %v7006
        %v7066 = vpop.f32.mrf.mxu0
        %v7067 = vadd.f32 0.0, %v7066
        %v7068 = vpop.f32.mrf.mxu0
        %v7069 = vpop.f32.mrf.mxu0
        %v7070 = vadd.f32 0.0, %v7069
        %v7071 = vpop.f32.mrf.mxu0
        %7072 = vdwg.mxu0
        %v7073 = vpack.c.bf16 %v7046, %v7043
        %v7074 = vpack.c.bf16 %v7054, %v7051
        %v7075 = vpack.c.bf16 %v7062, %v7059
        %v7076 = vpack.c.bf16 %v7070, %v7067
        %v7081 = vunpack.c.l.b16 %v7073
        %v7082 = vunpack.c.h.b16 %v7073
        %v7083 = vunpack.c.l.b16 %v7074
        %v7084 = vunpack.c.h.b16 %v7074
        %v7085 = vunpack.c.l.b16 %v7075
        %v7086 = vunpack.c.h.b16 %v7075
        %v7087 = vunpack.c.l.b16 %v7076
        %v7088 = vunpack.c.h.b16 %v7076
        %v7089 = vpack.c.b16 %v7081, %v7081
        %v7090 = vpack.c.b16 %v7082, %v7082
        %v7091 = vpack.c.b16 %v7083, %v7083
        %v7092 = vpack.c.b16 %v7084, %v7084
        %v7093 = vpack.c.b16 %v7085, %v7085
        %v7094 = vpack.c.b16 %v7086, %v7086
        %v7095 = vpack.c.b16 %v7087, %v7087
        %v7096 = vpack.c.b16 %v7088, %v7088
        %7097 = vrot.lane.b32.xlu0 %v7089, 32
        %v7098 = vpop.permute.xlu0 %7097
        %7099 = vrot.lane.b32.xlu0 %v7090, 32
        %v7100 = vpop.permute.xlu0 %7099
        %7101 = vrot.lane.b32.xlu0 %v7091, 32
        %v7102 = vpop.permute.xlu0 %7101
        %7103 = vrot.lane.b32.xlu0 %v7092, 32
        %v7104 = vpop.permute.xlu0 %7103
        %7105 = vrot.lane.b32.xlu0 %v7093, 32
        %v7106 = vpop.permute.xlu0 %7105
        %7107 = vrot.lane.b32.xlu0 %v7094, 32
        %v7108 = vpop.permute.xlu0 %7107
        %7109 = vrot.lane.b32.xlu0 %v7095, 32
        %v7110 = vpop.permute.xlu0 %7109
        %7111 = vrot.lane.b32.xlu0 %v7096, 32
        %v7112 = vpop.permute.xlu0 %7111
        %7121 = vst.msk [vmem:[#allocation3 + $0x60] sm:$0xf] %vm2126, %v7098
        %7122 = vst.msk [vmem:[#allocation3 + $0x64] sm:$0xf] %vm2126, %v7100
        %7123 = vst.msk [vmem:[#allocation3 + $0x68] sm:$0xf] %vm2126, %v7102
        %7124 = vst.msk [vmem:[#allocation3 + $0x6c] sm:$0xf] %vm2126, %v7104
        %7125 = vst.msk [vmem:[#allocation3 + $0x70] sm:$0xf] %vm2126, %v7106
        %7126 = vst.msk [vmem:[#allocation3 + $0x74] sm:$0xf] %vm2126, %v7108
        %7127 = vst.msk [vmem:[#allocation3 + $0x78] sm:$0xf] %vm2126, %v7110
        %7128 = vst.msk [vmem:[#allocation3 + $0x7c] sm:$0xf] %vm2126, %v7112
        %v7129 = vld [vmem:[#allocation2 + $0x120] sm:$0xf]
        %v7130 = vld [vmem:[#allocation2 + $0x12c] sm:$0xf]
        %v7131 = vld [vmem:[#allocation2 + $0x138] sm:$0xf]
        %v7132 = vld [vmem:[#allocation2 + $0x144] sm:$0xf]
        %v7133 = vld [vmem:[#allocation2 + $0x150] sm:$0xf]
        %v7134 = vld [vmem:[#allocation2 + $0x15c] sm:$0xf]
        %v7135 = vld [vmem:[#allocation2 + $0x168] sm:$0xf]
        %v7136 = vld [vmem:[#allocation2 + $0x174] sm:$0xf]
        %v7137 = vld [vmem:[#allocation2 + $0x124] sm:$0xf]
        %v7138 = vld [vmem:[#allocation2 + $0x130] sm:$0xf]
        %v7139 = vld [vmem:[#allocation2 + $0x13c] sm:$0xf]
        %v7140 = vld [vmem:[#allocation2 + $0x148] sm:$0xf]
        %v7141 = vld [vmem:[#allocation2 + $0x154] sm:$0xf]
        %v7142 = vld [vmem:[#allocation2 + $0x160] sm:$0xf]
        %v7143 = vld [vmem:[#allocation2 + $0x16c] sm:$0xf]
        %v7144 = vld [vmem:[#allocation2 + $0x178] sm:$0xf]
        %v7145 = vld [vmem:[#allocation2 + $0x128] sm:$0xf]
        %v7146 = vld [vmem:[#allocation2 + $0x134] sm:$0xf]
        %v7147 = vld [vmem:[#allocation2 + $0x140] sm:$0xf]
        %v7148 = vld [vmem:[#allocation2 + $0x14c] sm:$0xf]
        %v7149 = vld [vmem:[#allocation2 + $0x158] sm:$0xf]
        %v7150 = vld [vmem:[#allocation2 + $0x164] sm:$0xf]
        %v7151 = vld [vmem:[#allocation2 + $0x170] sm:$0xf]
        %v7152 = vld [vmem:[#allocation2 + $0x17c] sm:$0xf]
        %v7161 = vunpack.c.l.b16 %v7129
        %v7162 = vunpack.c.l.b16 %v7130
        %v7163 = vunpack.c.l.b16 %v7131
        %v7164 = vunpack.c.l.b16 %v7132
        %v7165 = vunpack.c.l.b16 %v7133
        %v7166 = vunpack.c.l.b16 %v7134
        %v7167 = vunpack.c.l.b16 %v7135
        %v7168 = vunpack.c.l.b16 %v7136
        %v7169 = vpack.c.b16 %v7162, %v7161
        %v7170 = vpack.c.b16 %v7164, %v7163
        %v7171 = vpack.c.b16 %v7166, %v7165
        %v7172 = vpack.c.b16 %v7168, %v7167
        %7173 = vrot.lane.b32.xlu0 %v7169, 64
        %v7174 = vpop.permute.xlu0 %7173
        %7175 = vrot.lane.b32.xlu0 %v7170, 64
        %v7176 = vpop.permute.xlu0 %7175
        %7177 = vrot.lane.b32.xlu0 %v7171, 64
        %v7178 = vpop.permute.xlu0 %7177
        %7179 = vrot.lane.b32.xlu0 %v7172, 64
        %v7180 = vpop.permute.xlu0 %7179
        %v7189 = vunpack.c.l.b16 %v7137
        %v7190 = vunpack.c.l.b16 %v7138
        %v7191 = vunpack.c.l.b16 %v7139
        %v7192 = vunpack.c.l.b16 %v7140
        %v7193 = vunpack.c.l.b16 %v7141
        %v7194 = vunpack.c.l.b16 %v7142
        %v7195 = vunpack.c.l.b16 %v7143
        %v7196 = vunpack.c.l.b16 %v7144
        %v7197 = vpack.c.b16 %v7190, %v7189
        %v7198 = vpack.c.b16 %v7192, %v7191
        %v7199 = vpack.c.b16 %v7194, %v7193
        %v7200 = vpack.c.b16 %v7196, %v7195
        %7201 = vrot.lane.b32.xlu0 %v7197, 64
        %v7202 = vpop.permute.xlu0 %7201
        %7203 = vrot.lane.b32.xlu0 %v7198, 64
        %v7204 = vpop.permute.xlu0 %7203
        %7205 = vrot.lane.b32.xlu0 %v7199, 64
        %v7206 = vpop.permute.xlu0 %7205
        %7207 = vrot.lane.b32.xlu0 %v7200, 64
        %v7208 = vpop.permute.xlu0 %7207
        %v7210 = vsel %vm1383, %v7174, 0
        %v7213 = vsel %vm1383, %v7176, 0
        %v7216 = vsel %vm1383, %v7178, 0
        %v7219 = vsel %vm1383, %v7180, 0
        %v7222 = vsel %vm1383, %v7202, 0
        %v7225 = vsel %vm1383, %v7204, 0
        %v7228 = vsel %vm1383, %v7206, 0
        %v7231 = vsel %vm1383, %v7208, 0
        %7233 = vmatprep.subr.bf16.mxu0 0
        %7234 = vmatpush1.bf16.xpose.msra.mxu0 0
        %7235 = vmatprep.subr.bf16.mxu0 0
        %7236 = vmatpush1.bf16.xpose.msra.mxu0 0
        %7237 = vmatprep.subr.bf16.mxu0 0
        %7238 = vmatpush1.bf16.xpose.msra.mxu0 0
        %7239 = vmatprep.subr.bf16.mxu0 0
        %7240 = vmatpush1.bf16.xpose.msra.mxu0 0
        %7241 = vmatprep.subr.bf16.mxu0 0
        %7242 = vmatpush1.bf16.xpose.msra.mxu0 %v7231
        %7243 = vmatprep.subr.bf16.mxu0 0
        %7244 = vmatpush1.bf16.xpose.msra.mxu0 %v7228
        %7245 = vmatprep.subr.bf16.mxu0 0
        %7246 = vmatpush1.bf16.xpose.msra.mxu0 %v7225
        %7247 = vmatprep.subr.bf16.mxu0 0
        %7248 = vmatpush1.bf16.xpose.msra.mxu0 %v7222
        %7249 = vmatprep.subr.bf16.mxu0 0
        %7250 = vmatpush2.bf16.xpose.msra.mxu0 0
        %7251 = vmatprep.subr.bf16.mxu0 0
        %7252 = vmatpush2.bf16.xpose.msra.mxu0 0
        %7253 = vmatprep.subr.bf16.mxu0 0
        %7254 = vmatpush2.bf16.xpose.msra.mxu0 0
        %7255 = vmatprep.subr.bf16.mxu0 0
        %7256 = vmatpush2.bf16.xpose.msra.mxu0 0
        %7257 = vmatprep.subr.bf16.mxu0 0
        %7258 = vmatpush2.bf16.xpose.msra.mxu0 0
        %7259 = vmatprep.subr.bf16.mxu0 0
        %7260 = vmatpush2.bf16.xpose.msra.mxu0 0
        %7261 = vmatprep.subr.bf16.mxu0 0
        %7262 = vmatpush2.bf16.xpose.msra.mxu0 0
        %7263 = vmatprep.subr.bf16.mxu0 0
        %7264 = vmatpush2.bf16.xpose.msra.mxu0 0
        %7265 = vmatprep.mubr.bf16.mxu0 0
        %7266 = vmatmul.mubr.bf16.gmra.mxu0 %v7210
        %v7267 = vpop.f32.mrf.mxu0
        %v7268 = vadd.f32 0.0, %v7267
        %v7269 = vpop.f32.mrf.mxu0
        %v7270 = vpop.f32.mrf.mxu0
        %v7271 = vadd.f32 0.0, %v7270
        %v7272 = vpop.f32.mrf.mxu0
        %7273 = vmatprep.mubr.bf16.mxu0 0
        %7274 = vmatmul.mubr.bf16.gmra.mxu0 %v7213
        %v7275 = vpop.f32.mrf.mxu0
        %v7276 = vadd.f32 0.0, %v7275
        %v7277 = vpop.f32.mrf.mxu0
        %v7278 = vpop.f32.mrf.mxu0
        %v7279 = vadd.f32 0.0, %v7278
        %v7280 = vpop.f32.mrf.mxu0
        %7281 = vmatprep.mubr.bf16.mxu0 0
        %7282 = vmatmul.mubr.bf16.gmra.mxu0 %v7216
        %v7283 = vpop.f32.mrf.mxu0
        %v7284 = vadd.f32 0.0, %v7283
        %v7285 = vpop.f32.mrf.mxu0
        %v7286 = vpop.f32.mrf.mxu0
        %v7287 = vadd.f32 0.0, %v7286
        %v7288 = vpop.f32.mrf.mxu0
        %7289 = vmatprep.mubr.bf16.mxu0 0
        %7290 = vmatmul.mubr.bf16.gmra.mxu0 %v7219
        %v7291 = vpop.f32.mrf.mxu0
        %v7292 = vadd.f32 0.0, %v7291
        %v7293 = vpop.f32.mrf.mxu0
        %v7294 = vpop.f32.mrf.mxu0
        %v7295 = vadd.f32 0.0, %v7294
        %v7296 = vpop.f32.mrf.mxu0
        %7297 = vdwg.mxu0
        %v7298 = vsel %vm1473, %v7268, -inf
        %7299 = vmax.xlane.f32.xlu0 %v7298
        %v7300 = vpop.xlane.xlu0 %7299
        %v7301 = vsel %vm1473, %v7271, -inf
        %7302 = vmax.xlane.f32.xlu0 %v7301
        %v7303 = vpop.xlane.xlu0 %7302
        %v7304 = vsel %vm1473, %v7276, -inf
        %7305 = vmax.xlane.f32.xlu0 %v7304
        %v7306 = vpop.xlane.xlu0 %7305
        %v7307 = vsel %vm1473, %v7279, -inf
        %7308 = vmax.xlane.f32.xlu0 %v7307
        %v7309 = vpop.xlane.xlu0 %7308
        %v7310 = vsel %vm1473, %v7284, -inf
        %7311 = vmax.xlane.f32.xlu0 %v7310
        %v7312 = vpop.xlane.xlu0 %7311
        %v7313 = vsel %vm1473, %v7287, -inf
        %7314 = vmax.xlane.f32.xlu0 %v7313
        %v7315 = vpop.xlane.xlu0 %7314
        %v7316 = vsel %vm1473, %v7292, -inf
        %7317 = vmax.xlane.f32.xlu0 %v7316
        %v7318 = vpop.xlane.xlu0 %7317
        %v7319 = vsel %vm1473, %v7295, -inf
        %7320 = vmax.xlane.f32.xlu0 %v7319
        %v7321 = vpop.xlane.xlu0 %7320
        %v7322 = vsub.f32 %v7268, %v7300
        %v7323 = vsub.f32 %v7271, %v7303
        %v7324 = vsub.f32 %v7276, %v7306
        %v7325 = vsub.f32 %v7279, %v7309
        %v7326 = vsub.f32 %v7284, %v7312
        %v7327 = vsub.f32 %v7287, %v7315
        %v7328 = vsub.f32 %v7292, %v7318
        %v7329 = vsub.f32 %v7295, %v7321
        %v7330 = vmul.f32 %v7322, 1.442695
        %v7331 = vpow.pop %v7330
        %v7332 = vmul.f32 %v7323, 1.442695
        %v7333 = vpow.pop %v7332
        %v7334 = vmul.f32 %v7324, 1.442695
        %v7335 = vpow.pop %v7334
        %v7336 = vmul.f32 %v7325, 1.442695
        %v7337 = vpow.pop %v7336
        %v7338 = vmul.f32 %v7326, 1.442695
        %v7339 = vpow.pop %v7338
        %v7340 = vmul.f32 %v7327, 1.442695
        %v7341 = vpow.pop %v7340
        %v7342 = vmul.f32 %v7328, 1.442695
        %v7343 = vpow.pop %v7342
        %v7344 = vmul.f32 %v7329, 1.442695
        %v7345 = vpow.pop %v7344
        %v7346 = vsel %vm1473, %v7331, 0.0
        %7347 = vadd.xlane.f32.xlu0 %v7346
        %v7348 = vpop.xlane.xlu0 %7347
        %v7349 = vsel %vm1473, %v7333, 0.0
        %7350 = vadd.xlane.f32.xlu0 %v7349
        %v7351 = vpop.xlane.xlu0 %7350
        %v7352 = vsel %vm1473, %v7335, 0.0
        %7353 = vadd.xlane.f32.xlu0 %v7352
        %v7354 = vpop.xlane.xlu0 %7353
        %v7355 = vsel %vm1473, %v7337, 0.0
        %7356 = vadd.xlane.f32.xlu0 %v7355
        %v7357 = vpop.xlane.xlu0 %7356
        %v7358 = vsel %vm1473, %v7339, 0.0
        %7359 = vadd.xlane.f32.xlu0 %v7358
        %v7360 = vpop.xlane.xlu0 %7359
        %v7361 = vsel %vm1473, %v7341, 0.0
        %7362 = vadd.xlane.f32.xlu0 %v7361
        %v7363 = vpop.xlane.xlu0 %7362
        %v7364 = vsel %vm1473, %v7343, 0.0
        %7365 = vadd.xlane.f32.xlu0 %v7364
        %v7366 = vpop.xlane.xlu0 %7365
        %v7367 = vsel %vm1473, %v7345, 0.0
        %7368 = vadd.xlane.f32.xlu0 %v7367
        %v7369 = vpop.xlane.xlu0 %7368
        %v7370 = vrcp.pop %v7348
        %v7371 = vrcp.pop %v7351
        %v7372 = vrcp.pop %v7354
        %v7373 = vrcp.pop %v7357
        %v7374 = vrcp.pop %v7360
        %v7375 = vrcp.pop %v7363
        %v7376 = vrcp.pop %v7366
        %v7377 = vrcp.pop %v7369
        %v7378 = vmul.f32 %v7331, %v7370
        %v7379 = vmul.f32 %v7333, %v7371
        %v7380 = vmul.f32 %v7335, %v7372
        %v7381 = vmul.f32 %v7337, %v7373
        %v7382 = vmul.f32 %v7339, %v7374
        %v7383 = vmul.f32 %v7341, %v7375
        %v7384 = vmul.f32 %v7343, %v7376
        %v7385 = vmul.f32 %v7345, %v7377
        %v7386 = vpack.c.bf16 %v7379, %v7378
        %v7387 = vpack.c.bf16 %v7381, %v7380
        %v7388 = vpack.c.bf16 %v7383, %v7382
        %v7389 = vpack.c.bf16 %v7385, %v7384
        %v7398 = vunpack.c.l.b16 %v7145
        %v7399 = vunpack.c.l.b16 %v7146
        %v7400 = vunpack.c.l.b16 %v7147
        %v7401 = vunpack.c.l.b16 %v7148
        %v7402 = vunpack.c.l.b16 %v7149
        %v7403 = vunpack.c.l.b16 %v7150
        %v7404 = vunpack.c.l.b16 %v7151
        %v7405 = vunpack.c.l.b16 %v7152
        %v7406 = vpack.c.b16 %v7399, %v7398
        %v7407 = vpack.c.b16 %v7401, %v7400
        %v7408 = vpack.c.b16 %v7403, %v7402
        %v7409 = vpack.c.b16 %v7405, %v7404
        %7410 = vrot.lane.b32.xlu0 %v7406, 64
        %v7411 = vpop.permute.xlu0 %7410
        %7412 = vrot.lane.b32.xlu0 %v7407, 64
        %v7413 = vpop.permute.xlu0 %7412
        %7414 = vrot.lane.b32.xlu0 %v7408, 64
        %v7415 = vpop.permute.xlu0 %7414
        %7416 = vrot.lane.b32.xlu0 %v7409, 64
        %v7417 = vpop.permute.xlu0 %7416
        %v7423 = vsel %vm1473, %v7386, 0
        %v7426 = vsel %vm1473, %v7387, 0
        %v7429 = vsel %vm1473, %v7388, 0
        %v7432 = vsel %vm1473, %v7389, 0
        %7434 = vmatprep.subr.bf16.mxu0 0
        %7435 = vmatpush1.bf16.msra.mxu0 0
        %7436 = vmatprep.subr.bf16.mxu0 0
        %7437 = vmatpush1.bf16.msra.mxu0 0
        %7438 = vmatprep.subr.bf16.mxu0 0
        %7439 = vmatpush1.bf16.msra.mxu0 0
        %7440 = vmatprep.subr.bf16.mxu0 0
        %7441 = vmatpush1.bf16.msra.mxu0 0
        %7442 = vmatprep.subr.bf16.mxu0 0
        %7443 = vmatpush1.bf16.msra.mxu0 %v7417
        %7444 = vmatprep.subr.bf16.mxu0 0
        %7445 = vmatpush1.bf16.msra.mxu0 %v7415
        %7446 = vmatprep.subr.bf16.mxu0 0
        %7447 = vmatpush1.bf16.msra.mxu0 %v7413
        %7448 = vmatprep.subr.bf16.mxu0 0
        %7449 = vmatpush1.bf16.msra.mxu0 %v7411
        %7450 = vmatprep.subr.bf16.mxu0 0
        %7451 = vmatpush2.bf16.msra.mxu0 0
        %7452 = vmatprep.subr.bf16.mxu0 0
        %7453 = vmatpush2.bf16.msra.mxu0 0
        %7454 = vmatprep.subr.bf16.mxu0 0
        %7455 = vmatpush2.bf16.msra.mxu0 0
        %7456 = vmatprep.subr.bf16.mxu0 0
        %7457 = vmatpush2.bf16.msra.mxu0 0
        %7458 = vmatprep.subr.bf16.mxu0 0
        %7459 = vmatpush2.bf16.msra.mxu0 0
        %7460 = vmatprep.subr.bf16.mxu0 0
        %7461 = vmatpush2.bf16.msra.mxu0 0
        %7462 = vmatprep.subr.bf16.mxu0 0
        %7463 = vmatpush2.bf16.msra.mxu0 0
        %7464 = vmatprep.subr.bf16.mxu0 0
        %7465 = vmatpush2.bf16.msra.mxu0 0
        %7466 = vmatprep.mubr.bf16.mxu0 0
        %7467 = vmatmul.mubr.bf16.gmra.mxu0 %v7423
        %v7468 = vpop.f32.mrf.mxu0
        %v7469 = vadd.f32 0.0, %v7468
        %v7470 = vpop.f32.mrf.mxu0
        %v7471 = vpop.f32.mrf.mxu0
        %v7472 = vadd.f32 0.0, %v7471
        %v7473 = vpop.f32.mrf.mxu0
        %7474 = vmatprep.mubr.bf16.mxu0 0
        %7475 = vmatmul.mubr.bf16.gmra.mxu0 %v7426
        %v7476 = vpop.f32.mrf.mxu0
        %v7477 = vadd.f32 0.0, %v7476
        %v7478 = vpop.f32.mrf.mxu0
        %v7479 = vpop.f32.mrf.mxu0
        %v7480 = vadd.f32 0.0, %v7479
        %v7481 = vpop.f32.mrf.mxu0
        %7482 = vmatprep.mubr.bf16.mxu0 0
        %7483 = vmatmul.mubr.bf16.gmra.mxu0 %v7429
        %v7484 = vpop.f32.mrf.mxu0
        %v7485 = vadd.f32 0.0, %v7484
        %v7486 = vpop.f32.mrf.mxu0
        %v7487 = vpop.f32.mrf.mxu0
        %v7488 = vadd.f32 0.0, %v7487
        %v7489 = vpop.f32.mrf.mxu0
        %7490 = vmatprep.mubr.bf16.mxu0 0
        %7491 = vmatmul.mubr.bf16.gmra.mxu0 %v7432
        %v7492 = vpop.f32.mrf.mxu0
        %v7493 = vadd.f32 0.0, %v7492
        %v7494 = vpop.f32.mrf.mxu0
        %v7495 = vpop.f32.mrf.mxu0
        %v7496 = vadd.f32 0.0, %v7495
        %v7497 = vpop.f32.mrf.mxu0
        %7498 = vdwg.mxu0
        %v7499 = vpack.c.bf16 %v7472, %v7469
        %v7500 = vpack.c.bf16 %v7480, %v7477
        %v7501 = vpack.c.bf16 %v7488, %v7485
        %v7502 = vpack.c.bf16 %v7496, %v7493
        %v7507 = vunpack.c.l.b16 %v7499
        %v7508 = vunpack.c.h.b16 %v7499
        %v7509 = vunpack.c.l.b16 %v7500
        %v7510 = vunpack.c.h.b16 %v7500
        %v7511 = vunpack.c.l.b16 %v7501
        %v7512 = vunpack.c.h.b16 %v7501
        %v7513 = vunpack.c.l.b16 %v7502
        %v7514 = vunpack.c.h.b16 %v7502
        %v7515 = vpack.c.b16 %v7507, %v7507
        %v7516 = vpack.c.b16 %v7508, %v7508
        %v7517 = vpack.c.b16 %v7509, %v7509
        %v7518 = vpack.c.b16 %v7510, %v7510
        %v7519 = vpack.c.b16 %v7511, %v7511
        %v7520 = vpack.c.b16 %v7512, %v7512
        %v7521 = vpack.c.b16 %v7513, %v7513
        %v7522 = vpack.c.b16 %v7514, %v7514
        %7523 = vrot.lane.b32.xlu0 %v7515, 64
        %v7524 = vpop.permute.xlu0 %7523
        %7525 = vrot.lane.b32.xlu0 %v7516, 64
        %v7526 = vpop.permute.xlu0 %7525
        %7527 = vrot.lane.b32.xlu0 %v7517, 64
        %v7528 = vpop.permute.xlu0 %7527
        %7529 = vrot.lane.b32.xlu0 %v7518, 64
        %v7530 = vpop.permute.xlu0 %7529
        %7531 = vrot.lane.b32.xlu0 %v7519, 64
        %v7532 = vpop.permute.xlu0 %7531
        %7533 = vrot.lane.b32.xlu0 %v7520, 64
        %v7534 = vpop.permute.xlu0 %7533
        %7535 = vrot.lane.b32.xlu0 %v7521, 64
        %v7536 = vpop.permute.xlu0 %7535
        %7537 = vrot.lane.b32.xlu0 %v7522, 64
        %v7538 = vpop.permute.xlu0 %7537
        %7547 = vst.msk [vmem:[#allocation3 + $0x60] sm:$0xf] %vm2553, %v7524
        %7548 = vst.msk [vmem:[#allocation3 + $0x64] sm:$0xf] %vm2553, %v7526
        %7549 = vst.msk [vmem:[#allocation3 + $0x68] sm:$0xf] %vm2553, %v7528
        %7550 = vst.msk [vmem:[#allocation3 + $0x6c] sm:$0xf] %vm2553, %v7530
        %7551 = vst.msk [vmem:[#allocation3 + $0x70] sm:$0xf] %vm2553, %v7532
        %7552 = vst.msk [vmem:[#allocation3 + $0x74] sm:$0xf] %vm2553, %v7534
        %7553 = vst.msk [vmem:[#allocation3 + $0x78] sm:$0xf] %vm2553, %v7536
        %7554 = vst.msk [vmem:[#allocation3 + $0x7c] sm:$0xf] %vm2553, %v7538
        %v7555 = vld [vmem:[#allocation2 + $0x120] sm:$0xf]
        %v7556 = vld [vmem:[#allocation2 + $0x12c] sm:$0xf]
        %v7557 = vld [vmem:[#allocation2 + $0x138] sm:$0xf]
        %v7558 = vld [vmem:[#allocation2 + $0x144] sm:$0xf]
        %v7559 = vld [vmem:[#allocation2 + $0x150] sm:$0xf]
        %v7560 = vld [vmem:[#allocation2 + $0x15c] sm:$0xf]
        %v7561 = vld [vmem:[#allocation2 + $0x168] sm:$0xf]
        %v7562 = vld [vmem:[#allocation2 + $0x174] sm:$0xf]
        %v7563 = vld [vmem:[#allocation2 + $0x124] sm:$0xf]
        %v7564 = vld [vmem:[#allocation2 + $0x130] sm:$0xf]
        %v7565 = vld [vmem:[#allocation2 + $0x13c] sm:$0xf]
        %v7566 = vld [vmem:[#allocation2 + $0x148] sm:$0xf]
        %v7567 = vld [vmem:[#allocation2 + $0x154] sm:$0xf]
        %v7568 = vld [vmem:[#allocation2 + $0x160] sm:$0xf]
        %v7569 = vld [vmem:[#allocation2 + $0x16c] sm:$0xf]
        %v7570 = vld [vmem:[#allocation2 + $0x178] sm:$0xf]
        %v7571 = vld [vmem:[#allocation2 + $0x128] sm:$0xf]
        %v7572 = vld [vmem:[#allocation2 + $0x134] sm:$0xf]
        %v7573 = vld [vmem:[#allocation2 + $0x140] sm:$0xf]
        %v7574 = vld [vmem:[#allocation2 + $0x14c] sm:$0xf]
        %v7575 = vld [vmem:[#allocation2 + $0x158] sm:$0xf]
        %v7576 = vld [vmem:[#allocation2 + $0x164] sm:$0xf]
        %v7577 = vld [vmem:[#allocation2 + $0x170] sm:$0xf]
        %v7578 = vld [vmem:[#allocation2 + $0x17c] sm:$0xf]
        %v7587 = vunpack.c.l.b16 %v7555
        %v7588 = vunpack.c.l.b16 %v7556
        %v7589 = vunpack.c.l.b16 %v7557
        %v7590 = vunpack.c.l.b16 %v7558
        %v7591 = vunpack.c.l.b16 %v7559
        %v7592 = vunpack.c.l.b16 %v7560
        %v7593 = vunpack.c.l.b16 %v7561
        %v7594 = vunpack.c.l.b16 %v7562
        %v7595 = vpack.c.b16 %v7588, %v7587
        %v7596 = vpack.c.b16 %v7590, %v7589
        %v7597 = vpack.c.b16 %v7592, %v7591
        %v7598 = vpack.c.b16 %v7594, %v7593
        %7599 = vrot.lane.b32.xlu0 %v7595, 32
        %v7600 = vpop.permute.xlu0 %7599
        %7601 = vrot.lane.b32.xlu0 %v7596, 32
        %v7602 = vpop.permute.xlu0 %7601
        %7603 = vrot.lane.b32.xlu0 %v7597, 32
        %v7604 = vpop.permute.xlu0 %7603
        %7605 = vrot.lane.b32.xlu0 %v7598, 32
        %v7606 = vpop.permute.xlu0 %7605
        %v7615 = vunpack.c.l.b16 %v7563
        %v7616 = vunpack.c.l.b16 %v7564
        %v7617 = vunpack.c.l.b16 %v7565
        %v7618 = vunpack.c.l.b16 %v7566
        %v7619 = vunpack.c.l.b16 %v7567
        %v7620 = vunpack.c.l.b16 %v7568
        %v7621 = vunpack.c.l.b16 %v7569
        %v7622 = vunpack.c.l.b16 %v7570
        %v7623 = vpack.c.b16 %v7616, %v7615
        %v7624 = vpack.c.b16 %v7618, %v7617
        %v7625 = vpack.c.b16 %v7620, %v7619
        %v7626 = vpack.c.b16 %v7622, %v7621
        %7627 = vrot.lane.b32.xlu0 %v7623, 32
        %v7628 = vpop.permute.xlu0 %7627
        %7629 = vrot.lane.b32.xlu0 %v7624, 32
        %v7630 = vpop.permute.xlu0 %7629
        %7631 = vrot.lane.b32.xlu0 %v7625, 32
        %v7632 = vpop.permute.xlu0 %7631
        %7633 = vrot.lane.b32.xlu0 %v7626, 32
        %v7634 = vpop.permute.xlu0 %7633
        %v7636 = vsel %vm1383, %v7600, 0
        %v7639 = vsel %vm1383, %v7602, 0
        %v7642 = vsel %vm1383, %v7604, 0
        %v7645 = vsel %vm1383, %v7606, 0
        %v7648 = vsel %vm1383, %v7628, 0
        %v7651 = vsel %vm1383, %v7630, 0
        %v7654 = vsel %vm1383, %v7632, 0
        %v7657 = vsel %vm1383, %v7634, 0
        %7659 = vmatprep.subr.bf16.mxu0 0
        %7660 = vmatpush1.bf16.xpose.msra.mxu0 0
        %7661 = vmatprep.subr.bf16.mxu0 0
        %7662 = vmatpush1.bf16.xpose.msra.mxu0 0
        %7663 = vmatprep.subr.bf16.mxu0 0
        %7664 = vmatpush1.bf16.xpose.msra.mxu0 0
        %7665 = vmatprep.subr.bf16.mxu0 0
        %7666 = vmatpush1.bf16.xpose.msra.mxu0 0
        %7667 = vmatprep.subr.bf16.mxu0 0
        %7668 = vmatpush1.bf16.xpose.msra.mxu0 %v7657
        %7669 = vmatprep.subr.bf16.mxu0 0
        %7670 = vmatpush1.bf16.xpose.msra.mxu0 %v7654
        %7671 = vmatprep.subr.bf16.mxu0 0
        %7672 = vmatpush1.bf16.xpose.msra.mxu0 %v7651
        %7673 = vmatprep.subr.bf16.mxu0 0
        %7674 = vmatpush1.bf16.xpose.msra.mxu0 %v7648
        %7675 = vmatprep.subr.bf16.mxu0 0
        %7676 = vmatpush2.bf16.xpose.msra.mxu0 0
        %7677 = vmatprep.subr.bf16.mxu0 0
        %7678 = vmatpush2.bf16.xpose.msra.mxu0 0
        %7679 = vmatprep.subr.bf16.mxu0 0
        %7680 = vmatpush2.bf16.xpose.msra.mxu0 0
        %7681 = vmatprep.subr.bf16.mxu0 0
        %7682 = vmatpush2.bf16.xpose.msra.mxu0 0
        %7683 = vmatprep.subr.bf16.mxu0 0
        %7684 = vmatpush2.bf16.xpose.msra.mxu0 0
        %7685 = vmatprep.subr.bf16.mxu0 0
        %7686 = vmatpush2.bf16.xpose.msra.mxu0 0
        %7687 = vmatprep.subr.bf16.mxu0 0
        %7688 = vmatpush2.bf16.xpose.msra.mxu0 0
        %7689 = vmatprep.subr.bf16.mxu0 0
        %7690 = vmatpush2.bf16.xpose.msra.mxu0 0
        %7691 = vmatprep.mubr.bf16.mxu0 0
        %7692 = vmatmul.mubr.bf16.gmra.mxu0 %v7636
        %v7693 = vpop.f32.mrf.mxu0
        %v7694 = vadd.f32 0.0, %v7693
        %v7695 = vpop.f32.mrf.mxu0
        %v7696 = vpop.f32.mrf.mxu0
        %v7697 = vadd.f32 0.0, %v7696
        %v7698 = vpop.f32.mrf.mxu0
        %7699 = vmatprep.mubr.bf16.mxu0 0
        %7700 = vmatmul.mubr.bf16.gmra.mxu0 %v7639
        %v7701 = vpop.f32.mrf.mxu0
        %v7702 = vadd.f32 0.0, %v7701
        %v7703 = vpop.f32.mrf.mxu0
        %v7704 = vpop.f32.mrf.mxu0
        %v7705 = vadd.f32 0.0, %v7704
        %v7706 = vpop.f32.mrf.mxu0
        %7707 = vmatprep.mubr.bf16.mxu0 0
        %7708 = vmatmul.mubr.bf16.gmra.mxu0 %v7642
        %v7709 = vpop.f32.mrf.mxu0
        %v7710 = vadd.f32 0.0, %v7709
        %v7711 = vpop.f32.mrf.mxu0
        %v7712 = vpop.f32.mrf.mxu0
        %v7713 = vadd.f32 0.0, %v7712
        %v7714 = vpop.f32.mrf.mxu0
        %7715 = vmatprep.mubr.bf16.mxu0 0
        %7716 = vmatmul.mubr.bf16.gmra.mxu0 %v7645
        %v7717 = vpop.f32.mrf.mxu0
        %v7718 = vadd.f32 0.0, %v7717
        %v7719 = vpop.f32.mrf.mxu0
        %v7720 = vpop.f32.mrf.mxu0
        %v7721 = vadd.f32 0.0, %v7720
        %v7722 = vpop.f32.mrf.mxu0
        %7723 = vdwg.mxu0
        %v7724 = vsel %vm1473, %v7694, -inf
        %7725 = vmax.xlane.f32.xlu0 %v7724
        %v7726 = vpop.xlane.xlu0 %7725
        %v7727 = vsel %vm1473, %v7697, -inf
        %7728 = vmax.xlane.f32.xlu0 %v7727
        %v7729 = vpop.xlane.xlu0 %7728
        %v7730 = vsel %vm1473, %v7702, -inf
        %7731 = vmax.xlane.f32.xlu0 %v7730
        %v7732 = vpop.xlane.xlu0 %7731
        %v7733 = vsel %vm1473, %v7705, -inf
        %7734 = vmax.xlane.f32.xlu0 %v7733
        %v7735 = vpop.xlane.xlu0 %7734
        %v7736 = vsel %vm1473, %v7710, -inf
        %7737 = vmax.xlane.f32.xlu0 %v7736
        %v7738 = vpop.xlane.xlu0 %7737
        %v7739 = vsel %vm1473, %v7713, -inf
        %7740 = vmax.xlane.f32.xlu0 %v7739
        %v7741 = vpop.xlane.xlu0 %7740
        %v7742 = vsel %vm1473, %v7718, -inf
        %7743 = vmax.xlane.f32.xlu0 %v7742
        %v7744 = vpop.xlane.xlu0 %7743
        %v7745 = vsel %vm1473, %v7721, -inf
        %7746 = vmax.xlane.f32.xlu0 %v7745
        %v7747 = vpop.xlane.xlu0 %7746
        %v7748 = vsub.f32 %v7694, %v7726
        %v7749 = vsub.f32 %v7697, %v7729
        %v7750 = vsub.f32 %v7702, %v7732
        %v7751 = vsub.f32 %v7705, %v7735
        %v7752 = vsub.f32 %v7710, %v7738
        %v7753 = vsub.f32 %v7713, %v7741
        %v7754 = vsub.f32 %v7718, %v7744
        %v7755 = vsub.f32 %v7721, %v7747
        %v7756 = vmul.f32 %v7748, 1.442695
        %v7757 = vpow.pop %v7756
        %v7758 = vmul.f32 %v7749, 1.442695
        %v7759 = vpow.pop %v7758
        %v7760 = vmul.f32 %v7750, 1.442695
        %v7761 = vpow.pop %v7760
        %v7762 = vmul.f32 %v7751, 1.442695
        %v7763 = vpow.pop %v7762
        %v7764 = vmul.f32 %v7752, 1.442695
        %v7765 = vpow.pop %v7764
        %v7766 = vmul.f32 %v7753, 1.442695
        %v7767 = vpow.pop %v7766
        %v7768 = vmul.f32 %v7754, 1.442695
        %v7769 = vpow.pop %v7768
        %v7770 = vmul.f32 %v7755, 1.442695
        %v7771 = vpow.pop %v7770
        %v7772 = vsel %vm1473, %v7757, 0.0
        %7773 = vadd.xlane.f32.xlu0 %v7772
        %v7774 = vpop.xlane.xlu0 %7773
        %v7775 = vsel %vm1473, %v7759, 0.0
        %7776 = vadd.xlane.f32.xlu0 %v7775
        %v7777 = vpop.xlane.xlu0 %7776
        %v7778 = vsel %vm1473, %v7761, 0.0
        %7779 = vadd.xlane.f32.xlu0 %v7778
        %v7780 = vpop.xlane.xlu0 %7779
        %v7781 = vsel %vm1473, %v7763, 0.0
        %7782 = vadd.xlane.f32.xlu0 %v7781
        %v7783 = vpop.xlane.xlu0 %7782
        %v7784 = vsel %vm1473, %v7765, 0.0
        %7785 = vadd.xlane.f32.xlu0 %v7784
        %v7786 = vpop.xlane.xlu0 %7785
        %v7787 = vsel %vm1473, %v7767, 0.0
        %7788 = vadd.xlane.f32.xlu0 %v7787
        %v7789 = vpop.xlane.xlu0 %7788
        %v7790 = vsel %vm1473, %v7769, 0.0
        %7791 = vadd.xlane.f32.xlu0 %v7790
        %v7792 = vpop.xlane.xlu0 %7791
        %v7793 = vsel %vm1473, %v7771, 0.0
        %7794 = vadd.xlane.f32.xlu0 %v7793
        %v7795 = vpop.xlane.xlu0 %7794
        %v7796 = vrcp.pop %v7774
        %v7797 = vrcp.pop %v7777
        %v7798 = vrcp.pop %v7780
        %v7799 = vrcp.pop %v7783
        %v7800 = vrcp.pop %v7786
        %v7801 = vrcp.pop %v7789
        %v7802 = vrcp.pop %v7792
        %v7803 = vrcp.pop %v7795
        %v7804 = vmul.f32 %v7757, %v7796
        %v7805 = vmul.f32 %v7759, %v7797
        %v7806 = vmul.f32 %v7761, %v7798
        %v7807 = vmul.f32 %v7763, %v7799
        %v7808 = vmul.f32 %v7765, %v7800
        %v7809 = vmul.f32 %v7767, %v7801
        %v7810 = vmul.f32 %v7769, %v7802
        %v7811 = vmul.f32 %v7771, %v7803
        %v7812 = vpack.c.bf16 %v7805, %v7804
        %v7813 = vpack.c.bf16 %v7807, %v7806
        %v7814 = vpack.c.bf16 %v7809, %v7808
        %v7815 = vpack.c.bf16 %v7811, %v7810
        %v7824 = vunpack.c.l.b16 %v7571
        %v7825 = vunpack.c.l.b16 %v7572
        %v7826 = vunpack.c.l.b16 %v7573
        %v7827 = vunpack.c.l.b16 %v7574
        %v7828 = vunpack.c.l.b16 %v7575
        %v7829 = vunpack.c.l.b16 %v7576
        %v7830 = vunpack.c.l.b16 %v7577
        %v7831 = vunpack.c.l.b16 %v7578
        %v7832 = vpack.c.b16 %v7825, %v7824
        %v7833 = vpack.c.b16 %v7827, %v7826
        %v7834 = vpack.c.b16 %v7829, %v7828
        %v7835 = vpack.c.b16 %v7831, %v7830
        %7836 = vrot.lane.b32.xlu0 %v7832, 32
        %v7837 = vpop.permute.xlu0 %7836
        %7838 = vrot.lane.b32.xlu0 %v7833, 32
        %v7839 = vpop.permute.xlu0 %7838
        %7840 = vrot.lane.b32.xlu0 %v7834, 32
        %v7841 = vpop.permute.xlu0 %7840
        %7842 = vrot.lane.b32.xlu0 %v7835, 32
        %v7843 = vpop.permute.xlu0 %7842
        %v7849 = vsel %vm1473, %v7812, 0
        %v7852 = vsel %vm1473, %v7813, 0
        %v7855 = vsel %vm1473, %v7814, 0
        %v7858 = vsel %vm1473, %v7815, 0
        %7860 = vmatprep.subr.bf16.mxu0 0
        %7861 = vmatpush1.bf16.msra.mxu0 0
        %7862 = vmatprep.subr.bf16.mxu0 0
        %7863 = vmatpush1.bf16.msra.mxu0 0
        %7864 = vmatprep.subr.bf16.mxu0 0
        %7865 = vmatpush1.bf16.msra.mxu0 0
        %7866 = vmatprep.subr.bf16.mxu0 0
        %7867 = vmatpush1.bf16.msra.mxu0 0
        %7868 = vmatprep.subr.bf16.mxu0 0
        %7869 = vmatpush1.bf16.msra.mxu0 %v7843
        %7870 = vmatprep.subr.bf16.mxu0 0
        %7871 = vmatpush1.bf16.msra.mxu0 %v7841
        %7872 = vmatprep.subr.bf16.mxu0 0
        %7873 = vmatpush1.bf16.msra.mxu0 %v7839
        %7874 = vmatprep.subr.bf16.mxu0 0
        %7875 = vmatpush1.bf16.msra.mxu0 %v7837
        %7876 = vmatprep.subr.bf16.mxu0 0
        %7877 = vmatpush2.bf16.msra.mxu0 0
        %7878 = vmatprep.subr.bf16.mxu0 0
        %7879 = vmatpush2.bf16.msra.mxu0 0
        %7880 = vmatprep.subr.bf16.mxu0 0
        %7881 = vmatpush2.bf16.msra.mxu0 0
        %7882 = vmatprep.subr.bf16.mxu0 0
        %7883 = vmatpush2.bf16.msra.mxu0 0
        %7884 = vmatprep.subr.bf16.mxu0 0
        %7885 = vmatpush2.bf16.msra.mxu0 0
        %7886 = vmatprep.subr.bf16.mxu0 0
        %7887 = vmatpush2.bf16.msra.mxu0 0
        %7888 = vmatprep.subr.bf16.mxu0 0
        %7889 = vmatpush2.bf16.msra.mxu0 0
        %7890 = vmatprep.subr.bf16.mxu0 0
        %7891 = vmatpush2.bf16.msra.mxu0 0
        %7892 = vmatprep.mubr.bf16.mxu0 0
        %7893 = vmatmul.mubr.bf16.gmra.mxu0 %v7849
        %v7894 = vpop.f32.mrf.mxu0
        %v7895 = vadd.f32 0.0, %v7894
        %v7896 = vpop.f32.mrf.mxu0
        %v7897 = vpop.f32.mrf.mxu0
        %v7898 = vadd.f32 0.0, %v7897
        %v7899 = vpop.f32.mrf.mxu0
        %7900 = vmatprep.mubr.bf16.mxu0 0
        %7901 = vmatmul.mubr.bf16.gmra.mxu0 %v7852
        %v7902 = vpop.f32.mrf.mxu0
        %v7903 = vadd.f32 0.0, %v7902
        %v7904 = vpop.f32.mrf.mxu0
        %v7905 = vpop.f32.mrf.mxu0
        %v7906 = vadd.f32 0.0, %v7905
        %v7907 = vpop.f32.mrf.mxu0
        %7908 = vmatprep.mubr.bf16.mxu0 0
        %7909 = vmatmul.mubr.bf16.gmra.mxu0 %v7855
        %v7910 = vpop.f32.mrf.mxu0
        %v7911 = vadd.f32 0.0, %v7910
        %v7912 = vpop.f32.mrf.mxu0
        %v7913 = vpop.f32.mrf.mxu0
        %v7914 = vadd.f32 0.0, %v7913
        %v7915 = vpop.f32.mrf.mxu0
        %7916 = vmatprep.mubr.bf16.mxu0 0
        %7917 = vmatmul.mubr.bf16.gmra.mxu0 %v7858
        %v7918 = vpop.f32.mrf.mxu0
        %v7919 = vadd.f32 0.0, %v7918
        %v7920 = vpop.f32.mrf.mxu0
        %v7921 = vpop.f32.mrf.mxu0
        %v7922 = vadd.f32 0.0, %v7921
        %v7923 = vpop.f32.mrf.mxu0
        %7924 = vdwg.mxu0
        %v7925 = vpack.c.bf16 %v7898, %v7895
        %v7926 = vpack.c.bf16 %v7906, %v7903
        %v7927 = vpack.c.bf16 %v7914, %v7911
        %v7928 = vpack.c.bf16 %v7922, %v7919
        %v7933 = vunpack.c.l.b16 %v7925
        %v7934 = vunpack.c.h.b16 %v7925
        %v7935 = vunpack.c.l.b16 %v7926
        %v7936 = vunpack.c.h.b16 %v7926
        %v7937 = vunpack.c.l.b16 %v7927
        %v7938 = vunpack.c.h.b16 %v7927
        %v7939 = vunpack.c.l.b16 %v7928
        %v7940 = vunpack.c.h.b16 %v7928
        %v7941 = vpack.c.b16 %v7933, %v7933
        %v7942 = vpack.c.b16 %v7934, %v7934
        %v7943 = vpack.c.b16 %v7935, %v7935
        %v7944 = vpack.c.b16 %v7936, %v7936
        %v7945 = vpack.c.b16 %v7937, %v7937
        %v7946 = vpack.c.b16 %v7938, %v7938
        %v7947 = vpack.c.b16 %v7939, %v7939
        %v7948 = vpack.c.b16 %v7940, %v7940
        %7949 = vrot.lane.b32.xlu0 %v7941, 96
        %v7950 = vpop.permute.xlu0 %7949
        %7951 = vrot.lane.b32.xlu0 %v7942, 96
        %v7952 = vpop.permute.xlu0 %7951
        %7953 = vrot.lane.b32.xlu0 %v7943, 96
        %v7954 = vpop.permute.xlu0 %7953
        %7955 = vrot.lane.b32.xlu0 %v7944, 96
        %v7956 = vpop.permute.xlu0 %7955
        %7957 = vrot.lane.b32.xlu0 %v7945, 96
        %v7958 = vpop.permute.xlu0 %7957
        %7959 = vrot.lane.b32.xlu0 %v7946, 96
        %v7960 = vpop.permute.xlu0 %7959
        %7961 = vrot.lane.b32.xlu0 %v7947, 96
        %v7962 = vpop.permute.xlu0 %7961
        %7963 = vrot.lane.b32.xlu0 %v7948, 96
        %v7964 = vpop.permute.xlu0 %7963
        %7973 = vst.msk [vmem:[#allocation3 + $0x60] sm:$0xf] %vm2980, %v7950
        %7974 = vst.msk [vmem:[#allocation3 + $0x64] sm:$0xf] %vm2980, %v7952
        %7975 = vst.msk [vmem:[#allocation3 + $0x68] sm:$0xf] %vm2980, %v7954
        %7976 = vst.msk [vmem:[#allocation3 + $0x6c] sm:$0xf] %vm2980, %v7956
        %7977 = vst.msk [vmem:[#allocation3 + $0x70] sm:$0xf] %vm2980, %v7958
        %7978 = vst.msk [vmem:[#allocation3 + $0x74] sm:$0xf] %vm2980, %v7960
        %7979 = vst.msk [vmem:[#allocation3 + $0x78] sm:$0xf] %vm2980, %v7962
        %7980 = vst.msk [vmem:[#allocation3 + $0x7c] sm:$0xf] %vm2980, %v7964
        %v7981 = vld [vmem:[#allocation3] sm:$0xf]
        %v7982 = vld [vmem:[#allocation3 + $0x4] sm:$0xf]
        %v7983 = vld [vmem:[#allocation3 + $0x8] sm:$0xf]
        %v7984 = vld [vmem:[#allocation3 + $0xc] sm:$0xf]
        %v7985 = vld [vmem:[#allocation3 + $0x10] sm:$0xf]
        %v7986 = vld [vmem:[#allocation3 + $0x14] sm:$0xf]
        %v7987 = vld [vmem:[#allocation3 + $0x18] sm:$0xf]
        %v7988 = vld [vmem:[#allocation3 + $0x1c] sm:$0xf]
        %v7989 = vld [vmem:[#allocation3 + $0x20] sm:$0xf]
        %v7990 = vld [vmem:[#allocation3 + $0x24] sm:$0xf]
        %v7991 = vld [vmem:[#allocation3 + $0x28] sm:$0xf]
        %v7992 = vld [vmem:[#allocation3 + $0x2c] sm:$0xf]
        %v7993 = vld [vmem:[#allocation3 + $0x30] sm:$0xf]
        %v7994 = vld [vmem:[#allocation3 + $0x34] sm:$0xf]
        %v7995 = vld [vmem:[#allocation3 + $0x38] sm:$0xf]
        %v7996 = vld [vmem:[#allocation3 + $0x3c] sm:$0xf]
        %v7997 = vld [vmem:[#allocation3 + $0x40] sm:$0xf]
        %v7998 = vld [vmem:[#allocation3 + $0x44] sm:$0xf]
        %v7999 = vld [vmem:[#allocation3 + $0x48] sm:$0xf]
        %v8000 = vld [vmem:[#allocation3 + $0x4c] sm:$0xf]
        %v8001 = vld [vmem:[#allocation3 + $0x50] sm:$0xf]
        %v8002 = vld [vmem:[#allocation3 + $0x54] sm:$0xf]
        %v8003 = vld [vmem:[#allocation3 + $0x58] sm:$0xf]
        %v8004 = vld [vmem:[#allocation3 + $0x5c] sm:$0xf]
        %v8005 = vld [vmem:[#allocation3 + $0x60] sm:$0xf]
        %v8006 = vld [vmem:[#allocation3 + $0x64] sm:$0xf]
        %v8007 = vld [vmem:[#allocation3 + $0x68] sm:$0xf]
        %v8008 = vld [vmem:[#allocation3 + $0x6c] sm:$0xf]
        %v8009 = vld [vmem:[#allocation3 + $0x70] sm:$0xf]
        %v8010 = vld [vmem:[#allocation3 + $0x74] sm:$0xf]
        %v8011 = vld [vmem:[#allocation3 + $0x78] sm:$0xf]
        %v8012 = vld [vmem:[#allocation3 + $0x7c] sm:$0xf]
        %v8013 = vld [vmem:[#allocation9] sm:$0xf]
        %v8014 = vld [vmem:[#allocation9 + $0x4] sm:$0xf]
        %v8015 = vld [vmem:[#allocation9 + $0x8] sm:$0xf]
        %v8016 = vld [vmem:[#allocation9 + $0xc] sm:$0xf]
        %v8017 = vld [vmem:[#allocation9 + $0x10] sm:$0xf]
        %v8018 = vld [vmem:[#allocation9 + $0x14] sm:$0xf]
        %v8019 = vld [vmem:[#allocation9 + $0x18] sm:$0xf]
        %v8020 = vld [vmem:[#allocation9 + $0x1c] sm:$0xf]
        %v8021 = vld [vmem:[#allocation9 + $0x20] sm:$0xf]
        %v8022 = vld [vmem:[#allocation9 + $0x24] sm:$0xf]
        %v8023 = vld [vmem:[#allocation9 + $0x28] sm:$0xf]
        %v8024 = vld [vmem:[#allocation9 + $0x2c] sm:$0xf]
        %v8025 = vld [vmem:[#allocation9 + $0x30] sm:$0xf]
        %v8026 = vld [vmem:[#allocation9 + $0x34] sm:$0xf]
        %v8027 = vld [vmem:[#allocation9 + $0x38] sm:$0xf]
        %v8028 = vld [vmem:[#allocation9 + $0x3c] sm:$0xf]
        %v8029 = vld [vmem:[%s4] sm:$0x1]
        %v8031 = vlaneseq
        %v8032 = vshrl.u32 %v8031, 7
        %v8033 = vsub.s32 0, %v8032
        %v8034 = vrot.slane %v8029, %v8033
        %v8068 = vunpack.c.l.b16 %v7981
        %v8069 = vunpack.c.l.b16 %v7982
        %v8070 = vunpack.c.l.b16 %v7983
        %v8071 = vunpack.c.l.b16 %v7984
        %v8072 = vunpack.c.l.b16 %v7985
        %v8073 = vunpack.c.l.b16 %v7986
        %v8074 = vunpack.c.l.b16 %v7987
        %v8075 = vunpack.c.l.b16 %v7988
        %v8076 = vunpack.c.l.b16 %v7989
        %v8077 = vunpack.c.l.b16 %v7990
        %v8078 = vunpack.c.l.b16 %v7991
        %v8079 = vunpack.c.l.b16 %v7992
        %v8080 = vunpack.c.l.b16 %v7993
        %v8081 = vunpack.c.l.b16 %v7994
        %v8082 = vunpack.c.l.b16 %v7995
        %v8083 = vunpack.c.l.b16 %v7996
        %v8084 = vunpack.c.l.b16 %v7997
        %v8085 = vunpack.c.l.b16 %v7998
        %v8086 = vunpack.c.l.b16 %v7999
        %v8087 = vunpack.c.l.b16 %v8000
        %v8088 = vunpack.c.l.b16 %v8001
        %v8089 = vunpack.c.l.b16 %v8002
        %v8090 = vunpack.c.l.b16 %v8003
        %v8091 = vunpack.c.l.b16 %v8004
        %v8092 = vunpack.c.l.b16 %v8005
        %v8093 = vunpack.c.l.b16 %v8006
        %v8094 = vunpack.c.l.b16 %v8007
        %v8095 = vunpack.c.l.b16 %v8008
        %v8096 = vunpack.c.l.b16 %v8009
        %v8097 = vunpack.c.l.b16 %v8010
        %v8098 = vunpack.c.l.b16 %v8011
        %v8099 = vunpack.c.l.b16 %v8012
        %v8100 = vpack.c.b16 %v8069, %v8068
        %v8101 = vpack.c.b16 %v8071, %v8070
        %v8102 = vpack.c.b16 %v8073, %v8072
        %v8103 = vpack.c.b16 %v8075, %v8074
        %v8104 = vpack.c.b16 %v8077, %v8076
        %v8105 = vpack.c.b16 %v8079, %v8078
        %v8106 = vpack.c.b16 %v8081, %v8080
        %v8107 = vpack.c.b16 %v8083, %v8082
        %v8108 = vpack.c.b16 %v8085, %v8084
        %v8109 = vpack.c.b16 %v8087, %v8086
        %v8110 = vpack.c.b16 %v8089, %v8088
        %v8111 = vpack.c.b16 %v8091, %v8090
        %v8112 = vpack.c.b16 %v8093, %v8092
        %v8113 = vpack.c.b16 %v8095, %v8094
        %v8114 = vpack.c.b16 %v8097, %v8096
        %v8115 = vpack.c.b16 %v8099, %v8098
        %v8148 = vunpack.c.l.b16 %v8013
        %v8149 = vunpack.c.l.b16 %v8014
        %v8150 = vunpack.c.l.b16 %v8015
        %v8151 = vunpack.c.l.b16 %v8016
        %v8152 = vunpack.c.l.b16 %v8017
        %v8153 = vunpack.c.l.b16 %v8018
        %v8154 = vunpack.c.l.b16 %v8019
        %v8155 = vunpack.c.l.b16 %v8020
        %v8156 = vunpack.c.l.b16 %v8021
        %v8157 = vunpack.c.l.b16 %v8022
        %v8158 = vunpack.c.l.b16 %v8023
        %v8159 = vunpack.c.l.b16 %v8024
        %v8160 = vunpack.c.l.b16 %v8025
        %v8161 = vunpack.c.l.b16 %v8026
        %v8162 = vunpack.c.l.b16 %v8027
        %v8163 = vunpack.c.l.b16 %v8028
        %v8164 = vpack.c.b16 %v8149, %v8148
        %v8165 = vpack.c.b16 %v8151, %v8150
        %v8166 = vpack.c.b16 %v8153, %v8152
        %v8167 = vpack.c.b16 %v8155, %v8154
        %v8168 = vpack.c.b16 %v8157, %v8156
        %v8169 = vpack.c.b16 %v8159, %v8158
        %v8170 = vpack.c.b16 %v8161, %v8160
        %v8171 = vpack.c.b16 %v8163, %v8162
        %8180 = vmatprep.subr.bf16.mxu0 0
        %8181 = vmatpush1.bf16.msra.mxu0 %v8171
        %8182 = vmatprep.subr.bf16.mxu0 0
        %8183 = vmatpush1.bf16.msra.mxu0 %v8170
        %8184 = vmatprep.subr.bf16.mxu0 0
        %8185 = vmatpush1.bf16.msra.mxu0 %v8169
        %8186 = vmatprep.subr.bf16.mxu0 0
        %8187 = vmatpush1.bf16.msra.mxu0 %v8168
        %8188 = vmatprep.subr.bf16.mxu0 0
        %8189 = vmatpush1.bf16.msra.mxu0 %v8167
        %8190 = vmatprep.subr.bf16.mxu0 0
        %8191 = vmatpush1.bf16.msra.mxu0 %v8166
        %8192 = vmatprep.subr.bf16.mxu0 0
        %8193 = vmatpush1.bf16.msra.mxu0 %v8165
        %8194 = vmatprep.subr.bf16.mxu0 0
        %8195 = vmatpush1.bf16.msra.mxu0 %v8164
        %8196 = vmatprep.subr.bf16.mxu0 0
        %8197 = vmatpush2.bf16.msra.mxu0 0
        %8198 = vmatprep.subr.bf16.mxu0 0
        %8199 = vmatpush2.bf16.msra.mxu0 0
        %8200 = vmatprep.subr.bf16.mxu0 0
        %8201 = vmatpush2.bf16.msra.mxu0 0
        %8202 = vmatprep.subr.bf16.mxu0 0
        %8203 = vmatpush2.bf16.msra.mxu0 0
        %8204 = vmatprep.subr.bf16.mxu0 0
        %8205 = vmatpush2.bf16.msra.mxu0 0
        %8206 = vmatprep.subr.bf16.mxu0 0
        %8207 = vmatpush2.bf16.msra.mxu0 0
        %8208 = vmatprep.subr.bf16.mxu0 0
        %8209 = vmatpush2.bf16.msra.mxu0 0
        %8210 = vmatprep.subr.bf16.mxu0 0
        %8211 = vmatpush2.bf16.msra.mxu0 0
        %8212 = vmatprep.mubr.bf16.mxu0 0
        %8213 = vmatmul.mubr.bf16.gmra.mxu0 %v8100
        %v8214 = vpop.f32.mrf.mxu0
        %v8215 = vadd.f32 %v8034, %v8214
        %v8216 = vpop.f32.mrf.mxu0
        %v8217 = vpop.f32.mrf.mxu0
        %v8218 = vadd.f32 %v8034, %v8217
        %v8219 = vpop.f32.mrf.mxu0
        %8220 = vmatprep.mubr.bf16.mxu0 0
        %8221 = vmatmul.mubr.bf16.gmra.mxu0 %v8101
        %v8222 = vpop.f32.mrf.mxu0
        %v8223 = vadd.f32 %v8034, %v8222
        %v8224 = vpop.f32.mrf.mxu0
        %v8225 = vpop.f32.mrf.mxu0
        %v8226 = vadd.f32 %v8034, %v8225
        %v8227 = vpop.f32.mrf.mxu0
        %8228 = vmatprep.mubr.bf16.mxu0 0
        %8229 = vmatmul.mubr.bf16.gmra.mxu0 %v8102
        %v8230 = vpop.f32.mrf.mxu0
        %v8231 = vadd.f32 %v8034, %v8230
        %v8232 = vpop.f32.mrf.mxu0
        %v8233 = vpop.f32.mrf.mxu0
        %v8234 = vadd.f32 %v8034, %v8233
        %v8235 = vpop.f32.mrf.mxu0
        %8236 = vmatprep.mubr.bf16.mxu0 0
        %8237 = vmatmul.mubr.bf16.gmra.mxu0 %v8103
        %v8238 = vpop.f32.mrf.mxu0
        %v8239 = vadd.f32 %v8034, %v8238
        %v8240 = vpop.f32.mrf.mxu0
        %v8241 = vpop.f32.mrf.mxu0
        %v8242 = vadd.f32 %v8034, %v8241
        %v8243 = vpop.f32.mrf.mxu0
        %8244 = vmatprep.mubr.bf16.mxu0 0
        %8245 = vmatmul.mubr.bf16.gmra.mxu0 %v8104
        %v8246 = vpop.f32.mrf.mxu0
        %v8247 = vadd.f32 %v8034, %v8246
        %v8248 = vpop.f32.mrf.mxu0
        %v8249 = vpop.f32.mrf.mxu0
        %v8250 = vadd.f32 %v8034, %v8249
        %v8251 = vpop.f32.mrf.mxu0
        %8252 = vmatprep.mubr.bf16.mxu0 0
        %8253 = vmatmul.mubr.bf16.gmra.mxu0 %v8105
        %v8254 = vpop.f32.mrf.mxu0
        %v8255 = vadd.f32 %v8034, %v8254
        %v8256 = vpop.f32.mrf.mxu0
        %v8257 = vpop.f32.mrf.mxu0
        %v8258 = vadd.f32 %v8034, %v8257
        %v8259 = vpop.f32.mrf.mxu0
        %8260 = vmatprep.mubr.bf16.mxu0 0
        %8261 = vmatmul.mubr.bf16.gmra.mxu0 %v8106
        %v8262 = vpop.f32.mrf.mxu0
        %v8263 = vadd.f32 %v8034, %v8262
        %v8264 = vpop.f32.mrf.mxu0
        %v8265 = vpop.f32.mrf.mxu0
        %v8266 = vadd.f32 %v8034, %v8265
        %v8267 = vpop.f32.mrf.mxu0
        %8268 = vmatprep.mubr.bf16.mxu0 0
        %8269 = vmatmul.mubr.bf16.gmra.mxu0 %v8107
        %v8270 = vpop.f32.mrf.mxu0
        %v8271 = vadd.f32 %v8034, %v8270
        %v8272 = vpop.f32.mrf.mxu0
        %v8273 = vpop.f32.mrf.mxu0
        %v8274 = vadd.f32 %v8034, %v8273
        %v8275 = vpop.f32.mrf.mxu0
        %8276 = vmatprep.mubr.bf16.mxu0 0
        %8277 = vmatmul.mubr.bf16.gmra.mxu0 %v8108
        %v8278 = vpop.f32.mrf.mxu0
        %v8279 = vadd.f32 %v8034, %v8278
        %v8280 = vpop.f32.mrf.mxu0
        %v8281 = vpop.f32.mrf.mxu0
        %v8282 = vadd.f32 %v8034, %v8281
        %v8283 = vpop.f32.mrf.mxu0
        %8284 = vmatprep.mubr.bf16.mxu0 0
        %8285 = vmatmul.mubr.bf16.gmra.mxu0 %v8109
        %v8286 = vpop.f32.mrf.mxu0
        %v8287 = vadd.f32 %v8034, %v8286
        %v8288 = vpop.f32.mrf.mxu0
        %v8289 = vpop.f32.mrf.mxu0
        %v8290 = vadd.f32 %v8034, %v8289
        %v8291 = vpop.f32.mrf.mxu0
        %8292 = vmatprep.mubr.bf16.mxu0 0
        %8293 = vmatmul.mubr.bf16.gmra.mxu0 %v8110
        %v8294 = vpop.f32.mrf.mxu0
        %v8295 = vadd.f32 %v8034, %v8294
        %v8296 = vpop.f32.mrf.mxu0
        %v8297 = vpop.f32.mrf.mxu0
        %v8298 = vadd.f32 %v8034, %v8297
        %v8299 = vpop.f32.mrf.mxu0
        %8300 = vmatprep.mubr.bf16.mxu0 0
        %8301 = vmatmul.mubr.bf16.gmra.mxu0 %v8111
        %v8302 = vpop.f32.mrf.mxu0
        %v8303 = vadd.f32 %v8034, %v8302
        %v8304 = vpop.f32.mrf.mxu0
        %v8305 = vpop.f32.mrf.mxu0
        %v8306 = vadd.f32 %v8034, %v8305
        %v8307 = vpop.f32.mrf.mxu0
        %8308 = vmatprep.mubr.bf16.mxu0 0
        %8309 = vmatmul.mubr.bf16.gmra.mxu0 %v8112
        %v8310 = vpop.f32.mrf.mxu0
        %v8311 = vadd.f32 %v8034, %v8310
        %v8312 = vpop.f32.mrf.mxu0
        %v8313 = vpop.f32.mrf.mxu0
        %v8314 = vadd.f32 %v8034, %v8313
        %v8315 = vpop.f32.mrf.mxu0
        %8316 = vmatprep.mubr.bf16.mxu0 0
        %8317 = vmatmul.mubr.bf16.gmra.mxu0 %v8113
        %v8318 = vpop.f32.mrf.mxu0
        %v8319 = vadd.f32 %v8034, %v8318
        %v8320 = vpop.f32.mrf.mxu0
        %v8321 = vpop.f32.mrf.mxu0
        %v8322 = vadd.f32 %v8034, %v8321
        %v8323 = vpop.f32.mrf.mxu0
        %8324 = vmatprep.mubr.bf16.mxu0 0
        %8325 = vmatmul.mubr.bf16.gmra.mxu0 %v8114
        %v8326 = vpop.f32.mrf.mxu0
        %v8327 = vadd.f32 %v8034, %v8326
        %v8328 = vpop.f32.mrf.mxu0
        %v8329 = vpop.f32.mrf.mxu0
        %v8330 = vadd.f32 %v8034, %v8329
        %v8331 = vpop.f32.mrf.mxu0
        %8332 = vmatprep.mubr.bf16.mxu0 0
        %8333 = vmatmul.mubr.bf16.gmra.mxu0 %v8115
        %v8334 = vpop.f32.mrf.mxu0
        %v8335 = vadd.f32 %v8034, %v8334
        %v8336 = vpop.f32.mrf.mxu0
        %v8337 = vpop.f32.mrf.mxu0
        %v8338 = vadd.f32 %v8034, %v8337
        %v8339 = vpop.f32.mrf.mxu0
        %8340 = vdwg.mxu0
        %8341 = vst [vmem:[%s272] sm:$0xff] %v8215
        %8342 = vst [vmem:[%s272 + $0x8] sm:$0xff] %v8218
        %8343 = vst [vmem:[%s272 + $0x10] sm:$0xff] %v8223
        %8344 = vst [vmem:[%s272 + $0x18] sm:$0xff] %v8226
        %8345 = vst [vmem:[%s272 + $0x20] sm:$0xff] %v8231
        %8346 = vst [vmem:[%s272 + $0x28] sm:$0xff] %v8234
        %8347 = vst [vmem:[%s272 + $0x30] sm:$0xff] %v8239
        %8348 = vst [vmem:[%s272 + $0x38] sm:$0xff] %v8242
        %8349 = vst [vmem:[%s272 + $0x40] sm:$0xff] %v8247
        %8350 = vst [vmem:[%s272 + $0x48] sm:$0xff] %v8250
        %8351 = vst [vmem:[%s272 + $0x50] sm:$0xff] %v8255
        %8352 = vst [vmem:[%s272 + $0x58] sm:$0xff] %v8258
        %8353 = vst [vmem:[%s272 + $0x60] sm:$0xff] %v8263
        %8354 = vst [vmem:[%s272 + $0x68] sm:$0xff] %v8266
        %8355 = vst [vmem:[%s272 + $0x70] sm:$0xff] %v8271
        %8356 = vst [vmem:[%s272 + $0x78] sm:$0xff] %v8274
        %8357 = vst [vmem:[%s272 + $0x80] sm:$0xff] %v8279
        %8358 = vst [vmem:[%s272 + $0x88] sm:$0xff] %v8282
        %8359 = vst [vmem:[%s272 + $0x90] sm:$0xff] %v8287
        %8360 = vst [vmem:[%s272 + $0x98] sm:$0xff] %v8290
        %8361 = vst [vmem:[%s272 + $0xa0] sm:$0xff] %v8295
        %8362 = vst [vmem:[%s272 + $0xa8] sm:$0xff] %v8298
        %8363 = vst [vmem:[%s272 + $0xb0] sm:$0xff] %v8303
        %8364 = vst [vmem:[%s272 + $0xb8] sm:$0xff] %v8306
        %8365 = vst [vmem:[%s272 + $0xc0] sm:$0xff] %v8311
        %8366 = vst [vmem:[%s272 + $0xc8] sm:$0xff] %v8314
        %8367 = vst [vmem:[%s272 + $0xd0] sm:$0xff] %v8319
        %8368 = vst [vmem:[%s272 + $0xd8] sm:$0xff] %v8322
        %8369 = vst [vmem:[%s272 + $0xe0] sm:$0xff] %v8327
        %8370 = vst [vmem:[%s272 + $0xe8] sm:$0xff] %v8330
        %8371 = vst [vmem:[%s272 + $0xf0] sm:$0xff] %v8335
        %8372 = vst [vmem:[%s272 + $0xf8] sm:$0xff] %v8338
        %s8373 = sand.u32 %s141, 1
        %s8374 = scalar_lea.sflag [#allocation6], %s8373
        %s8375 = sand.u32 %s141, 1
        %s8376 = smul.addr %s8375, 256
        %s8377 = scalar_lea.vmem [#allocation10], %s8376
        // Predicated region
        $region53: #{tpu_custom_call.1} parent=39 // pred_check
          %p8378 = pneg %p151
        $region54: #{tpu_custom_call.1} parent=39 // pred_check_branch
          %8380 = sbr.rel (%p8378) target = $region56
        $region55: #{tpu_custom_call.1} parent=39 // pred_region
          %s8381 = smul.u32 4, %s23
          %s8383 = ssub.s32 4096, 4096
          %8384 = vsyncadd %s8374, %s8383
          %s8385 = smul.addr %s8381, 8
          %s8386 = smul.addr %s8385, 128
          %s8387 = scalar_lea.hbm %s5, %s8386
          %s8388 = sshll.u32 %s8377, 4
          %s8389 = int_to_ptr.vmem [resolvable:$true] %s8388
          %8394 = dma.vmem_to_hbm [thread:$0]  %s8389, 4096, %s8387, %s8374, 128, 128, 8
        $region56: #{tpu_custom_call.1} parent=39 // pred_fallthru
          _
      $region40: #{tpu_custom_call.1} parent=5 // pred_fallthru
        _
      %p8395 = scmp.le.s32.totalorder 2, %s18
      // Predicated region
      $region57: #{tpu_custom_call.1} parent=5 // pred_check
        %p8396 = pneg %p8395
      $region58: #{tpu_custom_call.1} parent=5 // pred_check_branch
        %8398 = sbr.rel (%p8396) target = $region60
      $region59: #{tpu_custom_call.1} parent=5 // pred_region
        %s8399 = ssub.s32 %s18, 2
        // Predicated region
        $region61: #{tpu_custom_call.1} parent=59 // pred_check
          %p8400 = pneg %p157
        $region62: #{tpu_custom_call.1} parent=59 // pred_check_branch
          %8402 = sbr.rel (%p8400) target = $region64
        $region63: #{tpu_custom_call.1} parent=59 // pred_region
          %s8403 = sand.u32 %s142, 1
          %s8404 = scalar_lea.sflag [#allocation6], %s8403
          %s8405 = sand.u32 %s142, 1
          %s8406 = smul.addr %s8405, 256
          %s8407 = scalar_lea.vmem [#allocation10], %s8406
          %8408 = dma.done %s8404, 4096
        $region64: #{tpu_custom_call.1} parent=59 // pred_fallthru
          _
      $region60: #{tpu_custom_call.1} parent=5 // pred_fallthru
        _
    $region6: #{tpu_custom_call.1} parent=1 // loop_footer
      %s22 = sadd.s32 1, %s18
    $region7: #{tpu_custom_call.1} parent=1 // loop_footer_branch
      %17 = sbr.rel target = $region3
    $region8: #{tpu_custom_call.1} parent=1 // loop_exit
      _
    %8409 = vsyncpa [#allocation5], 1
    %s8410 = scalar_lea.sflag [#allocation5], 1
    %8411 = vsyncpa %s8410, 1
    %8412 = vsyncpa [#allocation8], 1
    %8413 = vsyncpa [#allocation6], 1
    %s8414 = scalar_lea.sflag [#allocation6], 1
    %8415 = vsyncpa %s8414, 1

</llo_original>
